<compile_context>
chip_gen: v7x
topology: tpu7x:2x2x1
jax: 0.10.0
libtpu: 0.0.40
codegen_flags: <defaults>
</compile_context>

<pallas_src>
import functools

import jax
import jax.numpy as jnp
from jax.experimental import pallas as pl
from jax.experimental.pallas import tpu as pltpu


# ------------------------------ helpers ------------------------------------ #

def _pick_point_tile(n):
    """Largest point-tile (<=512) dividing n. 512 fits all generations' VMEM budgets."""
    for t in (512, 256, 128):
        if n % t == 0:
            return t
    return n  # small / odd N: one block per batch


# ----------------------------- Pallas kernels ------------------------------ #

def _stn_trunk_kernel(x_ref, w1_ref, b1_ref, w2_ref, b2_ref, w3_ref, b3_ref,
                      g_ref):
    """STN conv trunk 3->64->128->1024 (+ReLU), channel-major, fused max over points."""
    j = pl.program_id(1)
    x = x_ref[0]                                            # (3, tn) f32
    w1 = w1_ref[...]                                        # (64, 3) f32
    h = jnp.maximum(w1[:, 0:1] * x[0:1, :]
                    + w1[:, 1:2] * x[1:2, :]
                    + w1[:, 2:3] * x[2:3, :]
                    + b1_ref[...], 0.0)                     # (64, tn)
    h = jnp.maximum(
        jnp.dot(w2_ref[...], h.astype(jnp.bfloat16),
                preferred_element_type=jnp.float32) + b2_ref[...], 0.0)   # (128, tn)
    h = jnp.maximum(
        jnp.dot(w3_ref[...], h.astype(jnp.bfloat16),
                preferred_element_type=jnp.float32) + b3_ref[...], 0.0)   # (1024, tn)
    tile_max = jnp.max(h, axis=1, keepdims=True)            # (1024, 1) lane reduce

    @pl.when(j == 0)
    def _():
        g_ref[0] = tile_max

    @pl.when(j > 0)
    def _():
        g_ref[0] = jnp.maximum(g_ref[0], tile_max)


def _feat_trunk_kernel(t9_ref, x_ref, w1_ref, b1_ref, w2_ref, b2_ref,
                       w3_ref, b3_ref, m_ref, g_ref):
    """PointNetfeatV2 trunk with the STN 3x3 transform (I + t9) folded in-kernel.

    Channel-major: x (3, tn) -> conv1(64) -> conv2(128) -> conv3/bn3(1024, no ReLU).
    matrix1024x1024 is written directly in torch (1024, tn) layout; global max-pool
    is a lane reduction accumulated into a resident (1024, 1) output block."""
    j = pl.program_id(1)
    x = x_ref[0]                                            # (3, tn) f32
    x0, x1, x2 = x[0:1, :], x[1:2, :], x[2:3, :]
    t = t9_ref[0]                                           # (1, 9): trans = I + reshape(t, 3, 3)
    # x_trans[jj, :] = sum_k trans[k, jj] * x[k, :],  trans[k, jj] = t[3k + jj] + delta_kj
    xt0 = (t[0:1, 0:1] + 1.0) * x0 + t[0:1, 3:4] * x1 + t[0:1, 6:7] * x2
    xt1 = t[0:1, 1:2] * x0 + (t[0:1, 4:5] + 1.0) * x1 + t[0:1, 7:8] * x2
    xt2 = t[0:1, 2:3] * x0 + t[0:1, 5:6] * x1 + (t[0:1, 8:9] + 1.0) * x2

    w1 = w1_ref[...]                                        # (64, 3) f32
    h = jnp.maximum(w1[:, 0:1] * xt0 + w1[:, 1:2] * xt1 + w1[:, 2:3] * xt2
                    + b1_ref[...], 0.0)                     # (64, tn)
    h = jnp.maximum(
        jnp.dot(w2_ref[...], h.astype(jnp.bfloat16),
                preferred_element_type=jnp.float32) + b2_ref[...], 0.0)   # (128, tn)
    m = (jnp.dot(w3_ref[...], h.astype(jnp.bfloat16),
                 preferred_element_type=jnp.float32) + b3_ref[...])       # (1024, tn), no ReLU

    m_ref[0] = m                                            # torch layout, lane-dense store
    tile_max = jnp.max(m, axis=1, keepdims=True)            # (1024, 1)

    @pl.when(j == 0)
    def _():
        g_ref[0] = tile_max

    @pl.when(j > 0)
    def _():
        g_ref[0] = jnp.maximum(g_ref[0], tile_max)


def _fc_head_kernel(x_ref, w1_ref, b1_ref, w2_ref, b2_ref, w3_ref, b3_ref,
                    o_ref, *, apply_log_softmax):
    """Three-layer FC head (ReLU, ReLU, linear), optionally + log_softmax.
    Weights are bf16 (f32 accumulation); Dropout(p=0.3) is identity in eval mode."""
    h = jnp.maximum(
        jnp.dot(x_ref[...].astype(jnp.bfloat16), w1_ref[...],
                preferred_element_type=jnp.float32) + b1_ref[...], 0.0)
    h = jnp.maximum(
        jnp.dot(h.astype(jnp.bfloat16), w2_ref[...],
                preferred_element_type=jnp.float32) + b2_ref[...], 0.0)
    y = jnp.dot(h.astype(jnp.bfloat16), w3_ref[...],
                preferred_element_type=jnp.float32) + b3_ref[...]
    if apply_log_softmax:
        mx = jnp.max(y, axis=-1, keepdims=True)
        s = y - mx
        y = s - jnp.log(jnp.sum(jnp.exp(s), axis=-1, keepdims=True))
    o_ref[...] = y


# ------------------------------ thin wrappers ------------------------------ #

def stn_trunk(x_bcn, p1, p2, p3):
    """x_bcn: (B, 3, N) native torch layout -> (B, 1024, 1) STN global feature."""
    B, _, N = x_bcn.shape
    tn = _pick_point_tile(N)
    (w1, b1), (w2, b2), (w3, b3) = p1, p2, p3
    return pl.pallas_call(
        _stn_trunk_kernel,
        out_shape=jax.ShapeDtypeStruct((B, 1024, 1), jnp.float32),
        grid=(B, N // tn),
        in_specs=[
            pl.BlockSpec((1, 3, tn), lambda b, j: (b, 0, j)),
            pl.BlockSpec((64, 3), lambda b, j: (0, 0)),
            pl.BlockSpec((64, 1), lambda b, j: (0, 0)),
            pl.BlockSpec((128, 64), lambda b, j: (0, 0)),
            pl.BlockSpec((128, 1), lambda b, j: (0, 0)),
            pl.BlockSpec((1024, 128), lambda b, j: (0, 0)),
            pl.BlockSpec((1024, 1), lambda b, j: (0, 0)),
        ],
        out_specs=pl.BlockSpec((1, 1024, 1), lambda b, j: (b, 0, 0)),
        compiler_params=pltpu.CompilerParams(
            dimension_semantics=("parallel", "arbitrary")),
    )(x_bcn, w1, b1, w2, b2, w3, b3)


def feat_trunk(x_bcn, t9, p1, p2, p3):
    """x_bcn: (B, 3, N), t9: (B, 1, 9) raw STN head output (trans = I + t9).

    Returns (matrix1024x1024 (B, 1024, N) torch layout, global feature (B, 1024, 1))."""
    B, _, N = x_bcn.shape
    tn = _pick_point_tile(N)
    (w1, b1), (w2, b2), (w3, b3) = p1, p2, p3
    return pl.pallas_call(
        _feat_trunk_kernel,
        out_shape=(jax.ShapeDtypeStruct((B, 1024, N), jnp.float32),
                   jax.ShapeDtypeStruct((B, 1024, 1), jnp.float32)),
        grid=(B, N // tn),
        in_specs=[
            pl.BlockSpec((1, 1, 9), lambda b, j: (b, 0, 0)),
            pl.BlockSpec((1, 3, tn), lambda b, j: (b, 0, j)),
            pl.BlockSpec((64, 3), lambda b, j: (0, 0)),
            pl.BlockSpec((64, 1), lambda b, j: (0, 0)),
            pl.BlockSpec((128, 64), lambda b, j: (0, 0)),
            pl.BlockSpec((128, 1), lambda b, j: (0, 0)),
            pl.BlockSpec((1024, 128), lambda b, j: (0, 0)),
            pl.BlockSpec((1024, 1), lambda b, j: (0, 0)),
        ],
        out_specs=(
            pl.BlockSpec((1, 1024, tn), lambda b, j: (b, 0, j)),
            pl.BlockSpec((1, 1024, 1), lambda b, j: (b, 0, 0)),
        ),
        compiler_params=pltpu.CompilerParams(
            dimension_semantics=("parallel", "arbitrary")),
    )(t9, x_bcn, w1, b1, w2, b2, w3, b3)


def fc_head(x, p1, p2, p3, *, apply_log_softmax):
    """x: (B, Cin) f32 -> (B, Cout) f32 through three fused FC layers (all VMEM-resident)."""
    (w1, b1), (w2, b2), (w3, b3) = p1, p2, p3
    B = x.shape[0]
    k = w3.shape[1]
    vmem = pl.BlockSpec(memory_space=pltpu.MemorySpace.VMEM)
    return pl.pallas_call(
        functools.partial(_fc_head_kernel, apply_log_softmax=apply_log_softmax),
        out_shape=jax.ShapeDtypeStruct((B, k), jnp.float32),
        in_specs=[vmem] * 7,
        out_specs=vmem,
    )(x, w1, b1, w2, b2, w3, b3)


# --------------------------- parameter construction ------------------------ #

def _fold_bn(key, cin, cout, with_bn=True, eps=1e-5):
    """Conv1d(k=1)/Linear with eval-mode BatchNorm folded. Returns (W (cout,cin), b (cout,))."""
    k1, k2, k3, k4, k5, k6 = jax.random.split(key, 6)
    w = jax.random.uniform(k1, (cout, cin), jnp.float32, -0.1, 0.1)
    b = jax.random.uniform(k2, (cout,), jnp.float32, -0.1, 0.1)
    if with_bn:
        gamma = 1.0 + 0.1 * jax.random.uniform(k3, (cout,), jnp.float32, -1.0, 1.0)
        beta = 0.1 * jax.random.uniform(k4, (cout,), jnp.float32, -1.0, 1.0)
        mean = 0.1 * jax.random.uniform(k5, (cout,), jnp.float32, -1.0, 1.0)
        var = 1.0 + 0.1 * jax.random.uniform(k6, (cout,), jnp.float32, 0.0, 1.0)
        scale = gamma / jnp.sqrt(var + eps)
        w = w * scale[:, None]
        b = (b - mean) * scale + beta
    return w, b


def _conv_layer(key, cin, cout, *, w_dtype, with_bn=True):
    """Channel-major conv layer: W (cout, cin) [bf16 for MXU layers], bias (cout, 1) f32."""
    w, b = _fold_bn(key, cin, cout, with_bn)
    return w.astype(w_dtype), b.reshape(cout, 1)


def _fc_layer(key, cin, cout, *, with_bn=True):
    """Row-major FC layer: W^T (cin, cout) bf16, bias (1, cout) f32."""
    w, b = _fold_bn(key, cin, cout, with_bn)
    return w.T.astype(jnp.bfloat16), b.reshape(1, cout)


def make_params(key, k_classes=2):
    keys = jax.random.split(key, 12)
    P = {}
    # STN3d: conv 3->64->128->1024, fc 1024->512->256->9
    P["stn_c1"] = _conv_layer(keys[0], 3, 64, w_dtype=jnp.float32)       # Cin=3 layer on VPU
    P["stn_c2"] = _conv_layer(keys[1], 64, 128, w_dtype=jnp.bfloat16)
    P["stn_c3"] = _conv_layer(keys[2], 128, 1024, w_dtype=jnp.bfloat16)
    P["stn_f1"] = _fc_layer(keys[3], 1024, 512)
    P["stn_f2"] = _fc_layer(keys[4], 512, 256)
    P["stn_f3"] = _fc_layer(keys[5], 256, 9, with_bn=False)
    # PointNetfeatV2 trunk: conv 3->64->128->1024 (bn3, no relu on last)
    P["feat_c1"] = _conv_layer(keys[6], 3, 64, w_dtype=jnp.float32)
    P["feat_c2"] = _conv_layer(keys[7], 64, 128, w_dtype=jnp.bfloat16)
    P["feat_c3"] = _conv_layer(keys[8], 128, 1024, w_dtype=jnp.bfloat16)
    # Classifier head: fc 1024->512->256->k
    P["fc1"] = _fc_layer(keys[9], 1024, 512)
    P["fc2"] = _fc_layer(keys[10], 512, 256)
    P["fc3"] = _fc_layer(keys[11], 256, k_classes, with_bn=False)
    return P


# --------------------------------- forward --------------------------------- #

@jax.jit
def _forward_jit(x_bcn, P):
    B, _, N = x_bcn.shape

    # ---- STN3d: conv trunk + FC head predicting the 3x3 input transform offsets ----
    g_stn = stn_trunk(x_bcn, P["stn_c1"], P["stn_c2"], P["stn_c3"])          # (B, 1024, 1)
    t9 = fc_head(g_stn.reshape(B, 1024), P["stn_f1"], P["stn_f2"], P["stn_f3"],
                 apply_log_softmax=False)                                    # (B, 9), trans = I + t9

    # ---- PointNetfeatV2 trunk (transform + identity folded in-kernel) ----
    m, g_feat = feat_trunk(x_bcn, t9.reshape(B, 1, 9),
                           P["feat_c1"], P["feat_c2"], P["feat_c3"])
    gfeat = g_feat.reshape(B, 1024)                                          # global feature

    # ---- classifier head (dropout identity in eval) + log_softmax ----
    logp = fc_head(gfeat, P["fc1"], P["fc2"], P["fc3"], apply_log_softmax=True)
    return logp, gfeat, m


def feature_extractor_forward(x_bcn, P):
    """x_bcn: (B, 3, N) float32, as in the PyTorch module.

    Returns (log_softmax(logits), global_feat, trans_feat=None, matrix1024x1024)."""
    logp, gfeat, matrix1024x1024 = _forward_jit(x_bcn, P)
    return logp, gfeat, None, matrix1024x1024                # feature_transform=False


# ----------------------------------- main ----------------------------------- #

if __name__ == "__main__":
    key = jax.random.PRNGKey(0)
    k_in, k_param = jax.random.split(key)

    B, C, N = 2, 3, 128  # point cloud: batch=2, 3 coords, 128 points
    x = jax.random.normal(k_in, (B, C, N), dtype=jnp.float32)
    params = make_params(k_param, k_classes=2)

    logp, feat, trans_feat, matrix1024x1024 = feature_extractor_forward(x, params)
    jax.block_until_ready((logp, feat, matrix1024x1024))

    assert logp.shape == (B, 2)
    assert feat.shape == (B, 1024)
    assert trans_feat is None
    assert matrix1024x1024.shape == (B, 1024, N)
    print("KERNEL_OK")
</pallas_src>

<mosaic_0001>
module attributes {stable_mosaic.version = 11 : i64} {
  func.func @_fc_head_kernel(%arg0: memref<2x1024xf32, #tpu.memory_space<vmem>>, %arg1: memref<1024x512xbf16, #tpu.memory_space<vmem>>, %arg2: memref<1x512xf32, #tpu.memory_space<vmem>>, %arg3: memref<512x256xbf16, #tpu.memory_space<vmem>>, %arg4: memref<1x256xf32, #tpu.memory_space<vmem>>, %arg5: memref<256x9xbf16, #tpu.memory_space<vmem>>, %arg6: memref<1x9xf32, #tpu.memory_space<vmem>>, %arg7: memref<2x9xf32, #tpu.memory_space<vmem>>) attributes {dimension_semantics = [], scalar_prefetch = 0 : i64, scratch_operands = 0 : i64, tpu.core_type = #tpu.core_type<tc>} {
    %c0 = arith.constant 0 : index
    %c0_0 = arith.constant 0 : index
    %0 = vector.load %arg0[%c0, %c0_0] : memref<2x1024xf32, #tpu.memory_space<vmem>>, vector<2x1024xf32>
    %1 = arith.truncf %0 : vector<2x1024xf32> to vector<2x1024xbf16>
    %c0_1 = arith.constant 0 : index
    %c0_2 = arith.constant 0 : index
    %2 = vector.load %arg1[%c0_1, %c0_2] : memref<1024x512xbf16, #tpu.memory_space<vmem>>, vector<1024x512xbf16>
    %cst = arith.constant dense<0.000000e+00> : vector<2x512xf32>
    %3 = tpu.matmul %1, %2, %cst {dimension_numbers = #tpu.dot_dimension_numbers<[1], [0], [0], [1], [0, 0, 1, 1], [], []>} : vector<2x1024xbf16>, vector<1024x512xbf16>, vector<2x512xf32> -> vector<2x512xf32>
    %c0_3 = arith.constant 0 : index
    %c0_4 = arith.constant 0 : index
    %4 = vector.load %arg2[%c0_3, %c0_4] : memref<1x512xf32, #tpu.memory_space<vmem>>, vector<1x512xf32>
    %5 = vector.broadcast %4 : vector<1x512xf32> to vector<2x512xf32>
    %6 = arith.addf %3, %5 : vector<2x512xf32>
    %cst_5 = arith.constant 0.000000e+00 : f32
    %7 = vector.broadcast %cst_5 : f32 to vector<2x512xf32>
    %8 = arith.maximumf %6, %7 : vector<2x512xf32>
    %9 = arith.truncf %8 : vector<2x512xf32> to vector<2x512xbf16>
    %c0_6 = arith.constant 0 : index
    %c0_7 = arith.constant 0 : index
    %10 = vector.load %arg3[%c0_6, %c0_7] : memref<512x256xbf16, #tpu.memory_space<vmem>>, vector<512x256xbf16>
    %cst_8 = arith.constant dense<0.000000e+00> : vector<2x256xf32>
    %11 = tpu.matmul %9, %10, %cst_8 {dimension_numbers = #tpu.dot_dimension_numbers<[1], [0], [0], [1], [0, 0, 1, 1], [], []>} : vector<2x512xbf16>, vector<512x256xbf16>, vector<2x256xf32> -> vector<2x256xf32>
    %c0_9 = arith.constant 0 : index
    %c0_10 = arith.constant 0 : index
    %12 = vector.load %arg4[%c0_9, %c0_10] : memref<1x256xf32, #tpu.memory_space<vmem>>, vector<1x256xf32>
    %13 = vector.broadcast %12 : vector<1x256xf32> to vector<2x256xf32>
    %14 = arith.addf %11, %13 : vector<2x256xf32>
    %cst_11 = arith.constant 0.000000e+00 : f32
    %15 = vector.broadcast %cst_11 : f32 to vector<2x256xf32>
    %16 = arith.maximumf %14, %15 : vector<2x256xf32>
    %17 = arith.truncf %16 : vector<2x256xf32> to vector<2x256xbf16>
    %c0_12 = arith.constant 0 : index
    %c0_13 = arith.constant 0 : index
    %18 = vector.load %arg5[%c0_12, %c0_13] : memref<256x9xbf16, #tpu.memory_space<vmem>>, vector<256x9xbf16>
    %cst_14 = arith.constant dense<0.000000e+00> : vector<2x9xf32>
    %19 = tpu.matmul %17, %18, %cst_14 {dimension_numbers = #tpu.dot_dimension_numbers<[1], [0], [0], [1], [0, 0, 1, 1], [], []>} : vector<2x256xbf16>, vector<256x9xbf16>, vector<2x9xf32> -> vector<2x9xf32>
    %c0_15 = arith.constant 0 : index
    %c0_16 = arith.constant 0 : index
    %20 = vector.load %arg6[%c0_15, %c0_16] : memref<1x9xf32, #tpu.memory_space<vmem>>, vector<1x9xf32>
    %21 = vector.broadcast %20 : vector<1x9xf32> to vector<2x9xf32>
    %22 = arith.addf %19, %21 : vector<2x9xf32>
    %c0_17 = arith.constant 0 : index
    %c0_18 = arith.constant 0 : index
    %23 = vector.load %arg7[%c0_17, %c0_18] : memref<2x9xf32, #tpu.memory_space<vmem>>, vector<2x9xf32>
    tpu.vector_store %arg7[%c0_17, %c0_18], %22 {strides = array<i32>} : memref<2x9xf32, #tpu.memory_space<vmem>>, vector<2x9xf32>,
    return
  }
}

module attributes {stable_mosaic.version = 11 : i64} {
  func.func @_stn_trunk_kernel(%arg0: i32, %arg1: i32, %arg2: memref<1x3x128xf32, #tpu.memory_space<vmem>>, %arg3: memref<64x3xf32, #tpu.memory_space<vmem>>, %arg4: memref<64x1xf32, #tpu.memory_space<vmem>>, %arg5: memref<128x64xbf16, #tpu.memory_space<vmem>>, %arg6: memref<128x1xf32, #tpu.memory_space<vmem>>, %arg7: memref<1024x128xbf16, #tpu.memory_space<vmem>>, %arg8: memref<1024x1xf32, #tpu.memory_space<vmem>>, %arg9: memref<1x1024x1xf32, #tpu.memory_space<vmem>>) attributes {dimension_semantics = [#tpu.dimension_semantics<parallel>, #tpu.dimension_semantics<arbitrary>], iteration_bounds = array<i64: 2, 1>, scalar_prefetch = 0 : i64, scratch_operands = 0 : i64, tpu.core_type = #tpu.core_type<tc>, window_params = [{transform_indices = @transform_0, window_bounds = array<i64: 1, 3, 128>}, {pipeline_mode = #tpu.pipeline_mode<synchronous>, transform_indices = @transform_1, window_bounds = array<i64: 64, 3>}, {pipeline_mode = #tpu.pipeline_mode<synchronous>, transform_indices = @transform_2, window_bounds = array<i64: 64, 1>}, {pipeline_mode = #tpu.pipeline_mode<synchronous>, transform_indices = @transform_3, window_bounds = array<i64: 128, 64>}, {pipeline_mode = #tpu.pipeline_mode<synchronous>, transform_indices = @transform_4, window_bounds = array<i64: 128, 1>}, {pipeline_mode = #tpu.pipeline_mode<synchronous>, transform_indices = @transform_5, window_bounds = array<i64: 1024, 128>}, {pipeline_mode = #tpu.pipeline_mode<synchronous>, transform_indices = @transform_6, window_bounds = array<i64: 1024, 1>}, {transform_indices = @transform_7, window_bounds = array<i64: 1, 1024, 1>}]} {
    %c0 = arith.constant 0 : index
    %c0_0 = arith.constant 0 : index
    %c0_1 = arith.constant 0 : index
    %0 = vector.load %arg2[%c0, %c0_0, %c0_1] : memref<1x3x128xf32, #tpu.memory_space<vmem>>, vector<1x3x128xf32>
    %1 = vector.shape_cast %0 : vector<1x3x128xf32> to vector<3x128xf32>
    %c0_2 = arith.constant 0 : index
    %c0_3 = arith.constant 0 : index
    %2 = vector.load %arg3[%c0_2, %c0_3] : memref<64x3xf32, #tpu.memory_space<vmem>>, vector<64x3xf32>
    %3 = vector.extract_strided_slice %2 {offsets = [0, 0], sizes = [64, 1], strides = [1, 1]} : vector<64x3xf32> to vector<64x1xf32>
    %4 = vector.extract_strided_slice %1 {offsets = [0, 0], sizes = [1, 128], strides = [1, 1]} : vector<3x128xf32> to vector<1x128xf32>
    %5 = vector.broadcast %3 : vector<64x1xf32> to vector<64x128xf32>
    %6 = vector.broadcast %4 : vector<1x128xf32> to vector<64x128xf32>
    %7 = arith.mulf %5, %6 : vector<64x128xf32>
    %8 = vector.extract_strided_slice %2 {offsets = [0, 1], sizes = [64, 1], strides = [1, 1]} : vector<64x3xf32> to vector<64x1xf32>
    %9 = vector.extract_strided_slice %1 {offsets = [1, 0], sizes = [1, 128], strides = [1, 1]} : vector<3x128xf32> to vector<1x128xf32>
    %10 = vector.broadcast %8 : vector<64x1xf32> to vector<64x128xf32>
    %11 = vector.broadcast %9 : vector<1x128xf32> to vector<64x128xf32>
    %12 = arith.mulf %10, %11 : vector<64x128xf32>
    %13 = arith.addf %7, %12 : vector<64x128xf32>
    %14 = vector.extract_strided_slice %2 {offsets = [0, 2], sizes = [64, 1], strides = [1, 1]} : vector<64x3xf32> to vector<64x1xf32>
    %15 = vector.extract_strided_slice %1 {offsets = [2, 0], sizes = [1, 128], strides = [1, 1]} : vector<3x128xf32> to vector<1x128xf32>
    %16 = vector.broadcast %14 : vector<64x1xf32> to vector<64x128xf32>
    %17 = vector.broadcast %15 : vector<1x128xf32> to vector<64x128xf32>
    %18 = arith.mulf %16, %17 : vector<64x128xf32>
    %19 = arith.addf %13, %18 : vector<64x128xf32>
    %c0_4 = arith.constant 0 : index
    %c0_5 = arith.constant 0 : index
    %20 = vector.load %arg4[%c0_4, %c0_5] : memref<64x1xf32, #tpu.memory_space<vmem>>, vector<64x1xf32>
    %21 = vector.broadcast %20 : vector<64x1xf32> to vector<64x128xf32>
    %22 = arith.addf %19, %21 : vector<64x128xf32>
    %cst = arith.constant 0.000000e+00 : f32
    %23 = vector.broadcast %cst : f32 to vector<64x128xf32>
    %24 = arith.maximumf %22, %23 : vector<64x128xf32>
    %c0_6 = arith.constant 0 : index
    %c0_7 = arith.constant 0 : index
    %25 = vector.load %arg5[%c0_6, %c0_7] : memref<128x64xbf16, #tpu.memory_space<vmem>>, vector<128x64xbf16>
    %26 = arith.truncf %24 : vector<64x128xf32> to vector<64x128xbf16>
    %cst_8 = arith.constant dense<0.000000e+00> : vector<128x128xf32>
    %27 = tpu.matmul %25, %26, %cst_8 {dimension_numbers = #tpu.dot_dimension_numbers<[1], [0], [0], [1], [0, 0, 1, 1], [], []>} : vector<128x64xbf16>, vector<64x128xbf16>, vector<128x128xf32> -> vector<128x128xf32>
    %c0_9 = arith.constant 0 : index
    %c0_10 = arith.constant 0 : index
    %28 = vector.load %arg6[%c0_9, %c0_10] : memref<128x1xf32, #tpu.memory_space<vmem>>, vector<128x1xf32>
    %29 = vector.broadcast %28 : vector<128x1xf32> to vector<128x128xf32>
    %30 = arith.addf %27, %29 : vector<128x128xf32>
    %cst_11 = arith.constant 0.000000e+00 : f32
    %31 = vector.broadcast %cst_11 : f32 to vector<128x128xf32>
    %32 = arith.maximumf %30, %31 : vector<128x128xf32>
    %c0_12 = arith.constant 0 : index
    %c0_13 = arith.constant 0 : index
    %33 = vector.load %arg7[%c0_12, %c0_13] : memref<1024x128xbf16, #tpu.memory_space<vmem>>, vector<1024x128xbf16>
    %34 = arith.truncf %32 : vector<128x128xf32> to vector<128x128xbf16>
    %cst_14 = arith.constant dense<0.000000e+00> : vector<1024x128xf32>
    %35 = tpu.matmul %33, %34, %cst_14 {dimension_numbers = #tpu.dot_dimension_numbers<[1], [0], [0], [1], [0, 0, 1, 1], [], []>} : vector<1024x128xbf16>, vector<128x128xbf16>, vector<1024x128xf32> -> vector<1024x128xf32>
    %c0_15 = arith.constant 0 : index
    %c0_16 = arith.constant 0 : index
    %36 = vector.load %arg8[%c0_15, %c0_16] : memref<1024x1xf32, #tpu.memory_space<vmem>>, vector<1024x1xf32>
    %37 = vector.broadcast %36 : vector<1024x1xf32> to vector<1024x128xf32>
    %38 = arith.addf %35, %37 : vector<1024x128xf32>
    %cst_17 = arith.constant 0.000000e+00 : f32
    %39 = vector.broadcast %cst_17 : f32 to vector<1024x128xf32>
    %40 = arith.maximumf %38, %39 : vector<1024x128xf32>
    %cst_18 = arith.constant dense<0xFF800000> : vector<1024xf32>
    %41 = vector.multi_reduction <maximumf>, %40, %cst_18 [1] : vector<1024x128xf32> to vector<1024xf32>
    %42 = vector.shape_cast %41 : vector<1024xf32> to vector<1024x1xf32>
    %c0_i32 = arith.constant 0 : i32
    %43 = arith.cmpi eq, %arg1, %c0_i32 : i32
    %44 = arith.extui %43 : i1 to i32
    %c0_i32_19 = arith.constant 0 : i32
    %45 = arith.cmpi ne, %44, %c0_i32_19 : i32
    scf.if %45 {
      %c0_22 = arith.constant 0 : index
      %c0_23 = arith.constant 0 : index
      %c0_24 = arith.constant 0 : index
      %49 = vector.load %arg9[%c0_22, %c0_23, %c0_24] : memref<1x1024x1xf32, #tpu.memory_space<vmem>>, vector<1x1024x1xf32>
      %50 = vector.shape_cast %49 : vector<1x1024x1xf32> to vector<1024x1xf32>
      %51 = vector.shape_cast %42 : vector<1024x1xf32> to vector<1x1024x1xf32>
      tpu.vector_store %arg9[%c0_22, %c0_23, %c0_24], %51 {strides = array<i32>} : memref<1x1024x1xf32, #tpu.memory_space<vmem>>, vector<1x1024x1xf32>,
    } else {
    }
    %c0_i32_20 = arith.constant 0 : i32
    %46 = arith.cmpi sgt, %arg1, %c0_i32_20 : i32
    %47 = arith.extui %46 : i1 to i32
    %c0_i32_21 = arith.constant 0 : i32
    %48 = arith.cmpi ne, %47, %c0_i32_21 : i32
    scf.if %48 {
      %c0_22 = arith.constant 0 : index
      %c0_23 = arith.constant 0 : index
      %c0_24 = arith.constant 0 : index
      %49 = vector.load %arg9[%c0_22, %c0_23, %c0_24] : memref<1x1024x1xf32, #tpu.memory_space<vmem>>, vector<1x1024x1xf32>
      %50 = vector.shape_cast %49 : vector<1x1024x1xf32> to vector<1024x1xf32>
      %51 = arith.maximumf %50, %42 : vector<1024x1xf32>
      %c0_25 = arith.constant 0 : index
      %c0_26 = arith.constant 0 : index
      %c0_27 = arith.constant 0 : index
      %52 = vector.load %arg9[%c0_25, %c0_26, %c0_27] : memref<1x1024x1xf32, #tpu.memory_space<vmem>>, vector<1x1024x1xf32>
      %53 = vector.shape_cast %52 : vector<1x1024x1xf32> to vector<1024x1xf32>
      %54 = vector.shape_cast %51 : vector<1024x1xf32> to vector<1x1024x1xf32>
      tpu.vector_store %arg9[%c0_25, %c0_26, %c0_27], %54 {strides = array<i32>} : memref<1x1024x1xf32, #tpu.memory_space<vmem>>, vector<1x1024x1xf32>,
    } else {
    }
    return
  }
  func.func @transform_0(%arg0: i32, %arg1: i32) -> (i32, i32, i32) {
    %c0_i32 = arith.constant 0 : i32
    %c0_i32_0 = arith.constant 0 : i32
    return %arg0, %c0_i32, %arg1 : i32, i32, i32
  }
  func.func @transform_1(%arg0: i32, %arg1: i32) -> (i32, i32) {
    %c0_i32 = arith.constant 0 : i32
    %c0_i32_0 = arith.constant 0 : i32
    %c0_i32_1 = arith.constant 0 : i32
    return %c0_i32, %c0_i32_0 : i32, i32
  }
  func.func @transform_2(%arg0: i32, %arg1: i32) -> (i32, i32) {
    %c0_i32 = arith.constant 0 : i32
    %c0_i32_0 = arith.constant 0 : i32
    %c0_i32_1 = arith.constant 0 : i32
    return %c0_i32, %c0_i32_0 : i32, i32
  }
  func.func @transform_3(%arg0: i32, %arg1: i32) -> (i32, i32) {
    %c0_i32 = arith.constant 0 : i32
    %c0_i32_0 = arith.constant 0 : i32
    %c0_i32_1 = arith.constant 0 : i32
    return %c0_i32, %c0_i32_0 : i32, i32
  }
  func.func @transform_4(%arg0: i32, %arg1: i32) -> (i32, i32) {
    %c0_i32 = arith.constant 0 : i32
    %c0_i32_0 = arith.constant 0 : i32
    %c0_i32_1 = arith.constant 0 : i32
    return %c0_i32, %c0_i32_0 : i32, i32
  }
  func.func @transform_5(%arg0: i32, %arg1: i32) -> (i32, i32) {
    %c0_i32 = arith.constant 0 : i32
    %c0_i32_0 = arith.constant 0 : i32
    %c0_i32_1 = arith.constant 0 : i32
    return %c0_i32, %c0_i32_0 : i32, i32
  }
  func.func @transform_6(%arg0: i32, %arg1: i32) -> (i32, i32) {
    %c0_i32 = arith.constant 0 : i32
    %c0_i32_0 = arith.constant 0 : i32
    %c0_i32_1 = arith.constant 0 : i32
    return %c0_i32, %c0_i32_0 : i32, i32
  }
  func.func @transform_7(%arg0: i32, %arg1: i32) -> (i32, i32, i32) {
    %c0_i32 = arith.constant 0 : i32
    %c0_i32_0 = arith.constant 0 : i32
    %c0_i32_1 = arith.constant 0 : i32
    return %arg0, %c0_i32, %c0_i32_0 : i32, i32, i32
  }
}

module attributes {stable_mosaic.version = 11 : i64} {
  func.func @_feat_trunk_kernel(%arg0: i32, %arg1: i32, %arg2: memref<1x1x9xf32, #tpu.memory_space<vmem>>, %arg3: memref<1x3x128xf32, #tpu.memory_space<vmem>>, %arg4: memref<64x3xf32, #tpu.memory_space<vmem>>, %arg5: memref<64x1xf32, #tpu.memory_space<vmem>>, %arg6: memref<128x64xbf16, #tpu.memory_space<vmem>>, %arg7: memref<128x1xf32, #tpu.memory_space<vmem>>, %arg8: memref<1024x128xbf16, #tpu.memory_space<vmem>>, %arg9: memref<1024x1xf32, #tpu.memory_space<vmem>>, %arg10: memref<1x1024x128xf32, #tpu.memory_space<vmem>>, %arg11: memref<1x1024x1xf32, #tpu.memory_space<vmem>>) attributes {dimension_semantics = [#tpu.dimension_semantics<parallel>, #tpu.dimension_semantics<arbitrary>], iteration_bounds = array<i64: 2, 1>, scalar_prefetch = 0 : i64, scratch_operands = 0 : i64, tpu.core_type = #tpu.core_type<tc>, window_params = [{transform_indices = @transform_0, window_bounds = array<i64: 1, 1, 9>}, {transform_indices = @transform_1, window_bounds = array<i64: 1, 3, 128>}, {pipeline_mode = #tpu.pipeline_mode<synchronous>, transform_indices = @transform_2, window_bounds = array<i64: 64, 3>}, {pipeline_mode = #tpu.pipeline_mode<synchronous>, transform_indices = @transform_3, window_bounds = array<i64: 64, 1>}, {pipeline_mode = #tpu.pipeline_mode<synchronous>, transform_indices = @transform_4, window_bounds = array<i64: 128, 64>}, {pipeline_mode = #tpu.pipeline_mode<synchronous>, transform_indices = @transform_5, window_bounds = array<i64: 128, 1>}, {pipeline_mode = #tpu.pipeline_mode<synchronous>, transform_indices = @transform_6, window_bounds = array<i64: 1024, 128>}, {pipeline_mode = #tpu.pipeline_mode<synchronous>, transform_indices = @transform_7, window_bounds = array<i64: 1024, 1>}, {transform_indices = @transform_8, window_bounds = array<i64: 1, 1024, 128>}, {transform_indices = @transform_9, window_bounds = array<i64: 1, 1024, 1>}]} {
    %c0 = arith.constant 0 : index
    %c0_0 = arith.constant 0 : index
    %c0_1 = arith.constant 0 : index
    %0 = vector.load %arg3[%c0, %c0_0, %c0_1] : memref<1x3x128xf32, #tpu.memory_space<vmem>>, vector<1x3x128xf32>
    %1 = vector.shape_cast %0 : vector<1x3x128xf32> to vector<3x128xf32>
    %2 = vector.extract_strided_slice %1 {offsets = [0, 0], sizes = [1, 128], strides = [1, 1]} : vector<3x128xf32> to vector<1x128xf32>
    %3 = vector.extract_strided_slice %1 {offsets = [1, 0], sizes = [1, 128], strides = [1, 1]} : vector<3x128xf32> to vector<1x128xf32>
    %4 = vector.extract_strided_slice %1 {offsets = [2, 0], sizes = [1, 128], strides = [1, 1]} : vector<3x128xf32> to vector<1x128xf32>
    %c0_2 = arith.constant 0 : index
    %c0_3 = arith.constant 0 : index
    %c0_4 = arith.constant 0 : index
    %5 = vector.load %arg2[%c0_2, %c0_3, %c0_4] : memref<1x1x9xf32, #tpu.memory_space<vmem>>, vector<1x1x9xf32>
    %6 = vector.shape_cast %5 : vector<1x1x9xf32> to vector<1x9xf32>
    %7 = vector.extract_strided_slice %6 {offsets = [0, 0], sizes = [1, 1], strides = [1, 1]} : vector<1x9xf32> to vector<1x1xf32>
    %cst = arith.constant 1.000000e+00 : f32
    %8 = vector.broadcast %cst : f32 to vector<1x1xf32>
    %9 = arith.addf %7, %8 : vector<1x1xf32>
    %10 = vector.broadcast %9 : vector<1x1xf32> to vector<1x128xf32>
    %11 = arith.mulf %10, %2 : vector<1x128xf32>
    %12 = vector.extract_strided_slice %6 {offsets = [0, 3], sizes = [1, 1], strides = [1, 1]} : vector<1x9xf32> to vector<1x1xf32>
    %13 = vector.broadcast %12 : vector<1x1xf32> to vector<1x128xf32>
    %14 = arith.mulf %13, %3 : vector<1x128xf32>
    %15 = arith.addf %11, %14 : vector<1x128xf32>
    %16 = vector.extract_strided_slice %6 {offsets = [0, 6], sizes = [1, 1], strides = [1, 1]} : vector<1x9xf32> to vector<1x1xf32>
    %17 = vector.broadcast %16 : vector<1x1xf32> to vector<1x128xf32>
    %18 = arith.mulf %17, %4 : vector<1x128xf32>
    %19 = arith.addf %15, %18 : vector<1x128xf32>
    %20 = vector.extract_strided_slice %6 {offsets = [0, 1], sizes = [1, 1], strides = [1, 1]} : vector<1x9xf32> to vector<1x1xf32>
    %21 = vector.broadcast %20 : vector<1x1xf32> to vector<1x128xf32>
    %22 = arith.mulf %21, %2 : vector<1x128xf32>
    %23 = vector.extract_strided_slice %6 {offsets = [0, 4], sizes = [1, 1], strides = [1, 1]} : vector<1x9xf32> to vector<1x1xf32>
    %cst_5 = arith.constant 1.000000e+00 : f32
    %24 = vector.broadcast %cst_5 : f32 to vector<1x1xf32>
    %25 = arith.addf %23, %24 : vector<1x1xf32>
    %26 = vector.broadcast %25 : vector<1x1xf32> to vector<1x128xf32>
    %27 = arith.mulf %26, %3 : vector<1x128xf32>
    %28 = arith.addf %22, %27 : vector<1x128xf32>
    %29 = vector.extract_strided_slice %6 {offsets = [0, 7], sizes = [1, 1], strides = [1, 1]} : vector<1x9xf32> to vector<1x1xf32>
    %30 = vector.broadcast %29 : vector<1x1xf32> to vector<1x128xf32>
    %31 = arith.mulf %30, %4 : vector<1x128xf32>
    %32 = arith.addf %28, %31 : vector<1x128xf32>
    %33 = vector.extract_strided_slice %6 {offsets = [0, 2], sizes = [1, 1], strides = [1, 1]} : vector<1x9xf32> to vector<1x1xf32>
    %34 = vector.broadcast %33 : vector<1x1xf32> to vector<1x128xf32>
    %35 = arith.mulf %34, %2 : vector<1x128xf32>
    %36 = vector.extract_strided_slice %6 {offsets = [0, 5], sizes = [1, 1], strides = [1, 1]} : vector<1x9xf32> to vector<1x1xf32>
    %37 = vector.broadcast %36 : vector<1x1xf32> to vector<1x128xf32>
    %38 = arith.mulf %37, %3 : vector<1x128xf32>
    %39 = arith.addf %35, %38 : vector<1x128xf32>
    %40 = vector.extract_strided_slice %6 {offsets = [0, 8], sizes = [1, 1], strides = [1, 1]} : vector<1x9xf32> to vector<1x1xf32>
    %cst_6 = arith.constant 1.000000e+00 : f32
    %41 = vector.broadcast %cst_6 : f32 to vector<1x1xf32>
    %42 = arith.addf %40, %41 : vector<1x1xf32>
    %43 = vector.broadcast %42 : vector<1x1xf32> to vector<1x128xf32>
    %44 = arith.mulf %43, %4 : vector<1x128xf32>
    %45 = arith.addf %39, %44 : vector<1x128xf32>
    %c0_7 = arith.constant 0 : index
    %c0_8 = arith.constant 0 : index
    %46 = vector.load %arg4[%c0_7, %c0_8] : memref<64x3xf32, #tpu.memory_space<vmem>>, vector<64x3xf32>
    %47 = vector.extract_strided_slice %46 {offsets = [0, 0], sizes = [64, 1], strides = [1, 1]} : vector<64x3xf32> to vector<64x1xf32>
    %48 = vector.broadcast %47 : vector<64x1xf32> to vector<64x128xf32>
    %49 = vector.broadcast %19 : vector<1x128xf32> to vector<64x128xf32>
    %50 = arith.mulf %48, %49 : vector<64x128xf32>
    %51 = vector.extract_strided_slice %46 {offsets = [0, 1], sizes = [64, 1], strides = [1, 1]} : vector<64x3xf32> to vector<64x1xf32>
    %52 = vector.broadcast %51 : vector<64x1xf32> to vector<64x128xf32>
    %53 = vector.broadcast %32 : vector<1x128xf32> to vector<64x128xf32>
    %54 = arith.mulf %52, %53 : vector<64x128xf32>
    %55 = arith.addf %50, %54 : vector<64x128xf32>
    %56 = vector.extract_strided_slice %46 {offsets = [0, 2], sizes = [64, 1], strides = [1, 1]} : vector<64x3xf32> to vector<64x1xf32>
    %57 = vector.broadcast %56 : vector<64x1xf32> to vector<64x128xf32>
    %58 = vector.broadcast %45 : vector<1x128xf32> to vector<64x128xf32>
    %59 = arith.mulf %57, %58 : vector<64x128xf32>
    %60 = arith.addf %55, %59 : vector<64x128xf32>
    %c0_9 = arith.constant 0 : index
    %c0_10 = arith.constant 0 : index
    %61 = vector.load %arg5[%c0_9, %c0_10] : memref<64x1xf32, #tpu.memory_space<vmem>>, vector<64x1xf32>
    %62 = vector.broadcast %61 : vector<64x1xf32> to vector<64x128xf32>
    %63 = arith.addf %60, %62 : vector<64x128xf32>
    %cst_11 = arith.constant 0.000000e+00 : f32
    %64 = vector.broadcast %cst_11 : f32 to vector<64x128xf32>
    %65 = arith.maximumf %63, %64 : vector<64x128xf32>
    %c0_12 = arith.constant 0 : index
    %c0_13 = arith.constant 0 : index
    %66 = vector.load %arg6[%c0_12, %c0_13] : memref<128x64xbf16, #tpu.memory_space<vmem>>, vector<128x64xbf16>
    %67 = arith.truncf %65 : vector<64x128xf32> to vector<64x128xbf16>
    %cst_14 = arith.constant dense<0.000000e+00> : vector<128x128xf32>
    %68 = tpu.matmul %66, %67, %cst_14 {dimension_numbers = #tpu.dot_dimension_numbers<[1], [0], [0], [1], [0, 0, 1, 1], [], []>} : vector<128x64xbf16>, vector<64x128xbf16>, vector<128x128xf32> -> vector<128x128xf32>
    %c0_15 = arith.constant 0 : index
    %c0_16 = arith.constant 0 : index
    %69 = vector.load %arg7[%c0_15, %c0_16] : memref<128x1xf32, #tpu.memory_space<vmem>>, vector<128x1xf32>
    %70 = vector.broadcast %69 : vector<128x1xf32> to vector<128x128xf32>
    %71 = arith.addf %68, %70 : vector<128x128xf32>
    %cst_17 = arith.constant 0.000000e+00 : f32
    %72 = vector.broadcast %cst_17 : f32 to vector<128x128xf32>
    %73 = arith.maximumf %71, %72 : vector<128x128xf32>
    %c0_18 = arith.constant 0 : index
    %c0_19 = arith.constant 0 : index
    %74 = vector.load %arg8[%c0_18, %c0_19] : memref<1024x128xbf16, #tpu.memory_space<vmem>>, vector<1024x128xbf16>
    %75 = arith.truncf %73 : vector<128x128xf32> to vector<128x128xbf16>
    %cst_20 = arith.constant dense<0.000000e+00> : vector<1024x128xf32>
    %76 = tpu.matmul %74, %75, %cst_20 {dimension_numbers = #tpu.dot_dimension_numbers<[1], [0], [0], [1], [0, 0, 1, 1], [], []>} : vector<1024x128xbf16>, vector<128x128xbf16>, vector<1024x128xf32> -> vector<1024x128xf32>
    %c0_21 = arith.constant 0 : index
    %c0_22 = arith.constant 0 : index
    %77 = vector.load %arg9[%c0_21, %c0_22] : memref<1024x1xf32, #tpu.memory_space<vmem>>, vector<1024x1xf32>
    %78 = vector.broadcast %77 : vector<1024x1xf32> to vector<1024x128xf32>
    %79 = arith.addf %76, %78 : vector<1024x128xf32>
    %c0_23 = arith.constant 0 : index
    %c0_24 = arith.constant 0 : index
    %c0_25 = arith.constant 0 : index
    %80 = vector.load %arg10[%c0_23, %c0_24, %c0_25] : memref<1x1024x128xf32, #tpu.memory_space<vmem>>, vector<1x1024x128xf32>
    %81 = vector.shape_cast %80 : vector<1x1024x128xf32> to vector<1024x128xf32>
    %82 = vector.shape_cast %79 : vector<1024x128xf32> to vector<1x1024x128xf32>
    tpu.vector_store %arg10[%c0_23, %c0_24, %c0_25], %82 {strides = array<i32>} : memref<1x1024x128xf32, #tpu.memory_space<vmem>>, vector<1x1024x128xf32>,
    %cst_26 = arith.constant dense<0xFF800000> : vector<1024xf32>
    %83 = vector.multi_reduction <maximumf>, %79, %cst_26 [1] : vector<1024x128xf32> to vector<1024xf32>
    %84 = vector.shape_cast %83 : vector<1024xf32> to vector<1024x1xf32>
    %c0_i32 = arith.constant 0 : i32
    %85 = arith.cmpi eq, %arg1, %c0_i32 : i32
    %86 = arith.extui %85 : i1 to i32
    %c0_i32_27 = arith.constant 0 : i32
    %87 = arith.cmpi ne, %86, %c0_i32_27 : i32
    scf.if %87 {
      %c0_30 = arith.constant 0 : index
      %c0_31 = arith.constant 0 : index
      %c0_32 = arith.constant 0 : index
      %91 = vector.load %arg11[%c0_30, %c0_31, %c0_32] : memref<1x1024x1xf32, #tpu.memory_space<vmem>>, vector<1x1024x1xf32>
      %92 = vector.shape_cast %91 : vector<1x1024x1xf32> to vector<1024x1xf32>
      %93 = vector.shape_cast %84 : vector<1024x1xf32> to vector<1x1024x1xf32>
      tpu.vector_store %arg11[%c0_30, %c0_31, %c0_32], %93 {strides = array<i32>} : memref<1x1024x1xf32, #tpu.memory_space<vmem>>, vector<1x1024x1xf32>,
    } else {
    }
    %c0_i32_28 = arith.constant 0 : i32
    %88 = arith.cmpi sgt, %arg1, %c0_i32_28 : i32
    %89 = arith.extui %88 : i1 to i32
    %c0_i32_29 = arith.constant 0 : i32
    %90 = arith.cmpi ne, %89, %c0_i32_29 : i32
    scf.if %90 {
      %c0_30 = arith.constant 0 : index
      %c0_31 = arith.constant 0 : index
      %c0_32 = arith.constant 0 : index
      %91 = vector.load %arg11[%c0_30, %c0_31, %c0_32] : memref<1x1024x1xf32, #tpu.memory_space<vmem>>, vector<1x1024x1xf32>
      %92 = vector.shape_cast %91 : vector<1x1024x1xf32> to vector<1024x1xf32>
      %93 = arith.maximumf %92, %84 : vector<1024x1xf32>
      %c0_33 = arith.constant 0 : index
      %c0_34 = arith.constant 0 : index
      %c0_35 = arith.constant 0 : index
      %94 = vector.load %arg11[%c0_33, %c0_34, %c0_35] : memref<1x1024x1xf32, #tpu.memory_space<vmem>>, vector<1x1024x1xf32>
      %95 = vector.shape_cast %94 : vector<1x1024x1xf32> to vector<1024x1xf32>
      %96 = vector.shape_cast %93 : vector<1024x1xf32> to vector<1x1024x1xf32>
      tpu.vector_store %arg11[%c0_33, %c0_34, %c0_35], %96 {strides = array<i32>} : memref<1x1024x1xf32, #tpu.memory_space<vmem>>, vector<1x1024x1xf32>,
    } else {
    }
    return
  }
  func.func @transform_0(%arg0: i32, %arg1: i32) -> (i32, i32, i32) {
    %c0_i32 = arith.constant 0 : i32
    %c0_i32_0 = arith.constant 0 : i32
    %c0_i32_1 = arith.constant 0 : i32
    return %arg0, %c0_i32, %c0_i32_0 : i32, i32, i32
  }
  func.func @transform_1(%arg0: i32, %arg1: i32) -> (i32, i32, i32) {
    %c0_i32 = arith.constant 0 : i32
    %c0_i32_0 = arith.constant 0 : i32
    return %arg0, %c0_i32, %arg1 : i32, i32, i32
  }
  func.func @transform_2(%arg0: i32, %arg1: i32) -> (i32, i32) {
    %c0_i32 = arith.constant 0 : i32
    %c0_i32_0 = arith.constant 0 : i32
    %c0_i32_1 = arith.constant 0 : i32
    return %c0_i32, %c0_i32_0 : i32, i32
  }
  func.func @transform_3(%arg0: i32, %arg1: i32) -> (i32, i32) {
    %c0_i32 = arith.constant 0 : i32
    %c0_i32_0 = arith.constant 0 : i32
    %c0_i32_1 = arith.constant 0 : i32
    return %c0_i32, %c0_i32_0 : i32, i32
  }
  func.func @transform_4(%arg0: i32, %arg1: i32) -> (i32, i32) {
    %c0_i32 = arith.constant 0 : i32
    %c0_i32_0 = arith.constant 0 : i32
    %c0_i32_1 = arith.constant 0 : i32
    return %c0_i32, %c0_i32_0 : i32, i32
  }
  func.func @transform_5(%arg0: i32, %arg1: i32) -> (i32, i32) {
    %c0_i32 = arith.constant 0 : i32
    %c0_i32_0 = arith.constant 0 : i32
    %c0_i32_1 = arith.constant 0 : i32
    return %c0_i32, %c0_i32_0 : i32, i32
  }
  func.func @transform_6(%arg0: i32, %arg1: i32) -> (i32, i32) {
    %c0_i32 = arith.constant 0 : i32
    %c0_i32_0 = arith.constant 0 : i32
    %c0_i32_1 = arith.constant 0 : i32
    return %c0_i32, %c0_i32_0 : i32, i32
  }
  func.func @transform_7(%arg0: i32, %arg1: i32) -> (i32, i32) {
    %c0_i32 = arith.constant 0 : i32
    %c0_i32_0 = arith.constant 0 : i32
    %c0_i32_1 = arith.constant 0 : i32
    return %c0_i32, %c0_i32_0 : i32, i32
  }
  func.func @transform_8(%arg0: i32, %arg1: i32) -> (i32, i32, i32) {
    %c0_i32 = arith.constant 0 : i32
    %c0_i32_0 = arith.constant 0 : i32
    return %arg0, %c0_i32, %arg1 : i32, i32, i32
  }
  func.func @transform_9(%arg0: i32, %arg1: i32) -> (i32, i32, i32) {
    %c0_i32 = arith.constant 0 : i32
    %c0_i32_0 = arith.constant 0 : i32
    %c0_i32_1 = arith.constant 0 : i32
    return %arg0, %c0_i32, %c0_i32_0 : i32, i32, i32
  }
}

module attributes {stable_mosaic.version = 11 : i64} {
  func.func @_fc_head_kernel(%arg0: memref<2x1024xf32, #tpu.memory_space<vmem>>, %arg1: memref<1024x512xbf16, #tpu.memory_space<vmem>>, %arg2: memref<1x512xf32, #tpu.memory_space<vmem>>, %arg3: memref<512x256xbf16, #tpu.memory_space<vmem>>, %arg4: memref<1x256xf32, #tpu.memory_space<vmem>>, %arg5: memref<256x2xbf16, #tpu.memory_space<vmem>>, %arg6: memref<1x2xf32, #tpu.memory_space<vmem>>, %arg7: memref<2x2xf32, #tpu.memory_space<vmem>>) attributes {dimension_semantics = [], scalar_prefetch = 0 : i64, scratch_operands = 0 : i64, tpu.core_type = #tpu.core_type<tc>} {
    %c0 = arith.constant 0 : index
    %c0_0 = arith.constant 0 : index
    %0 = vector.load %arg0[%c0, %c0_0] : memref<2x1024xf32, #tpu.memory_space<vmem>>, vector<2x1024xf32>
    %1 = arith.truncf %0 : vector<2x1024xf32> to vector<2x1024xbf16>
    %c0_1 = arith.constant 0 : index
    %c0_2 = arith.constant 0 : index
    %2 = vector.load %arg1[%c0_1, %c0_2] : memref<1024x512xbf16, #tpu.memory_space<vmem>>, vector<1024x512xbf16>
    %cst = arith.constant dense<0.000000e+00> : vector<2x512xf32>
    %3 = tpu.matmul %1, %2, %cst {dimension_numbers = #tpu.dot_dimension_numbers<[1], [0], [0], [1], [0, 0, 1, 1], [], []>} : vector<2x1024xbf16>, vector<1024x512xbf16>, vector<2x512xf32> -> vector<2x512xf32>
    %c0_3 = arith.constant 0 : index
    %c0_4 = arith.constant 0 : index
    %4 = vector.load %arg2[%c0_3, %c0_4] : memref<1x512xf32, #tpu.memory_space<vmem>>, vector<1x512xf32>
    %5 = vector.broadcast %4 : vector<1x512xf32> to vector<2x512xf32>
    %6 = arith.addf %3, %5 : vector<2x512xf32>
    %cst_5 = arith.constant 0.000000e+00 : f32
    %7 = vector.broadcast %cst_5 : f32 to vector<2x512xf32>
    %8 = arith.maximumf %6, %7 : vector<2x512xf32>
    %9 = arith.truncf %8 : vector<2x512xf32> to vector<2x512xbf16>
    %c0_6 = arith.constant 0 : index
    %c0_7 = arith.constant 0 : index
    %10 = vector.load %arg3[%c0_6, %c0_7] : memref<512x256xbf16, #tpu.memory_space<vmem>>, vector<512x256xbf16>
    %cst_8 = arith.constant dense<0.000000e+00> : vector<2x256xf32>
    %11 = tpu.matmul %9, %10, %cst_8 {dimension_numbers = #tpu.dot_dimension_numbers<[1], [0], [0], [1], [0, 0, 1, 1], [], []>} : vector<2x512xbf16>, vector<512x256xbf16>, vector<2x256xf32> -> vector<2x256xf32>
    %c0_9 = arith.constant 0 : index
    %c0_10 = arith.constant 0 : index
    %12 = vector.load %arg4[%c0_9, %c0_10] : memref<1x256xf32, #tpu.memory_space<vmem>>, vector<1x256xf32>
    %13 = vector.broadcast %12 : vector<1x256xf32> to vector<2x256xf32>
    %14 = arith.addf %11, %13 : vector<2x256xf32>
    %cst_11 = arith.constant 0.000000e+00 : f32
    %15 = vector.broadcast %cst_11 : f32 to vector<2x256xf32>
    %16 = arith.maximumf %14, %15 : vector<2x256xf32>
    %17 = arith.truncf %16 : vector<2x256xf32> to vector<2x256xbf16>
    %c0_12 = arith.constant 0 : index
    %c0_13 = arith.constant 0 : index
    %18 = vector.load %arg5[%c0_12, %c0_13] : memref<256x2xbf16, #tpu.memory_space<vmem>>, vector<256x2xbf16>
    %cst_14 = arith.constant dense<0.000000e+00> : vector<2x2xf32>
    %19 = tpu.matmul %17, %18, %cst_14 {dimension_numbers = #tpu.dot_dimension_numbers<[1], [0], [0], [1], [0, 0, 1, 1], [], []>} : vector<2x256xbf16>, vector<256x2xbf16>, vector<2x2xf32> -> vector<2x2xf32>
    %c0_15 = arith.constant 0 : index
    %c0_16 = arith.constant 0 : index
    %20 = vector.load %arg6[%c0_15, %c0_16] : memref<1x2xf32, #tpu.memory_space<vmem>>, vector<1x2xf32>
    %21 = vector.broadcast %20 : vector<1x2xf32> to vector<2x2xf32>
    %22 = arith.addf %19, %21 : vector<2x2xf32>
    %cst_17 = arith.constant dense<0xFF800000> : vector<2xf32>
    %23 = vector.multi_reduction <maximumf>, %22, %cst_17 [1] : vector<2x2xf32> to vector<2xf32>
    %24 = vector.shape_cast %23 : vector<2xf32> to vector<2x1xf32>
    %25 = vector.broadcast %24 : vector<2x1xf32> to vector<2x2xf32>
    %26 = arith.subf %22, %25 : vector<2x2xf32>
    %27 = math.exp %26 : vector<2x2xf32>
    %cst_18 = arith.constant dense<0.000000e+00> : vector<2xf32>
    %28 = vector.multi_reduction <add>, %27, %cst_18 [1] : vector<2x2xf32> to vector<2xf32>
    %29 = vector.shape_cast %28 : vector<2xf32> to vector<2x1xf32>
    %30 = math.log %29 : vector<2x1xf32>
    %31 = vector.broadcast %30 : vector<2x1xf32> to vector<2x2xf32>
    %32 = arith.subf %26, %31 : vector<2x2xf32>
    %c0_19 = arith.constant 0 : index
    %c0_20 = arith.constant 0 : index
    %33 = vector.load %arg7[%c0_19, %c0_20] : memref<2x2xf32, #tpu.memory_space<vmem>>, vector<2x2xf32>
    tpu.vector_store %arg7[%c0_19, %c0_20], %32 {strides = array<i32>} : memref<2x2xf32, #tpu.memory_space<vmem>>, vector<2x2xf32>,
    return
  }
}

</mosaic_0001>

<llo_original>
// kernel: _forward_jit.5
$region0: #{_forward_jit.5}
  #allocation0 [shape = 'u32[]', space=smem, size = 0x4, offset = 0x4, fixed_abs, tag = 'smem constant byte address 0x4 - core index']
  #allocation1 [shape = 'u32[144,128]{1,0:T(1,128)}', space=vmem, size = 0x12000, scoped, tag = 'internal scratch']
  %s0 = inlined_call_operand.vmem [shape: f32[2,1024], index: 0, kind: input, shape index: {}]
  %s1 = inlined_call_operand.vmem [shape: bf16[1024,512], index: 1, kind: input, shape index: {}]
  %s2 = inlined_call_operand.vmem [shape: f32[1,512], index: 2, kind: input, shape index: {}]
  %s3 = inlined_call_operand.vmem [shape: bf16[512,256], index: 3, kind: input, shape index: {}]
  %s4 = inlined_call_operand.vmem [shape: f32[1,256], index: 4, kind: input, shape index: {}]
  %s5 = inlined_call_operand.vmem [shape: bf16[256,9], index: 5, kind: input, shape index: {}]
  %s6 = inlined_call_operand.vmem [shape: f32[1,9], index: 6, kind: input, shape index: {}]
  %s7 = inlined_call_operand.vmem [shape: f32[2,9], index: 7, kind: output, shape index: {}]
  %s8 = sld [smem:[#allocation0]]
  $region38: #{_forward_jit.5} parent=0
    _
  %s10 = ssub.s32 1, %s8
  %s11 = scalar_select 0, %s10, %s8
  // Predicated region
  $region2: #{_forward_jit.5} parent=0 // pred_check
    _
  $region3: #{_forward_jit.5} parent=0 // pred_check_branch
    %13 = sbr.rel (0) target = $region5
  $region4: #{_forward_jit.5} parent=0 // pred_region
    _
  $region5: #{_forward_jit.5} parent=0 // pred_fallthru
    _
  // Predicated region
  $region6: #{_forward_jit.5} parent=0 // pred_check
    _
  $region7: #{_forward_jit.5} parent=0 // pred_check_branch
    %15 = sbr.rel (0) target = $region9
  $region8: #{_forward_jit.5} parent=0 // pred_region
    _
  $region9: #{_forward_jit.5} parent=0 // pred_fallthru
    _
  // Predicated region
  $region10: #{_forward_jit.5} parent=0 // pred_check
    _
  $region11: #{_forward_jit.5} parent=0 // pred_check_branch
    %17 = sbr.rel (0) target = $region13
  $region12: #{_forward_jit.5} parent=0 // pred_region
    _
  $region13: #{_forward_jit.5} parent=0 // pred_fallthru
    _
  // Predicated region
  $region14: #{_forward_jit.5} parent=0 // pred_check
    _
  $region15: #{_forward_jit.5} parent=0 // pred_check_branch
    %19 = sbr.rel (0) target = $region17
  $region16: #{_forward_jit.5} parent=0 // pred_region
    _
  $region17: #{_forward_jit.5} parent=0 // pred_fallthru
    _
  // Predicated region
  $region18: #{_forward_jit.5} parent=0 // pred_check
    _
  $region19: #{_forward_jit.5} parent=0 // pred_check_branch
    %21 = sbr.rel (0) target = $region21
  $region20: #{_forward_jit.5} parent=0 // pred_region
    _
  $region21: #{_forward_jit.5} parent=0 // pred_fallthru
    _
  // Predicated region
  $region22: #{_forward_jit.5} parent=0 // pred_check
    _
  $region23: #{_forward_jit.5} parent=0 // pred_check_branch
    %23 = sbr.rel (0) target = $region25
  $region24: #{_forward_jit.5} parent=0 // pred_region
    _
  $region25: #{_forward_jit.5} parent=0 // pred_fallthru
    _
  // Predicated region
  $region26: #{_forward_jit.5} parent=0 // pred_check
    _
  $region27: #{_forward_jit.5} parent=0 // pred_check_branch
    %25 = sbr.rel (0) target = $region29
  $region28: #{_forward_jit.5} parent=0 // pred_region
    _
  $region29: #{_forward_jit.5} parent=0 // pred_fallthru
    _
  %v27 = vld [vmem:[%s0] sm:$0xff]
  %v28 = vld [vmem:[%s0 + $0x8] sm:$0xff]
  %v31 = vcombine.high %v27, %v27
  %v33 = vunpack.c.l.s4 1983009808
  %v34 = vunpack.c.0.s8 %v33
  %v35 = vlaneseq
  %v36 = vshrl.u32 %v35, 7
  %v37 = vsub.s32 %v34, %v36
  %v38 = vrot.slane %v27, %v37
  %v40 = vunpack.c.l.s4 1983009808
  %v41 = vunpack.c.0.s8 %v40
  %v42 = vlaneseq
  %v43 = vshrl.u32 %v42, 7
  %v44 = vsub.s32 %v41, %v43
  %v45 = vrot.slane %v31, %v44
  %v46 = vcombine.high %v38, %v38
  %v47 = vcombine.high %v45, %v45
  %v48 = vcombine.high %v28, %v28
  %v50 = vunpack.c.l.s4 1983009808
  %v51 = vunpack.c.0.s8 %v50
  %v52 = vlaneseq
  %v53 = vshrl.u32 %v52, 7
  %v54 = vsub.s32 %v51, %v53
  %v55 = vrot.slane %v28, %v54
  %v57 = vunpack.c.l.s4 1983009808
  %v58 = vunpack.c.0.s8 %v57
  %v59 = vlaneseq
  %v60 = vshrl.u32 %v59, 7
  %v61 = vsub.s32 %v58, %v60
  %v62 = vrot.slane %v48, %v61
  %v63 = vcombine.high %v55, %v55
  %v64 = vcombine.high %v62, %v62
  %v73 = vpack.c.bf16 %v38, %v38
  %v74 = vpack.c.bf16 %v46, %v46
  %v75 = vpack.c.bf16 %v45, %v45
  %v76 = vpack.c.bf16 %v47, %v47
  %v77 = vpack.c.bf16 %v55, %v55
  %v78 = vpack.c.bf16 %v63, %v63
  %v79 = vpack.c.bf16 %v62, %v62
  %v80 = vpack.c.bf16 %v64, %v64
  %v81 = vld [vmem:[%s1] sm:$0xff]
  %v82 = vld [vmem:[%s1 + $0x8] sm:$0xff]
  %v83 = vld [vmem:[%s1 + $0x10] sm:$0xff]
  %v84 = vld [vmem:[%s1 + $0x18] sm:$0xff]
  %v85 = vld [vmem:[%s1 + $0x20] sm:$0xff]
  %v86 = vld [vmem:[%s1 + $0x28] sm:$0xff]
  %v87 = vld [vmem:[%s1 + $0x30] sm:$0xff]
  %v88 = vld [vmem:[%s1 + $0x38] sm:$0xff]
  %v89 = vld [vmem:[%s1 + $0x40] sm:$0xff]
  %v90 = vld [vmem:[%s1 + $0x48] sm:$0xff]
  %v91 = vld [vmem:[%s1 + $0x50] sm:$0xff]
  %v92 = vld [vmem:[%s1 + $0x58] sm:$0xff]
  %v93 = vld [vmem:[%s1 + $0x60] sm:$0xff]
  %v94 = vld [vmem:[%s1 + $0x68] sm:$0xff]
  %v95 = vld [vmem:[%s1 + $0x70] sm:$0xff]
  %v96 = vld [vmem:[%s1 + $0x78] sm:$0xff]
  %v97 = vld [vmem:[%s1 + $0x80] sm:$0xff]
  %v98 = vld [vmem:[%s1 + $0x88] sm:$0xff]
  %v99 = vld [vmem:[%s1 + $0x90] sm:$0xff]
  %v100 = vld [vmem:[%s1 + $0x98] sm:$0xff]
  %v101 = vld [vmem:[%s1 + $0xa0] sm:$0xff]
  %v102 = vld [vmem:[%s1 + $0xa8] sm:$0xff]
  %v103 = vld [vmem:[%s1 + $0xb0] sm:$0xff]
  %v104 = vld [vmem:[%s1 + $0xb8] sm:$0xff]
  %v105 = vld [vmem:[%s1 + $0xc0] sm:$0xff]
  %v106 = vld [vmem:[%s1 + $0xc8] sm:$0xff]
  %v107 = vld [vmem:[%s1 + $0xd0] sm:$0xff]
  %v108 = vld [vmem:[%s1 + $0xd8] sm:$0xff]
  %v109 = vld [vmem:[%s1 + $0xe0] sm:$0xff]
  %v110 = vld [vmem:[%s1 + $0xe8] sm:$0xff]
  %v111 = vld [vmem:[%s1 + $0xf0] sm:$0xff]
  %v112 = vld [vmem:[%s1 + $0xf8] sm:$0xff]
  %v113 = vld [vmem:[%s1 + $0x100] sm:$0xff]
  %v114 = vld [vmem:[%s1 + $0x108] sm:$0xff]
  %v115 = vld [vmem:[%s1 + $0x110] sm:$0xff]
  %v116 = vld [vmem:[%s1 + $0x118] sm:$0xff]
  %v117 = vld [vmem:[%s1 + $0x120] sm:$0xff]
  %v118 = vld [vmem:[%s1 + $0x128] sm:$0xff]
  %v119 = vld [vmem:[%s1 + $0x130] sm:$0xff]
  %v120 = vld [vmem:[%s1 + $0x138] sm:$0xff]
  %v121 = vld [vmem:[%s1 + $0x140] sm:$0xff]
  %v122 = vld [vmem:[%s1 + $0x148] sm:$0xff]
  %v123 = vld [vmem:[%s1 + $0x150] sm:$0xff]
  %v124 = vld [vmem:[%s1 + $0x158] sm:$0xff]
  %v125 = vld [vmem:[%s1 + $0x160] sm:$0xff]
  %v126 = vld [vmem:[%s1 + $0x168] sm:$0xff]
  %v127 = vld [vmem:[%s1 + $0x170] sm:$0xff]
  %v128 = vld [vmem:[%s1 + $0x178] sm:$0xff]
  %v129 = vld [vmem:[%s1 + $0x180] sm:$0xff]
  %v130 = vld [vmem:[%s1 + $0x188] sm:$0xff]
  %v131 = vld [vmem:[%s1 + $0x190] sm:$0xff]
  %v132 = vld [vmem:[%s1 + $0x198] sm:$0xff]
  %v133 = vld [vmem:[%s1 + $0x1a0] sm:$0xff]
  %v134 = vld [vmem:[%s1 + $0x1a8] sm:$0xff]
  %v135 = vld [vmem:[%s1 + $0x1b0] sm:$0xff]
  %v136 = vld [vmem:[%s1 + $0x1b8] sm:$0xff]
  %v137 = vld [vmem:[%s1 + $0x1c0] sm:$0xff]
  %v138 = vld [vmem:[%s1 + $0x1c8] sm:$0xff]
  %v139 = vld [vmem:[%s1 + $0x1d0] sm:$0xff]
  %v140 = vld [vmem:[%s1 + $0x1d8] sm:$0xff]
  %v141 = vld [vmem:[%s1 + $0x1e0] sm:$0xff]
  %v142 = vld [vmem:[%s1 + $0x1e8] sm:$0xff]
  %v143 = vld [vmem:[%s1 + $0x1f0] sm:$0xff]
  %v144 = vld [vmem:[%s1 + $0x1f8] sm:$0xff]
  %v145 = vld [vmem:[%s1 + $0x200] sm:$0xff]
  %v146 = vld [vmem:[%s1 + $0x208] sm:$0xff]
  %v147 = vld [vmem:[%s1 + $0x210] sm:$0xff]
  %v148 = vld [vmem:[%s1 + $0x218] sm:$0xff]
  %v149 = vld [vmem:[%s1 + $0x220] sm:$0xff]
  %v150 = vld [vmem:[%s1 + $0x228] sm:$0xff]
  %v151 = vld [vmem:[%s1 + $0x230] sm:$0xff]
  %v152 = vld [vmem:[%s1 + $0x238] sm:$0xff]
  %v153 = vld [vmem:[%s1 + $0x240] sm:$0xff]
  %v154 = vld [vmem:[%s1 + $0x248] sm:$0xff]
  %v155 = vld [vmem:[%s1 + $0x250] sm:$0xff]
  %v156 = vld [vmem:[%s1 + $0x258] sm:$0xff]
  %v157 = vld [vmem:[%s1 + $0x260] sm:$0xff]
  %v158 = vld [vmem:[%s1 + $0x268] sm:$0xff]
  %v159 = vld [vmem:[%s1 + $0x270] sm:$0xff]
  %v160 = vld [vmem:[%s1 + $0x278] sm:$0xff]
  %v161 = vld [vmem:[%s1 + $0x280] sm:$0xff]
  %v162 = vld [vmem:[%s1 + $0x288] sm:$0xff]
  %v163 = vld [vmem:[%s1 + $0x290] sm:$0xff]
  %v164 = vld [vmem:[%s1 + $0x298] sm:$0xff]
  %v165 = vld [vmem:[%s1 + $0x2a0] sm:$0xff]
  %v166 = vld [vmem:[%s1 + $0x2a8] sm:$0xff]
  %v167 = vld [vmem:[%s1 + $0x2b0] sm:$0xff]
  %v168 = vld [vmem:[%s1 + $0x2b8] sm:$0xff]
  %v169 = vld [vmem:[%s1 + $0x2c0] sm:$0xff]
  %v170 = vld [vmem:[%s1 + $0x2c8] sm:$0xff]
  %v171 = vld [vmem:[%s1 + $0x2d0] sm:$0xff]
  %v172 = vld [vmem:[%s1 + $0x2d8] sm:$0xff]
  %v173 = vld [vmem:[%s1 + $0x2e0] sm:$0xff]
  %v174 = vld [vmem:[%s1 + $0x2e8] sm:$0xff]
  %v175 = vld [vmem:[%s1 + $0x2f0] sm:$0xff]
  %v176 = vld [vmem:[%s1 + $0x2f8] sm:$0xff]
  %v177 = vld [vmem:[%s1 + $0x300] sm:$0xff]
  %v178 = vld [vmem:[%s1 + $0x308] sm:$0xff]
  %v179 = vld [vmem:[%s1 + $0x310] sm:$0xff]
  %v180 = vld [vmem:[%s1 + $0x318] sm:$0xff]
  %v181 = vld [vmem:[%s1 + $0x320] sm:$0xff]
  %v182 = vld [vmem:[%s1 + $0x328] sm:$0xff]
  %v183 = vld [vmem:[%s1 + $0x330] sm:$0xff]
  %v184 = vld [vmem:[%s1 + $0x338] sm:$0xff]
  %v185 = vld [vmem:[%s1 + $0x340] sm:$0xff]
  %v186 = vld [vmem:[%s1 + $0x348] sm:$0xff]
  %v187 = vld [vmem:[%s1 + $0x350] sm:$0xff]
  %v188 = vld [vmem:[%s1 + $0x358] sm:$0xff]
  %v189 = vld [vmem:[%s1 + $0x360] sm:$0xff]
  %v190 = vld [vmem:[%s1 + $0x368] sm:$0xff]
  %v191 = vld [vmem:[%s1 + $0x370] sm:$0xff]
  %v192 = vld [vmem:[%s1 + $0x378] sm:$0xff]
  %v193 = vld [vmem:[%s1 + $0x380] sm:$0xff]
  %v194 = vld [vmem:[%s1 + $0x388] sm:$0xff]
  %v195 = vld [vmem:[%s1 + $0x390] sm:$0xff]
  %v196 = vld [vmem:[%s1 + $0x398] sm:$0xff]
  %v197 = vld [vmem:[%s1 + $0x3a0] sm:$0xff]
  %v198 = vld [vmem:[%s1 + $0x3a8] sm:$0xff]
  %v199 = vld [vmem:[%s1 + $0x3b0] sm:$0xff]
  %v200 = vld [vmem:[%s1 + $0x3b8] sm:$0xff]
  %v201 = vld [vmem:[%s1 + $0x3c0] sm:$0xff]
  %v202 = vld [vmem:[%s1 + $0x3c8] sm:$0xff]
  %v203 = vld [vmem:[%s1 + $0x3d0] sm:$0xff]
  %v204 = vld [vmem:[%s1 + $0x3d8] sm:$0xff]
  %v205 = vld [vmem:[%s1 + $0x3e0] sm:$0xff]
  %v206 = vld [vmem:[%s1 + $0x3e8] sm:$0xff]
  %v207 = vld [vmem:[%s1 + $0x3f0] sm:$0xff]
  %v208 = vld [vmem:[%s1 + $0x3f8] sm:$0xff]
  %v209 = vld [vmem:[%s1 + $0x400] sm:$0xff]
  %v210 = vld [vmem:[%s1 + $0x408] sm:$0xff]
  %v211 = vld [vmem:[%s1 + $0x410] sm:$0xff]
  %v212 = vld [vmem:[%s1 + $0x418] sm:$0xff]
  %v213 = vld [vmem:[%s1 + $0x420] sm:$0xff]
  %v214 = vld [vmem:[%s1 + $0x428] sm:$0xff]
  %v215 = vld [vmem:[%s1 + $0x430] sm:$0xff]
  %v216 = vld [vmem:[%s1 + $0x438] sm:$0xff]
  %v217 = vld [vmem:[%s1 + $0x440] sm:$0xff]
  %v218 = vld [vmem:[%s1 + $0x448] sm:$0xff]
  %v219 = vld [vmem:[%s1 + $0x450] sm:$0xff]
  %v220 = vld [vmem:[%s1 + $0x458] sm:$0xff]
  %v221 = vld [vmem:[%s1 + $0x460] sm:$0xff]
  %v222 = vld [vmem:[%s1 + $0x468] sm:$0xff]
  %v223 = vld [vmem:[%s1 + $0x470] sm:$0xff]
  %v224 = vld [vmem:[%s1 + $0x478] sm:$0xff]
  %v225 = vld [vmem:[%s1 + $0x480] sm:$0xff]
  %v226 = vld [vmem:[%s1 + $0x488] sm:$0xff]
  %v227 = vld [vmem:[%s1 + $0x490] sm:$0xff]
  %v228 = vld [vmem:[%s1 + $0x498] sm:$0xff]
  %v229 = vld [vmem:[%s1 + $0x4a0] sm:$0xff]
  %v230 = vld [vmem:[%s1 + $0x4a8] sm:$0xff]
  %v231 = vld [vmem:[%s1 + $0x4b0] sm:$0xff]
  %v232 = vld [vmem:[%s1 + $0x4b8] sm:$0xff]
  %v233 = vld [vmem:[%s1 + $0x4c0] sm:$0xff]
  %v234 = vld [vmem:[%s1 + $0x4c8] sm:$0xff]
  %v235 = vld [vmem:[%s1 + $0x4d0] sm:$0xff]
  %v236 = vld [vmem:[%s1 + $0x4d8] sm:$0xff]
  %v237 = vld [vmem:[%s1 + $0x4e0] sm:$0xff]
  %v238 = vld [vmem:[%s1 + $0x4e8] sm:$0xff]
  %v239 = vld [vmem:[%s1 + $0x4f0] sm:$0xff]
  %v240 = vld [vmem:[%s1 + $0x4f8] sm:$0xff]
  %v241 = vld [vmem:[%s1 + $0x500] sm:$0xff]
  %v242 = vld [vmem:[%s1 + $0x508] sm:$0xff]
  %v243 = vld [vmem:[%s1 + $0x510] sm:$0xff]
  %v244 = vld [vmem:[%s1 + $0x518] sm:$0xff]
  %v245 = vld [vmem:[%s1 + $0x520] sm:$0xff]
  %v246 = vld [vmem:[%s1 + $0x528] sm:$0xff]
  %v247 = vld [vmem:[%s1 + $0x530] sm:$0xff]
  %v248 = vld [vmem:[%s1 + $0x538] sm:$0xff]
  %v249 = vld [vmem:[%s1 + $0x540] sm:$0xff]
  %v250 = vld [vmem:[%s1 + $0x548] sm:$0xff]
  %v251 = vld [vmem:[%s1 + $0x550] sm:$0xff]
  %v252 = vld [vmem:[%s1 + $0x558] sm:$0xff]
  %v253 = vld [vmem:[%s1 + $0x560] sm:$0xff]
  %v254 = vld [vmem:[%s1 + $0x568] sm:$0xff]
  %v255 = vld [vmem:[%s1 + $0x570] sm:$0xff]
  %v256 = vld [vmem:[%s1 + $0x578] sm:$0xff]
  %v257 = vld [vmem:[%s1 + $0x580] sm:$0xff]
  %v258 = vld [vmem:[%s1 + $0x588] sm:$0xff]
  %v259 = vld [vmem:[%s1 + $0x590] sm:$0xff]
  %v260 = vld [vmem:[%s1 + $0x598] sm:$0xff]
  %v261 = vld [vmem:[%s1 + $0x5a0] sm:$0xff]
  %v262 = vld [vmem:[%s1 + $0x5a8] sm:$0xff]
  %v263 = vld [vmem:[%s1 + $0x5b0] sm:$0xff]
  %v264 = vld [vmem:[%s1 + $0x5b8] sm:$0xff]
  %v265 = vld [vmem:[%s1 + $0x5c0] sm:$0xff]
  %v266 = vld [vmem:[%s1 + $0x5c8] sm:$0xff]
  %v267 = vld [vmem:[%s1 + $0x5d0] sm:$0xff]
  %v268 = vld [vmem:[%s1 + $0x5d8] sm:$0xff]
  %v269 = vld [vmem:[%s1 + $0x5e0] sm:$0xff]
  %v270 = vld [vmem:[%s1 + $0x5e8] sm:$0xff]
  %v271 = vld [vmem:[%s1 + $0x5f0] sm:$0xff]
  %v272 = vld [vmem:[%s1 + $0x5f8] sm:$0xff]
  %v273 = vld [vmem:[%s1 + $0x600] sm:$0xff]
  %v274 = vld [vmem:[%s1 + $0x608] sm:$0xff]
  %v275 = vld [vmem:[%s1 + $0x610] sm:$0xff]
  %v276 = vld [vmem:[%s1 + $0x618] sm:$0xff]
  %v277 = vld [vmem:[%s1 + $0x620] sm:$0xff]
  %v278 = vld [vmem:[%s1 + $0x628] sm:$0xff]
  %v279 = vld [vmem:[%s1 + $0x630] sm:$0xff]
  %v280 = vld [vmem:[%s1 + $0x638] sm:$0xff]
  %v281 = vld [vmem:[%s1 + $0x640] sm:$0xff]
  %v282 = vld [vmem:[%s1 + $0x648] sm:$0xff]
  %v283 = vld [vmem:[%s1 + $0x650] sm:$0xff]
  %v284 = vld [vmem:[%s1 + $0x658] sm:$0xff]
  %v285 = vld [vmem:[%s1 + $0x660] sm:$0xff]
  %v286 = vld [vmem:[%s1 + $0x668] sm:$0xff]
  %v287 = vld [vmem:[%s1 + $0x670] sm:$0xff]
  %v288 = vld [vmem:[%s1 + $0x678] sm:$0xff]
  %v289 = vld [vmem:[%s1 + $0x680] sm:$0xff]
  %v290 = vld [vmem:[%s1 + $0x688] sm:$0xff]
  %v291 = vld [vmem:[%s1 + $0x690] sm:$0xff]
  %v292 = vld [vmem:[%s1 + $0x698] sm:$0xff]
  %v293 = vld [vmem:[%s1 + $0x6a0] sm:$0xff]
  %v294 = vld [vmem:[%s1 + $0x6a8] sm:$0xff]
  %v295 = vld [vmem:[%s1 + $0x6b0] sm:$0xff]
  %v296 = vld [vmem:[%s1 + $0x6b8] sm:$0xff]
  %v297 = vld [vmem:[%s1 + $0x6c0] sm:$0xff]
  %v298 = vld [vmem:[%s1 + $0x6c8] sm:$0xff]
  %v299 = vld [vmem:[%s1 + $0x6d0] sm:$0xff]
  %v300 = vld [vmem:[%s1 + $0x6d8] sm:$0xff]
  %v301 = vld [vmem:[%s1 + $0x6e0] sm:$0xff]
  %v302 = vld [vmem:[%s1 + $0x6e8] sm:$0xff]
  %v303 = vld [vmem:[%s1 + $0x6f0] sm:$0xff]
  %v304 = vld [vmem:[%s1 + $0x6f8] sm:$0xff]
  %v305 = vld [vmem:[%s1 + $0x700] sm:$0xff]
  %v306 = vld [vmem:[%s1 + $0x708] sm:$0xff]
  %v307 = vld [vmem:[%s1 + $0x710] sm:$0xff]
  %v308 = vld [vmem:[%s1 + $0x718] sm:$0xff]
  %v309 = vld [vmem:[%s1 + $0x720] sm:$0xff]
  %v310 = vld [vmem:[%s1 + $0x728] sm:$0xff]
  %v311 = vld [vmem:[%s1 + $0x730] sm:$0xff]
  %v312 = vld [vmem:[%s1 + $0x738] sm:$0xff]
  %v313 = vld [vmem:[%s1 + $0x740] sm:$0xff]
  %v314 = vld [vmem:[%s1 + $0x748] sm:$0xff]
  %v315 = vld [vmem:[%s1 + $0x750] sm:$0xff]
  %v316 = vld [vmem:[%s1 + $0x758] sm:$0xff]
  %v317 = vld [vmem:[%s1 + $0x760] sm:$0xff]
  %v318 = vld [vmem:[%s1 + $0x768] sm:$0xff]
  %v319 = vld [vmem:[%s1 + $0x770] sm:$0xff]
  %v320 = vld [vmem:[%s1 + $0x778] sm:$0xff]
  %v321 = vld [vmem:[%s1 + $0x780] sm:$0xff]
  %v322 = vld [vmem:[%s1 + $0x788] sm:$0xff]
  %v323 = vld [vmem:[%s1 + $0x790] sm:$0xff]
  %v324 = vld [vmem:[%s1 + $0x798] sm:$0xff]
  %v325 = vld [vmem:[%s1 + $0x7a0] sm:$0xff]
  %v326 = vld [vmem:[%s1 + $0x7a8] sm:$0xff]
  %v327 = vld [vmem:[%s1 + $0x7b0] sm:$0xff]
  %v328 = vld [vmem:[%s1 + $0x7b8] sm:$0xff]
  %v329 = vld [vmem:[%s1 + $0x7c0] sm:$0xff]
  %v330 = vld [vmem:[%s1 + $0x7c8] sm:$0xff]
  %v331 = vld [vmem:[%s1 + $0x7d0] sm:$0xff]
  %v332 = vld [vmem:[%s1 + $0x7d8] sm:$0xff]
  %v333 = vld [vmem:[%s1 + $0x7e0] sm:$0xff]
  %v334 = vld [vmem:[%s1 + $0x7e8] sm:$0xff]
  %v335 = vld [vmem:[%s1 + $0x7f0] sm:$0xff]
  %v336 = vld [vmem:[%s1 + $0x7f8] sm:$0xff]
  %v337 = vld [vmem:[%s2] sm:$0xf]
  %v339 = vlaneseq
  %v340 = vshrl.u32 %v339, 7
  %v341 = vsub.s32 0, %v340
  %v342 = vrot.slane %v337, %v341
  %v343 = vlaneseq
  %v344 = vshrl.u32 %v343, 7
  %v345 = vsub.s32 1, %v344
  %v346 = vrot.slane %v337, %v345
  %v347 = vlaneseq
  %v348 = vshrl.u32 %v347, 7
  %v349 = vsub.s32 2, %v348
  %v350 = vrot.slane %v337, %v349
  %v351 = vlaneseq
  %v352 = vshrl.u32 %v351, 7
  %v353 = vsub.s32 3, %v352
  %v354 = vrot.slane %v337, %v353
  %v615 = vunpack.c.l.b16 %v81
  %v616 = vunpack.c.h.b16 %v81
  %v617 = vunpack.c.l.b16 %v82
  %v618 = vunpack.c.h.b16 %v82
  %v619 = vunpack.c.l.b16 %v83
  %v620 = vunpack.c.h.b16 %v83
  %v621 = vunpack.c.l.b16 %v84
  %v622 = vunpack.c.h.b16 %v84
  %v623 = vunpack.c.l.b16 %v85
  %v624 = vunpack.c.h.b16 %v85
  %v625 = vunpack.c.l.b16 %v86
  %v626 = vunpack.c.h.b16 %v86
  %v627 = vunpack.c.l.b16 %v87
  %v628 = vunpack.c.h.b16 %v87
  %v629 = vunpack.c.l.b16 %v88
  %v630 = vunpack.c.h.b16 %v88
  %v631 = vunpack.c.l.b16 %v89
  %v632 = vunpack.c.h.b16 %v89
  %v633 = vunpack.c.l.b16 %v90
  %v634 = vunpack.c.h.b16 %v90
  %v635 = vunpack.c.l.b16 %v91
  %v636 = vunpack.c.h.b16 %v91
  %v637 = vunpack.c.l.b16 %v92
  %v638 = vunpack.c.h.b16 %v92
  %v639 = vunpack.c.l.b16 %v93
  %v640 = vunpack.c.h.b16 %v93
  %v641 = vunpack.c.l.b16 %v94
  %v642 = vunpack.c.h.b16 %v94
  %v643 = vunpack.c.l.b16 %v95
  %v644 = vunpack.c.h.b16 %v95
  %v645 = vunpack.c.l.b16 %v96
  %v646 = vunpack.c.h.b16 %v96
  %v647 = vunpack.c.l.b16 %v97
  %v648 = vunpack.c.h.b16 %v97
  %v649 = vunpack.c.l.b16 %v98
  %v650 = vunpack.c.h.b16 %v98
  %v651 = vunpack.c.l.b16 %v99
  %v652 = vunpack.c.h.b16 %v99
  %v653 = vunpack.c.l.b16 %v100
  %v654 = vunpack.c.h.b16 %v100
  %v655 = vunpack.c.l.b16 %v101
  %v656 = vunpack.c.h.b16 %v101
  %v657 = vunpack.c.l.b16 %v102
  %v658 = vunpack.c.h.b16 %v102
  %v659 = vunpack.c.l.b16 %v103
  %v660 = vunpack.c.h.b16 %v103
  %v661 = vunpack.c.l.b16 %v104
  %v662 = vunpack.c.h.b16 %v104
  %v663 = vunpack.c.l.b16 %v105
  %v664 = vunpack.c.h.b16 %v105
  %v665 = vunpack.c.l.b16 %v106
  %v666 = vunpack.c.h.b16 %v106
  %v667 = vunpack.c.l.b16 %v107
  %v668 = vunpack.c.h.b16 %v107
  %v669 = vunpack.c.l.b16 %v108
  %v670 = vunpack.c.h.b16 %v108
  %v671 = vunpack.c.l.b16 %v109
  %v672 = vunpack.c.h.b16 %v109
  %v673 = vunpack.c.l.b16 %v110
  %v674 = vunpack.c.h.b16 %v110
  %v675 = vunpack.c.l.b16 %v111
  %v676 = vunpack.c.h.b16 %v111
  %v677 = vunpack.c.l.b16 %v112
  %v678 = vunpack.c.h.b16 %v112
  %v679 = vunpack.c.l.b16 %v113
  %v680 = vunpack.c.h.b16 %v113
  %v681 = vunpack.c.l.b16 %v114
  %v682 = vunpack.c.h.b16 %v114
  %v683 = vunpack.c.l.b16 %v115
  %v684 = vunpack.c.h.b16 %v115
  %v685 = vunpack.c.l.b16 %v116
  %v686 = vunpack.c.h.b16 %v116
  %v687 = vunpack.c.l.b16 %v117
  %v688 = vunpack.c.h.b16 %v117
  %v689 = vunpack.c.l.b16 %v118
  %v690 = vunpack.c.h.b16 %v118
  %v691 = vunpack.c.l.b16 %v119
  %v692 = vunpack.c.h.b16 %v119
  %v693 = vunpack.c.l.b16 %v120
  %v694 = vunpack.c.h.b16 %v120
  %v695 = vunpack.c.l.b16 %v121
  %v696 = vunpack.c.h.b16 %v121
  %v697 = vunpack.c.l.b16 %v122
  %v698 = vunpack.c.h.b16 %v122
  %v699 = vunpack.c.l.b16 %v123
  %v700 = vunpack.c.h.b16 %v123
  %v701 = vunpack.c.l.b16 %v124
  %v702 = vunpack.c.h.b16 %v124
  %v703 = vunpack.c.l.b16 %v125
  %v704 = vunpack.c.h.b16 %v125
  %v705 = vunpack.c.l.b16 %v126
  %v706 = vunpack.c.h.b16 %v126
  %v707 = vunpack.c.l.b16 %v127
  %v708 = vunpack.c.h.b16 %v127
  %v709 = vunpack.c.l.b16 %v128
  %v710 = vunpack.c.h.b16 %v128
  %v711 = vunpack.c.l.b16 %v129
  %v712 = vunpack.c.h.b16 %v129
  %v713 = vunpack.c.l.b16 %v130
  %v714 = vunpack.c.h.b16 %v130
  %v715 = vunpack.c.l.b16 %v131
  %v716 = vunpack.c.h.b16 %v131
  %v717 = vunpack.c.l.b16 %v132
  %v718 = vunpack.c.h.b16 %v132
  %v719 = vunpack.c.l.b16 %v133
  %v720 = vunpack.c.h.b16 %v133
  %v721 = vunpack.c.l.b16 %v134
  %v722 = vunpack.c.h.b16 %v134
  %v723 = vunpack.c.l.b16 %v135
  %v724 = vunpack.c.h.b16 %v135
  %v725 = vunpack.c.l.b16 %v136
  %v726 = vunpack.c.h.b16 %v136
  %v727 = vunpack.c.l.b16 %v137
  %v728 = vunpack.c.h.b16 %v137
  %v729 = vunpack.c.l.b16 %v138
  %v730 = vunpack.c.h.b16 %v138
  %v731 = vunpack.c.l.b16 %v139
  %v732 = vunpack.c.h.b16 %v139
  %v733 = vunpack.c.l.b16 %v140
  %v734 = vunpack.c.h.b16 %v140
  %v735 = vunpack.c.l.b16 %v141
  %v736 = vunpack.c.h.b16 %v141
  %v737 = vunpack.c.l.b16 %v142
  %v738 = vunpack.c.h.b16 %v142
  %v739 = vunpack.c.l.b16 %v143
  %v740 = vunpack.c.h.b16 %v143
  %v741 = vunpack.c.l.b16 %v144
  %v742 = vunpack.c.h.b16 %v144
  %v743 = vunpack.c.l.b16 %v145
  %v744 = vunpack.c.h.b16 %v145
  %v745 = vunpack.c.l.b16 %v146
  %v746 = vunpack.c.h.b16 %v146
  %v747 = vunpack.c.l.b16 %v147
  %v748 = vunpack.c.h.b16 %v147
  %v749 = vunpack.c.l.b16 %v148
  %v750 = vunpack.c.h.b16 %v148
  %v751 = vunpack.c.l.b16 %v149
  %v752 = vunpack.c.h.b16 %v149
  %v753 = vunpack.c.l.b16 %v150
  %v754 = vunpack.c.h.b16 %v150
  %v755 = vunpack.c.l.b16 %v151
  %v756 = vunpack.c.h.b16 %v151
  %v757 = vunpack.c.l.b16 %v152
  %v758 = vunpack.c.h.b16 %v152
  %v759 = vunpack.c.l.b16 %v153
  %v760 = vunpack.c.h.b16 %v153
  %v761 = vunpack.c.l.b16 %v154
  %v762 = vunpack.c.h.b16 %v154
  %v763 = vunpack.c.l.b16 %v155
  %v764 = vunpack.c.h.b16 %v155
  %v765 = vunpack.c.l.b16 %v156
  %v766 = vunpack.c.h.b16 %v156
  %v767 = vunpack.c.l.b16 %v157
  %v768 = vunpack.c.h.b16 %v157
  %v769 = vunpack.c.l.b16 %v158
  %v770 = vunpack.c.h.b16 %v158
  %v771 = vunpack.c.l.b16 %v159
  %v772 = vunpack.c.h.b16 %v159
  %v773 = vunpack.c.l.b16 %v160
  %v774 = vunpack.c.h.b16 %v160
  %v775 = vunpack.c.l.b16 %v161
  %v776 = vunpack.c.h.b16 %v161
  %v777 = vunpack.c.l.b16 %v162
  %v778 = vunpack.c.h.b16 %v162
  %v779 = vunpack.c.l.b16 %v163
  %v780 = vunpack.c.h.b16 %v163
  %v781 = vunpack.c.l.b16 %v164
  %v782 = vunpack.c.h.b16 %v164
  %v783 = vunpack.c.l.b16 %v165
  %v784 = vunpack.c.h.b16 %v165
  %v785 = vunpack.c.l.b16 %v166
  %v786 = vunpack.c.h.b16 %v166
  %v787 = vunpack.c.l.b16 %v167
  %v788 = vunpack.c.h.b16 %v167
  %v789 = vunpack.c.l.b16 %v168
  %v790 = vunpack.c.h.b16 %v168
  %v791 = vunpack.c.l.b16 %v169
  %v792 = vunpack.c.h.b16 %v169
  %v793 = vunpack.c.l.b16 %v170
  %v794 = vunpack.c.h.b16 %v170
  %v795 = vunpack.c.l.b16 %v171
  %v796 = vunpack.c.h.b16 %v171
  %v797 = vunpack.c.l.b16 %v172
  %v798 = vunpack.c.h.b16 %v172
  %v799 = vunpack.c.l.b16 %v173
  %v800 = vunpack.c.h.b16 %v173
  %v801 = vunpack.c.l.b16 %v174
  %v802 = vunpack.c.h.b16 %v174
  %v803 = vunpack.c.l.b16 %v175
  %v804 = vunpack.c.h.b16 %v175
  %v805 = vunpack.c.l.b16 %v176
  %v806 = vunpack.c.h.b16 %v176
  %v807 = vunpack.c.l.b16 %v177
  %v808 = vunpack.c.h.b16 %v177
  %v809 = vunpack.c.l.b16 %v178
  %v810 = vunpack.c.h.b16 %v178
  %v811 = vunpack.c.l.b16 %v179
  %v812 = vunpack.c.h.b16 %v179
  %v813 = vunpack.c.l.b16 %v180
  %v814 = vunpack.c.h.b16 %v180
  %v815 = vunpack.c.l.b16 %v181
  %v816 = vunpack.c.h.b16 %v181
  %v817 = vunpack.c.l.b16 %v182
  %v818 = vunpack.c.h.b16 %v182
  %v819 = vunpack.c.l.b16 %v183
  %v820 = vunpack.c.h.b16 %v183
  %v821 = vunpack.c.l.b16 %v184
  %v822 = vunpack.c.h.b16 %v184
  %v823 = vunpack.c.l.b16 %v185
  %v824 = vunpack.c.h.b16 %v185
  %v825 = vunpack.c.l.b16 %v186
  %v826 = vunpack.c.h.b16 %v186
  %v827 = vunpack.c.l.b16 %v187
  %v828 = vunpack.c.h.b16 %v187
  %v829 = vunpack.c.l.b16 %v188
  %v830 = vunpack.c.h.b16 %v188
  %v831 = vunpack.c.l.b16 %v189
  %v832 = vunpack.c.h.b16 %v189
  %v833 = vunpack.c.l.b16 %v190
  %v834 = vunpack.c.h.b16 %v190
  %v835 = vunpack.c.l.b16 %v191
  %v836 = vunpack.c.h.b16 %v191
  %v837 = vunpack.c.l.b16 %v192
  %v838 = vunpack.c.h.b16 %v192
  %v839 = vunpack.c.l.b16 %v193
  %v840 = vunpack.c.h.b16 %v193
  %v841 = vunpack.c.l.b16 %v194
  %v842 = vunpack.c.h.b16 %v194
  %v843 = vunpack.c.l.b16 %v195
  %v844 = vunpack.c.h.b16 %v195
  %v845 = vunpack.c.l.b16 %v196
  %v846 = vunpack.c.h.b16 %v196
  %v847 = vunpack.c.l.b16 %v197
  %v848 = vunpack.c.h.b16 %v197
  %v849 = vunpack.c.l.b16 %v198
  %v850 = vunpack.c.h.b16 %v198
  %v851 = vunpack.c.l.b16 %v199
  %v852 = vunpack.c.h.b16 %v199
  %v853 = vunpack.c.l.b16 %v200
  %v854 = vunpack.c.h.b16 %v200
  %v855 = vunpack.c.l.b16 %v201
  %v856 = vunpack.c.h.b16 %v201
  %v857 = vunpack.c.l.b16 %v202
  %v858 = vunpack.c.h.b16 %v202
  %v859 = vunpack.c.l.b16 %v203
  %v860 = vunpack.c.h.b16 %v203
  %v861 = vunpack.c.l.b16 %v204
  %v862 = vunpack.c.h.b16 %v204
  %v863 = vunpack.c.l.b16 %v205
  %v864 = vunpack.c.h.b16 %v205
  %v865 = vunpack.c.l.b16 %v206
  %v866 = vunpack.c.h.b16 %v206
  %v867 = vunpack.c.l.b16 %v207
  %v868 = vunpack.c.h.b16 %v207
  %v869 = vunpack.c.l.b16 %v208
  %v870 = vunpack.c.h.b16 %v208
  %v871 = vunpack.c.l.b16 %v209
  %v872 = vunpack.c.h.b16 %v209
  %v873 = vunpack.c.l.b16 %v210
  %v874 = vunpack.c.h.b16 %v210
  %v875 = vunpack.c.l.b16 %v211
  %v876 = vunpack.c.h.b16 %v211
  %v877 = vunpack.c.l.b16 %v212
  %v878 = vunpack.c.h.b16 %v212
  %v879 = vunpack.c.l.b16 %v213
  %v880 = vunpack.c.h.b16 %v213
  %v881 = vunpack.c.l.b16 %v214
  %v882 = vunpack.c.h.b16 %v214
  %v883 = vunpack.c.l.b16 %v215
  %v884 = vunpack.c.h.b16 %v215
  %v885 = vunpack.c.l.b16 %v216
  %v886 = vunpack.c.h.b16 %v216
  %v887 = vunpack.c.l.b16 %v217
  %v888 = vunpack.c.h.b16 %v217
  %v889 = vunpack.c.l.b16 %v218
  %v890 = vunpack.c.h.b16 %v218
  %v891 = vunpack.c.l.b16 %v219
  %v892 = vunpack.c.h.b16 %v219
  %v893 = vunpack.c.l.b16 %v220
  %v894 = vunpack.c.h.b16 %v220
  %v895 = vunpack.c.l.b16 %v221
  %v896 = vunpack.c.h.b16 %v221
  %v897 = vunpack.c.l.b16 %v222
  %v898 = vunpack.c.h.b16 %v222
  %v899 = vunpack.c.l.b16 %v223
  %v900 = vunpack.c.h.b16 %v223
  %v901 = vunpack.c.l.b16 %v224
  %v902 = vunpack.c.h.b16 %v224
  %v903 = vunpack.c.l.b16 %v225
  %v904 = vunpack.c.h.b16 %v225
  %v905 = vunpack.c.l.b16 %v226
  %v906 = vunpack.c.h.b16 %v226
  %v907 = vunpack.c.l.b16 %v227
  %v908 = vunpack.c.h.b16 %v227
  %v909 = vunpack.c.l.b16 %v228
  %v910 = vunpack.c.h.b16 %v228
  %v911 = vunpack.c.l.b16 %v229
  %v912 = vunpack.c.h.b16 %v229
  %v913 = vunpack.c.l.b16 %v230
  %v914 = vunpack.c.h.b16 %v230
  %v915 = vunpack.c.l.b16 %v231
  %v916 = vunpack.c.h.b16 %v231
  %v917 = vunpack.c.l.b16 %v232
  %v918 = vunpack.c.h.b16 %v232
  %v919 = vunpack.c.l.b16 %v233
  %v920 = vunpack.c.h.b16 %v233
  %v921 = vunpack.c.l.b16 %v234
  %v922 = vunpack.c.h.b16 %v234
  %v923 = vunpack.c.l.b16 %v235
  %v924 = vunpack.c.h.b16 %v235
  %v925 = vunpack.c.l.b16 %v236
  %v926 = vunpack.c.h.b16 %v236
  %v927 = vunpack.c.l.b16 %v237
  %v928 = vunpack.c.h.b16 %v237
  %v929 = vunpack.c.l.b16 %v238
  %v930 = vunpack.c.h.b16 %v238
  %v931 = vunpack.c.l.b16 %v239
  %v932 = vunpack.c.h.b16 %v239
  %v933 = vunpack.c.l.b16 %v240
  %v934 = vunpack.c.h.b16 %v240
  %v935 = vunpack.c.l.b16 %v241
  %v936 = vunpack.c.h.b16 %v241
  %v937 = vunpack.c.l.b16 %v242
  %v938 = vunpack.c.h.b16 %v242
  %v939 = vunpack.c.l.b16 %v243
  %v940 = vunpack.c.h.b16 %v243
  %v941 = vunpack.c.l.b16 %v244
  %v942 = vunpack.c.h.b16 %v244
  %v943 = vunpack.c.l.b16 %v245
  %v944 = vunpack.c.h.b16 %v245
  %v945 = vunpack.c.l.b16 %v246
  %v946 = vunpack.c.h.b16 %v246
  %v947 = vunpack.c.l.b16 %v247
  %v948 = vunpack.c.h.b16 %v247
  %v949 = vunpack.c.l.b16 %v248
  %v950 = vunpack.c.h.b16 %v248
  %v951 = vunpack.c.l.b16 %v249
  %v952 = vunpack.c.h.b16 %v249
  %v953 = vunpack.c.l.b16 %v250
  %v954 = vunpack.c.h.b16 %v250
  %v955 = vunpack.c.l.b16 %v251
  %v956 = vunpack.c.h.b16 %v251
  %v957 = vunpack.c.l.b16 %v252
  %v958 = vunpack.c.h.b16 %v252
  %v959 = vunpack.c.l.b16 %v253
  %v960 = vunpack.c.h.b16 %v253
  %v961 = vunpack.c.l.b16 %v254
  %v962 = vunpack.c.h.b16 %v254
  %v963 = vunpack.c.l.b16 %v255
  %v964 = vunpack.c.h.b16 %v255
  %v965 = vunpack.c.l.b16 %v256
  %v966 = vunpack.c.h.b16 %v256
  %v967 = vunpack.c.l.b16 %v257
  %v968 = vunpack.c.h.b16 %v257
  %v969 = vunpack.c.l.b16 %v258
  %v970 = vunpack.c.h.b16 %v258
  %v971 = vunpack.c.l.b16 %v259
  %v972 = vunpack.c.h.b16 %v259
  %v973 = vunpack.c.l.b16 %v260
  %v974 = vunpack.c.h.b16 %v260
  %v975 = vunpack.c.l.b16 %v261
  %v976 = vunpack.c.h.b16 %v261
  %v977 = vunpack.c.l.b16 %v262
  %v978 = vunpack.c.h.b16 %v262
  %v979 = vunpack.c.l.b16 %v263
  %v980 = vunpack.c.h.b16 %v263
  %v981 = vunpack.c.l.b16 %v264
  %v982 = vunpack.c.h.b16 %v264
  %v983 = vunpack.c.l.b16 %v265
  %v984 = vunpack.c.h.b16 %v265
  %v985 = vunpack.c.l.b16 %v266
  %v986 = vunpack.c.h.b16 %v266
  %v987 = vunpack.c.l.b16 %v267
  %v988 = vunpack.c.h.b16 %v267
  %v989 = vunpack.c.l.b16 %v268
  %v990 = vunpack.c.h.b16 %v268
  %v991 = vunpack.c.l.b16 %v269
  %v992 = vunpack.c.h.b16 %v269
  %v993 = vunpack.c.l.b16 %v270
  %v994 = vunpack.c.h.b16 %v270
  %v995 = vunpack.c.l.b16 %v271
  %v996 = vunpack.c.h.b16 %v271
  %v997 = vunpack.c.l.b16 %v272
  %v998 = vunpack.c.h.b16 %v272
  %v999 = vunpack.c.l.b16 %v273
  %v1000 = vunpack.c.h.b16 %v273
  %v1001 = vunpack.c.l.b16 %v274
  %v1002 = vunpack.c.h.b16 %v274
  %v1003 = vunpack.c.l.b16 %v275
  %v1004 = vunpack.c.h.b16 %v275
  %v1005 = vunpack.c.l.b16 %v276
  %v1006 = vunpack.c.h.b16 %v276
  %v1007 = vunpack.c.l.b16 %v277
  %v1008 = vunpack.c.h.b16 %v277
  %v1009 = vunpack.c.l.b16 %v278
  %v1010 = vunpack.c.h.b16 %v278
  %v1011 = vunpack.c.l.b16 %v279
  %v1012 = vunpack.c.h.b16 %v279
  %v1013 = vunpack.c.l.b16 %v280
  %v1014 = vunpack.c.h.b16 %v280
  %v1015 = vunpack.c.l.b16 %v281
  %v1016 = vunpack.c.h.b16 %v281
  %v1017 = vunpack.c.l.b16 %v282
  %v1018 = vunpack.c.h.b16 %v282
  %v1019 = vunpack.c.l.b16 %v283
  %v1020 = vunpack.c.h.b16 %v283
  %v1021 = vunpack.c.l.b16 %v284
  %v1022 = vunpack.c.h.b16 %v284
  %v1023 = vunpack.c.l.b16 %v285
  %v1024 = vunpack.c.h.b16 %v285
  %v1025 = vunpack.c.l.b16 %v286
  %v1026 = vunpack.c.h.b16 %v286
  %v1027 = vunpack.c.l.b16 %v287
  %v1028 = vunpack.c.h.b16 %v287
  %v1029 = vunpack.c.l.b16 %v288
  %v1030 = vunpack.c.h.b16 %v288
  %v1031 = vunpack.c.l.b16 %v289
  %v1032 = vunpack.c.h.b16 %v289
  %v1033 = vunpack.c.l.b16 %v290
  %v1034 = vunpack.c.h.b16 %v290
  %v1035 = vunpack.c.l.b16 %v291
  %v1036 = vunpack.c.h.b16 %v291
  %v1037 = vunpack.c.l.b16 %v292
  %v1038 = vunpack.c.h.b16 %v292
  %v1039 = vunpack.c.l.b16 %v293
  %v1040 = vunpack.c.h.b16 %v293
  %v1041 = vunpack.c.l.b16 %v294
  %v1042 = vunpack.c.h.b16 %v294
  %v1043 = vunpack.c.l.b16 %v295
  %v1044 = vunpack.c.h.b16 %v295
  %v1045 = vunpack.c.l.b16 %v296
  %v1046 = vunpack.c.h.b16 %v296
  %v1047 = vunpack.c.l.b16 %v297
  %v1048 = vunpack.c.h.b16 %v297
  %v1049 = vunpack.c.l.b16 %v298
  %v1050 = vunpack.c.h.b16 %v298
  %v1051 = vunpack.c.l.b16 %v299
  %v1052 = vunpack.c.h.b16 %v299
  %v1053 = vunpack.c.l.b16 %v300
  %v1054 = vunpack.c.h.b16 %v300
  %v1055 = vunpack.c.l.b16 %v301
  %v1056 = vunpack.c.h.b16 %v301
  %v1057 = vunpack.c.l.b16 %v302
  %v1058 = vunpack.c.h.b16 %v302
  %v1059 = vunpack.c.l.b16 %v303
  %v1060 = vunpack.c.h.b16 %v303
  %v1061 = vunpack.c.l.b16 %v304
  %v1062 = vunpack.c.h.b16 %v304
  %v1063 = vunpack.c.l.b16 %v305
  %v1064 = vunpack.c.h.b16 %v305
  %v1065 = vunpack.c.l.b16 %v306
  %v1066 = vunpack.c.h.b16 %v306
  %v1067 = vunpack.c.l.b16 %v307
  %v1068 = vunpack.c.h.b16 %v307
  %v1069 = vunpack.c.l.b16 %v308
  %v1070 = vunpack.c.h.b16 %v308
  %v1071 = vunpack.c.l.b16 %v309
  %v1072 = vunpack.c.h.b16 %v309
  %v1073 = vunpack.c.l.b16 %v310
  %v1074 = vunpack.c.h.b16 %v310
  %v1075 = vunpack.c.l.b16 %v311
  %v1076 = vunpack.c.h.b16 %v311
  %v1077 = vunpack.c.l.b16 %v312
  %v1078 = vunpack.c.h.b16 %v312
  %v1079 = vunpack.c.l.b16 %v313
  %v1080 = vunpack.c.h.b16 %v313
  %v1081 = vunpack.c.l.b16 %v314
  %v1082 = vunpack.c.h.b16 %v314
  %v1083 = vunpack.c.l.b16 %v315
  %v1084 = vunpack.c.h.b16 %v315
  %v1085 = vunpack.c.l.b16 %v316
  %v1086 = vunpack.c.h.b16 %v316
  %v1087 = vunpack.c.l.b16 %v317
  %v1088 = vunpack.c.h.b16 %v317
  %v1089 = vunpack.c.l.b16 %v318
  %v1090 = vunpack.c.h.b16 %v318
  %v1091 = vunpack.c.l.b16 %v319
  %v1092 = vunpack.c.h.b16 %v319
  %v1093 = vunpack.c.l.b16 %v320
  %v1094 = vunpack.c.h.b16 %v320
  %v1095 = vunpack.c.l.b16 %v321
  %v1096 = vunpack.c.h.b16 %v321
  %v1097 = vunpack.c.l.b16 %v322
  %v1098 = vunpack.c.h.b16 %v322
  %v1099 = vunpack.c.l.b16 %v323
  %v1100 = vunpack.c.h.b16 %v323
  %v1101 = vunpack.c.l.b16 %v324
  %v1102 = vunpack.c.h.b16 %v324
  %v1103 = vunpack.c.l.b16 %v325
  %v1104 = vunpack.c.h.b16 %v325
  %v1105 = vunpack.c.l.b16 %v326
  %v1106 = vunpack.c.h.b16 %v326
  %v1107 = vunpack.c.l.b16 %v327
  %v1108 = vunpack.c.h.b16 %v327
  %v1109 = vunpack.c.l.b16 %v328
  %v1110 = vunpack.c.h.b16 %v328
  %v1111 = vunpack.c.l.b16 %v329
  %v1112 = vunpack.c.h.b16 %v329
  %v1113 = vunpack.c.l.b16 %v330
  %v1114 = vunpack.c.h.b16 %v330
  %v1115 = vunpack.c.l.b16 %v331
  %v1116 = vunpack.c.h.b16 %v331
  %v1117 = vunpack.c.l.b16 %v332
  %v1118 = vunpack.c.h.b16 %v332
  %v1119 = vunpack.c.l.b16 %v333
  %v1120 = vunpack.c.h.b16 %v333
  %v1121 = vunpack.c.l.b16 %v334
  %v1122 = vunpack.c.h.b16 %v334
  %v1123 = vunpack.c.l.b16 %v335
  %v1124 = vunpack.c.h.b16 %v335
  %v1125 = vunpack.c.l.b16 %v336
  %v1126 = vunpack.c.h.b16 %v336
  %v1127 = vpack.c.b16 %v619, %v615
  %v1128 = vpack.c.b16 %v620, %v616
  %v1129 = vpack.c.b16 %v621, %v617
  %v1130 = vpack.c.b16 %v622, %v618
  %v1131 = vpack.c.b16 %v627, %v623
  %v1132 = vpack.c.b16 %v628, %v624
  %v1133 = vpack.c.b16 %v629, %v625
  %v1134 = vpack.c.b16 %v630, %v626
  %v1135 = vpack.c.b16 %v635, %v631
  %v1136 = vpack.c.b16 %v636, %v632
  %v1137 = vpack.c.b16 %v637, %v633
  %v1138 = vpack.c.b16 %v638, %v634
  %v1139 = vpack.c.b16 %v643, %v639
  %v1140 = vpack.c.b16 %v644, %v640
  %v1141 = vpack.c.b16 %v645, %v641
  %v1142 = vpack.c.b16 %v646, %v642
  %v1143 = vpack.c.b16 %v651, %v647
  %v1144 = vpack.c.b16 %v652, %v648
  %v1145 = vpack.c.b16 %v653, %v649
  %v1146 = vpack.c.b16 %v654, %v650
  %v1147 = vpack.c.b16 %v659, %v655
  %v1148 = vpack.c.b16 %v660, %v656
  %v1149 = vpack.c.b16 %v661, %v657
  %v1150 = vpack.c.b16 %v662, %v658
  %v1151 = vpack.c.b16 %v667, %v663
  %v1152 = vpack.c.b16 %v668, %v664
  %v1153 = vpack.c.b16 %v669, %v665
  %v1154 = vpack.c.b16 %v670, %v666
  %v1155 = vpack.c.b16 %v675, %v671
  %v1156 = vpack.c.b16 %v676, %v672
  %v1157 = vpack.c.b16 %v677, %v673
  %v1158 = vpack.c.b16 %v678, %v674
  %v1159 = vpack.c.b16 %v683, %v679
  %v1160 = vpack.c.b16 %v684, %v680
  %v1161 = vpack.c.b16 %v685, %v681
  %v1162 = vpack.c.b16 %v686, %v682
  %v1163 = vpack.c.b16 %v691, %v687
  %v1164 = vpack.c.b16 %v692, %v688
  %v1165 = vpack.c.b16 %v693, %v689
  %v1166 = vpack.c.b16 %v694, %v690
  %v1167 = vpack.c.b16 %v699, %v695
  %v1168 = vpack.c.b16 %v700, %v696
  %v1169 = vpack.c.b16 %v701, %v697
  %v1170 = vpack.c.b16 %v702, %v698
  %v1171 = vpack.c.b16 %v707, %v703
  %v1172 = vpack.c.b16 %v708, %v704
  %v1173 = vpack.c.b16 %v709, %v705
  %v1174 = vpack.c.b16 %v710, %v706
  %v1175 = vpack.c.b16 %v715, %v711
  %v1176 = vpack.c.b16 %v716, %v712
  %v1177 = vpack.c.b16 %v717, %v713
  %v1178 = vpack.c.b16 %v718, %v714
  %v1179 = vpack.c.b16 %v723, %v719
  %v1180 = vpack.c.b16 %v724, %v720
  %v1181 = vpack.c.b16 %v725, %v721
  %v1182 = vpack.c.b16 %v726, %v722
  %v1183 = vpack.c.b16 %v731, %v727
  %v1184 = vpack.c.b16 %v732, %v728
  %v1185 = vpack.c.b16 %v733, %v729
  %v1186 = vpack.c.b16 %v734, %v730
  %v1187 = vpack.c.b16 %v739, %v735
  %v1188 = vpack.c.b16 %v740, %v736
  %v1189 = vpack.c.b16 %v741, %v737
  %v1190 = vpack.c.b16 %v742, %v738
  %v1191 = vpack.c.b16 %v747, %v743
  %v1192 = vpack.c.b16 %v748, %v744
  %v1193 = vpack.c.b16 %v749, %v745
  %v1194 = vpack.c.b16 %v750, %v746
  %v1195 = vpack.c.b16 %v755, %v751
  %v1196 = vpack.c.b16 %v756, %v752
  %v1197 = vpack.c.b16 %v757, %v753
  %v1198 = vpack.c.b16 %v758, %v754
  %v1199 = vpack.c.b16 %v763, %v759
  %v1200 = vpack.c.b16 %v764, %v760
  %v1201 = vpack.c.b16 %v765, %v761
  %v1202 = vpack.c.b16 %v766, %v762
  %v1203 = vpack.c.b16 %v771, %v767
  %v1204 = vpack.c.b16 %v772, %v768
  %v1205 = vpack.c.b16 %v773, %v769
  %v1206 = vpack.c.b16 %v774, %v770
  %v1207 = vpack.c.b16 %v779, %v775
  %v1208 = vpack.c.b16 %v780, %v776
  %v1209 = vpack.c.b16 %v781, %v777
  %v1210 = vpack.c.b16 %v782, %v778
  %v1211 = vpack.c.b16 %v787, %v783
  %v1212 = vpack.c.b16 %v788, %v784
  %v1213 = vpack.c.b16 %v789, %v785
  %v1214 = vpack.c.b16 %v790, %v786
  %v1215 = vpack.c.b16 %v795, %v791
  %v1216 = vpack.c.b16 %v796, %v792
  %v1217 = vpack.c.b16 %v797, %v793
  %v1218 = vpack.c.b16 %v798, %v794
  %v1219 = vpack.c.b16 %v803, %v799
  %v1220 = vpack.c.b16 %v804, %v800
  %v1221 = vpack.c.b16 %v805, %v801
  %v1222 = vpack.c.b16 %v806, %v802
  %v1223 = vpack.c.b16 %v811, %v807
  %v1224 = vpack.c.b16 %v812, %v808
  %v1225 = vpack.c.b16 %v813, %v809
  %v1226 = vpack.c.b16 %v814, %v810
  %v1227 = vpack.c.b16 %v819, %v815
  %v1228 = vpack.c.b16 %v820, %v816
  %v1229 = vpack.c.b16 %v821, %v817
  %v1230 = vpack.c.b16 %v822, %v818
  %v1231 = vpack.c.b16 %v827, %v823
  %v1232 = vpack.c.b16 %v828, %v824
  %v1233 = vpack.c.b16 %v829, %v825
  %v1234 = vpack.c.b16 %v830, %v826
  %v1235 = vpack.c.b16 %v835, %v831
  %v1236 = vpack.c.b16 %v836, %v832
  %v1237 = vpack.c.b16 %v837, %v833
  %v1238 = vpack.c.b16 %v838, %v834
  %v1239 = vpack.c.b16 %v843, %v839
  %v1240 = vpack.c.b16 %v844, %v840
  %v1241 = vpack.c.b16 %v845, %v841
  %v1242 = vpack.c.b16 %v846, %v842
  %v1243 = vpack.c.b16 %v851, %v847
  %v1244 = vpack.c.b16 %v852, %v848
  %v1245 = vpack.c.b16 %v853, %v849
  %v1246 = vpack.c.b16 %v854, %v850
  %v1247 = vpack.c.b16 %v859, %v855
  %v1248 = vpack.c.b16 %v860, %v856
  %v1249 = vpack.c.b16 %v861, %v857
  %v1250 = vpack.c.b16 %v862, %v858
  %v1251 = vpack.c.b16 %v867, %v863
  %v1252 = vpack.c.b16 %v868, %v864
  %v1253 = vpack.c.b16 %v869, %v865
  %v1254 = vpack.c.b16 %v870, %v866
  %v1255 = vpack.c.b16 %v875, %v871
  %v1256 = vpack.c.b16 %v876, %v872
  %v1257 = vpack.c.b16 %v877, %v873
  %v1258 = vpack.c.b16 %v878, %v874
  %v1259 = vpack.c.b16 %v883, %v879
  %v1260 = vpack.c.b16 %v884, %v880
  %v1261 = vpack.c.b16 %v885, %v881
  %v1262 = vpack.c.b16 %v886, %v882
  %v1263 = vpack.c.b16 %v891, %v887
  %v1264 = vpack.c.b16 %v892, %v888
  %v1265 = vpack.c.b16 %v893, %v889
  %v1266 = vpack.c.b16 %v894, %v890
  %v1267 = vpack.c.b16 %v899, %v895
  %v1268 = vpack.c.b16 %v900, %v896
  %v1269 = vpack.c.b16 %v901, %v897
  %v1270 = vpack.c.b16 %v902, %v898
  %v1271 = vpack.c.b16 %v907, %v903
  %v1272 = vpack.c.b16 %v908, %v904
  %v1273 = vpack.c.b16 %v909, %v905
  %v1274 = vpack.c.b16 %v910, %v906
  %v1275 = vpack.c.b16 %v915, %v911
  %v1276 = vpack.c.b16 %v916, %v912
  %v1277 = vpack.c.b16 %v917, %v913
  %v1278 = vpack.c.b16 %v918, %v914
  %v1279 = vpack.c.b16 %v923, %v919
  %v1280 = vpack.c.b16 %v924, %v920
  %v1281 = vpack.c.b16 %v925, %v921
  %v1282 = vpack.c.b16 %v926, %v922
  %v1283 = vpack.c.b16 %v931, %v927
  %v1284 = vpack.c.b16 %v932, %v928
  %v1285 = vpack.c.b16 %v933, %v929
  %v1286 = vpack.c.b16 %v934, %v930
  %v1287 = vpack.c.b16 %v939, %v935
  %v1288 = vpack.c.b16 %v940, %v936
  %v1289 = vpack.c.b16 %v941, %v937
  %v1290 = vpack.c.b16 %v942, %v938
  %v1291 = vpack.c.b16 %v947, %v943
  %v1292 = vpack.c.b16 %v948, %v944
  %v1293 = vpack.c.b16 %v949, %v945
  %v1294 = vpack.c.b16 %v950, %v946
  %v1295 = vpack.c.b16 %v955, %v951
  %v1296 = vpack.c.b16 %v956, %v952
  %v1297 = vpack.c.b16 %v957, %v953
  %v1298 = vpack.c.b16 %v958, %v954
  %v1299 = vpack.c.b16 %v963, %v959
  %v1300 = vpack.c.b16 %v964, %v960
  %v1301 = vpack.c.b16 %v965, %v961
  %v1302 = vpack.c.b16 %v966, %v962
  %v1303 = vpack.c.b16 %v971, %v967
  %v1304 = vpack.c.b16 %v972, %v968
  %v1305 = vpack.c.b16 %v973, %v969
  %v1306 = vpack.c.b16 %v974, %v970
  %v1307 = vpack.c.b16 %v979, %v975
  %v1308 = vpack.c.b16 %v980, %v976
  %v1309 = vpack.c.b16 %v981, %v977
  %v1310 = vpack.c.b16 %v982, %v978
  %v1311 = vpack.c.b16 %v987, %v983
  %v1312 = vpack.c.b16 %v988, %v984
  %v1313 = vpack.c.b16 %v989, %v985
  %v1314 = vpack.c.b16 %v990, %v986
  %v1315 = vpack.c.b16 %v995, %v991
  %v1316 = vpack.c.b16 %v996, %v992
  %v1317 = vpack.c.b16 %v997, %v993
  %v1318 = vpack.c.b16 %v998, %v994
  %v1319 = vpack.c.b16 %v1003, %v999
  %v1320 = vpack.c.b16 %v1004, %v1000
  %v1321 = vpack.c.b16 %v1005, %v1001
  %v1322 = vpack.c.b16 %v1006, %v1002
  %v1323 = vpack.c.b16 %v1011, %v1007
  %v1324 = vpack.c.b16 %v1012, %v1008
  %v1325 = vpack.c.b16 %v1013, %v1009
  %v1326 = vpack.c.b16 %v1014, %v1010
  %v1327 = vpack.c.b16 %v1019, %v1015
  %v1328 = vpack.c.b16 %v1020, %v1016
  %v1329 = vpack.c.b16 %v1021, %v1017
  %v1330 = vpack.c.b16 %v1022, %v1018
  %v1331 = vpack.c.b16 %v1027, %v1023
  %v1332 = vpack.c.b16 %v1028, %v1024
  %v1333 = vpack.c.b16 %v1029, %v1025
  %v1334 = vpack.c.b16 %v1030, %v1026
  %v1335 = vpack.c.b16 %v1035, %v1031
  %v1336 = vpack.c.b16 %v1036, %v1032
  %v1337 = vpack.c.b16 %v1037, %v1033
  %v1338 = vpack.c.b16 %v1038, %v1034
  %v1339 = vpack.c.b16 %v1043, %v1039
  %v1340 = vpack.c.b16 %v1044, %v1040
  %v1341 = vpack.c.b16 %v1045, %v1041
  %v1342 = vpack.c.b16 %v1046, %v1042
  %v1343 = vpack.c.b16 %v1051, %v1047
  %v1344 = vpack.c.b16 %v1052, %v1048
  %v1345 = vpack.c.b16 %v1053, %v1049
  %v1346 = vpack.c.b16 %v1054, %v1050
  %v1347 = vpack.c.b16 %v1059, %v1055
  %v1348 = vpack.c.b16 %v1060, %v1056
  %v1349 = vpack.c.b16 %v1061, %v1057
  %v1350 = vpack.c.b16 %v1062, %v1058
  %v1351 = vpack.c.b16 %v1067, %v1063
  %v1352 = vpack.c.b16 %v1068, %v1064
  %v1353 = vpack.c.b16 %v1069, %v1065
  %v1354 = vpack.c.b16 %v1070, %v1066
  %v1355 = vpack.c.b16 %v1075, %v1071
  %v1356 = vpack.c.b16 %v1076, %v1072
  %v1357 = vpack.c.b16 %v1077, %v1073
  %v1358 = vpack.c.b16 %v1078, %v1074
  %v1359 = vpack.c.b16 %v1083, %v1079
  %v1360 = vpack.c.b16 %v1084, %v1080
  %v1361 = vpack.c.b16 %v1085, %v1081
  %v1362 = vpack.c.b16 %v1086, %v1082
  %v1363 = vpack.c.b16 %v1091, %v1087
  %v1364 = vpack.c.b16 %v1092, %v1088
  %v1365 = vpack.c.b16 %v1093, %v1089
  %v1366 = vpack.c.b16 %v1094, %v1090
  %v1367 = vpack.c.b16 %v1099, %v1095
  %v1368 = vpack.c.b16 %v1100, %v1096
  %v1369 = vpack.c.b16 %v1101, %v1097
  %v1370 = vpack.c.b16 %v1102, %v1098
  %v1371 = vpack.c.b16 %v1107, %v1103
  %v1372 = vpack.c.b16 %v1108, %v1104
  %v1373 = vpack.c.b16 %v1109, %v1105
  %v1374 = vpack.c.b16 %v1110, %v1106
  %v1375 = vpack.c.b16 %v1115, %v1111
  %v1376 = vpack.c.b16 %v1116, %v1112
  %v1377 = vpack.c.b16 %v1117, %v1113
  %v1378 = vpack.c.b16 %v1118, %v1114
  %v1379 = vpack.c.b16 %v1123, %v1119
  %v1380 = vpack.c.b16 %v1124, %v1120
  %v1381 = vpack.c.b16 %v1125, %v1121
  %v1382 = vpack.c.b16 %v1126, %v1122
  %1639 = vmatprep.subr.bf16.mxu0 %v1128
  %1640 = vmatpush1.bf16.msra.mxu0 %v1127
  %1641 = vmatprep.subr.bf16.mxu0 %v1132
  %1642 = vmatpush1.bf16.msra.mxu0 %v1131
  %1643 = vmatprep.subr.bf16.mxu0 %v1136
  %1644 = vmatpush1.bf16.msra.mxu0 %v1135
  %1645 = vmatprep.subr.bf16.mxu0 %v1140
  %1646 = vmatpush1.bf16.msra.mxu0 %v1139
  %1647 = vmatprep.subr.bf16.mxu0 %v1144
  %1648 = vmatpush1.bf16.msra.mxu0 %v1143
  %1649 = vmatprep.subr.bf16.mxu0 %v1148
  %1650 = vmatpush1.bf16.msra.mxu0 %v1147
  %1651 = vmatprep.subr.bf16.mxu0 %v1152
  %1652 = vmatpush1.bf16.msra.mxu0 %v1151
  %1653 = vmatprep.subr.bf16.mxu0 %v1156
  %1654 = vmatpush1.bf16.msra.mxu0 %v1155
  %1655 = vmatprep.subr.bf16.mxu0 %v1160
  %1656 = vmatpush1.bf16.msra.mxu0 %v1159
  %1657 = vmatprep.subr.bf16.mxu0 %v1164
  %1658 = vmatpush1.bf16.msra.mxu0 %v1163
  %1659 = vmatprep.subr.bf16.mxu0 %v1168
  %1660 = vmatpush1.bf16.msra.mxu0 %v1167
  %1661 = vmatprep.subr.bf16.mxu0 %v1172
  %1662 = vmatpush1.bf16.msra.mxu0 %v1171
  %1663 = vmatprep.subr.bf16.mxu0 %v1176
  %1664 = vmatpush1.bf16.msra.mxu0 %v1175
  %1665 = vmatprep.subr.bf16.mxu0 %v1180
  %1666 = vmatpush1.bf16.msra.mxu0 %v1179
  %1667 = vmatprep.subr.bf16.mxu0 %v1184
  %1668 = vmatpush1.bf16.msra.mxu0 %v1183
  %1669 = vmatprep.subr.bf16.mxu0 %v1188
  %1670 = vmatpush1.bf16.msra.mxu0 %v1187
  %1671 = vmatprep.mubr.bf16.mxu0 %v74
  %1672 = vmatmul.mubr.bf16.gmra.mrb[0].mxu0 %v73
  %v1673 = vpop.f32.mrb[0].mxu0
  %v1674 = vadd.f32 %v342, %v1673
  %v1675 = vpop.f32.mrb[0].mxu0
  %v1676 = vadd.f32 %v346, %v1675
  %v1677 = vpop.f32.mrb[0].mxu0
  %v1678 = vpop.f32.mrb[0].mxu0
  %1679 = vdwg.mxu0
  %1680 = vmatprep.subr.bf16.mxu0 %v1192
  %1681 = vmatpush1.bf16.msra.mxu0 %v1191
  %1682 = vmatprep.subr.bf16.mxu0 %v1196
  %1683 = vmatpush1.bf16.msra.mxu0 %v1195
  %1684 = vmatprep.subr.bf16.mxu0 %v1200
  %1685 = vmatpush1.bf16.msra.mxu0 %v1199
  %1686 = vmatprep.subr.bf16.mxu0 %v1204
  %1687 = vmatpush1.bf16.msra.mxu0 %v1203
  %1688 = vmatprep.subr.bf16.mxu0 %v1208
  %1689 = vmatpush1.bf16.msra.mxu0 %v1207
  %1690 = vmatprep.subr.bf16.mxu0 %v1212
  %1691 = vmatpush1.bf16.msra.mxu0 %v1211
  %1692 = vmatprep.subr.bf16.mxu0 %v1216
  %1693 = vmatpush1.bf16.msra.mxu0 %v1215
  %1694 = vmatprep.subr.bf16.mxu0 %v1220
  %1695 = vmatpush1.bf16.msra.mxu0 %v1219
  %1696 = vmatprep.subr.bf16.mxu0 %v1224
  %1697 = vmatpush1.bf16.msra.mxu0 %v1223
  %1698 = vmatprep.subr.bf16.mxu0 %v1228
  %1699 = vmatpush1.bf16.msra.mxu0 %v1227
  %1700 = vmatprep.subr.bf16.mxu0 %v1232
  %1701 = vmatpush1.bf16.msra.mxu0 %v1231
  %1702 = vmatprep.subr.bf16.mxu0 %v1236
  %1703 = vmatpush1.bf16.msra.mxu0 %v1235
  %1704 = vmatprep.subr.bf16.mxu0 %v1240
  %1705 = vmatpush1.bf16.msra.mxu0 %v1239
  %1706 = vmatprep.subr.bf16.mxu0 %v1244
  %1707 = vmatpush1.bf16.msra.mxu0 %v1243
  %1708 = vmatprep.subr.bf16.mxu0 %v1248
  %1709 = vmatpush1.bf16.msra.mxu0 %v1247
  %1710 = vmatprep.subr.bf16.mxu0 %v1252
  %1711 = vmatpush1.bf16.msra.mxu0 %v1251
  %1712 = vmatprep.mubr.bf16.mxu0 %v76
  %1713 = vmatmul.mubr.bf16.gmra.mrb[0].mxu0 %v75
  %v1714 = vpop.f32.mrb[0].mxu0
  %v1715 = vadd.f32 %v1674, %v1714
  %v1716 = vpop.f32.mrb[0].mxu0
  %v1717 = vadd.f32 %v1676, %v1716
  %v1718 = vpop.f32.mrb[0].mxu0
  %v1719 = vpop.f32.mrb[0].mxu0
  %1720 = vdwg.mxu0
  %1721 = vmatprep.subr.bf16.mxu0 %v1256
  %1722 = vmatpush1.bf16.msra.mxu0 %v1255
  %1723 = vmatprep.subr.bf16.mxu0 %v1260
  %1724 = vmatpush1.bf16.msra.mxu0 %v1259
  %1725 = vmatprep.subr.bf16.mxu0 %v1264
  %1726 = vmatpush1.bf16.msra.mxu0 %v1263
  %1727 = vmatprep.subr.bf16.mxu0 %v1268
  %1728 = vmatpush1.bf16.msra.mxu0 %v1267
  %1729 = vmatprep.subr.bf16.mxu0 %v1272
  %1730 = vmatpush1.bf16.msra.mxu0 %v1271
  %1731 = vmatprep.subr.bf16.mxu0 %v1276
  %1732 = vmatpush1.bf16.msra.mxu0 %v1275
  %1733 = vmatprep.subr.bf16.mxu0 %v1280
  %1734 = vmatpush1.bf16.msra.mxu0 %v1279
  %1735 = vmatprep.subr.bf16.mxu0 %v1284
  %1736 = vmatpush1.bf16.msra.mxu0 %v1283
  %1737 = vmatprep.subr.bf16.mxu0 %v1288
  %1738 = vmatpush1.bf16.msra.mxu0 %v1287
  %1739 = vmatprep.subr.bf16.mxu0 %v1292
  %1740 = vmatpush1.bf16.msra.mxu0 %v1291
  %1741 = vmatprep.subr.bf16.mxu0 %v1296
  %1742 = vmatpush1.bf16.msra.mxu0 %v1295
  %1743 = vmatprep.subr.bf16.mxu0 %v1300
  %1744 = vmatpush1.bf16.msra.mxu0 %v1299
  %1745 = vmatprep.subr.bf16.mxu0 %v1304
  %1746 = vmatpush1.bf16.msra.mxu0 %v1303
  %1747 = vmatprep.subr.bf16.mxu0 %v1308
  %1748 = vmatpush1.bf16.msra.mxu0 %v1307
  %1749 = vmatprep.subr.bf16.mxu0 %v1312
  %1750 = vmatpush1.bf16.msra.mxu0 %v1311
  %1751 = vmatprep.subr.bf16.mxu0 %v1316
  %1752 = vmatpush1.bf16.msra.mxu0 %v1315
  %1753 = vmatprep.mubr.bf16.mxu0 %v78
  %1754 = vmatmul.mubr.bf16.gmra.mrb[0].mxu0 %v77
  %v1755 = vpop.f32.mrb[0].mxu0
  %v1756 = vadd.f32 %v1715, %v1755
  %v1757 = vpop.f32.mrb[0].mxu0
  %v1758 = vadd.f32 %v1717, %v1757
  %v1759 = vpop.f32.mrb[0].mxu0
  %v1760 = vpop.f32.mrb[0].mxu0
  %1761 = vdwg.mxu0
  %1762 = vmatprep.subr.bf16.mxu0 %v1320
  %1763 = vmatpush1.bf16.msra.mxu0 %v1319
  %1764 = vmatprep.subr.bf16.mxu0 %v1324
  %1765 = vmatpush1.bf16.msra.mxu0 %v1323
  %1766 = vmatprep.subr.bf16.mxu0 %v1328
  %1767 = vmatpush1.bf16.msra.mxu0 %v1327
  %1768 = vmatprep.subr.bf16.mxu0 %v1332
  %1769 = vmatpush1.bf16.msra.mxu0 %v1331
  %1770 = vmatprep.subr.bf16.mxu0 %v1336
  %1771 = vmatpush1.bf16.msra.mxu0 %v1335
  %1772 = vmatprep.subr.bf16.mxu0 %v1340
  %1773 = vmatpush1.bf16.msra.mxu0 %v1339
  %1774 = vmatprep.subr.bf16.mxu0 %v1344
  %1775 = vmatpush1.bf16.msra.mxu0 %v1343
  %1776 = vmatprep.subr.bf16.mxu0 %v1348
  %1777 = vmatpush1.bf16.msra.mxu0 %v1347
  %1778 = vmatprep.subr.bf16.mxu0 %v1352
  %1779 = vmatpush1.bf16.msra.mxu0 %v1351
  %1780 = vmatprep.subr.bf16.mxu0 %v1356
  %1781 = vmatpush1.bf16.msra.mxu0 %v1355
  %1782 = vmatprep.subr.bf16.mxu0 %v1360
  %1783 = vmatpush1.bf16.msra.mxu0 %v1359
  %1784 = vmatprep.subr.bf16.mxu0 %v1364
  %1785 = vmatpush1.bf16.msra.mxu0 %v1363
  %1786 = vmatprep.subr.bf16.mxu0 %v1368
  %1787 = vmatpush1.bf16.msra.mxu0 %v1367
  %1788 = vmatprep.subr.bf16.mxu0 %v1372
  %1789 = vmatpush1.bf16.msra.mxu0 %v1371
  %1790 = vmatprep.subr.bf16.mxu0 %v1376
  %1791 = vmatpush1.bf16.msra.mxu0 %v1375
  %1792 = vmatprep.subr.bf16.mxu0 %v1380
  %1793 = vmatpush1.bf16.msra.mxu0 %v1379
  %1794 = vmatprep.mubr.bf16.mxu0 %v80
  %1795 = vmatmul.mubr.bf16.gmra.mrb[0].mxu0 %v79
  %v1796 = vpop.f32.mrb[0].mxu0
  %v1797 = vadd.f32 %v1756, %v1796
  %v1798 = vpop.f32.mrb[0].mxu0
  %v1799 = vadd.f32 %v1758, %v1798
  %v1800 = vpop.f32.mrb[0].mxu0
  %v1801 = vpop.f32.mrb[0].mxu0
  %1802 = vdwg.mxu0
  %1803 = vmatprep.subr.bf16.mxu0 %v1130
  %1804 = vmatpush1.bf16.msra.mxu0 %v1129
  %1805 = vmatprep.subr.bf16.mxu0 %v1134
  %1806 = vmatpush1.bf16.msra.mxu0 %v1133
  %1807 = vmatprep.subr.bf16.mxu0 %v1138
  %1808 = vmatpush1.bf16.msra.mxu0 %v1137
  %1809 = vmatprep.subr.bf16.mxu0 %v1142
  %1810 = vmatpush1.bf16.msra.mxu0 %v1141
  %1811 = vmatprep.subr.bf16.mxu0 %v1146
  %1812 = vmatpush1.bf16.msra.mxu0 %v1145
  %1813 = vmatprep.subr.bf16.mxu0 %v1150
  %1814 = vmatpush1.bf16.msra.mxu0 %v1149
  %1815 = vmatprep.subr.bf16.mxu0 %v1154
  %1816 = vmatpush1.bf16.msra.mxu0 %v1153
  %1817 = vmatprep.subr.bf16.mxu0 %v1158
  %1818 = vmatpush1.bf16.msra.mxu0 %v1157
  %1819 = vmatprep.subr.bf16.mxu0 %v1162
  %1820 = vmatpush1.bf16.msra.mxu0 %v1161
  %1821 = vmatprep.subr.bf16.mxu0 %v1166
  %1822 = vmatpush1.bf16.msra.mxu0 %v1165
  %1823 = vmatprep.subr.bf16.mxu0 %v1170
  %1824 = vmatpush1.bf16.msra.mxu0 %v1169
  %1825 = vmatprep.subr.bf16.mxu0 %v1174
  %1826 = vmatpush1.bf16.msra.mxu0 %v1173
  %1827 = vmatprep.subr.bf16.mxu0 %v1178
  %1828 = vmatpush1.bf16.msra.mxu0 %v1177
  %1829 = vmatprep.subr.bf16.mxu0 %v1182
  %1830 = vmatpush1.bf16.msra.mxu0 %v1181
  %1831 = vmatprep.subr.bf16.mxu0 %v1186
  %1832 = vmatpush1.bf16.msra.mxu0 %v1185
  %1833 = vmatprep.subr.bf16.mxu0 %v1190
  %1834 = vmatpush1.bf16.msra.mxu0 %v1189
  %1835 = vmatprep.mubr.bf16.mxu0 %v74
  %1836 = vmatmul.mubr.bf16.gmra.mrb[0].mxu0 %v73
  %v1837 = vpop.f32.mrb[0].mxu0
  %v1838 = vadd.f32 %v350, %v1837
  %v1839 = vpop.f32.mrb[0].mxu0
  %v1840 = vadd.f32 %v354, %v1839
  %v1841 = vpop.f32.mrb[0].mxu0
  %v1842 = vpop.f32.mrb[0].mxu0
  %1843 = vdwg.mxu0
  %1844 = vmatprep.subr.bf16.mxu0 %v1194
  %1845 = vmatpush1.bf16.msra.mxu0 %v1193
  %1846 = vmatprep.subr.bf16.mxu0 %v1198
  %1847 = vmatpush1.bf16.msra.mxu0 %v1197
  %1848 = vmatprep.subr.bf16.mxu0 %v1202
  %1849 = vmatpush1.bf16.msra.mxu0 %v1201
  %1850 = vmatprep.subr.bf16.mxu0 %v1206
  %1851 = vmatpush1.bf16.msra.mxu0 %v1205
  %1852 = vmatprep.subr.bf16.mxu0 %v1210
  %1853 = vmatpush1.bf16.msra.mxu0 %v1209
  %1854 = vmatprep.subr.bf16.mxu0 %v1214
  %1855 = vmatpush1.bf16.msra.mxu0 %v1213
  %1856 = vmatprep.subr.bf16.mxu0 %v1218
  %1857 = vmatpush1.bf16.msra.mxu0 %v1217
  %1858 = vmatprep.subr.bf16.mxu0 %v1222
  %1859 = vmatpush1.bf16.msra.mxu0 %v1221
  %1860 = vmatprep.subr.bf16.mxu0 %v1226
  %1861 = vmatpush1.bf16.msra.mxu0 %v1225
  %1862 = vmatprep.subr.bf16.mxu0 %v1230
  %1863 = vmatpush1.bf16.msra.mxu0 %v1229
  %1864 = vmatprep.subr.bf16.mxu0 %v1234
  %1865 = vmatpush1.bf16.msra.mxu0 %v1233
  %1866 = vmatprep.subr.bf16.mxu0 %v1238
  %1867 = vmatpush1.bf16.msra.mxu0 %v1237
  %1868 = vmatprep.subr.bf16.mxu0 %v1242
  %1869 = vmatpush1.bf16.msra.mxu0 %v1241
  %1870 = vmatprep.subr.bf16.mxu0 %v1246
  %1871 = vmatpush1.bf16.msra.mxu0 %v1245
  %1872 = vmatprep.subr.bf16.mxu0 %v1250
  %1873 = vmatpush1.bf16.msra.mxu0 %v1249
  %1874 = vmatprep.subr.bf16.mxu0 %v1254
  %1875 = vmatpush1.bf16.msra.mxu0 %v1253
  %1876 = vmatprep.mubr.bf16.mxu0 %v76
  %1877 = vmatmul.mubr.bf16.gmra.mrb[0].mxu0 %v75
  %v1878 = vpop.f32.mrb[0].mxu0
  %v1879 = vadd.f32 %v1838, %v1878
  %v1880 = vpop.f32.mrb[0].mxu0
  %v1881 = vadd.f32 %v1840, %v1880
  %v1882 = vpop.f32.mrb[0].mxu0
  %v1883 = vpop.f32.mrb[0].mxu0
  %1884 = vdwg.mxu0
  %1885 = vmatprep.subr.bf16.mxu0 %v1258
  %1886 = vmatpush1.bf16.msra.mxu0 %v1257
  %1887 = vmatprep.subr.bf16.mxu0 %v1262
  %1888 = vmatpush1.bf16.msra.mxu0 %v1261
  %1889 = vmatprep.subr.bf16.mxu0 %v1266
  %1890 = vmatpush1.bf16.msra.mxu0 %v1265
  %1891 = vmatprep.subr.bf16.mxu0 %v1270
  %1892 = vmatpush1.bf16.msra.mxu0 %v1269
  %1893 = vmatprep.subr.bf16.mxu0 %v1274
  %1894 = vmatpush1.bf16.msra.mxu0 %v1273
  %1895 = vmatprep.subr.bf16.mxu0 %v1278
  %1896 = vmatpush1.bf16.msra.mxu0 %v1277
  %1897 = vmatprep.subr.bf16.mxu0 %v1282
  %1898 = vmatpush1.bf16.msra.mxu0 %v1281
  %1899 = vmatprep.subr.bf16.mxu0 %v1286
  %1900 = vmatpush1.bf16.msra.mxu0 %v1285
  %1901 = vmatprep.subr.bf16.mxu0 %v1290
  %1902 = vmatpush1.bf16.msra.mxu0 %v1289
  %1903 = vmatprep.subr.bf16.mxu0 %v1294
  %1904 = vmatpush1.bf16.msra.mxu0 %v1293
  %1905 = vmatprep.subr.bf16.mxu0 %v1298
  %1906 = vmatpush1.bf16.msra.mxu0 %v1297
  %1907 = vmatprep.subr.bf16.mxu0 %v1302
  %1908 = vmatpush1.bf16.msra.mxu0 %v1301
  %1909 = vmatprep.subr.bf16.mxu0 %v1306
  %1910 = vmatpush1.bf16.msra.mxu0 %v1305
  %1911 = vmatprep.subr.bf16.mxu0 %v1310
  %1912 = vmatpush1.bf16.msra.mxu0 %v1309
  %1913 = vmatprep.subr.bf16.mxu0 %v1314
  %1914 = vmatpush1.bf16.msra.mxu0 %v1313
  %1915 = vmatprep.subr.bf16.mxu0 %v1318
  %1916 = vmatpush1.bf16.msra.mxu0 %v1317
  %1917 = vmatprep.mubr.bf16.mxu0 %v78
  %1918 = vmatmul.mubr.bf16.gmra.mrb[0].mxu0 %v77
  %v1919 = vpop.f32.mrb[0].mxu0
  %v1920 = vadd.f32 %v1879, %v1919
  %v1921 = vpop.f32.mrb[0].mxu0
  %v1922 = vadd.f32 %v1881, %v1921
  %v1923 = vpop.f32.mrb[0].mxu0
  %v1924 = vpop.f32.mrb[0].mxu0
  %1925 = vdwg.mxu0
  %1926 = vmatprep.subr.bf16.mxu0 %v1322
  %1927 = vmatpush1.bf16.msra.mxu0 %v1321
  %1928 = vmatprep.subr.bf16.mxu0 %v1326
  %1929 = vmatpush1.bf16.msra.mxu0 %v1325
  %1930 = vmatprep.subr.bf16.mxu0 %v1330
  %1931 = vmatpush1.bf16.msra.mxu0 %v1329
  %1932 = vmatprep.subr.bf16.mxu0 %v1334
  %1933 = vmatpush1.bf16.msra.mxu0 %v1333
  %1934 = vmatprep.subr.bf16.mxu0 %v1338
  %1935 = vmatpush1.bf16.msra.mxu0 %v1337
  %1936 = vmatprep.subr.bf16.mxu0 %v1342
  %1937 = vmatpush1.bf16.msra.mxu0 %v1341
  %1938 = vmatprep.subr.bf16.mxu0 %v1346
  %1939 = vmatpush1.bf16.msra.mxu0 %v1345
  %1940 = vmatprep.subr.bf16.mxu0 %v1350
  %1941 = vmatpush1.bf16.msra.mxu0 %v1349
  %1942 = vmatprep.subr.bf16.mxu0 %v1354
  %1943 = vmatpush1.bf16.msra.mxu0 %v1353
  %1944 = vmatprep.subr.bf16.mxu0 %v1358
  %1945 = vmatpush1.bf16.msra.mxu0 %v1357
  %1946 = vmatprep.subr.bf16.mxu0 %v1362
  %1947 = vmatpush1.bf16.msra.mxu0 %v1361
  %1948 = vmatprep.subr.bf16.mxu0 %v1366
  %1949 = vmatpush1.bf16.msra.mxu0 %v1365
  %1950 = vmatprep.subr.bf16.mxu0 %v1370
  %1951 = vmatpush1.bf16.msra.mxu0 %v1369
  %1952 = vmatprep.subr.bf16.mxu0 %v1374
  %1953 = vmatpush1.bf16.msra.mxu0 %v1373
  %1954 = vmatprep.subr.bf16.mxu0 %v1378
  %1955 = vmatpush1.bf16.msra.mxu0 %v1377
  %1956 = vmatprep.subr.bf16.mxu0 %v1382
  %1957 = vmatpush1.bf16.msra.mxu0 %v1381
  %1958 = vmatprep.mubr.bf16.mxu0 %v80
  %1959 = vmatmul.mubr.bf16.gmra.mrb[0].mxu0 %v79
  %v1960 = vpop.f32.mrb[0].mxu0
  %v1961 = vadd.f32 %v1920, %v1960
  %v1962 = vpop.f32.mrb[0].mxu0
  %v1963 = vadd.f32 %v1922, %v1962
  %v1964 = vpop.f32.mrb[0].mxu0
  %v1965 = vpop.f32.mrb[0].mxu0
  %1966 = vdwg.mxu0
  %v1967 = vmax.f32 %v1797, 0.0
  %v1968 = vmax.f32 %v1799, 0.0
  %v1969 = vmax.f32 %v1961, 0.0
  %v1970 = vmax.f32 %v1963, 0.0
  %v1971 = vpack.c.bf16 %v1967, %v1967
  %v1972 = vpack.c.bf16 %v1968, %v1968
  %v1973 = vpack.c.bf16 %v1969, %v1969
  %v1974 = vpack.c.bf16 %v1970, %v1970
  %v1975 = vld [vmem:[%s3] sm:$0xff]
  %v1976 = vld [vmem:[%s3 + $0x8] sm:$0xff]
  %v1977 = vld [vmem:[%s3 + $0x10] sm:$0xff]
  %v1978 = vld [vmem:[%s3 + $0x18] sm:$0xff]
  %v1979 = vld [vmem:[%s3 + $0x20] sm:$0xff]
  %v1980 = vld [vmem:[%s3 + $0x28] sm:$0xff]
  %v1981 = vld [vmem:[%s3 + $0x30] sm:$0xff]
  %v1982 = vld [vmem:[%s3 + $0x38] sm:$0xff]
  %v1983 = vld [vmem:[%s3 + $0x40] sm:$0xff]
  %v1984 = vld [vmem:[%s3 + $0x48] sm:$0xff]
  %v1985 = vld [vmem:[%s3 + $0x50] sm:$0xff]
  %v1986 = vld [vmem:[%s3 + $0x58] sm:$0xff]
  %v1987 = vld [vmem:[%s3 + $0x60] sm:$0xff]
  %v1988 = vld [vmem:[%s3 + $0x68] sm:$0xff]
  %v1989 = vld [vmem:[%s3 + $0x70] sm:$0xff]
  %v1990 = vld [vmem:[%s3 + $0x78] sm:$0xff]
  %v1991 = vld [vmem:[%s3 + $0x80] sm:$0xff]
  %v1992 = vld [vmem:[%s3 + $0x88] sm:$0xff]
  %v1993 = vld [vmem:[%s3 + $0x90] sm:$0xff]
  %v1994 = vld [vmem:[%s3 + $0x98] sm:$0xff]
  %v1995 = vld [vmem:[%s3 + $0xa0] sm:$0xff]
  %v1996 = vld [vmem:[%s3 + $0xa8] sm:$0xff]
  %v1997 = vld [vmem:[%s3 + $0xb0] sm:$0xff]
  %v1998 = vld [vmem:[%s3 + $0xb8] sm:$0xff]
  %v1999 = vld [vmem:[%s3 + $0xc0] sm:$0xff]
  %v2000 = vld [vmem:[%s3 + $0xc8] sm:$0xff]
  %v2001 = vld [vmem:[%s3 + $0xd0] sm:$0xff]
  %v2002 = vld [vmem:[%s3 + $0xd8] sm:$0xff]
  %v2003 = vld [vmem:[%s3 + $0xe0] sm:$0xff]
  %v2004 = vld [vmem:[%s3 + $0xe8] sm:$0xff]
  %v2005 = vld [vmem:[%s3 + $0xf0] sm:$0xff]
  %v2006 = vld [vmem:[%s3 + $0xf8] sm:$0xff]
  %v2007 = vld [vmem:[%s3 + $0x100] sm:$0xff]
  %v2008 = vld [vmem:[%s3 + $0x108] sm:$0xff]
  %v2009 = vld [vmem:[%s3 + $0x110] sm:$0xff]
  %v2010 = vld [vmem:[%s3 + $0x118] sm:$0xff]
  %v2011 = vld [vmem:[%s3 + $0x120] sm:$0xff]
  %v2012 = vld [vmem:[%s3 + $0x128] sm:$0xff]
  %v2013 = vld [vmem:[%s3 + $0x130] sm:$0xff]
  %v2014 = vld [vmem:[%s3 + $0x138] sm:$0xff]
  %v2015 = vld [vmem:[%s3 + $0x140] sm:$0xff]
  %v2016 = vld [vmem:[%s3 + $0x148] sm:$0xff]
  %v2017 = vld [vmem:[%s3 + $0x150] sm:$0xff]
  %v2018 = vld [vmem:[%s3 + $0x158] sm:$0xff]
  %v2019 = vld [vmem:[%s3 + $0x160] sm:$0xff]
  %v2020 = vld [vmem:[%s3 + $0x168] sm:$0xff]
  %v2021 = vld [vmem:[%s3 + $0x170] sm:$0xff]
  %v2022 = vld [vmem:[%s3 + $0x178] sm:$0xff]
  %v2023 = vld [vmem:[%s3 + $0x180] sm:$0xff]
  %v2024 = vld [vmem:[%s3 + $0x188] sm:$0xff]
  %v2025 = vld [vmem:[%s3 + $0x190] sm:$0xff]
  %v2026 = vld [vmem:[%s3 + $0x198] sm:$0xff]
  %v2027 = vld [vmem:[%s3 + $0x1a0] sm:$0xff]
  %v2028 = vld [vmem:[%s3 + $0x1a8] sm:$0xff]
  %v2029 = vld [vmem:[%s3 + $0x1b0] sm:$0xff]
  %v2030 = vld [vmem:[%s3 + $0x1b8] sm:$0xff]
  %v2031 = vld [vmem:[%s3 + $0x1c0] sm:$0xff]
  %v2032 = vld [vmem:[%s3 + $0x1c8] sm:$0xff]
  %v2033 = vld [vmem:[%s3 + $0x1d0] sm:$0xff]
  %v2034 = vld [vmem:[%s3 + $0x1d8] sm:$0xff]
  %v2035 = vld [vmem:[%s3 + $0x1e0] sm:$0xff]
  %v2036 = vld [vmem:[%s3 + $0x1e8] sm:$0xff]
  %v2037 = vld [vmem:[%s3 + $0x1f0] sm:$0xff]
  %v2038 = vld [vmem:[%s3 + $0x1f8] sm:$0xff]
  %v2039 = vld [vmem:[%s4] sm:$0x3]
  %v2041 = vlaneseq
  %v2042 = vshrl.u32 %v2041, 7
  %v2043 = vsub.s32 0, %v2042
  %v2044 = vrot.slane %v2039, %v2043
  %v2045 = vlaneseq
  %v2046 = vshrl.u32 %v2045, 7
  %v2047 = vsub.s32 1, %v2046
  %v2048 = vrot.slane %v2039, %v2047
  %v2115 = vunpack.c.l.b16 %v1975
  %v2116 = vunpack.c.h.b16 %v1975
  %v2117 = vunpack.c.l.b16 %v1976
  %v2118 = vunpack.c.h.b16 %v1976
  %v2119 = vunpack.c.l.b16 %v1977
  %v2120 = vunpack.c.h.b16 %v1977
  %v2121 = vunpack.c.l.b16 %v1978
  %v2122 = vunpack.c.h.b16 %v1978
  %v2123 = vunpack.c.l.b16 %v1979
  %v2124 = vunpack.c.h.b16 %v1979
  %v2125 = vunpack.c.l.b16 %v1980
  %v2126 = vunpack.c.h.b16 %v1980
  %v2127 = vunpack.c.l.b16 %v1981
  %v2128 = vunpack.c.h.b16 %v1981
  %v2129 = vunpack.c.l.b16 %v1982
  %v2130 = vunpack.c.h.b16 %v1982
  %v2131 = vunpack.c.l.b16 %v1983
  %v2132 = vunpack.c.h.b16 %v1983
  %v2133 = vunpack.c.l.b16 %v1984
  %v2134 = vunpack.c.h.b16 %v1984
  %v2135 = vunpack.c.l.b16 %v1985
  %v2136 = vunpack.c.h.b16 %v1985
  %v2137 = vunpack.c.l.b16 %v1986
  %v2138 = vunpack.c.h.b16 %v1986
  %v2139 = vunpack.c.l.b16 %v1987
  %v2140 = vunpack.c.h.b16 %v1987
  %v2141 = vunpack.c.l.b16 %v1988
  %v2142 = vunpack.c.h.b16 %v1988
  %v2143 = vunpack.c.l.b16 %v1989
  %v2144 = vunpack.c.h.b16 %v1989
  %v2145 = vunpack.c.l.b16 %v1990
  %v2146 = vunpack.c.h.b16 %v1990
  %v2147 = vunpack.c.l.b16 %v1991
  %v2148 = vunpack.c.h.b16 %v1991
  %v2149 = vunpack.c.l.b16 %v1992
  %v2150 = vunpack.c.h.b16 %v1992
  %v2151 = vunpack.c.l.b16 %v1993
  %v2152 = vunpack.c.h.b16 %v1993
  %v2153 = vunpack.c.l.b16 %v1994
  %v2154 = vunpack.c.h.b16 %v1994
  %v2155 = vunpack.c.l.b16 %v1995
  %v2156 = vunpack.c.h.b16 %v1995
  %v2157 = vunpack.c.l.b16 %v1996
  %v2158 = vunpack.c.h.b16 %v1996
  %v2159 = vunpack.c.l.b16 %v1997
  %v2160 = vunpack.c.h.b16 %v1997
  %v2161 = vunpack.c.l.b16 %v1998
  %v2162 = vunpack.c.h.b16 %v1998
  %v2163 = vunpack.c.l.b16 %v1999
  %v2164 = vunpack.c.h.b16 %v1999
  %v2165 = vunpack.c.l.b16 %v2000
  %v2166 = vunpack.c.h.b16 %v2000
  %v2167 = vunpack.c.l.b16 %v2001
  %v2168 = vunpack.c.h.b16 %v2001
  %v2169 = vunpack.c.l.b16 %v2002
  %v2170 = vunpack.c.h.b16 %v2002
  %v2171 = vunpack.c.l.b16 %v2003
  %v2172 = vunpack.c.h.b16 %v2003
  %v2173 = vunpack.c.l.b16 %v2004
  %v2174 = vunpack.c.h.b16 %v2004
  %v2175 = vunpack.c.l.b16 %v2005
  %v2176 = vunpack.c.h.b16 %v2005
  %v2177 = vunpack.c.l.b16 %v2006
  %v2178 = vunpack.c.h.b16 %v2006
  %v2179 = vunpack.c.l.b16 %v2007
  %v2180 = vunpack.c.h.b16 %v2007
  %v2181 = vunpack.c.l.b16 %v2008
  %v2182 = vunpack.c.h.b16 %v2008
  %v2183 = vunpack.c.l.b16 %v2009
  %v2184 = vunpack.c.h.b16 %v2009
  %v2185 = vunpack.c.l.b16 %v2010
  %v2186 = vunpack.c.h.b16 %v2010
  %v2187 = vunpack.c.l.b16 %v2011
  %v2188 = vunpack.c.h.b16 %v2011
  %v2189 = vunpack.c.l.b16 %v2012
  %v2190 = vunpack.c.h.b16 %v2012
  %v2191 = vunpack.c.l.b16 %v2013
  %v2192 = vunpack.c.h.b16 %v2013
  %v2193 = vunpack.c.l.b16 %v2014
  %v2194 = vunpack.c.h.b16 %v2014
  %v2195 = vunpack.c.l.b16 %v2015
  %v2196 = vunpack.c.h.b16 %v2015
  %v2197 = vunpack.c.l.b16 %v2016
  %v2198 = vunpack.c.h.b16 %v2016
  %v2199 = vunpack.c.l.b16 %v2017
  %v2200 = vunpack.c.h.b16 %v2017
  %v2201 = vunpack.c.l.b16 %v2018
  %v2202 = vunpack.c.h.b16 %v2018
  %v2203 = vunpack.c.l.b16 %v2019
  %v2204 = vunpack.c.h.b16 %v2019
  %v2205 = vunpack.c.l.b16 %v2020
  %v2206 = vunpack.c.h.b16 %v2020
  %v2207 = vunpack.c.l.b16 %v2021
  %v2208 = vunpack.c.h.b16 %v2021
  %v2209 = vunpack.c.l.b16 %v2022
  %v2210 = vunpack.c.h.b16 %v2022
  %v2211 = vunpack.c.l.b16 %v2023
  %v2212 = vunpack.c.h.b16 %v2023
  %v2213 = vunpack.c.l.b16 %v2024
  %v2214 = vunpack.c.h.b16 %v2024
  %v2215 = vunpack.c.l.b16 %v2025
  %v2216 = vunpack.c.h.b16 %v2025
  %v2217 = vunpack.c.l.b16 %v2026
  %v2218 = vunpack.c.h.b16 %v2026
  %v2219 = vunpack.c.l.b16 %v2027
  %v2220 = vunpack.c.h.b16 %v2027
  %v2221 = vunpack.c.l.b16 %v2028
  %v2222 = vunpack.c.h.b16 %v2028
  %v2223 = vunpack.c.l.b16 %v2029
  %v2224 = vunpack.c.h.b16 %v2029
  %v2225 = vunpack.c.l.b16 %v2030
  %v2226 = vunpack.c.h.b16 %v2030
  %v2227 = vunpack.c.l.b16 %v2031
  %v2228 = vunpack.c.h.b16 %v2031
  %v2229 = vunpack.c.l.b16 %v2032
  %v2230 = vunpack.c.h.b16 %v2032
  %v2231 = vunpack.c.l.b16 %v2033
  %v2232 = vunpack.c.h.b16 %v2033
  %v2233 = vunpack.c.l.b16 %v2034
  %v2234 = vunpack.c.h.b16 %v2034
  %v2235 = vunpack.c.l.b16 %v2035
  %v2236 = vunpack.c.h.b16 %v2035
  %v2237 = vunpack.c.l.b16 %v2036
  %v2238 = vunpack.c.h.b16 %v2036
  %v2239 = vunpack.c.l.b16 %v2037
  %v2240 = vunpack.c.h.b16 %v2037
  %v2241 = vunpack.c.l.b16 %v2038
  %v2242 = vunpack.c.h.b16 %v2038
  %v2243 = vpack.c.b16 %v2117, %v2115
  %v2244 = vpack.c.b16 %v2118, %v2116
  %v2245 = vpack.c.b16 %v2121, %v2119
  %v2246 = vpack.c.b16 %v2122, %v2120
  %v2247 = vpack.c.b16 %v2125, %v2123
  %v2248 = vpack.c.b16 %v2126, %v2124
  %v2249 = vpack.c.b16 %v2129, %v2127
  %v2250 = vpack.c.b16 %v2130, %v2128
  %v2251 = vpack.c.b16 %v2133, %v2131
  %v2252 = vpack.c.b16 %v2134, %v2132
  %v2253 = vpack.c.b16 %v2137, %v2135
  %v2254 = vpack.c.b16 %v2138, %v2136
  %v2255 = vpack.c.b16 %v2141, %v2139
  %v2256 = vpack.c.b16 %v2142, %v2140
  %v2257 = vpack.c.b16 %v2145, %v2143
  %v2258 = vpack.c.b16 %v2146, %v2144
  %v2259 = vpack.c.b16 %v2149, %v2147
  %v2260 = vpack.c.b16 %v2150, %v2148
  %v2261 = vpack.c.b16 %v2153, %v2151
  %v2262 = vpack.c.b16 %v2154, %v2152
  %v2263 = vpack.c.b16 %v2157, %v2155
  %v2264 = vpack.c.b16 %v2158, %v2156
  %v2265 = vpack.c.b16 %v2161, %v2159
  %v2266 = vpack.c.b16 %v2162, %v2160
  %v2267 = vpack.c.b16 %v2165, %v2163
  %v2268 = vpack.c.b16 %v2166, %v2164
  %v2269 = vpack.c.b16 %v2169, %v2167
  %v2270 = vpack.c.b16 %v2170, %v2168
  %v2271 = vpack.c.b16 %v2173, %v2171
  %v2272 = vpack.c.b16 %v2174, %v2172
  %v2273 = vpack.c.b16 %v2177, %v2175
  %v2274 = vpack.c.b16 %v2178, %v2176
  %v2275 = vpack.c.b16 %v2181, %v2179
  %v2276 = vpack.c.b16 %v2182, %v2180
  %v2277 = vpack.c.b16 %v2185, %v2183
  %v2278 = vpack.c.b16 %v2186, %v2184
  %v2279 = vpack.c.b16 %v2189, %v2187
  %v2280 = vpack.c.b16 %v2190, %v2188
  %v2281 = vpack.c.b16 %v2193, %v2191
  %v2282 = vpack.c.b16 %v2194, %v2192
  %v2283 = vpack.c.b16 %v2197, %v2195
  %v2284 = vpack.c.b16 %v2198, %v2196
  %v2285 = vpack.c.b16 %v2201, %v2199
  %v2286 = vpack.c.b16 %v2202, %v2200
  %v2287 = vpack.c.b16 %v2205, %v2203
  %v2288 = vpack.c.b16 %v2206, %v2204
  %v2289 = vpack.c.b16 %v2209, %v2207
  %v2290 = vpack.c.b16 %v2210, %v2208
  %v2291 = vpack.c.b16 %v2213, %v2211
  %v2292 = vpack.c.b16 %v2214, %v2212
  %v2293 = vpack.c.b16 %v2217, %v2215
  %v2294 = vpack.c.b16 %v2218, %v2216
  %v2295 = vpack.c.b16 %v2221, %v2219
  %v2296 = vpack.c.b16 %v2222, %v2220
  %v2297 = vpack.c.b16 %v2225, %v2223
  %v2298 = vpack.c.b16 %v2226, %v2224
  %v2299 = vpack.c.b16 %v2229, %v2227
  %v2300 = vpack.c.b16 %v2230, %v2228
  %v2301 = vpack.c.b16 %v2233, %v2231
  %v2302 = vpack.c.b16 %v2234, %v2232
  %v2303 = vpack.c.b16 %v2237, %v2235
  %v2304 = vpack.c.b16 %v2238, %v2236
  %v2305 = vpack.c.b16 %v2241, %v2239
  %v2306 = vpack.c.b16 %v2242, %v2240
  %2371 = vmatprep.subr.bf16.mxu0 %v2244
  %2372 = vmatpush1.bf16.msra.mxu0 %v2243
  %2373 = vmatprep.subr.bf16.mxu0 %v2246
  %2374 = vmatpush1.bf16.msra.mxu0 %v2245
  %2375 = vmatprep.subr.bf16.mxu0 %v2248
  %2376 = vmatpush1.bf16.msra.mxu0 %v2247
  %2377 = vmatprep.subr.bf16.mxu0 %v2250
  %2378 = vmatpush1.bf16.msra.mxu0 %v2249
  %2379 = vmatprep.subr.bf16.mxu0 %v2252
  %2380 = vmatpush1.bf16.msra.mxu0 %v2251
  %2381 = vmatprep.subr.bf16.mxu0 %v2254
  %2382 = vmatpush1.bf16.msra.mxu0 %v2253
  %2383 = vmatprep.subr.bf16.mxu0 %v2256
  %2384 = vmatpush1.bf16.msra.mxu0 %v2255
  %2385 = vmatprep.subr.bf16.mxu0 %v2258
  %2386 = vmatpush1.bf16.msra.mxu0 %v2257
  %2387 = vmatprep.subr.bf16.mxu0 %v2260
  %2388 = vmatpush1.bf16.msra.mxu0 %v2259
  %2389 = vmatprep.subr.bf16.mxu0 %v2262
  %2390 = vmatpush1.bf16.msra.mxu0 %v2261
  %2391 = vmatprep.subr.bf16.mxu0 %v2264
  %2392 = vmatpush1.bf16.msra.mxu0 %v2263
  %2393 = vmatprep.subr.bf16.mxu0 %v2266
  %2394 = vmatpush1.bf16.msra.mxu0 %v2265
  %2395 = vmatprep.subr.bf16.mxu0 %v2268
  %2396 = vmatpush1.bf16.msra.mxu0 %v2267
  %2397 = vmatprep.subr.bf16.mxu0 %v2270
  %2398 = vmatpush1.bf16.msra.mxu0 %v2269
  %2399 = vmatprep.subr.bf16.mxu0 %v2272
  %2400 = vmatpush1.bf16.msra.mxu0 %v2271
  %2401 = vmatprep.subr.bf16.mxu0 %v2274
  %2402 = vmatpush1.bf16.msra.mxu0 %v2273
  %2403 = vmatprep.mubr.bf16.mxu0 %v1972
  %2404 = vmatmul.mubr.bf16.gmra.mrb[0].mxu0 %v1971
  %v2405 = vpop.f32.mrb[0].mxu0
  %v2406 = vadd.f32 %v2044, %v2405
  %v2407 = vpop.f32.mrb[0].mxu0
  %v2408 = vadd.f32 %v2048, %v2407
  %v2409 = vpop.f32.mrb[0].mxu0
  %v2410 = vpop.f32.mrb[0].mxu0
  %2411 = vdwg.mxu0
  %2412 = vmatprep.subr.bf16.mxu0 %v2276
  %2413 = vmatpush1.bf16.msra.mxu0 %v2275
  %2414 = vmatprep.subr.bf16.mxu0 %v2278
  %2415 = vmatpush1.bf16.msra.mxu0 %v2277
  %2416 = vmatprep.subr.bf16.mxu0 %v2280
  %2417 = vmatpush1.bf16.msra.mxu0 %v2279
  %2418 = vmatprep.subr.bf16.mxu0 %v2282
  %2419 = vmatpush1.bf16.msra.mxu0 %v2281
  %2420 = vmatprep.subr.bf16.mxu0 %v2284
  %2421 = vmatpush1.bf16.msra.mxu0 %v2283
  %2422 = vmatprep.subr.bf16.mxu0 %v2286
  %2423 = vmatpush1.bf16.msra.mxu0 %v2285
  %2424 = vmatprep.subr.bf16.mxu0 %v2288
  %2425 = vmatpush1.bf16.msra.mxu0 %v2287
  %2426 = vmatprep.subr.bf16.mxu0 %v2290
  %2427 = vmatpush1.bf16.msra.mxu0 %v2289
  %2428 = vmatprep.subr.bf16.mxu0 %v2292
  %2429 = vmatpush1.bf16.msra.mxu0 %v2291
  %2430 = vmatprep.subr.bf16.mxu0 %v2294
  %2431 = vmatpush1.bf16.msra.mxu0 %v2293
  %2432 = vmatprep.subr.bf16.mxu0 %v2296
  %2433 = vmatpush1.bf16.msra.mxu0 %v2295
  %2434 = vmatprep.subr.bf16.mxu0 %v2298
  %2435 = vmatpush1.bf16.msra.mxu0 %v2297
  %2436 = vmatprep.subr.bf16.mxu0 %v2300
  %2437 = vmatpush1.bf16.msra.mxu0 %v2299
  %2438 = vmatprep.subr.bf16.mxu0 %v2302
  %2439 = vmatpush1.bf16.msra.mxu0 %v2301
  %2440 = vmatprep.subr.bf16.mxu0 %v2304
  %2441 = vmatpush1.bf16.msra.mxu0 %v2303
  %2442 = vmatprep.subr.bf16.mxu0 %v2306
  %2443 = vmatpush1.bf16.msra.mxu0 %v2305
  %2444 = vmatprep.mubr.bf16.mxu0 %v1974
  %2445 = vmatmul.mubr.bf16.gmra.mrb[0].mxu0 %v1973
  %v2446 = vpop.f32.mrb[0].mxu0
  %v2447 = vadd.f32 %v2406, %v2446
  %v2448 = vpop.f32.mrb[0].mxu0
  %v2449 = vadd.f32 %v2408, %v2448
  %v2450 = vpop.f32.mrb[0].mxu0
  %v2451 = vpop.f32.mrb[0].mxu0
  %2452 = vdwg.mxu0
  %v2453 = vmax.f32 %v2447, 0.0
  %v2454 = vmax.f32 %v2449, 0.0
  %v2455 = vpack.c.bf16 %v2453, %v2453
  %v2456 = vpack.c.bf16 %v2454, %v2454
  %v2457 = vld [vmem:[%s5] sm:$0xf]
  %v2458 = vld [vmem:[%s5 + $0x4] sm:$0xf]
  %v2459 = vld [vmem:[%s5 + $0x8] sm:$0xf]
  %v2460 = vld [vmem:[%s5 + $0xc] sm:$0xf]
  %v2461 = vld [vmem:[%s5 + $0x10] sm:$0xf]
  %v2462 = vld [vmem:[%s5 + $0x14] sm:$0xf]
  %v2463 = vld [vmem:[%s5 + $0x18] sm:$0xf]
  %v2464 = vld [vmem:[%s5 + $0x1c] sm:$0xf]
  %v2465 = vld [vmem:[%s5 + $0x20] sm:$0xf]
  %v2466 = vld [vmem:[%s5 + $0x24] sm:$0xf]
  %v2467 = vld [vmem:[%s5 + $0x28] sm:$0xf]
  %v2468 = vld [vmem:[%s5 + $0x2c] sm:$0xf]
  %v2469 = vld [vmem:[%s5 + $0x30] sm:$0xf]
  %v2470 = vld [vmem:[%s5 + $0x34] sm:$0xf]
  %v2471 = vld [vmem:[%s5 + $0x38] sm:$0xf]
  %v2472 = vld [vmem:[%s5 + $0x3c] sm:$0xf]
  %v2473 = vld [vmem:[%s5 + $0x40] sm:$0xf]
  %v2474 = vld [vmem:[%s5 + $0x44] sm:$0xf]
  %v2475 = vld [vmem:[%s5 + $0x48] sm:$0xf]
  %v2476 = vld [vmem:[%s5 + $0x4c] sm:$0xf]
  %v2477 = vld [vmem:[%s5 + $0x50] sm:$0xf]
  %v2478 = vld [vmem:[%s5 + $0x54] sm:$0xf]
  %v2479 = vld [vmem:[%s5 + $0x58] sm:$0xf]
  %v2480 = vld [vmem:[%s5 + $0x5c] sm:$0xf]
  %v2481 = vld [vmem:[%s5 + $0x60] sm:$0xf]
  %v2482 = vld [vmem:[%s5 + $0x64] sm:$0xf]
  %v2483 = vld [vmem:[%s5 + $0x68] sm:$0xf]
  %v2484 = vld [vmem:[%s5 + $0x6c] sm:$0xf]
  %v2485 = vld [vmem:[%s5 + $0x70] sm:$0xf]
  %v2486 = vld [vmem:[%s5 + $0x74] sm:$0xf]
  %v2487 = vld [vmem:[%s5 + $0x78] sm:$0xf]
  %v2488 = vld [vmem:[%s5 + $0x7c] sm:$0xf]
  %v2489 = vld [vmem:[%s6] sm:$0x1]
  %v2491 = vlaneseq
  %v2492 = vshrl.u32 %v2491, 7
  %v2493 = vsub.s32 0, %v2492
  %v2494 = vrot.slane %v2489, %v2493
  %v2528 = vunpack.c.l.b16 %v2457
  %v2529 = vunpack.c.l.b16 %v2458
  %v2530 = vunpack.c.l.b16 %v2459
  %v2531 = vunpack.c.l.b16 %v2460
  %v2532 = vunpack.c.l.b16 %v2461
  %v2533 = vunpack.c.l.b16 %v2462
  %v2534 = vunpack.c.l.b16 %v2463
  %v2535 = vunpack.c.l.b16 %v2464
  %v2536 = vunpack.c.l.b16 %v2465
  %v2537 = vunpack.c.l.b16 %v2466
  %v2538 = vunpack.c.l.b16 %v2467
  %v2539 = vunpack.c.l.b16 %v2468
  %v2540 = vunpack.c.l.b16 %v2469
  %v2541 = vunpack.c.l.b16 %v2470
  %v2542 = vunpack.c.l.b16 %v2471
  %v2543 = vunpack.c.l.b16 %v2472
  %v2544 = vunpack.c.l.b16 %v2473
  %v2545 = vunpack.c.l.b16 %v2474
  %v2546 = vunpack.c.l.b16 %v2475
  %v2547 = vunpack.c.l.b16 %v2476
  %v2548 = vunpack.c.l.b16 %v2477
  %v2549 = vunpack.c.l.b16 %v2478
  %v2550 = vunpack.c.l.b16 %v2479
  %v2551 = vunpack.c.l.b16 %v2480
  %v2552 = vunpack.c.l.b16 %v2481
  %v2553 = vunpack.c.l.b16 %v2482
  %v2554 = vunpack.c.l.b16 %v2483
  %v2555 = vunpack.c.l.b16 %v2484
  %v2556 = vunpack.c.l.b16 %v2485
  %v2557 = vunpack.c.l.b16 %v2486
  %v2558 = vunpack.c.l.b16 %v2487
  %v2559 = vunpack.c.l.b16 %v2488
  %v2560 = vpack.c.b16 %v2529, %v2528
  %v2561 = vpack.c.b16 %v2531, %v2530
  %v2562 = vpack.c.b16 %v2533, %v2532
  %v2563 = vpack.c.b16 %v2535, %v2534
  %v2564 = vpack.c.b16 %v2537, %v2536
  %v2565 = vpack.c.b16 %v2539, %v2538
  %v2566 = vpack.c.b16 %v2541, %v2540
  %v2567 = vpack.c.b16 %v2543, %v2542
  %v2568 = vpack.c.b16 %v2545, %v2544
  %v2569 = vpack.c.b16 %v2547, %v2546
  %v2570 = vpack.c.b16 %v2549, %v2548
  %v2571 = vpack.c.b16 %v2551, %v2550
  %v2572 = vpack.c.b16 %v2553, %v2552
  %v2573 = vpack.c.b16 %v2555, %v2554
  %v2574 = vpack.c.b16 %v2557, %v2556
  %v2575 = vpack.c.b16 %v2559, %v2558
  %2592 = vmatprep.subr.bf16.mxu0 0
  %2593 = vmatpush1.bf16.msra.mxu0 %v2560
  %2594 = vmatprep.subr.bf16.mxu0 0
  %2595 = vmatpush1.bf16.msra.mxu0 %v2561
  %2596 = vmatprep.subr.bf16.mxu0 0
  %2597 = vmatpush1.bf16.msra.mxu0 %v2562
  %2598 = vmatprep.subr.bf16.mxu0 0
  %2599 = vmatpush1.bf16.msra.mxu0 %v2563
  %2600 = vmatprep.subr.bf16.mxu0 0
  %2601 = vmatpush1.bf16.msra.mxu0 %v2564
  %2602 = vmatprep.subr.bf16.mxu0 0
  %2603 = vmatpush1.bf16.msra.mxu0 %v2565
  %2604 = vmatprep.subr.bf16.mxu0 0
  %2605 = vmatpush1.bf16.msra.mxu0 %v2566
  %2606 = vmatprep.subr.bf16.mxu0 0
  %2607 = vmatpush1.bf16.msra.mxu0 %v2567
  %2608 = vmatprep.subr.bf16.mxu0 0
  %2609 = vmatpush1.bf16.msra.mxu0 %v2568
  %2610 = vmatprep.subr.bf16.mxu0 0
  %2611 = vmatpush1.bf16.msra.mxu0 %v2569
  %2612 = vmatprep.subr.bf16.mxu0 0
  %2613 = vmatpush1.bf16.msra.mxu0 %v2570
  %2614 = vmatprep.subr.bf16.mxu0 0
  %2615 = vmatpush1.bf16.msra.mxu0 %v2571
  %2616 = vmatprep.subr.bf16.mxu0 0
  %2617 = vmatpush1.bf16.msra.mxu0 %v2572
  %2618 = vmatprep.subr.bf16.mxu0 0
  %2619 = vmatpush1.bf16.msra.mxu0 %v2573
  %2620 = vmatprep.subr.bf16.mxu0 0
  %2621 = vmatpush1.bf16.msra.mxu0 %v2574
  %2622 = vmatprep.subr.bf16.mxu0 0
  %2623 = vmatpush1.bf16.msra.mxu0 %v2575
  %2624 = vmatprep.mubr.bf16.mxu0 %v2456
  %2625 = vmatmul.mubr.bf16.gmra.mrb[0].mxu0 %v2455
  %v2626 = vpop.f32.mrb[0].mxu0
  %v2627 = vadd.f32 %v2494, %v2626
  %v2628 = vpop.f32.mrb[0].mxu0
  %v2629 = vpop.f32.mrb[0].mxu0
  %v2630 = vpop.f32.mrb[0].mxu0
  %2631 = vdwg.mxu0
  %vm2632 = vcmask 66560
  %2633 = vst.msk [vmem:[%s7] sm:$0x3] %vm2632, %v2627
  // Predicated region
  $region30: #{_forward_jit.5} parent=0 // pred_check
    _
  $region31: #{_forward_jit.5} parent=0 // pred_check_branch
    %2635 = sbr.rel (0) target = $region33
  $region32: #{_forward_jit.5} parent=0 // pred_region
    _
  $region33: #{_forward_jit.5} parent=0 // pred_fallthru
    _
  // Predicated region
  $region34: #{_forward_jit.5} parent=0 // pred_check
    _
  $region35: #{_forward_jit.5} parent=0 // pred_check_branch
    %2637 = sbr.rel (0) target = $region37
  $region36: #{_forward_jit.5} parent=0 // pred_region
    _
  $region37: #{_forward_jit.5} parent=0 // pred_fallthru
    _

// kernel: _forward_jit.4
$region0: #{_forward_jit.4}
  #allocation0 [shape = 'u32[]', space=smem, size = 0x4, offset = 0x4, fixed_abs, tag = 'smem constant byte address 0x4 - core index']
  #allocation1 [shape = 'u32[144,128]{1,0:T(1,128)}', space=vmem, size = 0x12000, scoped, tag = 'internal scratch']
  %s0 = inlined_call_operand.vmem [shape: f32[2,3,128], index: 0, kind: input, shape index: {}]
  %s1 = inlined_call_operand.vmem [shape: f32[64,3], index: 1, kind: input, shape index: {}]
  %s2 = inlined_call_operand.vmem [shape: f32[64,1], index: 2, kind: input, shape index: {}]
  %s3 = inlined_call_operand.vmem [shape: bf16[128,64], index: 3, kind: input, shape index: {}]
  %s4 = inlined_call_operand.vmem [shape: f32[128,1], index: 4, kind: input, shape index: {}]
  %s5 = inlined_call_operand.vmem [shape: bf16[1024,128], index: 5, kind: input, shape index: {}]
  %s6 = inlined_call_operand.vmem [shape: f32[1024,1], index: 6, kind: input, shape index: {}]
  %s7 = inlined_call_operand.vmem [shape: f32[2,1024,1], index: 7, kind: output, shape index: {}]
  %s8 = sld [smem:[#allocation0]]
  $region69: #{_forward_jit.4} parent=0
    _
  %s10 = ssub.s32 1, %s8
  %s11 = scalar_select 0, %s10, %s8
  loop: start=0, step=1, limit=4
  $region2: #{_forward_jit.4} parent=0 // loop_pre_header
    _
  $region3: #{_forward_jit.4} parent=0 // loop_header
    %s13 = sphi 0, %s17
    %p14 = scmp.ge.s32.totalorder %s13, 4
    %s20 = sphi 0, %s32
    %s21 = sphi 0, %s28
    %s22 = sphi 0, %s20
    %s23 = sphi 0, %s21
    %s24 = sphi 0, %s22
    %s25 = sphi 0, %s23
    %s37 = sphi 0, %s39
    %s40 = sphi 0, %s37
    %s41 = sphi 0, %s40
    %s57 = sphi 0, %s41
    %s61 = sphi 0, %s61
    %s63 = sphi 0, %s61
    %s64 = sphi 0, %s63
    %s78 = sphi 0, %s64
    %s82 = sphi 0, %s82
    %s84 = sphi 0, %s82
    %s85 = sphi 0, %s84
    %s99 = sphi 0, %s85
    %s103 = sphi 0, %s103
    %s105 = sphi 0, %s103
    %s106 = sphi 0, %s105
    %s120 = sphi 0, %s106
    %s124 = sphi 0, %s124
    %s126 = sphi 0, %s124
    %s127 = sphi 0, %s126
    %s141 = sphi 0, %s127
    %s145 = sphi 0, %s145
    %s147 = sphi 0, %s145
    %s148 = sphi 0, %s147
    %s162 = sphi 0, %s148
    %s166 = sphi 0, %s166
    %s168 = sphi 0, %s166
    %s169 = sphi 0, %s168
    %s183 = sphi 0, %s169
    %s189 = sphi 0, %s191
    %s192 = sphi 0, %s189
    %s193 = sphi 0, %s192
    %s209 = sphi 0, %s193
  $region4: #{_forward_jit.4} parent=0 // loop_header_branch
    %16 = sbr.rel (%p14) target = $region8
  $region5: #{_forward_jit.4} parent=0 // loop_body
    %s18 = ssub.s32 %s13, 1
    %s19 = ssub.s32 %s13, 2
    %s26 = sadd.s32 1, %s21
    %p27 = scmp.ge.s32.totalorder %s26, 1
    %s28 = scalar_select %p27, 0, %s26
    %s29 = sadd.s32 1, %s20
    %s30 = scalar_select %p27, %s29, %s20
    %p31 = scmp.ge.s32.totalorder %s30, 2
    %s32 = scalar_select %p31, 0, %s30
    %s33 = ssub.s32 %s20, %s32
    %s34 = ssub.s32 %s21, %s28
    %s35 = sor.u32 %s33, %s34
    %p36 = scmp.eq.s32.totalorder %s35, 0
    %s38 = sadd.s32 %s37, 1
    %s39 = scalar_select %p36, %s37, %s38
    %p42 = pneg %p36
    %p43 = scmp.eq.s32.totalorder %s13, 1
    %p44 = por %p42, %p43
    %p45 = scmp.ne.s32.totalorder %s37, %s40
    %p46 = scmp.eq.s32.totalorder %s13, 0
    %p47 = por %p45, %p46
    %p48 = scmp.ne.s32.totalorder %s37, %s40
    %p49 = scmp.eq.s32.totalorder %s18, 1
    %p50 = por %p48, %p49
    %p51 = scmp.ne.s32.totalorder %s40, %s41
    %p52 = scmp.eq.s32.totalorder %s18, 0
    %p53 = por %p51, %p52
    %p54 = scmp.ne.s32.totalorder %s40, %s41
    %p55 = scmp.eq.s32.totalorder %s19, 1
    %p56 = por %p54, %p55
    %p58 = scmp.ne.s32.totalorder %s41, %s57
    %p59 = scmp.eq.s32.totalorder %s19, 0
    %p60 = por %p58, %p59
    %s62 = sadd.s32 %s61, 1
    %p65 = scmp.eq.s32.totalorder %s13, 1
    %p66 = scmp.ne.s32.totalorder %s61, %s63
    %p67 = scmp.eq.s32.totalorder %s13, 0
    %p68 = por %p66, %p67
    %p69 = scmp.ne.s32.totalorder %s61, %s63
    %p70 = scmp.eq.s32.totalorder %s18, 1
    %p71 = por %p69, %p70
    %p72 = scmp.ne.s32.totalorder %s63, %s64
    %p73 = scmp.eq.s32.totalorder %s18, 0
    %p74 = por %p72, %p73
    %p75 = scmp.ne.s32.totalorder %s63, %s64
    %p76 = scmp.eq.s32.totalorder %s19, 1
    %p77 = por %p75, %p76
    %p79 = scmp.ne.s32.totalorder %s64, %s78
    %p80 = scmp.eq.s32.totalorder %s19, 0
    %p81 = por %p79, %p80
    %s83 = sadd.s32 %s82, 1
    %p86 = scmp.eq.s32.totalorder %s13, 1
    %p87 = scmp.ne.s32.totalorder %s82, %s84
    %p88 = scmp.eq.s32.totalorder %s13, 0
    %p89 = por %p87, %p88
    %p90 = scmp.ne.s32.totalorder %s82, %s84
    %p91 = scmp.eq.s32.totalorder %s18, 1
    %p92 = por %p90, %p91
    %p93 = scmp.ne.s32.totalorder %s84, %s85
    %p94 = scmp.eq.s32.totalorder %s18, 0
    %p95 = por %p93, %p94
    %p96 = scmp.ne.s32.totalorder %s84, %s85
    %p97 = scmp.eq.s32.totalorder %s19, 1
    %p98 = por %p96, %p97
    %p100 = scmp.ne.s32.totalorder %s85, %s99
    %p101 = scmp.eq.s32.totalorder %s19, 0
    %p102 = por %p100, %p101
    %s104 = sadd.s32 %s103, 1
    %p107 = scmp.eq.s32.totalorder %s13, 1
    %p108 = scmp.ne.s32.totalorder %s103, %s105
    %p109 = scmp.eq.s32.totalorder %s13, 0
    %p110 = por %p108, %p109
    %p111 = scmp.ne.s32.totalorder %s103, %s105
    %p112 = scmp.eq.s32.totalorder %s18, 1
    %p113 = por %p111, %p112
    %p114 = scmp.ne.s32.totalorder %s105, %s106
    %p115 = scmp.eq.s32.totalorder %s18, 0
    %p116 = por %p114, %p115
    %p117 = scmp.ne.s32.totalorder %s105, %s106
    %p118 = scmp.eq.s32.totalorder %s19, 1
    %p119 = por %p117, %p118
    %p121 = scmp.ne.s32.totalorder %s106, %s120
    %p122 = scmp.eq.s32.totalorder %s19, 0
    %p123 = por %p121, %p122
    %s125 = sadd.s32 %s124, 1
    %p128 = scmp.eq.s32.totalorder %s13, 1
    %p129 = scmp.ne.s32.totalorder %s124, %s126
    %p130 = scmp.eq.s32.totalorder %s13, 0
    %p131 = por %p129, %p130
    %p132 = scmp.ne.s32.totalorder %s124, %s126
    %p133 = scmp.eq.s32.totalorder %s18, 1
    %p134 = por %p132, %p133
    %p135 = scmp.ne.s32.totalorder %s126, %s127
    %p136 = scmp.eq.s32.totalorder %s18, 0
    %p137 = por %p135, %p136
    %p138 = scmp.ne.s32.totalorder %s126, %s127
    %p139 = scmp.eq.s32.totalorder %s19, 1
    %p140 = por %p138, %p139
    %p142 = scmp.ne.s32.totalorder %s127, %s141
    %p143 = scmp.eq.s32.totalorder %s19, 0
    %p144 = por %p142, %p143
    %s146 = sadd.s32 %s145, 1
    %p149 = scmp.eq.s32.totalorder %s13, 1
    %p150 = scmp.ne.s32.totalorder %s145, %s147
    %p151 = scmp.eq.s32.totalorder %s13, 0
    %p152 = por %p150, %p151
    %p153 = scmp.ne.s32.totalorder %s145, %s147
    %p154 = scmp.eq.s32.totalorder %s18, 1
    %p155 = por %p153, %p154
    %p156 = scmp.ne.s32.totalorder %s147, %s148
    %p157 = scmp.eq.s32.totalorder %s18, 0
    %p158 = por %p156, %p157
    %p159 = scmp.ne.s32.totalorder %s147, %s148
    %p160 = scmp.eq.s32.totalorder %s19, 1
    %p161 = por %p159, %p160
    %p163 = scmp.ne.s32.totalorder %s148, %s162
    %p164 = scmp.eq.s32.totalorder %s19, 0
    %p165 = por %p163, %p164
    %s167 = sadd.s32 %s166, 1
    %p170 = scmp.eq.s32.totalorder %s13, 1
    %p171 = scmp.ne.s32.totalorder %s166, %s168
    %p172 = scmp.eq.s32.totalorder %s13, 0
    %p173 = por %p171, %p172
    %p174 = scmp.ne.s32.totalorder %s166, %s168
    %p175 = scmp.eq.s32.totalorder %s18, 1
    %p176 = por %p174, %p175
    %p177 = scmp.ne.s32.totalorder %s168, %s169
    %p178 = scmp.eq.s32.totalorder %s18, 0
    %p179 = por %p177, %p178
    %p180 = scmp.ne.s32.totalorder %s168, %s169
    %p181 = scmp.eq.s32.totalorder %s19, 1
    %p182 = por %p180, %p181
    %p184 = scmp.ne.s32.totalorder %s169, %s183
    %p185 = scmp.eq.s32.totalorder %s19, 0
    %p186 = por %p184, %p185
    %s187 = ssub.s32 %s20, %s32
    %p188 = scmp.eq.s32.totalorder %s187, 0
    %s190 = sadd.s32 %s189, 1
    %s191 = scalar_select %p188, %s189, %s190
    %p194 = pneg %p188
    %p195 = scmp.eq.s32.totalorder %s13, 1
    %p196 = por %p194, %p195
    %p197 = scmp.ne.s32.totalorder %s189, %s192
    %p198 = scmp.eq.s32.totalorder %s13, 0
    %p199 = por %p197, %p198
    %p200 = scmp.ne.s32.totalorder %s189, %s192
    %p201 = scmp.eq.s32.totalorder %s18, 1
    %p202 = por %p200, %p201
    %p203 = scmp.ne.s32.totalorder %s192, %s193
    %p204 = scmp.eq.s32.totalorder %s18, 0
    %p205 = por %p203, %p204
    %p206 = scmp.ne.s32.totalorder %s192, %s193
    %p207 = scmp.eq.s32.totalorder %s19, 1
    %p208 = por %p206, %p207
    %p210 = scmp.ne.s32.totalorder %s193, %s209
    %p211 = scmp.eq.s32.totalorder %s19, 0
    %p212 = por %p210, %p211
    %p213 = scmp.le.s32.totalorder 1, %s13
    %p214 = scmp.lt.s32.totalorder %s13, 3
    %p215 = pnand %p213, %p214
    %p216 = pneg %p215
    // Predicated region
    $region9: #{_forward_jit.4} parent=5 // pred_check
      _
    $region10: #{_forward_jit.4} parent=5 // pred_check_branch
      %218 = sbr.rel (%p215) target = $region12
    $region11: #{_forward_jit.4} parent=5 // pred_region
      %s219 = ssub.s32 %s13, 1
      // Predicated region
      $region13: #{_forward_jit.4} parent=11 // pred_check
        %p220 = pneg %p74
      $region14: #{_forward_jit.4} parent=11 // pred_check_branch
        %222 = sbr.rel (%p220) target = $region16
      $region15: #{_forward_jit.4} parent=11 // pred_region
        _
      $region16: #{_forward_jit.4} parent=11 // pred_fallthru
        _
      // Predicated region
      $region17: #{_forward_jit.4} parent=11 // pred_check
        %p223 = pneg %p95
      $region18: #{_forward_jit.4} parent=11 // pred_check_branch
        %225 = sbr.rel (%p223) target = $region20
      $region19: #{_forward_jit.4} parent=11 // pred_region
        _
      $region20: #{_forward_jit.4} parent=11 // pred_fallthru
        _
      // Predicated region
      $region21: #{_forward_jit.4} parent=11 // pred_check
        %p226 = pneg %p116
      $region22: #{_forward_jit.4} parent=11 // pred_check_branch
        %228 = sbr.rel (%p226) target = $region24
      $region23: #{_forward_jit.4} parent=11 // pred_region
        _
      $region24: #{_forward_jit.4} parent=11 // pred_fallthru
        _
      // Predicated region
      $region25: #{_forward_jit.4} parent=11 // pred_check
        %p229 = pneg %p137
      $region26: #{_forward_jit.4} parent=11 // pred_check_branch
        %231 = sbr.rel (%p229) target = $region28
      $region27: #{_forward_jit.4} parent=11 // pred_region
        _
      $region28: #{_forward_jit.4} parent=11 // pred_fallthru
        _
      // Predicated region
      $region29: #{_forward_jit.4} parent=11 // pred_check
        %p232 = pneg %p158
      $region30: #{_forward_jit.4} parent=11 // pred_check_branch
        %234 = sbr.rel (%p232) target = $region32
      $region31: #{_forward_jit.4} parent=11 // pred_region
        _
      $region32: #{_forward_jit.4} parent=11 // pred_fallthru
        _
      // Predicated region
      $region33: #{_forward_jit.4} parent=11 // pred_check
        %p235 = pneg %p179
      $region34: #{_forward_jit.4} parent=11 // pred_check_branch
        %237 = sbr.rel (%p235) target = $region36
      $region35: #{_forward_jit.4} parent=11 // pred_region
        _
      $region36: #{_forward_jit.4} parent=11 // pred_fallthru
        _
    $region12: #{_forward_jit.4} parent=5 // pred_fallthru
      _
    %p238 = scmp.lt.s32.totalorder %s13, 2
    // Predicated region
    $region37: #{_forward_jit.4} parent=5 // pred_check
      %p239 = pneg %p238
    $region38: #{_forward_jit.4} parent=5 // pred_check_branch
      %241 = sbr.rel (%p239) target = $region40
    $region39: #{_forward_jit.4} parent=5 // pred_region
      // Predicated region
      $region41: #{_forward_jit.4} parent=39 // pred_check
        %p242 = pneg %p47
      $region42: #{_forward_jit.4} parent=39 // pred_check_branch
        %244 = sbr.rel (%p242) target = $region44
      $region43: #{_forward_jit.4} parent=39 // pred_region
        %p245 = scmp.lt.s32.totalorder %s20, 1
        %s246 = scalar_select %p245, %s20, 1
        %p247 = scmp.lt.s32.totalorder %s21, 0
        %s248 = scalar_select %p247, %s21, 0
        %s249 = sadd.s32 %s248, %s246
        %s250 = smul.addr %s249, 4
        %s251 = scalar_lea.vmem %s0, %s250
      $region44: #{_forward_jit.4} parent=39 // pred_fallthru
        _
    $region40: #{_forward_jit.4} parent=5 // pred_fallthru
      _
    %p252 = scmp.le.s32.totalorder 1, %s13
    %p253 = scmp.lt.s32.totalorder %s13, 3
    %p254 = pnand %p252, %p253
    %p255 = pneg %p254
    // Predicated region
    $region45: #{_forward_jit.4} parent=5 // pred_check
      _
    $region46: #{_forward_jit.4} parent=5 // pred_check_branch
      %257 = sbr.rel (%p254) target = $region48
    $region47: #{_forward_jit.4} parent=5 // pred_region
      %s258 = ssub.s32 %s13, 1
      %p259 = scmp.lt.s32.totalorder %s22, 1
      %s260 = scalar_select %p259, %s22, 1
      %p261 = scmp.lt.s32.totalorder %s23, 0
      %s262 = scalar_select %p261, %s23, 0
      %s263 = sadd.s32 %s262, %s260
      %s264 = smul.addr %s263, 4
      %s265 = scalar_lea.vmem %s0, %s264
      %p266 = pneg %p53
      %p267 = pneg %p50
      %p268 = pneg %p74
      %p269 = pneg %p71
      %p270 = pneg %p95
      %p271 = pneg %p92
      %p272 = pneg %p116
      %p273 = pneg %p113
      %p274 = pneg %p137
      %p275 = pneg %p134
      %p276 = pneg %p158
      %p277 = pneg %p155
      %p278 = pneg %p179
      %p279 = pneg %p176
      %p280 = pneg %p205
      %p281 = pneg %p202
      %p282 = scmp.lt.s32.totalorder %s22, 1
      %s283 = scalar_select %p282, %s22, 1
      %s284 = smul.addr %s283, 128
      %s285 = smul.addr %s284, 8
      %s286 = scalar_lea.vmem %s7, %s285
      %p287 = scmp.lt.s32.totalorder %s22, 1
      %s288 = scalar_select %p287, %s22, 1
      %p289 = scmp.lt.s32.totalorder %s23, 0
      %s290 = scalar_select %p289, %s23, 0
      %s291 = sadd.s32 %s290, %s288
      %s292 = smul.addr %s291, 4
      %s293 = scalar_lea.vmem %s0, %s292
      %p294 = scmp.lt.s32.totalorder %s22, 1
      %s295 = scalar_select %p294, %s22, 1
      %s296 = smul.addr %s295, 128
      %s297 = smul.addr %s296, 8
      %s298 = scalar_lea.vmem %s7, %s297
      %v300 = vld [vmem:[%s293] sm:$0x7]
      %v301 = vld [vmem:[%s1] sm:$0xff]
      %v302 = vld [vmem:[%s1 + $0x8] sm:$0xff]
      %v303 = vld [vmem:[%s1 + $0x10] sm:$0xff]
      %v304 = vld [vmem:[%s1 + $0x18] sm:$0xff]
      %v305 = vld [vmem:[%s1 + $0x20] sm:$0xff]
      %v306 = vld [vmem:[%s1 + $0x28] sm:$0xff]
      %v307 = vld [vmem:[%s1 + $0x30] sm:$0xff]
      %v308 = vld [vmem:[%s1 + $0x38] sm:$0xff]
      %310 = vset.pattern.permute.xlu0 0
      %311 = vperm.xlu0 %310, %v301
      %v312 = vpop.permute.xlu0 %311
      %315 = vset.pattern.permute.xlu0 0
      %316 = vperm.xlu0 %315, %v302
      %v317 = vpop.permute.xlu0 %316
      %320 = vset.pattern.permute.xlu0 0
      %321 = vperm.xlu0 %320, %v303
      %v322 = vpop.permute.xlu0 %321
      %325 = vset.pattern.permute.xlu0 0
      %326 = vperm.xlu0 %325, %v304
      %v327 = vpop.permute.xlu0 %326
      %330 = vset.pattern.permute.xlu0 0
      %331 = vperm.xlu0 %330, %v305
      %v332 = vpop.permute.xlu0 %331
      %335 = vset.pattern.permute.xlu0 0
      %336 = vperm.xlu0 %335, %v306
      %v337 = vpop.permute.xlu0 %336
      %340 = vset.pattern.permute.xlu0 0
      %341 = vperm.xlu0 %340, %v307
      %v342 = vpop.permute.xlu0 %341
      %345 = vset.pattern.permute.xlu0 0
      %346 = vperm.xlu0 %345, %v308
      %v347 = vpop.permute.xlu0 %346
      %v349 = vlaneseq
      %v350 = vshrl.u32 %v349, 7
      %v351 = vsub.s32 0, %v350
      %v352 = vrot.slane %v300, %v351
      %v353 = vmul.f32 %v312, %v352
      %v354 = vmul.f32 %v317, %v352
      %v355 = vmul.f32 %v322, %v352
      %v356 = vmul.f32 %v327, %v352
      %v357 = vmul.f32 %v332, %v352
      %v358 = vmul.f32 %v337, %v352
      %v359 = vmul.f32 %v342, %v352
      %v360 = vmul.f32 %v347, %v352
      %361 = vset.pattern.permute.xlu0 1
      %362 = vperm.xlu0 %361, %v301
      %v363 = vpop.permute.xlu0 %362
      %365 = vset.pattern.permute.xlu0 1
      %366 = vperm.xlu0 %365, %v302
      %v367 = vpop.permute.xlu0 %366
      %369 = vset.pattern.permute.xlu0 1
      %370 = vperm.xlu0 %369, %v303
      %v371 = vpop.permute.xlu0 %370
      %373 = vset.pattern.permute.xlu0 1
      %374 = vperm.xlu0 %373, %v304
      %v375 = vpop.permute.xlu0 %374
      %377 = vset.pattern.permute.xlu0 1
      %378 = vperm.xlu0 %377, %v305
      %v379 = vpop.permute.xlu0 %378
      %381 = vset.pattern.permute.xlu0 1
      %382 = vperm.xlu0 %381, %v306
      %v383 = vpop.permute.xlu0 %382
      %385 = vset.pattern.permute.xlu0 1
      %386 = vperm.xlu0 %385, %v307
      %v387 = vpop.permute.xlu0 %386
      %389 = vset.pattern.permute.xlu0 1
      %390 = vperm.xlu0 %389, %v308
      %v391 = vpop.permute.xlu0 %390
      %v393 = vlaneseq
      %v394 = vshrl.u32 %v393, 7
      %v395 = vsub.s32 1, %v394
      %v396 = vrot.slane %v300, %v395
      %v397 = vmul.f32 %v363, %v396
      %v398 = vmul.f32 %v367, %v396
      %v399 = vmul.f32 %v371, %v396
      %v400 = vmul.f32 %v375, %v396
      %v401 = vmul.f32 %v379, %v396
      %v402 = vmul.f32 %v383, %v396
      %v403 = vmul.f32 %v387, %v396
      %v404 = vmul.f32 %v391, %v396
      %v405 = vadd.f32 %v353, %v397
      %v406 = vadd.f32 %v354, %v398
      %v407 = vadd.f32 %v355, %v399
      %v408 = vadd.f32 %v356, %v400
      %v409 = vadd.f32 %v357, %v401
      %v410 = vadd.f32 %v358, %v402
      %v411 = vadd.f32 %v359, %v403
      %v412 = vadd.f32 %v360, %v404
      %413 = vset.pattern.permute.xlu0 2
      %414 = vperm.xlu0 %413, %v301
      %v415 = vpop.permute.xlu0 %414
      %417 = vset.pattern.permute.xlu0 2
      %418 = vperm.xlu0 %417, %v302
      %v419 = vpop.permute.xlu0 %418
      %421 = vset.pattern.permute.xlu0 2
      %422 = vperm.xlu0 %421, %v303
      %v423 = vpop.permute.xlu0 %422
      %425 = vset.pattern.permute.xlu0 2
      %426 = vperm.xlu0 %425, %v304
      %v427 = vpop.permute.xlu0 %426
      %429 = vset.pattern.permute.xlu0 2
      %430 = vperm.xlu0 %429, %v305
      %v431 = vpop.permute.xlu0 %430
      %433 = vset.pattern.permute.xlu0 2
      %434 = vperm.xlu0 %433, %v306
      %v435 = vpop.permute.xlu0 %434
      %437 = vset.pattern.permute.xlu0 2
      %438 = vperm.xlu0 %437, %v307
      %v439 = vpop.permute.xlu0 %438
      %441 = vset.pattern.permute.xlu0 2
      %442 = vperm.xlu0 %441, %v308
      %v443 = vpop.permute.xlu0 %442
      %v445 = vlaneseq
      %v446 = vshrl.u32 %v445, 7
      %v447 = vsub.s32 2, %v446
      %v448 = vrot.slane %v300, %v447
      %v449 = vmul.f32 %v415, %v448
      %v450 = vmul.f32 %v419, %v448
      %v451 = vmul.f32 %v423, %v448
      %v452 = vmul.f32 %v427, %v448
      %v453 = vmul.f32 %v431, %v448
      %v454 = vmul.f32 %v435, %v448
      %v455 = vmul.f32 %v439, %v448
      %v456 = vmul.f32 %v443, %v448
      %v457 = vadd.f32 %v405, %v449
      %v458 = vadd.f32 %v406, %v450
      %v459 = vadd.f32 %v407, %v451
      %v460 = vadd.f32 %v408, %v452
      %v461 = vadd.f32 %v409, %v453
      %v462 = vadd.f32 %v410, %v454
      %v463 = vadd.f32 %v411, %v455
      %v464 = vadd.f32 %v412, %v456
      %v465 = vld [vmem:[%s2] sm:$0xff]
      %v466 = vld [vmem:[%s2 + $0x8] sm:$0xff]
      %v467 = vld [vmem:[%s2 + $0x10] sm:$0xff]
      %v468 = vld [vmem:[%s2 + $0x18] sm:$0xff]
      %v469 = vld [vmem:[%s2 + $0x20] sm:$0xff]
      %v470 = vld [vmem:[%s2 + $0x28] sm:$0xff]
      %v471 = vld [vmem:[%s2 + $0x30] sm:$0xff]
      %v472 = vld [vmem:[%s2 + $0x38] sm:$0xff]
      %474 = vset.pattern.permute.xlu0 0
      %475 = vperm.xlu0 %474, %v465
      %v476 = vpop.permute.xlu0 %475
      %479 = vset.pattern.permute.xlu0 0
      %480 = vperm.xlu0 %479, %v466
      %v481 = vpop.permute.xlu0 %480
      %484 = vset.pattern.permute.xlu0 0
      %485 = vperm.xlu0 %484, %v467
      %v486 = vpop.permute.xlu0 %485
      %489 = vset.pattern.permute.xlu0 0
      %490 = vperm.xlu0 %489, %v468
      %v491 = vpop.permute.xlu0 %490
      %494 = vset.pattern.permute.xlu0 0
      %495 = vperm.xlu0 %494, %v469
      %v496 = vpop.permute.xlu0 %495
      %499 = vset.pattern.permute.xlu0 0
      %500 = vperm.xlu0 %499, %v470
      %v501 = vpop.permute.xlu0 %500
      %504 = vset.pattern.permute.xlu0 0
      %505 = vperm.xlu0 %504, %v471
      %v506 = vpop.permute.xlu0 %505
      %509 = vset.pattern.permute.xlu0 0
      %510 = vperm.xlu0 %509, %v472
      %v511 = vpop.permute.xlu0 %510
      %v513 = vadd.f32 %v457, %v476
      %v514 = vadd.f32 %v458, %v481
      %v515 = vadd.f32 %v459, %v486
      %v516 = vadd.f32 %v460, %v491
      %v517 = vadd.f32 %v461, %v496
      %v518 = vadd.f32 %v462, %v501
      %v519 = vadd.f32 %v463, %v506
      %v520 = vadd.f32 %v464, %v511
      %v521 = vmax.f32 %v513, 0.0
      %v522 = vmax.f32 %v514, 0.0
      %v523 = vmax.f32 %v515, 0.0
      %v524 = vmax.f32 %v516, 0.0
      %v525 = vmax.f32 %v517, 0.0
      %v526 = vmax.f32 %v518, 0.0
      %v527 = vmax.f32 %v519, 0.0
      %v528 = vmax.f32 %v520, 0.0
      %v529 = vld [vmem:[%s3] sm:$0xf]
      %v530 = vld [vmem:[%s3 + $0x4] sm:$0xf]
      %v531 = vld [vmem:[%s3 + $0x8] sm:$0xf]
      %v532 = vld [vmem:[%s3 + $0xc] sm:$0xf]
      %v533 = vld [vmem:[%s3 + $0x10] sm:$0xf]
      %v534 = vld [vmem:[%s3 + $0x14] sm:$0xf]
      %v535 = vld [vmem:[%s3 + $0x18] sm:$0xf]
      %v536 = vld [vmem:[%s3 + $0x1c] sm:$0xf]
      %v537 = vld [vmem:[%s3 + $0x20] sm:$0xf]
      %v538 = vld [vmem:[%s3 + $0x24] sm:$0xf]
      %v539 = vld [vmem:[%s3 + $0x28] sm:$0xf]
      %v540 = vld [vmem:[%s3 + $0x2c] sm:$0xf]
      %v541 = vld [vmem:[%s3 + $0x30] sm:$0xf]
      %v542 = vld [vmem:[%s3 + $0x34] sm:$0xf]
      %v543 = vld [vmem:[%s3 + $0x38] sm:$0xf]
      %v544 = vld [vmem:[%s3 + $0x3c] sm:$0xf]
      %v545 = vpack.c.bf16 %v522, %v521
      %v546 = vpack.c.bf16 %v524, %v523
      %v547 = vpack.c.bf16 %v526, %v525
      %v548 = vpack.c.bf16 %v528, %v527
      %v549 = vld [vmem:[%s4] sm:$0xff]
      %v550 = vld [vmem:[%s4 + $0x8] sm:$0xff]
      %v551 = vld [vmem:[%s4 + $0x10] sm:$0xff]
      %v552 = vld [vmem:[%s4 + $0x18] sm:$0xff]
      %v553 = vld [vmem:[%s4 + $0x20] sm:$0xff]
      %v554 = vld [vmem:[%s4 + $0x28] sm:$0xff]
      %v555 = vld [vmem:[%s4 + $0x30] sm:$0xff]
      %v556 = vld [vmem:[%s4 + $0x38] sm:$0xff]
      %v557 = vld [vmem:[%s4 + $0x40] sm:$0xff]
      %v558 = vld [vmem:[%s4 + $0x48] sm:$0xff]
      %v559 = vld [vmem:[%s4 + $0x50] sm:$0xff]
      %v560 = vld [vmem:[%s4 + $0x58] sm:$0xff]
      %v561 = vld [vmem:[%s4 + $0x60] sm:$0xff]
      %v562 = vld [vmem:[%s4 + $0x68] sm:$0xff]
      %v563 = vld [vmem:[%s4 + $0x70] sm:$0xff]
      %v564 = vld [vmem:[%s4 + $0x78] sm:$0xff]
      %566 = vset.pattern.permute.xlu0 0
      %567 = vperm.xlu0 %566, %v549
      %v568 = vpop.permute.xlu0 %567
      %571 = vset.pattern.permute.xlu0 0
      %572 = vperm.xlu0 %571, %v550
      %v573 = vpop.permute.xlu0 %572
      %576 = vset.pattern.permute.xlu0 0
      %577 = vperm.xlu0 %576, %v551
      %v578 = vpop.permute.xlu0 %577
      %581 = vset.pattern.permute.xlu0 0
      %582 = vperm.xlu0 %581, %v552
      %v583 = vpop.permute.xlu0 %582
      %586 = vset.pattern.permute.xlu0 0
      %587 = vperm.xlu0 %586, %v553
      %v588 = vpop.permute.xlu0 %587
      %591 = vset.pattern.permute.xlu0 0
      %592 = vperm.xlu0 %591, %v554
      %v593 = vpop.permute.xlu0 %592
      %596 = vset.pattern.permute.xlu0 0
      %597 = vperm.xlu0 %596, %v555
      %v598 = vpop.permute.xlu0 %597
      %601 = vset.pattern.permute.xlu0 0
      %602 = vperm.xlu0 %601, %v556
      %v603 = vpop.permute.xlu0 %602
      %606 = vset.pattern.permute.xlu0 0
      %607 = vperm.xlu0 %606, %v557
      %v608 = vpop.permute.xlu0 %607
      %611 = vset.pattern.permute.xlu0 0
      %612 = vperm.xlu0 %611, %v558
      %v613 = vpop.permute.xlu0 %612
      %616 = vset.pattern.permute.xlu0 0
      %617 = vperm.xlu0 %616, %v559
      %v618 = vpop.permute.xlu0 %617
      %621 = vset.pattern.permute.xlu0 0
      %622 = vperm.xlu0 %621, %v560
      %v623 = vpop.permute.xlu0 %622
      %626 = vset.pattern.permute.xlu0 0
      %627 = vperm.xlu0 %626, %v561
      %v628 = vpop.permute.xlu0 %627
      %631 = vset.pattern.permute.xlu0 0
      %632 = vperm.xlu0 %631, %v562
      %v633 = vpop.permute.xlu0 %632
      %636 = vset.pattern.permute.xlu0 0
      %637 = vperm.xlu0 %636, %v563
      %v638 = vpop.permute.xlu0 %637
      %641 = vset.pattern.permute.xlu0 0
      %642 = vperm.xlu0 %641, %v564
      %v643 = vpop.permute.xlu0 %642
      %v661 = vunpack.c.l.b16 %v529
      %v662 = vunpack.c.l.b16 %v530
      %v663 = vunpack.c.l.b16 %v531
      %v664 = vunpack.c.l.b16 %v532
      %v665 = vunpack.c.l.b16 %v533
      %v666 = vunpack.c.l.b16 %v534
      %v667 = vunpack.c.l.b16 %v535
      %v668 = vunpack.c.l.b16 %v536
      %v669 = vunpack.c.l.b16 %v537
      %v670 = vunpack.c.l.b16 %v538
      %v671 = vunpack.c.l.b16 %v539
      %v672 = vunpack.c.l.b16 %v540
      %v673 = vunpack.c.l.b16 %v541
      %v674 = vunpack.c.l.b16 %v542
      %v675 = vunpack.c.l.b16 %v543
      %v676 = vunpack.c.l.b16 %v544
      %v677 = vpack.c.b16 %v662, %v661
      %v678 = vpack.c.b16 %v664, %v663
      %v679 = vpack.c.b16 %v666, %v665
      %v680 = vpack.c.b16 %v668, %v667
      %v681 = vpack.c.b16 %v670, %v669
      %v682 = vpack.c.b16 %v672, %v671
      %v683 = vpack.c.b16 %v674, %v673
      %v684 = vpack.c.b16 %v676, %v675
      %vm685 = vcmask 523264
      %v687 = vsel %vm685, %v677, 0
      %v690 = vsel %vm685, %v678, 0
      %v693 = vsel %vm685, %v679, 0
      %v696 = vsel %vm685, %v680, 0
      %v699 = vsel %vm685, %v681, 0
      %v702 = vsel %vm685, %v682, 0
      %v705 = vsel %vm685, %v683, 0
      %v708 = vsel %vm685, %v684, 0
      %710 = vmatprep.subr.bf16.mxu0 0
      %711 = vmatpush1.bf16.msra.mxu0 %v545
      %712 = vmatprep.subr.bf16.mxu0 0
      %713 = vmatpush1.bf16.msra.mxu0 %v546
      %714 = vmatprep.subr.bf16.mxu0 0
      %715 = vmatpush1.bf16.msra.mxu0 %v547
      %716 = vmatprep.subr.bf16.mxu0 0
      %717 = vmatpush1.bf16.msra.mxu0 %v548
      %718 = vmatprep.subr.bf16.mxu0 0
      %719 = vmatpush1.bf16.msra.mxu0 0
      %720 = vmatprep.subr.bf16.mxu0 0
      %721 = vmatpush1.bf16.msra.mxu0 0
      %722 = vmatprep.subr.bf16.mxu0 0
      %723 = vmatpush1.bf16.msra.mxu0 0
      %724 = vmatprep.subr.bf16.mxu0 0
      %725 = vmatpush1.bf16.msra.mxu0 0
      %726 = vmatprep.subr.bf16.mxu0 0
      %727 = vmatpush1.bf16.msra.mxu0 0
      %728 = vmatprep.subr.bf16.mxu0 0
      %729 = vmatpush1.bf16.msra.mxu0 0
      %730 = vmatprep.subr.bf16.mxu0 0
      %731 = vmatpush1.bf16.msra.mxu0 0
      %732 = vmatprep.subr.bf16.mxu0 0
      %733 = vmatpush1.bf16.msra.mxu0 0
      %734 = vmatprep.subr.bf16.mxu0 0
      %735 = vmatpush1.bf16.msra.mxu0 0
      %736 = vmatprep.subr.bf16.mxu0 0
      %737 = vmatpush1.bf16.msra.mxu0 0
      %738 = vmatprep.subr.bf16.mxu0 0
      %739 = vmatpush1.bf16.msra.mxu0 0
      %740 = vmatprep.subr.bf16.mxu0 0
      %741 = vmatpush1.bf16.msra.mxu0 0
      %742 = vmatprep.mubr.bf16.mxu0 0
      %743 = vmatmul.mubr.bf16.gmra.mrb[0].mxu0 %v687
      %v744 = vpop.f32.mrb[0].mxu0
      %v745 = vadd.f32 %v568, %v744
      %v746 = vpop.f32.mrb[0].mxu0
      %v747 = vpop.f32.mrb[0].mxu0
      %v748 = vadd.f32 %v573, %v747
      %v749 = vpop.f32.mrb[0].mxu0
      %750 = vmatprep.mubr.bf16.mxu0 0
      %751 = vmatmul.mubr.bf16.gmra.mrb[0].mxu0 %v690
      %v752 = vpop.f32.mrb[0].mxu0
      %v753 = vadd.f32 %v578, %v752
      %v754 = vpop.f32.mrb[0].mxu0
      %v755 = vpop.f32.mrb[0].mxu0
      %v756 = vadd.f32 %v583, %v755
      %v757 = vpop.f32.mrb[0].mxu0
      %758 = vmatprep.mubr.bf16.mxu0 0
      %759 = vmatmul.mubr.bf16.gmra.mrb[0].mxu0 %v693
      %v760 = vpop.f32.mrb[0].mxu0
      %v761 = vadd.f32 %v588, %v760
      %v762 = vpop.f32.mrb[0].mxu0
      %v763 = vpop.f32.mrb[0].mxu0
      %v764 = vadd.f32 %v593, %v763
      %v765 = vpop.f32.mrb[0].mxu0
      %766 = vmatprep.mubr.bf16.mxu0 0
      %767 = vmatmul.mubr.bf16.gmra.mrb[0].mxu0 %v696
      %v768 = vpop.f32.mrb[0].mxu0
      %v769 = vadd.f32 %v598, %v768
      %v770 = vpop.f32.mrb[0].mxu0
      %v771 = vpop.f32.mrb[0].mxu0
      %v772 = vadd.f32 %v603, %v771
      %v773 = vpop.f32.mrb[0].mxu0
      %774 = vmatprep.mubr.bf16.mxu0 0
      %775 = vmatmul.mubr.bf16.gmra.mrb[0].mxu0 %v699
      %v776 = vpop.f32.mrb[0].mxu0
      %v777 = vadd.f32 %v608, %v776
      %v778 = vpop.f32.mrb[0].mxu0
      %v779 = vpop.f32.mrb[0].mxu0
      %v780 = vadd.f32 %v613, %v779
      %v781 = vpop.f32.mrb[0].mxu0
      %782 = vmatprep.mubr.bf16.mxu0 0
      %783 = vmatmul.mubr.bf16.gmra.mrb[0].mxu0 %v702
      %v784 = vpop.f32.mrb[0].mxu0
      %v785 = vadd.f32 %v618, %v784
      %v786 = vpop.f32.mrb[0].mxu0
      %v787 = vpop.f32.mrb[0].mxu0
      %v788 = vadd.f32 %v623, %v787
      %v789 = vpop.f32.mrb[0].mxu0
      %790 = vmatprep.mubr.bf16.mxu0 0
      %791 = vmatmul.mubr.bf16.gmra.mrb[0].mxu0 %v705
      %v792 = vpop.f32.mrb[0].mxu0
      %v793 = vadd.f32 %v628, %v792
      %v794 = vpop.f32.mrb[0].mxu0
      %v795 = vpop.f32.mrb[0].mxu0
      %v796 = vadd.f32 %v633, %v795
      %v797 = vpop.f32.mrb[0].mxu0
      %798 = vmatprep.mubr.bf16.mxu0 0
      %799 = vmatmul.mubr.bf16.gmra.mrb[0].mxu0 %v708
      %v800 = vpop.f32.mrb[0].mxu0
      %v801 = vadd.f32 %v638, %v800
      %v802 = vpop.f32.mrb[0].mxu0
      %v803 = vpop.f32.mrb[0].mxu0
      %v804 = vadd.f32 %v643, %v803
      %v805 = vpop.f32.mrb[0].mxu0
      %806 = vdwg.mxu0
      %v807 = vmax.f32 %v745, 0.0
      %v808 = vmax.f32 %v748, 0.0
      %v809 = vmax.f32 %v753, 0.0
      %v810 = vmax.f32 %v756, 0.0
      %v811 = vmax.f32 %v761, 0.0
      %v812 = vmax.f32 %v764, 0.0
      %v813 = vmax.f32 %v769, 0.0
      %v814 = vmax.f32 %v772, 0.0
      %v815 = vmax.f32 %v777, 0.0
      %v816 = vmax.f32 %v780, 0.0
      %v817 = vmax.f32 %v785, 0.0
      %v818 = vmax.f32 %v788, 0.0
      %v819 = vmax.f32 %v793, 0.0
      %v820 = vmax.f32 %v796, 0.0
      %v821 = vmax.f32 %v801, 0.0
      %v822 = vmax.f32 %v804, 0.0
      %v823 = vld [vmem:[%s5] sm:$0xf]
      %v824 = vld [vmem:[%s5 + $0x4] sm:$0xf]
      %v825 = vld [vmem:[%s5 + $0x8] sm:$0xf]
      %v826 = vld [vmem:[%s5 + $0xc] sm:$0xf]
      %v827 = vld [vmem:[%s5 + $0x10] sm:$0xf]
      %v828 = vld [vmem:[%s5 + $0x14] sm:$0xf]
      %v829 = vld [vmem:[%s5 + $0x18] sm:$0xf]
      %v830 = vld [vmem:[%s5 + $0x1c] sm:$0xf]
      %v831 = vld [vmem:[%s5 + $0x20] sm:$0xf]
      %v832 = vld [vmem:[%s5 + $0x24] sm:$0xf]
      %v833 = vld [vmem:[%s5 + $0x28] sm:$0xf]
      %v834 = vld [vmem:[%s5 + $0x2c] sm:$0xf]
      %v835 = vld [vmem:[%s5 + $0x30] sm:$0xf]
      %v836 = vld [vmem:[%s5 + $0x34] sm:$0xf]
      %v837 = vld [vmem:[%s5 + $0x38] sm:$0xf]
      %v838 = vld [vmem:[%s5 + $0x3c] sm:$0xf]
      %v839 = vld [vmem:[%s5 + $0x40] sm:$0xf]
      %v840 = vld [vmem:[%s5 + $0x44] sm:$0xf]
      %v841 = vld [vmem:[%s5 + $0x48] sm:$0xf]
      %v842 = vld [vmem:[%s5 + $0x4c] sm:$0xf]
      %v843 = vld [vmem:[%s5 + $0x50] sm:$0xf]
      %v844 = vld [vmem:[%s5 + $0x54] sm:$0xf]
      %v845 = vld [vmem:[%s5 + $0x58] sm:$0xf]
      %v846 = vld [vmem:[%s5 + $0x5c] sm:$0xf]
      %v847 = vld [vmem:[%s5 + $0x60] sm:$0xf]
      %v848 = vld [vmem:[%s5 + $0x64] sm:$0xf]
      %v849 = vld [vmem:[%s5 + $0x68] sm:$0xf]
      %v850 = vld [vmem:[%s5 + $0x6c] sm:$0xf]
      %v851 = vld [vmem:[%s5 + $0x70] sm:$0xf]
      %v852 = vld [vmem:[%s5 + $0x74] sm:$0xf]
      %v853 = vld [vmem:[%s5 + $0x78] sm:$0xf]
      %v854 = vld [vmem:[%s5 + $0x7c] sm:$0xf]
      %v855 = vld [vmem:[%s5 + $0x80] sm:$0xf]
      %v856 = vld [vmem:[%s5 + $0x84] sm:$0xf]
      %v857 = vld [vmem:[%s5 + $0x88] sm:$0xf]
      %v858 = vld [vmem:[%s5 + $0x8c] sm:$0xf]
      %v859 = vld [vmem:[%s5 + $0x90] sm:$0xf]
      %v860 = vld [vmem:[%s5 + $0x94] sm:$0xf]
      %v861 = vld [vmem:[%s5 + $0x98] sm:$0xf]
      %v862 = vld [vmem:[%s5 + $0x9c] sm:$0xf]
      %v863 = vld [vmem:[%s5 + $0xa0] sm:$0xf]
      %v864 = vld [vmem:[%s5 + $0xa4] sm:$0xf]
      %v865 = vld [vmem:[%s5 + $0xa8] sm:$0xf]
      %v866 = vld [vmem:[%s5 + $0xac] sm:$0xf]
      %v867 = vld [vmem:[%s5 + $0xb0] sm:$0xf]
      %v868 = vld [vmem:[%s5 + $0xb4] sm:$0xf]
      %v869 = vld [vmem:[%s5 + $0xb8] sm:$0xf]
      %v870 = vld [vmem:[%s5 + $0xbc] sm:$0xf]
      %v871 = vld [vmem:[%s5 + $0xc0] sm:$0xf]
      %v872 = vld [vmem:[%s5 + $0xc4] sm:$0xf]
      %v873 = vld [vmem:[%s5 + $0xc8] sm:$0xf]
      %v874 = vld [vmem:[%s5 + $0xcc] sm:$0xf]
      %v875 = vld [vmem:[%s5 + $0xd0] sm:$0xf]
      %v876 = vld [vmem:[%s5 + $0xd4] sm:$0xf]
      %v877 = vld [vmem:[%s5 + $0xd8] sm:$0xf]
      %v878 = vld [vmem:[%s5 + $0xdc] sm:$0xf]
      %v879 = vld [vmem:[%s5 + $0xe0] sm:$0xf]
      %v880 = vld [vmem:[%s5 + $0xe4] sm:$0xf]
      %v881 = vld [vmem:[%s5 + $0xe8] sm:$0xf]
      %v882 = vld [vmem:[%s5 + $0xec] sm:$0xf]
      %v883 = vld [vmem:[%s5 + $0xf0] sm:$0xf]
      %v884 = vld [vmem:[%s5 + $0xf4] sm:$0xf]
      %v885 = vld [vmem:[%s5 + $0xf8] sm:$0xf]
      %v886 = vld [vmem:[%s5 + $0xfc] sm:$0xf]
      %v887 = vld [vmem:[%s5 + $0x100] sm:$0xf]
      %v888 = vld [vmem:[%s5 + $0x104] sm:$0xf]
      %v889 = vld [vmem:[%s5 + $0x108] sm:$0xf]
      %v890 = vld [vmem:[%s5 + $0x10c] sm:$0xf]
      %v891 = vld [vmem:[%s5 + $0x110] sm:$0xf]
      %v892 = vld [vmem:[%s5 + $0x114] sm:$0xf]
      %v893 = vld [vmem:[%s5 + $0x118] sm:$0xf]
      %v894 = vld [vmem:[%s5 + $0x11c] sm:$0xf]
      %v895 = vld [vmem:[%s5 + $0x120] sm:$0xf]
      %v896 = vld [vmem:[%s5 + $0x124] sm:$0xf]
      %v897 = vld [vmem:[%s5 + $0x128] sm:$0xf]
      %v898 = vld [vmem:[%s5 + $0x12c] sm:$0xf]
      %v899 = vld [vmem:[%s5 + $0x130] sm:$0xf]
      %v900 = vld [vmem:[%s5 + $0x134] sm:$0xf]
      %v901 = vld [vmem:[%s5 + $0x138] sm:$0xf]
      %v902 = vld [vmem:[%s5 + $0x13c] sm:$0xf]
      %v903 = vld [vmem:[%s5 + $0x140] sm:$0xf]
      %v904 = vld [vmem:[%s5 + $0x144] sm:$0xf]
      %v905 = vld [vmem:[%s5 + $0x148] sm:$0xf]
      %v906 = vld [vmem:[%s5 + $0x14c] sm:$0xf]
      %v907 = vld [vmem:[%s5 + $0x150] sm:$0xf]
      %v908 = vld [vmem:[%s5 + $0x154] sm:$0xf]
      %v909 = vld [vmem:[%s5 + $0x158] sm:$0xf]
      %v910 = vld [vmem:[%s5 + $0x15c] sm:$0xf]
      %v911 = vld [vmem:[%s5 + $0x160] sm:$0xf]
      %v912 = vld [vmem:[%s5 + $0x164] sm:$0xf]
      %v913 = vld [vmem:[%s5 + $0x168] sm:$0xf]
      %v914 = vld [vmem:[%s5 + $0x16c] sm:$0xf]
      %v915 = vld [vmem:[%s5 + $0x170] sm:$0xf]
      %v916 = vld [vmem:[%s5 + $0x174] sm:$0xf]
      %v917 = vld [vmem:[%s5 + $0x178] sm:$0xf]
      %v918 = vld [vmem:[%s5 + $0x17c] sm:$0xf]
      %v919 = vld [vmem:[%s5 + $0x180] sm:$0xf]
      %v920 = vld [vmem:[%s5 + $0x184] sm:$0xf]
      %v921 = vld [vmem:[%s5 + $0x188] sm:$0xf]
      %v922 = vld [vmem:[%s5 + $0x18c] sm:$0xf]
      %v923 = vld [vmem:[%s5 + $0x190] sm:$0xf]
      %v924 = vld [vmem:[%s5 + $0x194] sm:$0xf]
      %v925 = vld [vmem:[%s5 + $0x198] sm:$0xf]
      %v926 = vld [vmem:[%s5 + $0x19c] sm:$0xf]
      %v927 = vld [vmem:[%s5 + $0x1a0] sm:$0xf]
      %v928 = vld [vmem:[%s5 + $0x1a4] sm:$0xf]
      %v929 = vld [vmem:[%s5 + $0x1a8] sm:$0xf]
      %v930 = vld [vmem:[%s5 + $0x1ac] sm:$0xf]
      %v931 = vld [vmem:[%s5 + $0x1b0] sm:$0xf]
      %v932 = vld [vmem:[%s5 + $0x1b4] sm:$0xf]
      %v933 = vld [vmem:[%s5 + $0x1b8] sm:$0xf]
      %v934 = vld [vmem:[%s5 + $0x1bc] sm:$0xf]
      %v935 = vld [vmem:[%s5 + $0x1c0] sm:$0xf]
      %v936 = vld [vmem:[%s5 + $0x1c4] sm:$0xf]
      %v937 = vld [vmem:[%s5 + $0x1c8] sm:$0xf]
      %v938 = vld [vmem:[%s5 + $0x1cc] sm:$0xf]
      %v939 = vld [vmem:[%s5 + $0x1d0] sm:$0xf]
      %v940 = vld [vmem:[%s5 + $0x1d4] sm:$0xf]
      %v941 = vld [vmem:[%s5 + $0x1d8] sm:$0xf]
      %v942 = vld [vmem:[%s5 + $0x1dc] sm:$0xf]
      %v943 = vld [vmem:[%s5 + $0x1e0] sm:$0xf]
      %v944 = vld [vmem:[%s5 + $0x1e4] sm:$0xf]
      %v945 = vld [vmem:[%s5 + $0x1e8] sm:$0xf]
      %v946 = vld [vmem:[%s5 + $0x1ec] sm:$0xf]
      %v947 = vld [vmem:[%s5 + $0x1f0] sm:$0xf]
      %v948 = vld [vmem:[%s5 + $0x1f4] sm:$0xf]
      %v949 = vld [vmem:[%s5 + $0x1f8] sm:$0xf]
      %v950 = vld [vmem:[%s5 + $0x1fc] sm:$0xf]
      %v951 = vpack.c.bf16 %v808, %v807
      %v952 = vpack.c.bf16 %v810, %v809
      %v953 = vpack.c.bf16 %v812, %v811
      %v954 = vpack.c.bf16 %v814, %v813
      %v955 = vpack.c.bf16 %v816, %v815
      %v956 = vpack.c.bf16 %v818, %v817
      %v957 = vpack.c.bf16 %v820, %v819
      %v958 = vpack.c.bf16 %v822, %v821
      %v959 = vld [vmem:[%s6] sm:$0xff]
      %v960 = vld [vmem:[%s6 + $0x8] sm:$0xff]
      %v961 = vld [vmem:[%s6 + $0x10] sm:$0xff]
      %v962 = vld [vmem:[%s6 + $0x18] sm:$0xff]
      %v963 = vld [vmem:[%s6 + $0x20] sm:$0xff]
      %v964 = vld [vmem:[%s6 + $0x28] sm:$0xff]
      %v965 = vld [vmem:[%s6 + $0x30] sm:$0xff]
      %v966 = vld [vmem:[%s6 + $0x38] sm:$0xff]
      %v967 = vld [vmem:[%s6 + $0x40] sm:$0xff]
      %v968 = vld [vmem:[%s6 + $0x48] sm:$0xff]
      %v969 = vld [vmem:[%s6 + $0x50] sm:$0xff]
      %v970 = vld [vmem:[%s6 + $0x58] sm:$0xff]
      %v971 = vld [vmem:[%s6 + $0x60] sm:$0xff]
      %v972 = vld [vmem:[%s6 + $0x68] sm:$0xff]
      %v973 = vld [vmem:[%s6 + $0x70] sm:$0xff]
      %v974 = vld [vmem:[%s6 + $0x78] sm:$0xff]
      %v975 = vld [vmem:[%s6 + $0x80] sm:$0xff]
      %v976 = vld [vmem:[%s6 + $0x88] sm:$0xff]
      %v977 = vld [vmem:[%s6 + $0x90] sm:$0xff]
      %v978 = vld [vmem:[%s6 + $0x98] sm:$0xff]
      %v979 = vld [vmem:[%s6 + $0xa0] sm:$0xff]
      %v980 = vld [vmem:[%s6 + $0xa8] sm:$0xff]
      %v981 = vld [vmem:[%s6 + $0xb0] sm:$0xff]
      %v982 = vld [vmem:[%s6 + $0xb8] sm:$0xff]
      %v983 = vld [vmem:[%s6 + $0xc0] sm:$0xff]
      %v984 = vld [vmem:[%s6 + $0xc8] sm:$0xff]
      %v985 = vld [vmem:[%s6 + $0xd0] sm:$0xff]
      %v986 = vld [vmem:[%s6 + $0xd8] sm:$0xff]
      %v987 = vld [vmem:[%s6 + $0xe0] sm:$0xff]
      %v988 = vld [vmem:[%s6 + $0xe8] sm:$0xff]
      %v989 = vld [vmem:[%s6 + $0xf0] sm:$0xff]
      %v990 = vld [vmem:[%s6 + $0xf8] sm:$0xff]
      %v991 = vld [vmem:[%s6 + $0x100] sm:$0xff]
      %v992 = vld [vmem:[%s6 + $0x108] sm:$0xff]
      %v993 = vld [vmem:[%s6 + $0x110] sm:$0xff]
      %v994 = vld [vmem:[%s6 + $0x118] sm:$0xff]
      %v995 = vld [vmem:[%s6 + $0x120] sm:$0xff]
      %v996 = vld [vmem:[%s6 + $0x128] sm:$0xff]
      %v997 = vld [vmem:[%s6 + $0x130] sm:$0xff]
      %v998 = vld [vmem:[%s6 + $0x138] sm:$0xff]
      %v999 = vld [vmem:[%s6 + $0x140] sm:$0xff]
      %v1000 = vld [vmem:[%s6 + $0x148] sm:$0xff]
      %v1001 = vld [vmem:[%s6 + $0x150] sm:$0xff]
      %v1002 = vld [vmem:[%s6 + $0x158] sm:$0xff]
      %v1003 = vld [vmem:[%s6 + $0x160] sm:$0xff]
      %v1004 = vld [vmem:[%s6 + $0x168] sm:$0xff]
      %v1005 = vld [vmem:[%s6 + $0x170] sm:$0xff]
      %v1006 = vld [vmem:[%s6 + $0x178] sm:$0xff]
      %v1007 = vld [vmem:[%s6 + $0x180] sm:$0xff]
      %v1008 = vld [vmem:[%s6 + $0x188] sm:$0xff]
      %v1009 = vld [vmem:[%s6 + $0x190] sm:$0xff]
      %v1010 = vld [vmem:[%s6 + $0x198] sm:$0xff]
      %v1011 = vld [vmem:[%s6 + $0x1a0] sm:$0xff]
      %v1012 = vld [vmem:[%s6 + $0x1a8] sm:$0xff]
      %v1013 = vld [vmem:[%s6 + $0x1b0] sm:$0xff]
      %v1014 = vld [vmem:[%s6 + $0x1b8] sm:$0xff]
      %v1015 = vld [vmem:[%s6 + $0x1c0] sm:$0xff]
      %v1016 = vld [vmem:[%s6 + $0x1c8] sm:$0xff]
      %v1017 = vld [vmem:[%s6 + $0x1d0] sm:$0xff]
      %v1018 = vld [vmem:[%s6 + $0x1d8] sm:$0xff]
      %v1019 = vld [vmem:[%s6 + $0x1e0] sm:$0xff]
      %v1020 = vld [vmem:[%s6 + $0x1e8] sm:$0xff]
      %v1021 = vld [vmem:[%s6 + $0x1f0] sm:$0xff]
      %v1022 = vld [vmem:[%s6 + $0x1f8] sm:$0xff]
      %v1023 = vld [vmem:[%s6 + $0x200] sm:$0xff]
      %v1024 = vld [vmem:[%s6 + $0x208] sm:$0xff]
      %v1025 = vld [vmem:[%s6 + $0x210] sm:$0xff]
      %v1026 = vld [vmem:[%s6 + $0x218] sm:$0xff]
      %v1027 = vld [vmem:[%s6 + $0x220] sm:$0xff]
      %v1028 = vld [vmem:[%s6 + $0x228] sm:$0xff]
      %v1029 = vld [vmem:[%s6 + $0x230] sm:$0xff]
      %v1030 = vld [vmem:[%s6 + $0x238] sm:$0xff]
      %v1031 = vld [vmem:[%s6 + $0x240] sm:$0xff]
      %v1032 = vld [vmem:[%s6 + $0x248] sm:$0xff]
      %v1033 = vld [vmem:[%s6 + $0x250] sm:$0xff]
      %v1034 = vld [vmem:[%s6 + $0x258] sm:$0xff]
      %v1035 = vld [vmem:[%s6 + $0x260] sm:$0xff]
      %v1036 = vld [vmem:[%s6 + $0x268] sm:$0xff]
      %v1037 = vld [vmem:[%s6 + $0x270] sm:$0xff]
      %v1038 = vld [vmem:[%s6 + $0x278] sm:$0xff]
      %v1039 = vld [vmem:[%s6 + $0x280] sm:$0xff]
      %v1040 = vld [vmem:[%s6 + $0x288] sm:$0xff]
      %v1041 = vld [vmem:[%s6 + $0x290] sm:$0xff]
      %v1042 = vld [vmem:[%s6 + $0x298] sm:$0xff]
      %v1043 = vld [vmem:[%s6 + $0x2a0] sm:$0xff]
      %v1044 = vld [vmem:[%s6 + $0x2a8] sm:$0xff]
      %v1045 = vld [vmem:[%s6 + $0x2b0] sm:$0xff]
      %v1046 = vld [vmem:[%s6 + $0x2b8] sm:$0xff]
      %v1047 = vld [vmem:[%s6 + $0x2c0] sm:$0xff]
      %v1048 = vld [vmem:[%s6 + $0x2c8] sm:$0xff]
      %v1049 = vld [vmem:[%s6 + $0x2d0] sm:$0xff]
      %v1050 = vld [vmem:[%s6 + $0x2d8] sm:$0xff]
      %v1051 = vld [vmem:[%s6 + $0x2e0] sm:$0xff]
      %v1052 = vld [vmem:[%s6 + $0x2e8] sm:$0xff]
      %v1053 = vld [vmem:[%s6 + $0x2f0] sm:$0xff]
      %v1054 = vld [vmem:[%s6 + $0x2f8] sm:$0xff]
      %v1055 = vld [vmem:[%s6 + $0x300] sm:$0xff]
      %v1056 = vld [vmem:[%s6 + $0x308] sm:$0xff]
      %v1057 = vld [vmem:[%s6 + $0x310] sm:$0xff]
      %v1058 = vld [vmem:[%s6 + $0x318] sm:$0xff]
      %v1059 = vld [vmem:[%s6 + $0x320] sm:$0xff]
      %v1060 = vld [vmem:[%s6 + $0x328] sm:$0xff]
      %v1061 = vld [vmem:[%s6 + $0x330] sm:$0xff]
      %v1062 = vld [vmem:[%s6 + $0x338] sm:$0xff]
      %v1063 = vld [vmem:[%s6 + $0x340] sm:$0xff]
      %v1064 = vld [vmem:[%s6 + $0x348] sm:$0xff]
      %v1065 = vld [vmem:[%s6 + $0x350] sm:$0xff]
      %v1066 = vld [vmem:[%s6 + $0x358] sm:$0xff]
      %v1067 = vld [vmem:[%s6 + $0x360] sm:$0xff]
      %v1068 = vld [vmem:[%s6 + $0x368] sm:$0xff]
      %v1069 = vld [vmem:[%s6 + $0x370] sm:$0xff]
      %v1070 = vld [vmem:[%s6 + $0x378] sm:$0xff]
      %v1071 = vld [vmem:[%s6 + $0x380] sm:$0xff]
      %v1072 = vld [vmem:[%s6 + $0x388] sm:$0xff]
      %v1073 = vld [vmem:[%s6 + $0x390] sm:$0xff]
      %v1074 = vld [vmem:[%s6 + $0x398] sm:$0xff]
      %v1075 = vld [vmem:[%s6 + $0x3a0] sm:$0xff]
      %v1076 = vld [vmem:[%s6 + $0x3a8] sm:$0xff]
      %v1077 = vld [vmem:[%s6 + $0x3b0] sm:$0xff]
      %v1078 = vld [vmem:[%s6 + $0x3b8] sm:$0xff]
      %v1079 = vld [vmem:[%s6 + $0x3c0] sm:$0xff]
      %v1080 = vld [vmem:[%s6 + $0x3c8] sm:$0xff]
      %v1081 = vld [vmem:[%s6 + $0x3d0] sm:$0xff]
      %v1082 = vld [vmem:[%s6 + $0x3d8] sm:$0xff]
      %v1083 = vld [vmem:[%s6 + $0x3e0] sm:$0xff]
      %v1084 = vld [vmem:[%s6 + $0x3e8] sm:$0xff]
      %v1085 = vld [vmem:[%s6 + $0x3f0] sm:$0xff]
      %v1086 = vld [vmem:[%s6 + $0x3f8] sm:$0xff]
      %1088 = vset.pattern.permute.xlu0 0
      %1089 = vperm.xlu0 %1088, %v959
      %v1090 = vpop.permute.xlu0 %1089
      %1093 = vset.pattern.permute.xlu0 0
      %1094 = vperm.xlu0 %1093, %v960
      %v1095 = vpop.permute.xlu0 %1094
      %1098 = vset.pattern.permute.xlu0 0
      %1099 = vperm.xlu0 %1098, %v961
      %v1100 = vpop.permute.xlu0 %1099
      %1103 = vset.pattern.permute.xlu0 0
      %1104 = vperm.xlu0 %1103, %v962
      %v1105 = vpop.permute.xlu0 %1104
      %1108 = vset.pattern.permute.xlu0 0
      %1109 = vperm.xlu0 %1108, %v963
      %v1110 = vpop.permute.xlu0 %1109
      %1113 = vset.pattern.permute.xlu0 0
      %1114 = vperm.xlu0 %1113, %v964
      %v1115 = vpop.permute.xlu0 %1114
      %1118 = vset.pattern.permute.xlu0 0
      %1119 = vperm.xlu0 %1118, %v965
      %v1120 = vpop.permute.xlu0 %1119
      %1123 = vset.pattern.permute.xlu0 0
      %1124 = vperm.xlu0 %1123, %v966
      %v1125 = vpop.permute.xlu0 %1124
      %1128 = vset.pattern.permute.xlu0 0
      %1129 = vperm.xlu0 %1128, %v967
      %v1130 = vpop.permute.xlu0 %1129
      %1133 = vset.pattern.permute.xlu0 0
      %1134 = vperm.xlu0 %1133, %v968
      %v1135 = vpop.permute.xlu0 %1134
      %1138 = vset.pattern.permute.xlu0 0
      %1139 = vperm.xlu0 %1138, %v969
      %v1140 = vpop.permute.xlu0 %1139
      %1143 = vset.pattern.permute.xlu0 0
      %1144 = vperm.xlu0 %1143, %v970
      %v1145 = vpop.permute.xlu0 %1144
      %1148 = vset.pattern.permute.xlu0 0
      %1149 = vperm.xlu0 %1148, %v971
      %v1150 = vpop.permute.xlu0 %1149
      %1153 = vset.pattern.permute.xlu0 0
      %1154 = vperm.xlu0 %1153, %v972
      %v1155 = vpop.permute.xlu0 %1154
      %1158 = vset.pattern.permute.xlu0 0
      %1159 = vperm.xlu0 %1158, %v973
      %v1160 = vpop.permute.xlu0 %1159
      %1163 = vset.pattern.permute.xlu0 0
      %1164 = vperm.xlu0 %1163, %v974
      %v1165 = vpop.permute.xlu0 %1164
      %1168 = vset.pattern.permute.xlu0 0
      %1169 = vperm.xlu0 %1168, %v975
      %v1170 = vpop.permute.xlu0 %1169
      %1173 = vset.pattern.permute.xlu0 0
      %1174 = vperm.xlu0 %1173, %v976
      %v1175 = vpop.permute.xlu0 %1174
      %1178 = vset.pattern.permute.xlu0 0
      %1179 = vperm.xlu0 %1178, %v977
      %v1180 = vpop.permute.xlu0 %1179
      %1183 = vset.pattern.permute.xlu0 0
      %1184 = vperm.xlu0 %1183, %v978
      %v1185 = vpop.permute.xlu0 %1184
      %1188 = vset.pattern.permute.xlu0 0
      %1189 = vperm.xlu0 %1188, %v979
      %v1190 = vpop.permute.xlu0 %1189
      %1193 = vset.pattern.permute.xlu0 0
      %1194 = vperm.xlu0 %1193, %v980
      %v1195 = vpop.permute.xlu0 %1194
      %1198 = vset.pattern.permute.xlu0 0
      %1199 = vperm.xlu0 %1198, %v981
      %v1200 = vpop.permute.xlu0 %1199
      %1203 = vset.pattern.permute.xlu0 0
      %1204 = vperm.xlu0 %1203, %v982
      %v1205 = vpop.permute.xlu0 %1204
      %1208 = vset.pattern.permute.xlu0 0
      %1209 = vperm.xlu0 %1208, %v983
      %v1210 = vpop.permute.xlu0 %1209
      %1213 = vset.pattern.permute.xlu0 0
      %1214 = vperm.xlu0 %1213, %v984
      %v1215 = vpop.permute.xlu0 %1214
      %1218 = vset.pattern.permute.xlu0 0
      %1219 = vperm.xlu0 %1218, %v985
      %v1220 = vpop.permute.xlu0 %1219
      %1223 = vset.pattern.permute.xlu0 0
      %1224 = vperm.xlu0 %1223, %v986
      %v1225 = vpop.permute.xlu0 %1224
      %1228 = vset.pattern.permute.xlu0 0
      %1229 = vperm.xlu0 %1228, %v987
      %v1230 = vpop.permute.xlu0 %1229
      %1233 = vset.pattern.permute.xlu0 0
      %1234 = vperm.xlu0 %1233, %v988
      %v1235 = vpop.permute.xlu0 %1234
      %1238 = vset.pattern.permute.xlu0 0
      %1239 = vperm.xlu0 %1238, %v989
      %v1240 = vpop.permute.xlu0 %1239
      %1243 = vset.pattern.permute.xlu0 0
      %1244 = vperm.xlu0 %1243, %v990
      %v1245 = vpop.permute.xlu0 %1244
      %1248 = vset.pattern.permute.xlu0 0
      %1249 = vperm.xlu0 %1248, %v991
      %v1250 = vpop.permute.xlu0 %1249
      %1253 = vset.pattern.permute.xlu0 0
      %1254 = vperm.xlu0 %1253, %v992
      %v1255 = vpop.permute.xlu0 %1254
      %1258 = vset.pattern.permute.xlu0 0
      %1259 = vperm.xlu0 %1258, %v993
      %v1260 = vpop.permute.xlu0 %1259
      %1263 = vset.pattern.permute.xlu0 0
      %1264 = vperm.xlu0 %1263, %v994
      %v1265 = vpop.permute.xlu0 %1264
      %1268 = vset.pattern.permute.xlu0 0
      %1269 = vperm.xlu0 %1268, %v995
      %v1270 = vpop.permute.xlu0 %1269
      %1273 = vset.pattern.permute.xlu0 0
      %1274 = vperm.xlu0 %1273, %v996
      %v1275 = vpop.permute.xlu0 %1274
      %1278 = vset.pattern.permute.xlu0 0
      %1279 = vperm.xlu0 %1278, %v997
      %v1280 = vpop.permute.xlu0 %1279
      %1283 = vset.pattern.permute.xlu0 0
      %1284 = vperm.xlu0 %1283, %v998
      %v1285 = vpop.permute.xlu0 %1284
      %1288 = vset.pattern.permute.xlu0 0
      %1289 = vperm.xlu0 %1288, %v999
      %v1290 = vpop.permute.xlu0 %1289
      %1293 = vset.pattern.permute.xlu0 0
      %1294 = vperm.xlu0 %1293, %v1000
      %v1295 = vpop.permute.xlu0 %1294
      %1298 = vset.pattern.permute.xlu0 0
      %1299 = vperm.xlu0 %1298, %v1001
      %v1300 = vpop.permute.xlu0 %1299
      %1303 = vset.pattern.permute.xlu0 0
      %1304 = vperm.xlu0 %1303, %v1002
      %v1305 = vpop.permute.xlu0 %1304
      %1308 = vset.pattern.permute.xlu0 0
      %1309 = vperm.xlu0 %1308, %v1003
      %v1310 = vpop.permute.xlu0 %1309
      %1313 = vset.pattern.permute.xlu0 0
      %1314 = vperm.xlu0 %1313, %v1004
      %v1315 = vpop.permute.xlu0 %1314
      %1318 = vset.pattern.permute.xlu0 0
      %1319 = vperm.xlu0 %1318, %v1005
      %v1320 = vpop.permute.xlu0 %1319
      %1323 = vset.pattern.permute.xlu0 0
      %1324 = vperm.xlu0 %1323, %v1006
      %v1325 = vpop.permute.xlu0 %1324
      %1328 = vset.pattern.permute.xlu0 0
      %1329 = vperm.xlu0 %1328, %v1007
      %v1330 = vpop.permute.xlu0 %1329
      %1333 = vset.pattern.permute.xlu0 0
      %1334 = vperm.xlu0 %1333, %v1008
      %v1335 = vpop.permute.xlu0 %1334
      %1338 = vset.pattern.permute.xlu0 0
      %1339 = vperm.xlu0 %1338, %v1009
      %v1340 = vpop.permute.xlu0 %1339
      %1343 = vset.pattern.permute.xlu0 0
      %1344 = vperm.xlu0 %1343, %v1010
      %v1345 = vpop.permute.xlu0 %1344
      %1348 = vset.pattern.permute.xlu0 0
      %1349 = vperm.xlu0 %1348, %v1011
      %v1350 = vpop.permute.xlu0 %1349
      %1353 = vset.pattern.permute.xlu0 0
      %1354 = vperm.xlu0 %1353, %v1012
      %v1355 = vpop.permute.xlu0 %1354
      %1358 = vset.pattern.permute.xlu0 0
      %1359 = vperm.xlu0 %1358, %v1013
      %v1360 = vpop.permute.xlu0 %1359
      %1363 = vset.pattern.permute.xlu0 0
      %1364 = vperm.xlu0 %1363, %v1014
      %v1365 = vpop.permute.xlu0 %1364
      %1368 = vset.pattern.permute.xlu0 0
      %1369 = vperm.xlu0 %1368, %v1015
      %v1370 = vpop.permute.xlu0 %1369
      %1373 = vset.pattern.permute.xlu0 0
      %1374 = vperm.xlu0 %1373, %v1016
      %v1375 = vpop.permute.xlu0 %1374
      %1378 = vset.pattern.permute.xlu0 0
      %1379 = vperm.xlu0 %1378, %v1017
      %v1380 = vpop.permute.xlu0 %1379
      %1383 = vset.pattern.permute.xlu0 0
      %1384 = vperm.xlu0 %1383, %v1018
      %v1385 = vpop.permute.xlu0 %1384
      %1388 = vset.pattern.permute.xlu0 0
      %1389 = vperm.xlu0 %1388, %v1019
      %v1390 = vpop.permute.xlu0 %1389
      %1393 = vset.pattern.permute.xlu0 0
      %1394 = vperm.xlu0 %1393, %v1020
      %v1395 = vpop.permute.xlu0 %1394
      %1398 = vset.pattern.permute.xlu0 0
      %1399 = vperm.xlu0 %1398, %v1021
      %v1400 = vpop.permute.xlu0 %1399
      %1403 = vset.pattern.permute.xlu0 0
      %1404 = vperm.xlu0 %1403, %v1022
      %v1405 = vpop.permute.xlu0 %1404
      %1408 = vset.pattern.permute.xlu0 0
      %1409 = vperm.xlu0 %1408, %v1023
      %v1410 = vpop.permute.xlu0 %1409
      %1413 = vset.pattern.permute.xlu0 0
      %1414 = vperm.xlu0 %1413, %v1024
      %v1415 = vpop.permute.xlu0 %1414
      %1418 = vset.pattern.permute.xlu0 0
      %1419 = vperm.xlu0 %1418, %v1025
      %v1420 = vpop.permute.xlu0 %1419
      %1423 = vset.pattern.permute.xlu0 0
      %1424 = vperm.xlu0 %1423, %v1026
      %v1425 = vpop.permute.xlu0 %1424
      %1428 = vset.pattern.permute.xlu0 0
      %1429 = vperm.xlu0 %1428, %v1027
      %v1430 = vpop.permute.xlu0 %1429
      %1433 = vset.pattern.permute.xlu0 0
      %1434 = vperm.xlu0 %1433, %v1028
      %v1435 = vpop.permute.xlu0 %1434
      %1438 = vset.pattern.permute.xlu0 0
      %1439 = vperm.xlu0 %1438, %v1029
      %v1440 = vpop.permute.xlu0 %1439
      %1443 = vset.pattern.permute.xlu0 0
      %1444 = vperm.xlu0 %1443, %v1030
      %v1445 = vpop.permute.xlu0 %1444
      %1448 = vset.pattern.permute.xlu0 0
      %1449 = vperm.xlu0 %1448, %v1031
      %v1450 = vpop.permute.xlu0 %1449
      %1453 = vset.pattern.permute.xlu0 0
      %1454 = vperm.xlu0 %1453, %v1032
      %v1455 = vpop.permute.xlu0 %1454
      %1458 = vset.pattern.permute.xlu0 0
      %1459 = vperm.xlu0 %1458, %v1033
      %v1460 = vpop.permute.xlu0 %1459
      %1463 = vset.pattern.permute.xlu0 0
      %1464 = vperm.xlu0 %1463, %v1034
      %v1465 = vpop.permute.xlu0 %1464
      %1468 = vset.pattern.permute.xlu0 0
      %1469 = vperm.xlu0 %1468, %v1035
      %v1470 = vpop.permute.xlu0 %1469
      %1473 = vset.pattern.permute.xlu0 0
      %1474 = vperm.xlu0 %1473, %v1036
      %v1475 = vpop.permute.xlu0 %1474
      %1478 = vset.pattern.permute.xlu0 0
      %1479 = vperm.xlu0 %1478, %v1037
      %v1480 = vpop.permute.xlu0 %1479
      %1483 = vset.pattern.permute.xlu0 0
      %1484 = vperm.xlu0 %1483, %v1038
      %v1485 = vpop.permute.xlu0 %1484
      %1488 = vset.pattern.permute.xlu0 0
      %1489 = vperm.xlu0 %1488, %v1039
      %v1490 = vpop.permute.xlu0 %1489
      %1493 = vset.pattern.permute.xlu0 0
      %1494 = vperm.xlu0 %1493, %v1040
      %v1495 = vpop.permute.xlu0 %1494
      %1498 = vset.pattern.permute.xlu0 0
      %1499 = vperm.xlu0 %1498, %v1041
      %v1500 = vpop.permute.xlu0 %1499
      %1503 = vset.pattern.permute.xlu0 0
      %1504 = vperm.xlu0 %1503, %v1042
      %v1505 = vpop.permute.xlu0 %1504
      %1508 = vset.pattern.permute.xlu0 0
      %1509 = vperm.xlu0 %1508, %v1043
      %v1510 = vpop.permute.xlu0 %1509
      %1513 = vset.pattern.permute.xlu0 0
      %1514 = vperm.xlu0 %1513, %v1044
      %v1515 = vpop.permute.xlu0 %1514
      %1518 = vset.pattern.permute.xlu0 0
      %1519 = vperm.xlu0 %1518, %v1045
      %v1520 = vpop.permute.xlu0 %1519
      %1523 = vset.pattern.permute.xlu0 0
      %1524 = vperm.xlu0 %1523, %v1046
      %v1525 = vpop.permute.xlu0 %1524
      %1528 = vset.pattern.permute.xlu0 0
      %1529 = vperm.xlu0 %1528, %v1047
      %v1530 = vpop.permute.xlu0 %1529
      %1533 = vset.pattern.permute.xlu0 0
      %1534 = vperm.xlu0 %1533, %v1048
      %v1535 = vpop.permute.xlu0 %1534
      %1538 = vset.pattern.permute.xlu0 0
      %1539 = vperm.xlu0 %1538, %v1049
      %v1540 = vpop.permute.xlu0 %1539
      %1543 = vset.pattern.permute.xlu0 0
      %1544 = vperm.xlu0 %1543, %v1050
      %v1545 = vpop.permute.xlu0 %1544
      %1548 = vset.pattern.permute.xlu0 0
      %1549 = vperm.xlu0 %1548, %v1051
      %v1550 = vpop.permute.xlu0 %1549
      %1553 = vset.pattern.permute.xlu0 0
      %1554 = vperm.xlu0 %1553, %v1052
      %v1555 = vpop.permute.xlu0 %1554
      %1558 = vset.pattern.permute.xlu0 0
      %1559 = vperm.xlu0 %1558, %v1053
      %v1560 = vpop.permute.xlu0 %1559
      %1563 = vset.pattern.permute.xlu0 0
      %1564 = vperm.xlu0 %1563, %v1054
      %v1565 = vpop.permute.xlu0 %1564
      %1568 = vset.pattern.permute.xlu0 0
      %1569 = vperm.xlu0 %1568, %v1055
      %v1570 = vpop.permute.xlu0 %1569
      %1573 = vset.pattern.permute.xlu0 0
      %1574 = vperm.xlu0 %1573, %v1056
      %v1575 = vpop.permute.xlu0 %1574
      %1578 = vset.pattern.permute.xlu0 0
      %1579 = vperm.xlu0 %1578, %v1057
      %v1580 = vpop.permute.xlu0 %1579
      %1583 = vset.pattern.permute.xlu0 0
      %1584 = vperm.xlu0 %1583, %v1058
      %v1585 = vpop.permute.xlu0 %1584
      %1588 = vset.pattern.permute.xlu0 0
      %1589 = vperm.xlu0 %1588, %v1059
      %v1590 = vpop.permute.xlu0 %1589
      %1593 = vset.pattern.permute.xlu0 0
      %1594 = vperm.xlu0 %1593, %v1060
      %v1595 = vpop.permute.xlu0 %1594
      %1598 = vset.pattern.permute.xlu0 0
      %1599 = vperm.xlu0 %1598, %v1061
      %v1600 = vpop.permute.xlu0 %1599
      %1603 = vset.pattern.permute.xlu0 0
      %1604 = vperm.xlu0 %1603, %v1062
      %v1605 = vpop.permute.xlu0 %1604
      %1608 = vset.pattern.permute.xlu0 0
      %1609 = vperm.xlu0 %1608, %v1063
      %v1610 = vpop.permute.xlu0 %1609
      %1613 = vset.pattern.permute.xlu0 0
      %1614 = vperm.xlu0 %1613, %v1064
      %v1615 = vpop.permute.xlu0 %1614
      %1618 = vset.pattern.permute.xlu0 0
      %1619 = vperm.xlu0 %1618, %v1065
      %v1620 = vpop.permute.xlu0 %1619
      %1623 = vset.pattern.permute.xlu0 0
      %1624 = vperm.xlu0 %1623, %v1066
      %v1625 = vpop.permute.xlu0 %1624
      %1628 = vset.pattern.permute.xlu0 0
      %1629 = vperm.xlu0 %1628, %v1067
      %v1630 = vpop.permute.xlu0 %1629
      %1633 = vset.pattern.permute.xlu0 0
      %1634 = vperm.xlu0 %1633, %v1068
      %v1635 = vpop.permute.xlu0 %1634
      %1638 = vset.pattern.permute.xlu0 0
      %1639 = vperm.xlu0 %1638, %v1069
      %v1640 = vpop.permute.xlu0 %1639
      %1643 = vset.pattern.permute.xlu0 0
      %1644 = vperm.xlu0 %1643, %v1070
      %v1645 = vpop.permute.xlu0 %1644
      %1648 = vset.pattern.permute.xlu0 0
      %1649 = vperm.xlu0 %1648, %v1071
      %v1650 = vpop.permute.xlu0 %1649
      %1653 = vset.pattern.permute.xlu0 0
      %1654 = vperm.xlu0 %1653, %v1072
      %v1655 = vpop.permute.xlu0 %1654
      %1658 = vset.pattern.permute.xlu0 0
      %1659 = vperm.xlu0 %1658, %v1073
      %v1660 = vpop.permute.xlu0 %1659
      %1663 = vset.pattern.permute.xlu0 0
      %1664 = vperm.xlu0 %1663, %v1074
      %v1665 = vpop.permute.xlu0 %1664
      %1668 = vset.pattern.permute.xlu0 0
      %1669 = vperm.xlu0 %1668, %v1075
      %v1670 = vpop.permute.xlu0 %1669
      %1673 = vset.pattern.permute.xlu0 0
      %1674 = vperm.xlu0 %1673, %v1076
      %v1675 = vpop.permute.xlu0 %1674
      %1678 = vset.pattern.permute.xlu0 0
      %1679 = vperm.xlu0 %1678, %v1077
      %v1680 = vpop.permute.xlu0 %1679
      %1683 = vset.pattern.permute.xlu0 0
      %1684 = vperm.xlu0 %1683, %v1078
      %v1685 = vpop.permute.xlu0 %1684
      %1688 = vset.pattern.permute.xlu0 0
      %1689 = vperm.xlu0 %1688, %v1079
      %v1690 = vpop.permute.xlu0 %1689
      %1693 = vset.pattern.permute.xlu0 0
      %1694 = vperm.xlu0 %1693, %v1080
      %v1695 = vpop.permute.xlu0 %1694
      %1698 = vset.pattern.permute.xlu0 0
      %1699 = vperm.xlu0 %1698, %v1081
      %v1700 = vpop.permute.xlu0 %1699
      %1703 = vset.pattern.permute.xlu0 0
      %1704 = vperm.xlu0 %1703, %v1082
      %v1705 = vpop.permute.xlu0 %1704
      %1708 = vset.pattern.permute.xlu0 0
      %1709 = vperm.xlu0 %1708, %v1083
      %v1710 = vpop.permute.xlu0 %1709
      %1713 = vset.pattern.permute.xlu0 0
      %1714 = vperm.xlu0 %1713, %v1084
      %v1715 = vpop.permute.xlu0 %1714
      %1718 = vset.pattern.permute.xlu0 0
      %1719 = vperm.xlu0 %1718, %v1085
      %v1720 = vpop.permute.xlu0 %1719
      %1723 = vset.pattern.permute.xlu0 0
      %1724 = vperm.xlu0 %1723, %v1086
      %v1725 = vpop.permute.xlu0 %1724
      %v1855 = vunpack.c.l.b16 %v823
      %v1856 = vunpack.c.l.b16 %v824
      %v1857 = vunpack.c.l.b16 %v825
      %v1858 = vunpack.c.l.b16 %v826
      %v1859 = vunpack.c.l.b16 %v827
      %v1860 = vunpack.c.l.b16 %v828
      %v1861 = vunpack.c.l.b16 %v829
      %v1862 = vunpack.c.l.b16 %v830
      %v1863 = vunpack.c.l.b16 %v831
      %v1864 = vunpack.c.l.b16 %v832
      %v1865 = vunpack.c.l.b16 %v833
      %v1866 = vunpack.c.l.b16 %v834
      %v1867 = vunpack.c.l.b16 %v835
      %v1868 = vunpack.c.l.b16 %v836
      %v1869 = vunpack.c.l.b16 %v837
      %v1870 = vunpack.c.l.b16 %v838
      %v1871 = vunpack.c.l.b16 %v839
      %v1872 = vunpack.c.l.b16 %v840
      %v1873 = vunpack.c.l.b16 %v841
      %v1874 = vunpack.c.l.b16 %v842
      %v1875 = vunpack.c.l.b16 %v843
      %v1876 = vunpack.c.l.b16 %v844
      %v1877 = vunpack.c.l.b16 %v845
      %v1878 = vunpack.c.l.b16 %v846
      %v1879 = vunpack.c.l.b16 %v847
      %v1880 = vunpack.c.l.b16 %v848
      %v1881 = vunpack.c.l.b16 %v849
      %v1882 = vunpack.c.l.b16 %v850
      %v1883 = vunpack.c.l.b16 %v851
      %v1884 = vunpack.c.l.b16 %v852
      %v1885 = vunpack.c.l.b16 %v853
      %v1886 = vunpack.c.l.b16 %v854
      %v1887 = vunpack.c.l.b16 %v855
      %v1888 = vunpack.c.l.b16 %v856
      %v1889 = vunpack.c.l.b16 %v857
      %v1890 = vunpack.c.l.b16 %v858
      %v1891 = vunpack.c.l.b16 %v859
      %v1892 = vunpack.c.l.b16 %v860
      %v1893 = vunpack.c.l.b16 %v861
      %v1894 = vunpack.c.l.b16 %v862
      %v1895 = vunpack.c.l.b16 %v863
      %v1896 = vunpack.c.l.b16 %v864
      %v1897 = vunpack.c.l.b16 %v865
      %v1898 = vunpack.c.l.b16 %v866
      %v1899 = vunpack.c.l.b16 %v867
      %v1900 = vunpack.c.l.b16 %v868
      %v1901 = vunpack.c.l.b16 %v869
      %v1902 = vunpack.c.l.b16 %v870
      %v1903 = vunpack.c.l.b16 %v871
      %v1904 = vunpack.c.l.b16 %v872
      %v1905 = vunpack.c.l.b16 %v873
      %v1906 = vunpack.c.l.b16 %v874
      %v1907 = vunpack.c.l.b16 %v875
      %v1908 = vunpack.c.l.b16 %v876
      %v1909 = vunpack.c.l.b16 %v877
      %v1910 = vunpack.c.l.b16 %v878
      %v1911 = vunpack.c.l.b16 %v879
      %v1912 = vunpack.c.l.b16 %v880
      %v1913 = vunpack.c.l.b16 %v881
      %v1914 = vunpack.c.l.b16 %v882
      %v1915 = vunpack.c.l.b16 %v883
      %v1916 = vunpack.c.l.b16 %v884
      %v1917 = vunpack.c.l.b16 %v885
      %v1918 = vunpack.c.l.b16 %v886
      %v1919 = vunpack.c.l.b16 %v887
      %v1920 = vunpack.c.l.b16 %v888
      %v1921 = vunpack.c.l.b16 %v889
      %v1922 = vunpack.c.l.b16 %v890
      %v1923 = vunpack.c.l.b16 %v891
      %v1924 = vunpack.c.l.b16 %v892
      %v1925 = vunpack.c.l.b16 %v893
      %v1926 = vunpack.c.l.b16 %v894
      %v1927 = vunpack.c.l.b16 %v895
      %v1928 = vunpack.c.l.b16 %v896
      %v1929 = vunpack.c.l.b16 %v897
      %v1930 = vunpack.c.l.b16 %v898
      %v1931 = vunpack.c.l.b16 %v899
      %v1932 = vunpack.c.l.b16 %v900
      %v1933 = vunpack.c.l.b16 %v901
      %v1934 = vunpack.c.l.b16 %v902
      %v1935 = vunpack.c.l.b16 %v903
      %v1936 = vunpack.c.l.b16 %v904
      %v1937 = vunpack.c.l.b16 %v905
      %v1938 = vunpack.c.l.b16 %v906
      %v1939 = vunpack.c.l.b16 %v907
      %v1940 = vunpack.c.l.b16 %v908
      %v1941 = vunpack.c.l.b16 %v909
      %v1942 = vunpack.c.l.b16 %v910
      %v1943 = vunpack.c.l.b16 %v911
      %v1944 = vunpack.c.l.b16 %v912
      %v1945 = vunpack.c.l.b16 %v913
      %v1946 = vunpack.c.l.b16 %v914
      %v1947 = vunpack.c.l.b16 %v915
      %v1948 = vunpack.c.l.b16 %v916
      %v1949 = vunpack.c.l.b16 %v917
      %v1950 = vunpack.c.l.b16 %v918
      %v1951 = vunpack.c.l.b16 %v919
      %v1952 = vunpack.c.l.b16 %v920
      %v1953 = vunpack.c.l.b16 %v921
      %v1954 = vunpack.c.l.b16 %v922
      %v1955 = vunpack.c.l.b16 %v923
      %v1956 = vunpack.c.l.b16 %v924
      %v1957 = vunpack.c.l.b16 %v925
      %v1958 = vunpack.c.l.b16 %v926
      %v1959 = vunpack.c.l.b16 %v927
      %v1960 = vunpack.c.l.b16 %v928
      %v1961 = vunpack.c.l.b16 %v929
      %v1962 = vunpack.c.l.b16 %v930
      %v1963 = vunpack.c.l.b16 %v931
      %v1964 = vunpack.c.l.b16 %v932
      %v1965 = vunpack.c.l.b16 %v933
      %v1966 = vunpack.c.l.b16 %v934
      %v1967 = vunpack.c.l.b16 %v935
      %v1968 = vunpack.c.l.b16 %v936
      %v1969 = vunpack.c.l.b16 %v937
      %v1970 = vunpack.c.l.b16 %v938
      %v1971 = vunpack.c.l.b16 %v939
      %v1972 = vunpack.c.l.b16 %v940
      %v1973 = vunpack.c.l.b16 %v941
      %v1974 = vunpack.c.l.b16 %v942
      %v1975 = vunpack.c.l.b16 %v943
      %v1976 = vunpack.c.l.b16 %v944
      %v1977 = vunpack.c.l.b16 %v945
      %v1978 = vunpack.c.l.b16 %v946
      %v1979 = vunpack.c.l.b16 %v947
      %v1980 = vunpack.c.l.b16 %v948
      %v1981 = vunpack.c.l.b16 %v949
      %v1982 = vunpack.c.l.b16 %v950
      %v1983 = vpack.c.b16 %v1856, %v1855
      %v1984 = vpack.c.b16 %v1858, %v1857
      %v1985 = vpack.c.b16 %v1860, %v1859
      %v1986 = vpack.c.b16 %v1862, %v1861
      %v1987 = vpack.c.b16 %v1864, %v1863
      %v1988 = vpack.c.b16 %v1866, %v1865
      %v1989 = vpack.c.b16 %v1868, %v1867
      %v1990 = vpack.c.b16 %v1870, %v1869
      %v1991 = vpack.c.b16 %v1872, %v1871
      %v1992 = vpack.c.b16 %v1874, %v1873
      %v1993 = vpack.c.b16 %v1876, %v1875
      %v1994 = vpack.c.b16 %v1878, %v1877
      %v1995 = vpack.c.b16 %v1880, %v1879
      %v1996 = vpack.c.b16 %v1882, %v1881
      %v1997 = vpack.c.b16 %v1884, %v1883
      %v1998 = vpack.c.b16 %v1886, %v1885
      %v1999 = vpack.c.b16 %v1888, %v1887
      %v2000 = vpack.c.b16 %v1890, %v1889
      %v2001 = vpack.c.b16 %v1892, %v1891
      %v2002 = vpack.c.b16 %v1894, %v1893
      %v2003 = vpack.c.b16 %v1896, %v1895
      %v2004 = vpack.c.b16 %v1898, %v1897
      %v2005 = vpack.c.b16 %v1900, %v1899
      %v2006 = vpack.c.b16 %v1902, %v1901
      %v2007 = vpack.c.b16 %v1904, %v1903
      %v2008 = vpack.c.b16 %v1906, %v1905
      %v2009 = vpack.c.b16 %v1908, %v1907
      %v2010 = vpack.c.b16 %v1910, %v1909
      %v2011 = vpack.c.b16 %v1912, %v1911
      %v2012 = vpack.c.b16 %v1914, %v1913
      %v2013 = vpack.c.b16 %v1916, %v1915
      %v2014 = vpack.c.b16 %v1918, %v1917
      %v2015 = vpack.c.b16 %v1920, %v1919
      %v2016 = vpack.c.b16 %v1922, %v1921
      %v2017 = vpack.c.b16 %v1924, %v1923
      %v2018 = vpack.c.b16 %v1926, %v1925
      %v2019 = vpack.c.b16 %v1928, %v1927
      %v2020 = vpack.c.b16 %v1930, %v1929
      %v2021 = vpack.c.b16 %v1932, %v1931
      %v2022 = vpack.c.b16 %v1934, %v1933
      %v2023 = vpack.c.b16 %v1936, %v1935
      %v2024 = vpack.c.b16 %v1938, %v1937
      %v2025 = vpack.c.b16 %v1940, %v1939
      %v2026 = vpack.c.b16 %v1942, %v1941
      %v2027 = vpack.c.b16 %v1944, %v1943
      %v2028 = vpack.c.b16 %v1946, %v1945
      %v2029 = vpack.c.b16 %v1948, %v1947
      %v2030 = vpack.c.b16 %v1950, %v1949
      %v2031 = vpack.c.b16 %v1952, %v1951
      %v2032 = vpack.c.b16 %v1954, %v1953
      %v2033 = vpack.c.b16 %v1956, %v1955
      %v2034 = vpack.c.b16 %v1958, %v1957
      %v2035 = vpack.c.b16 %v1960, %v1959
      %v2036 = vpack.c.b16 %v1962, %v1961
      %v2037 = vpack.c.b16 %v1964, %v1963
      %v2038 = vpack.c.b16 %v1966, %v1965
      %v2039 = vpack.c.b16 %v1968, %v1967
      %v2040 = vpack.c.b16 %v1970, %v1969
      %v2041 = vpack.c.b16 %v1972, %v1971
      %v2042 = vpack.c.b16 %v1974, %v1973
      %v2043 = vpack.c.b16 %v1976, %v1975
      %v2044 = vpack.c.b16 %v1978, %v1977
      %v2045 = vpack.c.b16 %v1980, %v1979
      %v2046 = vpack.c.b16 %v1982, %v1981
      %2111 = vmatprep.subr.bf16.mxu0 0
      %2112 = vmatpush1.bf16.msra.mxu0 %v951
      %2113 = vmatprep.subr.bf16.mxu0 0
      %2114 = vmatpush1.bf16.msra.mxu0 %v952
      %2115 = vmatprep.subr.bf16.mxu0 0
      %2116 = vmatpush1.bf16.msra.mxu0 %v953
      %2117 = vmatprep.subr.bf16.mxu0 0
      %2118 = vmatpush1.bf16.msra.mxu0 %v954
      %2119 = vmatprep.subr.bf16.mxu0 0
      %2120 = vmatpush1.bf16.msra.mxu0 %v955
      %2121 = vmatprep.subr.bf16.mxu0 0
      %2122 = vmatpush1.bf16.msra.mxu0 %v956
      %2123 = vmatprep.subr.bf16.mxu0 0
      %2124 = vmatpush1.bf16.msra.mxu0 %v957
      %2125 = vmatprep.subr.bf16.mxu0 0
      %2126 = vmatpush1.bf16.msra.mxu0 %v958
      %2127 = vmatprep.subr.bf16.mxu0 0
      %2128 = vmatpush1.bf16.msra.mxu0 0
      %2129 = vmatprep.subr.bf16.mxu0 0
      %2130 = vmatpush1.bf16.msra.mxu0 0
      %2131 = vmatprep.subr.bf16.mxu0 0
      %2132 = vmatpush1.bf16.msra.mxu0 0
      %2133 = vmatprep.subr.bf16.mxu0 0
      %2134 = vmatpush1.bf16.msra.mxu0 0
      %2135 = vmatprep.subr.bf16.mxu0 0
      %2136 = vmatpush1.bf16.msra.mxu0 0
      %2137 = vmatprep.subr.bf16.mxu0 0
      %2138 = vmatpush1.bf16.msra.mxu0 0
      %2139 = vmatprep.subr.bf16.mxu0 0
      %2140 = vmatpush1.bf16.msra.mxu0 0
      %2141 = vmatprep.subr.bf16.mxu0 0
      %2142 = vmatpush1.bf16.msra.mxu0 0
      %2143 = vmatprep.mubr.bf16.mxu0 0
      %2144 = vmatmul.mubr.bf16.gmra.mrb[0].mxu0 %v1983
      %v2145 = vpop.f32.mrb[0].mxu0
      %v2146 = vadd.f32 %v1090, %v2145
      %v2147 = vpop.f32.mrb[0].mxu0
      %v2148 = vpop.f32.mrb[0].mxu0
      %v2149 = vadd.f32 %v1095, %v2148
      %v2150 = vpop.f32.mrb[0].mxu0
      %2151 = vmatprep.mubr.bf16.mxu0 0
      %2152 = vmatmul.mubr.bf16.gmra.mrb[0].mxu0 %v1984
      %v2153 = vpop.f32.mrb[0].mxu0
      %v2154 = vadd.f32 %v1100, %v2153
      %v2155 = vpop.f32.mrb[0].mxu0
      %v2156 = vpop.f32.mrb[0].mxu0
      %v2157 = vadd.f32 %v1105, %v2156
      %v2158 = vpop.f32.mrb[0].mxu0
      %2159 = vmatprep.mubr.bf16.mxu0 0
      %2160 = vmatmul.mubr.bf16.gmra.mrb[0].mxu0 %v1985
      %v2161 = vpop.f32.mrb[0].mxu0
      %v2162 = vadd.f32 %v1110, %v2161
      %v2163 = vpop.f32.mrb[0].mxu0
      %v2164 = vpop.f32.mrb[0].mxu0
      %v2165 = vadd.f32 %v1115, %v2164
      %v2166 = vpop.f32.mrb[0].mxu0
      %2167 = vmatprep.mubr.bf16.mxu0 0
      %2168 = vmatmul.mubr.bf16.gmra.mrb[0].mxu0 %v1986
      %v2169 = vpop.f32.mrb[0].mxu0
      %v2170 = vadd.f32 %v1120, %v2169
      %v2171 = vpop.f32.mrb[0].mxu0
      %v2172 = vpop.f32.mrb[0].mxu0
      %v2173 = vadd.f32 %v1125, %v2172
      %v2174 = vpop.f32.mrb[0].mxu0
      %2175 = vmatprep.mubr.bf16.mxu0 0
      %2176 = vmatmul.mubr.bf16.gmra.mrb[0].mxu0 %v1987
      %v2177 = vpop.f32.mrb[0].mxu0
      %v2178 = vadd.f32 %v1130, %v2177
      %v2179 = vpop.f32.mrb[0].mxu0
      %v2180 = vpop.f32.mrb[0].mxu0
      %v2181 = vadd.f32 %v1135, %v2180
      %v2182 = vpop.f32.mrb[0].mxu0
      %2183 = vmatprep.mubr.bf16.mxu0 0
      %2184 = vmatmul.mubr.bf16.gmra.mrb[0].mxu0 %v1988
      %v2185 = vpop.f32.mrb[0].mxu0
      %v2186 = vadd.f32 %v1140, %v2185
      %v2187 = vpop.f32.mrb[0].mxu0
      %v2188 = vpop.f32.mrb[0].mxu0
      %v2189 = vadd.f32 %v1145, %v2188
      %v2190 = vpop.f32.mrb[0].mxu0
      %2191 = vmatprep.mubr.bf16.mxu0 0
      %2192 = vmatmul.mubr.bf16.gmra.mrb[0].mxu0 %v1989
      %v2193 = vpop.f32.mrb[0].mxu0
      %v2194 = vadd.f32 %v1150, %v2193
      %v2195 = vpop.f32.mrb[0].mxu0
      %v2196 = vpop.f32.mrb[0].mxu0
      %v2197 = vadd.f32 %v1155, %v2196
      %v2198 = vpop.f32.mrb[0].mxu0
      %2199 = vmatprep.mubr.bf16.mxu0 0
      %2200 = vmatmul.mubr.bf16.gmra.mrb[0].mxu0 %v1990
      %v2201 = vpop.f32.mrb[0].mxu0
      %v2202 = vadd.f32 %v1160, %v2201
      %v2203 = vpop.f32.mrb[0].mxu0
      %v2204 = vpop.f32.mrb[0].mxu0
      %v2205 = vadd.f32 %v1165, %v2204
      %v2206 = vpop.f32.mrb[0].mxu0
      %2207 = vmatprep.mubr.bf16.mxu0 0
      %2208 = vmatmul.mubr.bf16.gmra.mrb[0].mxu0 %v1991
      %v2209 = vpop.f32.mrb[0].mxu0
      %v2210 = vadd.f32 %v1170, %v2209
      %v2211 = vpop.f32.mrb[0].mxu0
      %v2212 = vpop.f32.mrb[0].mxu0
      %v2213 = vadd.f32 %v1175, %v2212
      %v2214 = vpop.f32.mrb[0].mxu0
      %2215 = vmatprep.mubr.bf16.mxu0 0
      %2216 = vmatmul.mubr.bf16.gmra.mrb[0].mxu0 %v1992
      %v2217 = vpop.f32.mrb[0].mxu0
      %v2218 = vadd.f32 %v1180, %v2217
      %v2219 = vpop.f32.mrb[0].mxu0
      %v2220 = vpop.f32.mrb[0].mxu0
      %v2221 = vadd.f32 %v1185, %v2220
      %v2222 = vpop.f32.mrb[0].mxu0
      %2223 = vmatprep.mubr.bf16.mxu0 0
      %2224 = vmatmul.mubr.bf16.gmra.mrb[0].mxu0 %v1993
      %v2225 = vpop.f32.mrb[0].mxu0
      %v2226 = vadd.f32 %v1190, %v2225
      %v2227 = vpop.f32.mrb[0].mxu0
      %v2228 = vpop.f32.mrb[0].mxu0
      %v2229 = vadd.f32 %v1195, %v2228
      %v2230 = vpop.f32.mrb[0].mxu0
      %2231 = vmatprep.mubr.bf16.mxu0 0
      %2232 = vmatmul.mubr.bf16.gmra.mrb[0].mxu0 %v1994
      %v2233 = vpop.f32.mrb[0].mxu0
      %v2234 = vadd.f32 %v1200, %v2233
      %v2235 = vpop.f32.mrb[0].mxu0
      %v2236 = vpop.f32.mrb[0].mxu0
      %v2237 = vadd.f32 %v1205, %v2236
      %v2238 = vpop.f32.mrb[0].mxu0
      %2239 = vmatprep.mubr.bf16.mxu0 0
      %2240 = vmatmul.mubr.bf16.gmra.mrb[0].mxu0 %v1995
      %v2241 = vpop.f32.mrb[0].mxu0
      %v2242 = vadd.f32 %v1210, %v2241
      %v2243 = vpop.f32.mrb[0].mxu0
      %v2244 = vpop.f32.mrb[0].mxu0
      %v2245 = vadd.f32 %v1215, %v2244
      %v2246 = vpop.f32.mrb[0].mxu0
      %2247 = vmatprep.mubr.bf16.mxu0 0
      %2248 = vmatmul.mubr.bf16.gmra.mrb[0].mxu0 %v1996
      %v2249 = vpop.f32.mrb[0].mxu0
      %v2250 = vadd.f32 %v1220, %v2249
      %v2251 = vpop.f32.mrb[0].mxu0
      %v2252 = vpop.f32.mrb[0].mxu0
      %v2253 = vadd.f32 %v1225, %v2252
      %v2254 = vpop.f32.mrb[0].mxu0
      %2255 = vmatprep.mubr.bf16.mxu0 0
      %2256 = vmatmul.mubr.bf16.gmra.mrb[0].mxu0 %v1997
      %v2257 = vpop.f32.mrb[0].mxu0
      %v2258 = vadd.f32 %v1230, %v2257
      %v2259 = vpop.f32.mrb[0].mxu0
      %v2260 = vpop.f32.mrb[0].mxu0
      %v2261 = vadd.f32 %v1235, %v2260
      %v2262 = vpop.f32.mrb[0].mxu0
      %2263 = vmatprep.mubr.bf16.mxu0 0
      %2264 = vmatmul.mubr.bf16.gmra.mrb[0].mxu0 %v1998
      %v2265 = vpop.f32.mrb[0].mxu0
      %v2266 = vadd.f32 %v1240, %v2265
      %v2267 = vpop.f32.mrb[0].mxu0
      %v2268 = vpop.f32.mrb[0].mxu0
      %v2269 = vadd.f32 %v1245, %v2268
      %v2270 = vpop.f32.mrb[0].mxu0
      %2271 = vmatprep.mubr.bf16.mxu0 0
      %2272 = vmatmul.mubr.bf16.gmra.mrb[0].mxu0 %v1999
      %v2273 = vpop.f32.mrb[0].mxu0
      %v2274 = vadd.f32 %v1250, %v2273
      %v2275 = vpop.f32.mrb[0].mxu0
      %v2276 = vpop.f32.mrb[0].mxu0
      %v2277 = vadd.f32 %v1255, %v2276
      %v2278 = vpop.f32.mrb[0].mxu0
      %2279 = vmatprep.mubr.bf16.mxu0 0
      %2280 = vmatmul.mubr.bf16.gmra.mrb[0].mxu0 %v2000
      %v2281 = vpop.f32.mrb[0].mxu0
      %v2282 = vadd.f32 %v1260, %v2281
      %v2283 = vpop.f32.mrb[0].mxu0
      %v2284 = vpop.f32.mrb[0].mxu0
      %v2285 = vadd.f32 %v1265, %v2284
      %v2286 = vpop.f32.mrb[0].mxu0
      %2287 = vmatprep.mubr.bf16.mxu0 0
      %2288 = vmatmul.mubr.bf16.gmra.mrb[0].mxu0 %v2001
      %v2289 = vpop.f32.mrb[0].mxu0
      %v2290 = vadd.f32 %v1270, %v2289
      %v2291 = vpop.f32.mrb[0].mxu0
      %v2292 = vpop.f32.mrb[0].mxu0
      %v2293 = vadd.f32 %v1275, %v2292
      %v2294 = vpop.f32.mrb[0].mxu0
      %2295 = vmatprep.mubr.bf16.mxu0 0
      %2296 = vmatmul.mubr.bf16.gmra.mrb[0].mxu0 %v2002
      %v2297 = vpop.f32.mrb[0].mxu0
      %v2298 = vadd.f32 %v1280, %v2297
      %v2299 = vpop.f32.mrb[0].mxu0
      %v2300 = vpop.f32.mrb[0].mxu0
      %v2301 = vadd.f32 %v1285, %v2300
      %v2302 = vpop.f32.mrb[0].mxu0
      %2303 = vmatprep.mubr.bf16.mxu0 0
      %2304 = vmatmul.mubr.bf16.gmra.mrb[0].mxu0 %v2003
      %v2305 = vpop.f32.mrb[0].mxu0
      %v2306 = vadd.f32 %v1290, %v2305
      %v2307 = vpop.f32.mrb[0].mxu0
      %v2308 = vpop.f32.mrb[0].mxu0
      %v2309 = vadd.f32 %v1295, %v2308
      %v2310 = vpop.f32.mrb[0].mxu0
      %2311 = vmatprep.mubr.bf16.mxu0 0
      %2312 = vmatmul.mubr.bf16.gmra.mrb[0].mxu0 %v2004
      %v2313 = vpop.f32.mrb[0].mxu0
      %v2314 = vadd.f32 %v1300, %v2313
      %v2315 = vpop.f32.mrb[0].mxu0
      %v2316 = vpop.f32.mrb[0].mxu0
      %v2317 = vadd.f32 %v1305, %v2316
      %v2318 = vpop.f32.mrb[0].mxu0
      %2319 = vmatprep.mubr.bf16.mxu0 0
      %2320 = vmatmul.mubr.bf16.gmra.mrb[0].mxu0 %v2005
      %v2321 = vpop.f32.mrb[0].mxu0
      %v2322 = vadd.f32 %v1310, %v2321
      %v2323 = vpop.f32.mrb[0].mxu0
      %v2324 = vpop.f32.mrb[0].mxu0
      %v2325 = vadd.f32 %v1315, %v2324
      %v2326 = vpop.f32.mrb[0].mxu0
      %2327 = vmatprep.mubr.bf16.mxu0 0
      %2328 = vmatmul.mubr.bf16.gmra.mrb[0].mxu0 %v2006
      %v2329 = vpop.f32.mrb[0].mxu0
      %v2330 = vadd.f32 %v1320, %v2329
      %v2331 = vpop.f32.mrb[0].mxu0
      %v2332 = vpop.f32.mrb[0].mxu0
      %v2333 = vadd.f32 %v1325, %v2332
      %v2334 = vpop.f32.mrb[0].mxu0
      %2335 = vmatprep.mubr.bf16.mxu0 0
      %2336 = vmatmul.mubr.bf16.gmra.mrb[0].mxu0 %v2007
      %v2337 = vpop.f32.mrb[0].mxu0
      %v2338 = vadd.f32 %v1330, %v2337
      %v2339 = vpop.f32.mrb[0].mxu0
      %v2340 = vpop.f32.mrb[0].mxu0
      %v2341 = vadd.f32 %v1335, %v2340
      %v2342 = vpop.f32.mrb[0].mxu0
      %2343 = vmatprep.mubr.bf16.mxu0 0
      %2344 = vmatmul.mubr.bf16.gmra.mrb[0].mxu0 %v2008
      %v2345 = vpop.f32.mrb[0].mxu0
      %v2346 = vadd.f32 %v1340, %v2345
      %v2347 = vpop.f32.mrb[0].mxu0
      %v2348 = vpop.f32.mrb[0].mxu0
      %v2349 = vadd.f32 %v1345, %v2348
      %v2350 = vpop.f32.mrb[0].mxu0
      %2351 = vmatprep.mubr.bf16.mxu0 0
      %2352 = vmatmul.mubr.bf16.gmra.mrb[0].mxu0 %v2009
      %v2353 = vpop.f32.mrb[0].mxu0
      %v2354 = vadd.f32 %v1350, %v2353
      %v2355 = vpop.f32.mrb[0].mxu0
      %v2356 = vpop.f32.mrb[0].mxu0
      %v2357 = vadd.f32 %v1355, %v2356
      %v2358 = vpop.f32.mrb[0].mxu0
      %2359 = vmatprep.mubr.bf16.mxu0 0
      %2360 = vmatmul.mubr.bf16.gmra.mrb[0].mxu0 %v2010
      %v2361 = vpop.f32.mrb[0].mxu0
      %v2362 = vadd.f32 %v1360, %v2361
      %v2363 = vpop.f32.mrb[0].mxu0
      %v2364 = vpop.f32.mrb[0].mxu0
      %v2365 = vadd.f32 %v1365, %v2364
      %v2366 = vpop.f32.mrb[0].mxu0
      %2367 = vmatprep.mubr.bf16.mxu0 0
      %2368 = vmatmul.mubr.bf16.gmra.mrb[0].mxu0 %v2011
      %v2369 = vpop.f32.mrb[0].mxu0
      %v2370 = vadd.f32 %v1370, %v2369
      %v2371 = vpop.f32.mrb[0].mxu0
      %v2372 = vpop.f32.mrb[0].mxu0
      %v2373 = vadd.f32 %v1375, %v2372
      %v2374 = vpop.f32.mrb[0].mxu0
      %2375 = vmatprep.mubr.bf16.mxu0 0
      %2376 = vmatmul.mubr.bf16.gmra.mrb[0].mxu0 %v2012
      %v2377 = vpop.f32.mrb[0].mxu0
      %v2378 = vadd.f32 %v1380, %v2377
      %v2379 = vpop.f32.mrb[0].mxu0
      %v2380 = vpop.f32.mrb[0].mxu0
      %v2381 = vadd.f32 %v1385, %v2380
      %v2382 = vpop.f32.mrb[0].mxu0
      %2383 = vmatprep.mubr.bf16.mxu0 0
      %2384 = vmatmul.mubr.bf16.gmra.mrb[0].mxu0 %v2013
      %v2385 = vpop.f32.mrb[0].mxu0
      %v2386 = vadd.f32 %v1390, %v2385
      %v2387 = vpop.f32.mrb[0].mxu0
      %v2388 = vpop.f32.mrb[0].mxu0
      %v2389 = vadd.f32 %v1395, %v2388
      %v2390 = vpop.f32.mrb[0].mxu0
      %2391 = vmatprep.mubr.bf16.mxu0 0
      %2392 = vmatmul.mubr.bf16.gmra.mrb[0].mxu0 %v2014
      %v2393 = vpop.f32.mrb[0].mxu0
      %v2394 = vadd.f32 %v1400, %v2393
      %v2395 = vpop.f32.mrb[0].mxu0
      %v2396 = vpop.f32.mrb[0].mxu0
      %v2397 = vadd.f32 %v1405, %v2396
      %v2398 = vpop.f32.mrb[0].mxu0
      %2399 = vmatprep.mubr.bf16.mxu0 0
      %2400 = vmatmul.mubr.bf16.gmra.mrb[0].mxu0 %v2015
      %v2401 = vpop.f32.mrb[0].mxu0
      %v2402 = vadd.f32 %v1410, %v2401
      %v2403 = vpop.f32.mrb[0].mxu0
      %v2404 = vpop.f32.mrb[0].mxu0
      %v2405 = vadd.f32 %v1415, %v2404
      %v2406 = vpop.f32.mrb[0].mxu0
      %2407 = vmatprep.mubr.bf16.mxu0 0
      %2408 = vmatmul.mubr.bf16.gmra.mrb[0].mxu0 %v2016
      %v2409 = vpop.f32.mrb[0].mxu0
      %v2410 = vadd.f32 %v1420, %v2409
      %v2411 = vpop.f32.mrb[0].mxu0
      %v2412 = vpop.f32.mrb[0].mxu0
      %v2413 = vadd.f32 %v1425, %v2412
      %v2414 = vpop.f32.mrb[0].mxu0
      %2415 = vmatprep.mubr.bf16.mxu0 0
      %2416 = vmatmul.mubr.bf16.gmra.mrb[0].mxu0 %v2017
      %v2417 = vpop.f32.mrb[0].mxu0
      %v2418 = vadd.f32 %v1430, %v2417
      %v2419 = vpop.f32.mrb[0].mxu0
      %v2420 = vpop.f32.mrb[0].mxu0
      %v2421 = vadd.f32 %v1435, %v2420
      %v2422 = vpop.f32.mrb[0].mxu0
      %2423 = vmatprep.mubr.bf16.mxu0 0
      %2424 = vmatmul.mubr.bf16.gmra.mrb[0].mxu0 %v2018
      %v2425 = vpop.f32.mrb[0].mxu0
      %v2426 = vadd.f32 %v1440, %v2425
      %v2427 = vpop.f32.mrb[0].mxu0
      %v2428 = vpop.f32.mrb[0].mxu0
      %v2429 = vadd.f32 %v1445, %v2428
      %v2430 = vpop.f32.mrb[0].mxu0
      %2431 = vmatprep.mubr.bf16.mxu0 0
      %2432 = vmatmul.mubr.bf16.gmra.mrb[0].mxu0 %v2019
      %v2433 = vpop.f32.mrb[0].mxu0
      %v2434 = vadd.f32 %v1450, %v2433
      %v2435 = vpop.f32.mrb[0].mxu0
      %v2436 = vpop.f32.mrb[0].mxu0
      %v2437 = vadd.f32 %v1455, %v2436
      %v2438 = vpop.f32.mrb[0].mxu0
      %2439 = vmatprep.mubr.bf16.mxu0 0
      %2440 = vmatmul.mubr.bf16.gmra.mrb[0].mxu0 %v2020
      %v2441 = vpop.f32.mrb[0].mxu0
      %v2442 = vadd.f32 %v1460, %v2441
      %v2443 = vpop.f32.mrb[0].mxu0
      %v2444 = vpop.f32.mrb[0].mxu0
      %v2445 = vadd.f32 %v1465, %v2444
      %v2446 = vpop.f32.mrb[0].mxu0
      %2447 = vmatprep.mubr.bf16.mxu0 0
      %2448 = vmatmul.mubr.bf16.gmra.mrb[0].mxu0 %v2021
      %v2449 = vpop.f32.mrb[0].mxu0
      %v2450 = vadd.f32 %v1470, %v2449
      %v2451 = vpop.f32.mrb[0].mxu0
      %v2452 = vpop.f32.mrb[0].mxu0
      %v2453 = vadd.f32 %v1475, %v2452
      %v2454 = vpop.f32.mrb[0].mxu0
      %2455 = vmatprep.mubr.bf16.mxu0 0
      %2456 = vmatmul.mubr.bf16.gmra.mrb[0].mxu0 %v2022
      %v2457 = vpop.f32.mrb[0].mxu0
      %v2458 = vadd.f32 %v1480, %v2457
      %v2459 = vpop.f32.mrb[0].mxu0
      %v2460 = vpop.f32.mrb[0].mxu0
      %v2461 = vadd.f32 %v1485, %v2460
      %v2462 = vpop.f32.mrb[0].mxu0
      %2463 = vmatprep.mubr.bf16.mxu0 0
      %2464 = vmatmul.mubr.bf16.gmra.mrb[0].mxu0 %v2023
      %v2465 = vpop.f32.mrb[0].mxu0
      %v2466 = vadd.f32 %v1490, %v2465
      %v2467 = vpop.f32.mrb[0].mxu0
      %v2468 = vpop.f32.mrb[0].mxu0
      %v2469 = vadd.f32 %v1495, %v2468
      %v2470 = vpop.f32.mrb[0].mxu0
      %2471 = vmatprep.mubr.bf16.mxu0 0
      %2472 = vmatmul.mubr.bf16.gmra.mrb[0].mxu0 %v2024
      %v2473 = vpop.f32.mrb[0].mxu0
      %v2474 = vadd.f32 %v1500, %v2473
      %v2475 = vpop.f32.mrb[0].mxu0
      %v2476 = vpop.f32.mrb[0].mxu0
      %v2477 = vadd.f32 %v1505, %v2476
      %v2478 = vpop.f32.mrb[0].mxu0
      %2479 = vmatprep.mubr.bf16.mxu0 0
      %2480 = vmatmul.mubr.bf16.gmra.mrb[0].mxu0 %v2025
      %v2481 = vpop.f32.mrb[0].mxu0
      %v2482 = vadd.f32 %v1510, %v2481
      %v2483 = vpop.f32.mrb[0].mxu0
      %v2484 = vpop.f32.mrb[0].mxu0
      %v2485 = vadd.f32 %v1515, %v2484
      %v2486 = vpop.f32.mrb[0].mxu0
      %2487 = vmatprep.mubr.bf16.mxu0 0
      %2488 = vmatmul.mubr.bf16.gmra.mrb[0].mxu0 %v2026
      %v2489 = vpop.f32.mrb[0].mxu0
      %v2490 = vadd.f32 %v1520, %v2489
      %v2491 = vpop.f32.mrb[0].mxu0
      %v2492 = vpop.f32.mrb[0].mxu0
      %v2493 = vadd.f32 %v1525, %v2492
      %v2494 = vpop.f32.mrb[0].mxu0
      %2495 = vmatprep.mubr.bf16.mxu0 0
      %2496 = vmatmul.mubr.bf16.gmra.mrb[0].mxu0 %v2027
      %v2497 = vpop.f32.mrb[0].mxu0
      %v2498 = vadd.f32 %v1530, %v2497
      %v2499 = vpop.f32.mrb[0].mxu0
      %v2500 = vpop.f32.mrb[0].mxu0
      %v2501 = vadd.f32 %v1535, %v2500
      %v2502 = vpop.f32.mrb[0].mxu0
      %2503 = vmatprep.mubr.bf16.mxu0 0
      %2504 = vmatmul.mubr.bf16.gmra.mrb[0].mxu0 %v2028
      %v2505 = vpop.f32.mrb[0].mxu0
      %v2506 = vadd.f32 %v1540, %v2505
      %v2507 = vpop.f32.mrb[0].mxu0
      %v2508 = vpop.f32.mrb[0].mxu0
      %v2509 = vadd.f32 %v1545, %v2508
      %v2510 = vpop.f32.mrb[0].mxu0
      %2511 = vmatprep.mubr.bf16.mxu0 0
      %2512 = vmatmul.mubr.bf16.gmra.mrb[0].mxu0 %v2029
      %v2513 = vpop.f32.mrb[0].mxu0
      %v2514 = vadd.f32 %v1550, %v2513
      %v2515 = vpop.f32.mrb[0].mxu0
      %v2516 = vpop.f32.mrb[0].mxu0
      %v2517 = vadd.f32 %v1555, %v2516
      %v2518 = vpop.f32.mrb[0].mxu0
      %2519 = vmatprep.mubr.bf16.mxu0 0
      %2520 = vmatmul.mubr.bf16.gmra.mrb[0].mxu0 %v2030
      %v2521 = vpop.f32.mrb[0].mxu0
      %v2522 = vadd.f32 %v1560, %v2521
      %v2523 = vpop.f32.mrb[0].mxu0
      %v2524 = vpop.f32.mrb[0].mxu0
      %v2525 = vadd.f32 %v1565, %v2524
      %v2526 = vpop.f32.mrb[0].mxu0
      %2527 = vmatprep.mubr.bf16.mxu0 0
      %2528 = vmatmul.mubr.bf16.gmra.mrb[0].mxu0 %v2031
      %v2529 = vpop.f32.mrb[0].mxu0
      %v2530 = vadd.f32 %v1570, %v2529
      %v2531 = vpop.f32.mrb[0].mxu0
      %v2532 = vpop.f32.mrb[0].mxu0
      %v2533 = vadd.f32 %v1575, %v2532
      %v2534 = vpop.f32.mrb[0].mxu0
      %2535 = vmatprep.mubr.bf16.mxu0 0
      %2536 = vmatmul.mubr.bf16.gmra.mrb[0].mxu0 %v2032
      %v2537 = vpop.f32.mrb[0].mxu0
      %v2538 = vadd.f32 %v1580, %v2537
      %v2539 = vpop.f32.mrb[0].mxu0
      %v2540 = vpop.f32.mrb[0].mxu0
      %v2541 = vadd.f32 %v1585, %v2540
      %v2542 = vpop.f32.mrb[0].mxu0
      %2543 = vmatprep.mubr.bf16.mxu0 0
      %2544 = vmatmul.mubr.bf16.gmra.mrb[0].mxu0 %v2033
      %v2545 = vpop.f32.mrb[0].mxu0
      %v2546 = vadd.f32 %v1590, %v2545
      %v2547 = vpop.f32.mrb[0].mxu0
      %v2548 = vpop.f32.mrb[0].mxu0
      %v2549 = vadd.f32 %v1595, %v2548
      %v2550 = vpop.f32.mrb[0].mxu0
      %2551 = vmatprep.mubr.bf16.mxu0 0
      %2552 = vmatmul.mubr.bf16.gmra.mrb[0].mxu0 %v2034
      %v2553 = vpop.f32.mrb[0].mxu0
      %v2554 = vadd.f32 %v1600, %v2553
      %v2555 = vpop.f32.mrb[0].mxu0
      %v2556 = vpop.f32.mrb[0].mxu0
      %v2557 = vadd.f32 %v1605, %v2556
      %v2558 = vpop.f32.mrb[0].mxu0
      %2559 = vmatprep.mubr.bf16.mxu0 0
      %2560 = vmatmul.mubr.bf16.gmra.mrb[0].mxu0 %v2035
      %v2561 = vpop.f32.mrb[0].mxu0
      %v2562 = vadd.f32 %v1610, %v2561
      %v2563 = vpop.f32.mrb[0].mxu0
      %v2564 = vpop.f32.mrb[0].mxu0
      %v2565 = vadd.f32 %v1615, %v2564
      %v2566 = vpop.f32.mrb[0].mxu0
      %2567 = vmatprep.mubr.bf16.mxu0 0
      %2568 = vmatmul.mubr.bf16.gmra.mrb[0].mxu0 %v2036
      %v2569 = vpop.f32.mrb[0].mxu0
      %v2570 = vadd.f32 %v1620, %v2569
      %v2571 = vpop.f32.mrb[0].mxu0
      %v2572 = vpop.f32.mrb[0].mxu0
      %v2573 = vadd.f32 %v1625, %v2572
      %v2574 = vpop.f32.mrb[0].mxu0
      %2575 = vmatprep.mubr.bf16.mxu0 0
      %2576 = vmatmul.mubr.bf16.gmra.mrb[0].mxu0 %v2037
      %v2577 = vpop.f32.mrb[0].mxu0
      %v2578 = vadd.f32 %v1630, %v2577
      %v2579 = vpop.f32.mrb[0].mxu0
      %v2580 = vpop.f32.mrb[0].mxu0
      %v2581 = vadd.f32 %v1635, %v2580
      %v2582 = vpop.f32.mrb[0].mxu0
      %2583 = vmatprep.mubr.bf16.mxu0 0
      %2584 = vmatmul.mubr.bf16.gmra.mrb[0].mxu0 %v2038
      %v2585 = vpop.f32.mrb[0].mxu0
      %v2586 = vadd.f32 %v1640, %v2585
      %v2587 = vpop.f32.mrb[0].mxu0
      %v2588 = vpop.f32.mrb[0].mxu0
      %v2589 = vadd.f32 %v1645, %v2588
      %v2590 = vpop.f32.mrb[0].mxu0
      %2591 = vmatprep.mubr.bf16.mxu0 0
      %2592 = vmatmul.mubr.bf16.gmra.mrb[0].mxu0 %v2039
      %v2593 = vpop.f32.mrb[0].mxu0
      %v2594 = vadd.f32 %v1650, %v2593
      %v2595 = vpop.f32.mrb[0].mxu0
      %v2596 = vpop.f32.mrb[0].mxu0
      %v2597 = vadd.f32 %v1655, %v2596
      %v2598 = vpop.f32.mrb[0].mxu0
      %2599 = vmatprep.mubr.bf16.mxu0 0
      %2600 = vmatmul.mubr.bf16.gmra.mrb[0].mxu0 %v2040
      %v2601 = vpop.f32.mrb[0].mxu0
      %v2602 = vadd.f32 %v1660, %v2601
      %v2603 = vpop.f32.mrb[0].mxu0
      %v2604 = vpop.f32.mrb[0].mxu0
      %v2605 = vadd.f32 %v1665, %v2604
      %v2606 = vpop.f32.mrb[0].mxu0
      %2607 = vmatprep.mubr.bf16.mxu0 0
      %2608 = vmatmul.mubr.bf16.gmra.mrb[0].mxu0 %v2041
      %v2609 = vpop.f32.mrb[0].mxu0
      %v2610 = vadd.f32 %v1670, %v2609
      %v2611 = vpop.f32.mrb[0].mxu0
      %v2612 = vpop.f32.mrb[0].mxu0
      %v2613 = vadd.f32 %v1675, %v2612
      %v2614 = vpop.f32.mrb[0].mxu0
      %2615 = vmatprep.mubr.bf16.mxu0 0
      %2616 = vmatmul.mubr.bf16.gmra.mrb[0].mxu0 %v2042
      %v2617 = vpop.f32.mrb[0].mxu0
      %v2618 = vadd.f32 %v1680, %v2617
      %v2619 = vpop.f32.mrb[0].mxu0
      %v2620 = vpop.f32.mrb[0].mxu0
      %v2621 = vadd.f32 %v1685, %v2620
      %v2622 = vpop.f32.mrb[0].mxu0
      %2623 = vmatprep.mubr.bf16.mxu0 0
      %2624 = vmatmul.mubr.bf16.gmra.mrb[0].mxu0 %v2043
      %v2625 = vpop.f32.mrb[0].mxu0
      %v2626 = vadd.f32 %v1690, %v2625
      %v2627 = vpop.f32.mrb[0].mxu0
      %v2628 = vpop.f32.mrb[0].mxu0
      %v2629 = vadd.f32 %v1695, %v2628
      %v2630 = vpop.f32.mrb[0].mxu0
      %2631 = vmatprep.mubr.bf16.mxu0 0
      %2632 = vmatmul.mubr.bf16.gmra.mrb[0].mxu0 %v2044
      %v2633 = vpop.f32.mrb[0].mxu0
      %v2634 = vadd.f32 %v1700, %v2633
      %v2635 = vpop.f32.mrb[0].mxu0
      %v2636 = vpop.f32.mrb[0].mxu0
      %v2637 = vadd.f32 %v1705, %v2636
      %v2638 = vpop.f32.mrb[0].mxu0
      %2639 = vmatprep.mubr.bf16.mxu0 0
      %2640 = vmatmul.mubr.bf16.gmra.mrb[0].mxu0 %v2045
      %v2641 = vpop.f32.mrb[0].mxu0
      %v2642 = vadd.f32 %v1710, %v2641
      %v2643 = vpop.f32.mrb[0].mxu0
      %v2644 = vpop.f32.mrb[0].mxu0
      %v2645 = vadd.f32 %v1715, %v2644
      %v2646 = vpop.f32.mrb[0].mxu0
      %2647 = vmatprep.mubr.bf16.mxu0 0
      %2648 = vmatmul.mubr.bf16.gmra.mrb[0].mxu0 %v2046
      %v2649 = vpop.f32.mrb[0].mxu0
      %v2650 = vadd.f32 %v1720, %v2649
      %v2651 = vpop.f32.mrb[0].mxu0
      %v2652 = vpop.f32.mrb[0].mxu0
      %v2653 = vadd.f32 %v1725, %v2652
      %v2654 = vpop.f32.mrb[0].mxu0
      %2655 = vdwg.mxu0
      %v2656 = vmax.f32 %v2146, 0.0
      %v2657 = vmax.f32 %v2149, 0.0
      %v2658 = vmax.f32 %v2154, 0.0
      %v2659 = vmax.f32 %v2157, 0.0
      %v2660 = vmax.f32 %v2162, 0.0
      %v2661 = vmax.f32 %v2165, 0.0
      %v2662 = vmax.f32 %v2170, 0.0
      %v2663 = vmax.f32 %v2173, 0.0
      %v2664 = vmax.f32 %v2178, 0.0
      %v2665 = vmax.f32 %v2181, 0.0
      %v2666 = vmax.f32 %v2186, 0.0
      %v2667 = vmax.f32 %v2189, 0.0
      %v2668 = vmax.f32 %v2194, 0.0
      %v2669 = vmax.f32 %v2197, 0.0
      %v2670 = vmax.f32 %v2202, 0.0
      %v2671 = vmax.f32 %v2205, 0.0
      %v2672 = vmax.f32 %v2210, 0.0
      %v2673 = vmax.f32 %v2213, 0.0
      %v2674 = vmax.f32 %v2218, 0.0
      %v2675 = vmax.f32 %v2221, 0.0
      %v2676 = vmax.f32 %v2226, 0.0
      %v2677 = vmax.f32 %v2229, 0.0
      %v2678 = vmax.f32 %v2234, 0.0
      %v2679 = vmax.f32 %v2237, 0.0
      %v2680 = vmax.f32 %v2242, 0.0
      %v2681 = vmax.f32 %v2245, 0.0
      %v2682 = vmax.f32 %v2250, 0.0
      %v2683 = vmax.f32 %v2253, 0.0
      %v2684 = vmax.f32 %v2258, 0.0
      %v2685 = vmax.f32 %v2261, 0.0
      %v2686 = vmax.f32 %v2266, 0.0
      %v2687 = vmax.f32 %v2269, 0.0
      %v2688 = vmax.f32 %v2274, 0.0
      %v2689 = vmax.f32 %v2277, 0.0
      %v2690 = vmax.f32 %v2282, 0.0
      %v2691 = vmax.f32 %v2285, 0.0
      %v2692 = vmax.f32 %v2290, 0.0
      %v2693 = vmax.f32 %v2293, 0.0
      %v2694 = vmax.f32 %v2298, 0.0
      %v2695 = vmax.f32 %v2301, 0.0
      %v2696 = vmax.f32 %v2306, 0.0
      %v2697 = vmax.f32 %v2309, 0.0
      %v2698 = vmax.f32 %v2314, 0.0
      %v2699 = vmax.f32 %v2317, 0.0
      %v2700 = vmax.f32 %v2322, 0.0
      %v2701 = vmax.f32 %v2325, 0.0
      %v2702 = vmax.f32 %v2330, 0.0
      %v2703 = vmax.f32 %v2333, 0.0
      %v2704 = vmax.f32 %v2338, 0.0
      %v2705 = vmax.f32 %v2341, 0.0
      %v2706 = vmax.f32 %v2346, 0.0
      %v2707 = vmax.f32 %v2349, 0.0
      %v2708 = vmax.f32 %v2354, 0.0
      %v2709 = vmax.f32 %v2357, 0.0
      %v2710 = vmax.f32 %v2362, 0.0
      %v2711 = vmax.f32 %v2365, 0.0
      %v2712 = vmax.f32 %v2370, 0.0
      %v2713 = vmax.f32 %v2373, 0.0
      %v2714 = vmax.f32 %v2378, 0.0
      %v2715 = vmax.f32 %v2381, 0.0
      %v2716 = vmax.f32 %v2386, 0.0
      %v2717 = vmax.f32 %v2389, 0.0
      %v2718 = vmax.f32 %v2394, 0.0
      %v2719 = vmax.f32 %v2397, 0.0
      %v2720 = vmax.f32 %v2402, 0.0
      %v2721 = vmax.f32 %v2405, 0.0
      %v2722 = vmax.f32 %v2410, 0.0
      %v2723 = vmax.f32 %v2413, 0.0
      %v2724 = vmax.f32 %v2418, 0.0
      %v2725 = vmax.f32 %v2421, 0.0
      %v2726 = vmax.f32 %v2426, 0.0
      %v2727 = vmax.f32 %v2429, 0.0
      %v2728 = vmax.f32 %v2434, 0.0
      %v2729 = vmax.f32 %v2437, 0.0
      %v2730 = vmax.f32 %v2442, 0.0
      %v2731 = vmax.f32 %v2445, 0.0
      %v2732 = vmax.f32 %v2450, 0.0
      %v2733 = vmax.f32 %v2453, 0.0
      %v2734 = vmax.f32 %v2458, 0.0
      %v2735 = vmax.f32 %v2461, 0.0
      %v2736 = vmax.f32 %v2466, 0.0
      %v2737 = vmax.f32 %v2469, 0.0
      %v2738 = vmax.f32 %v2474, 0.0
      %v2739 = vmax.f32 %v2477, 0.0
      %v2740 = vmax.f32 %v2482, 0.0
      %v2741 = vmax.f32 %v2485, 0.0
      %v2742 = vmax.f32 %v2490, 0.0
      %v2743 = vmax.f32 %v2493, 0.0
      %v2744 = vmax.f32 %v2498, 0.0
      %v2745 = vmax.f32 %v2501, 0.0
      %v2746 = vmax.f32 %v2506, 0.0
      %v2747 = vmax.f32 %v2509, 0.0
      %v2748 = vmax.f32 %v2514, 0.0
      %v2749 = vmax.f32 %v2517, 0.0
      %v2750 = vmax.f32 %v2522, 0.0
      %v2751 = vmax.f32 %v2525, 0.0
      %v2752 = vmax.f32 %v2530, 0.0
      %v2753 = vmax.f32 %v2533, 0.0
      %v2754 = vmax.f32 %v2538, 0.0
      %v2755 = vmax.f32 %v2541, 0.0
      %v2756 = vmax.f32 %v2546, 0.0
      %v2757 = vmax.f32 %v2549, 0.0
      %v2758 = vmax.f32 %v2554, 0.0
      %v2759 = vmax.f32 %v2557, 0.0
      %v2760 = vmax.f32 %v2562, 0.0
      %v2761 = vmax.f32 %v2565, 0.0
      %v2762 = vmax.f32 %v2570, 0.0
      %v2763 = vmax.f32 %v2573, 0.0
      %v2764 = vmax.f32 %v2578, 0.0
      %v2765 = vmax.f32 %v2581, 0.0
      %v2766 = vmax.f32 %v2586, 0.0
      %v2767 = vmax.f32 %v2589, 0.0
      %v2768 = vmax.f32 %v2594, 0.0
      %v2769 = vmax.f32 %v2597, 0.0
      %v2770 = vmax.f32 %v2602, 0.0
      %v2771 = vmax.f32 %v2605, 0.0
      %v2772 = vmax.f32 %v2610, 0.0
      %v2773 = vmax.f32 %v2613, 0.0
      %v2774 = vmax.f32 %v2618, 0.0
      %v2775 = vmax.f32 %v2621, 0.0
      %v2776 = vmax.f32 %v2626, 0.0
      %v2777 = vmax.f32 %v2629, 0.0
      %v2778 = vmax.f32 %v2634, 0.0
      %v2779 = vmax.f32 %v2637, 0.0
      %v2780 = vmax.f32 %v2642, 0.0
      %v2781 = vmax.f32 %v2645, 0.0
      %v2782 = vmax.f32 %v2650, 0.0
      %v2783 = vmax.f32 %v2653, 0.0
      %2784 = vmax.xlane.f32.xlu0 %v2656
      %v2785 = vpop.xlane.xlu0 %2784
      %2786 = vmax.xlane.f32.xlu0 %v2657
      %v2787 = vpop.xlane.xlu0 %2786
      %2788 = vmax.xlane.f32.xlu0 %v2658
      %v2789 = vpop.xlane.xlu0 %2788
      %2790 = vmax.xlane.f32.xlu0 %v2659
      %v2791 = vpop.xlane.xlu0 %2790
      %2792 = vmax.xlane.f32.xlu0 %v2660
      %v2793 = vpop.xlane.xlu0 %2792
      %2794 = vmax.xlane.f32.xlu0 %v2661
      %v2795 = vpop.xlane.xlu0 %2794
      %2796 = vmax.xlane.f32.xlu0 %v2662
      %v2797 = vpop.xlane.xlu0 %2796
      %2798 = vmax.xlane.f32.xlu0 %v2663
      %v2799 = vpop.xlane.xlu0 %2798
      %2800 = vmax.xlane.f32.xlu0 %v2664
      %v2801 = vpop.xlane.xlu0 %2800
      %2802 = vmax.xlane.f32.xlu0 %v2665
      %v2803 = vpop.xlane.xlu0 %2802
      %2804 = vmax.xlane.f32.xlu0 %v2666
      %v2805 = vpop.xlane.xlu0 %2804
      %2806 = vmax.xlane.f32.xlu0 %v2667
      %v2807 = vpop.xlane.xlu0 %2806
      %2808 = vmax.xlane.f32.xlu0 %v2668
      %v2809 = vpop.xlane.xlu0 %2808
      %2810 = vmax.xlane.f32.xlu0 %v2669
      %v2811 = vpop.xlane.xlu0 %2810
      %2812 = vmax.xlane.f32.xlu0 %v2670
      %v2813 = vpop.xlane.xlu0 %2812
      %2814 = vmax.xlane.f32.xlu0 %v2671
      %v2815 = vpop.xlane.xlu0 %2814
      %2816 = vmax.xlane.f32.xlu0 %v2672
      %v2817 = vpop.xlane.xlu0 %2816
      %2818 = vmax.xlane.f32.xlu0 %v2673
      %v2819 = vpop.xlane.xlu0 %2818
      %2820 = vmax.xlane.f32.xlu0 %v2674
      %v2821 = vpop.xlane.xlu0 %2820
      %2822 = vmax.xlane.f32.xlu0 %v2675
      %v2823 = vpop.xlane.xlu0 %2822
      %2824 = vmax.xlane.f32.xlu0 %v2676
      %v2825 = vpop.xlane.xlu0 %2824
      %2826 = vmax.xlane.f32.xlu0 %v2677
      %v2827 = vpop.xlane.xlu0 %2826
      %2828 = vmax.xlane.f32.xlu0 %v2678
      %v2829 = vpop.xlane.xlu0 %2828
      %2830 = vmax.xlane.f32.xlu0 %v2679
      %v2831 = vpop.xlane.xlu0 %2830
      %2832 = vmax.xlane.f32.xlu0 %v2680
      %v2833 = vpop.xlane.xlu0 %2832
      %2834 = vmax.xlane.f32.xlu0 %v2681
      %v2835 = vpop.xlane.xlu0 %2834
      %2836 = vmax.xlane.f32.xlu0 %v2682
      %v2837 = vpop.xlane.xlu0 %2836
      %2838 = vmax.xlane.f32.xlu0 %v2683
      %v2839 = vpop.xlane.xlu0 %2838
      %2840 = vmax.xlane.f32.xlu0 %v2684
      %v2841 = vpop.xlane.xlu0 %2840
      %2842 = vmax.xlane.f32.xlu0 %v2685
      %v2843 = vpop.xlane.xlu0 %2842
      %2844 = vmax.xlane.f32.xlu0 %v2686
      %v2845 = vpop.xlane.xlu0 %2844
      %2846 = vmax.xlane.f32.xlu0 %v2687
      %v2847 = vpop.xlane.xlu0 %2846
      %2848 = vmax.xlane.f32.xlu0 %v2688
      %v2849 = vpop.xlane.xlu0 %2848
      %2850 = vmax.xlane.f32.xlu0 %v2689
      %v2851 = vpop.xlane.xlu0 %2850
      %2852 = vmax.xlane.f32.xlu0 %v2690
      %v2853 = vpop.xlane.xlu0 %2852
      %2854 = vmax.xlane.f32.xlu0 %v2691
      %v2855 = vpop.xlane.xlu0 %2854
      %2856 = vmax.xlane.f32.xlu0 %v2692
      %v2857 = vpop.xlane.xlu0 %2856
      %2858 = vmax.xlane.f32.xlu0 %v2693
      %v2859 = vpop.xlane.xlu0 %2858
      %2860 = vmax.xlane.f32.xlu0 %v2694
      %v2861 = vpop.xlane.xlu0 %2860
      %2862 = vmax.xlane.f32.xlu0 %v2695
      %v2863 = vpop.xlane.xlu0 %2862
      %2864 = vmax.xlane.f32.xlu0 %v2696
      %v2865 = vpop.xlane.xlu0 %2864
      %2866 = vmax.xlane.f32.xlu0 %v2697
      %v2867 = vpop.xlane.xlu0 %2866
      %2868 = vmax.xlane.f32.xlu0 %v2698
      %v2869 = vpop.xlane.xlu0 %2868
      %2870 = vmax.xlane.f32.xlu0 %v2699
      %v2871 = vpop.xlane.xlu0 %2870
      %2872 = vmax.xlane.f32.xlu0 %v2700
      %v2873 = vpop.xlane.xlu0 %2872
      %2874 = vmax.xlane.f32.xlu0 %v2701
      %v2875 = vpop.xlane.xlu0 %2874
      %2876 = vmax.xlane.f32.xlu0 %v2702
      %v2877 = vpop.xlane.xlu0 %2876
      %2878 = vmax.xlane.f32.xlu0 %v2703
      %v2879 = vpop.xlane.xlu0 %2878
      %2880 = vmax.xlane.f32.xlu0 %v2704
      %v2881 = vpop.xlane.xlu0 %2880
      %2882 = vmax.xlane.f32.xlu0 %v2705
      %v2883 = vpop.xlane.xlu0 %2882
      %2884 = vmax.xlane.f32.xlu0 %v2706
      %v2885 = vpop.xlane.xlu0 %2884
      %2886 = vmax.xlane.f32.xlu0 %v2707
      %v2887 = vpop.xlane.xlu0 %2886
      %2888 = vmax.xlane.f32.xlu0 %v2708
      %v2889 = vpop.xlane.xlu0 %2888
      %2890 = vmax.xlane.f32.xlu0 %v2709
      %v2891 = vpop.xlane.xlu0 %2890
      %2892 = vmax.xlane.f32.xlu0 %v2710
      %v2893 = vpop.xlane.xlu0 %2892
      %2894 = vmax.xlane.f32.xlu0 %v2711
      %v2895 = vpop.xlane.xlu0 %2894
      %2896 = vmax.xlane.f32.xlu0 %v2712
      %v2897 = vpop.xlane.xlu0 %2896
      %2898 = vmax.xlane.f32.xlu0 %v2713
      %v2899 = vpop.xlane.xlu0 %2898
      %2900 = vmax.xlane.f32.xlu0 %v2714
      %v2901 = vpop.xlane.xlu0 %2900
      %2902 = vmax.xlane.f32.xlu0 %v2715
      %v2903 = vpop.xlane.xlu0 %2902
      %2904 = vmax.xlane.f32.xlu0 %v2716
      %v2905 = vpop.xlane.xlu0 %2904
      %2906 = vmax.xlane.f32.xlu0 %v2717
      %v2907 = vpop.xlane.xlu0 %2906
      %2908 = vmax.xlane.f32.xlu0 %v2718
      %v2909 = vpop.xlane.xlu0 %2908
      %2910 = vmax.xlane.f32.xlu0 %v2719
      %v2911 = vpop.xlane.xlu0 %2910
      %2912 = vmax.xlane.f32.xlu0 %v2720
      %v2913 = vpop.xlane.xlu0 %2912
      %2914 = vmax.xlane.f32.xlu0 %v2721
      %v2915 = vpop.xlane.xlu0 %2914
      %2916 = vmax.xlane.f32.xlu0 %v2722
      %v2917 = vpop.xlane.xlu0 %2916
      %2918 = vmax.xlane.f32.xlu0 %v2723
      %v2919 = vpop.xlane.xlu0 %2918
      %2920 = vmax.xlane.f32.xlu0 %v2724
      %v2921 = vpop.xlane.xlu0 %2920
      %2922 = vmax.xlane.f32.xlu0 %v2725
      %v2923 = vpop.xlane.xlu0 %2922
      %2924 = vmax.xlane.f32.xlu0 %v2726
      %v2925 = vpop.xlane.xlu0 %2924
      %2926 = vmax.xlane.f32.xlu0 %v2727
      %v2927 = vpop.xlane.xlu0 %2926
      %2928 = vmax.xlane.f32.xlu0 %v2728
      %v2929 = vpop.xlane.xlu0 %2928
      %2930 = vmax.xlane.f32.xlu0 %v2729
      %v2931 = vpop.xlane.xlu0 %2930
      %2932 = vmax.xlane.f32.xlu0 %v2730
      %v2933 = vpop.xlane.xlu0 %2932
      %2934 = vmax.xlane.f32.xlu0 %v2731
      %v2935 = vpop.xlane.xlu0 %2934
      %2936 = vmax.xlane.f32.xlu0 %v2732
      %v2937 = vpop.xlane.xlu0 %2936
      %2938 = vmax.xlane.f32.xlu0 %v2733
      %v2939 = vpop.xlane.xlu0 %2938
      %2940 = vmax.xlane.f32.xlu0 %v2734
      %v2941 = vpop.xlane.xlu0 %2940
      %2942 = vmax.xlane.f32.xlu0 %v2735
      %v2943 = vpop.xlane.xlu0 %2942
      %2944 = vmax.xlane.f32.xlu0 %v2736
      %v2945 = vpop.xlane.xlu0 %2944
      %2946 = vmax.xlane.f32.xlu0 %v2737
      %v2947 = vpop.xlane.xlu0 %2946
      %2948 = vmax.xlane.f32.xlu0 %v2738
      %v2949 = vpop.xlane.xlu0 %2948
      %2950 = vmax.xlane.f32.xlu0 %v2739
      %v2951 = vpop.xlane.xlu0 %2950
      %2952 = vmax.xlane.f32.xlu0 %v2740
      %v2953 = vpop.xlane.xlu0 %2952
      %2954 = vmax.xlane.f32.xlu0 %v2741
      %v2955 = vpop.xlane.xlu0 %2954
      %2956 = vmax.xlane.f32.xlu0 %v2742
      %v2957 = vpop.xlane.xlu0 %2956
      %2958 = vmax.xlane.f32.xlu0 %v2743
      %v2959 = vpop.xlane.xlu0 %2958
      %2960 = vmax.xlane.f32.xlu0 %v2744
      %v2961 = vpop.xlane.xlu0 %2960
      %2962 = vmax.xlane.f32.xlu0 %v2745
      %v2963 = vpop.xlane.xlu0 %2962
      %2964 = vmax.xlane.f32.xlu0 %v2746
      %v2965 = vpop.xlane.xlu0 %2964
      %2966 = vmax.xlane.f32.xlu0 %v2747
      %v2967 = vpop.xlane.xlu0 %2966
      %2968 = vmax.xlane.f32.xlu0 %v2748
      %v2969 = vpop.xlane.xlu0 %2968
      %2970 = vmax.xlane.f32.xlu0 %v2749
      %v2971 = vpop.xlane.xlu0 %2970
      %2972 = vmax.xlane.f32.xlu0 %v2750
      %v2973 = vpop.xlane.xlu0 %2972
      %2974 = vmax.xlane.f32.xlu0 %v2751
      %v2975 = vpop.xlane.xlu0 %2974
      %2976 = vmax.xlane.f32.xlu0 %v2752
      %v2977 = vpop.xlane.xlu0 %2976
      %2978 = vmax.xlane.f32.xlu0 %v2753
      %v2979 = vpop.xlane.xlu0 %2978
      %2980 = vmax.xlane.f32.xlu0 %v2754
      %v2981 = vpop.xlane.xlu0 %2980
      %2982 = vmax.xlane.f32.xlu0 %v2755
      %v2983 = vpop.xlane.xlu0 %2982
      %2984 = vmax.xlane.f32.xlu0 %v2756
      %v2985 = vpop.xlane.xlu0 %2984
      %2986 = vmax.xlane.f32.xlu0 %v2757
      %v2987 = vpop.xlane.xlu0 %2986
      %2988 = vmax.xlane.f32.xlu0 %v2758
      %v2989 = vpop.xlane.xlu0 %2988
      %2990 = vmax.xlane.f32.xlu0 %v2759
      %v2991 = vpop.xlane.xlu0 %2990
      %2992 = vmax.xlane.f32.xlu0 %v2760
      %v2993 = vpop.xlane.xlu0 %2992
      %2994 = vmax.xlane.f32.xlu0 %v2761
      %v2995 = vpop.xlane.xlu0 %2994
      %2996 = vmax.xlane.f32.xlu0 %v2762
      %v2997 = vpop.xlane.xlu0 %2996
      %2998 = vmax.xlane.f32.xlu0 %v2763
      %v2999 = vpop.xlane.xlu0 %2998
      %3000 = vmax.xlane.f32.xlu0 %v2764
      %v3001 = vpop.xlane.xlu0 %3000
      %3002 = vmax.xlane.f32.xlu0 %v2765
      %v3003 = vpop.xlane.xlu0 %3002
      %3004 = vmax.xlane.f32.xlu0 %v2766
      %v3005 = vpop.xlane.xlu0 %3004
      %3006 = vmax.xlane.f32.xlu0 %v2767
      %v3007 = vpop.xlane.xlu0 %3006
      %3008 = vmax.xlane.f32.xlu0 %v2768
      %v3009 = vpop.xlane.xlu0 %3008
      %3010 = vmax.xlane.f32.xlu0 %v2769
      %v3011 = vpop.xlane.xlu0 %3010
      %3012 = vmax.xlane.f32.xlu0 %v2770
      %v3013 = vpop.xlane.xlu0 %3012
      %3014 = vmax.xlane.f32.xlu0 %v2771
      %v3015 = vpop.xlane.xlu0 %3014
      %3016 = vmax.xlane.f32.xlu0 %v2772
      %v3017 = vpop.xlane.xlu0 %3016
      %3018 = vmax.xlane.f32.xlu0 %v2773
      %v3019 = vpop.xlane.xlu0 %3018
      %3020 = vmax.xlane.f32.xlu0 %v2774
      %v3021 = vpop.xlane.xlu0 %3020
      %3022 = vmax.xlane.f32.xlu0 %v2775
      %v3023 = vpop.xlane.xlu0 %3022
      %3024 = vmax.xlane.f32.xlu0 %v2776
      %v3025 = vpop.xlane.xlu0 %3024
      %3026 = vmax.xlane.f32.xlu0 %v2777
      %v3027 = vpop.xlane.xlu0 %3026
      %3028 = vmax.xlane.f32.xlu0 %v2778
      %v3029 = vpop.xlane.xlu0 %3028
      %3030 = vmax.xlane.f32.xlu0 %v2779
      %v3031 = vpop.xlane.xlu0 %3030
      %3032 = vmax.xlane.f32.xlu0 %v2780
      %v3033 = vpop.xlane.xlu0 %3032
      %3034 = vmax.xlane.f32.xlu0 %v2781
      %v3035 = vpop.xlane.xlu0 %3034
      %3036 = vmax.xlane.f32.xlu0 %v2782
      %v3037 = vpop.xlane.xlu0 %3036
      %3038 = vmax.xlane.f32.xlu0 %v2783
      %v3039 = vpop.xlane.xlu0 %3038
      %p3040 = scmp.eq.s32.totalorder %s23, 0
      // Predicated region
      $region49: #{_forward_jit.4} parent=47 // pred_check
        %p3041 = pneg %p3040
      $region50: #{_forward_jit.4} parent=47 // pred_check_branch
        %3043 = sbr.rel (%p3041) target = $region52
      $region51: #{_forward_jit.4} parent=47 // pred_region
        %vm3044 = vcmask 7168
        %3045 = vst.msk [vmem:[%s298] sm:$0xff] %vm3044, %v2785
        %3046 = vst.msk [vmem:[%s298 + $0x8] sm:$0xff] %vm3044, %v2787
        %3047 = vst.msk [vmem:[%s298 + $0x10] sm:$0xff] %vm3044, %v2789
        %3048 = vst.msk [vmem:[%s298 + $0x18] sm:$0xff] %vm3044, %v2791
        %3049 = vst.msk [vmem:[%s298 + $0x20] sm:$0xff] %vm3044, %v2793
        %3050 = vst.msk [vmem:[%s298 + $0x28] sm:$0xff] %vm3044, %v2795
        %3051 = vst.msk [vmem:[%s298 + $0x30] sm:$0xff] %vm3044, %v2797
        %3052 = vst.msk [vmem:[%s298 + $0x38] sm:$0xff] %vm3044, %v2799
        %3053 = vst.msk [vmem:[%s298 + $0x40] sm:$0xff] %vm3044, %v2801
        %3054 = vst.msk [vmem:[%s298 + $0x48] sm:$0xff] %vm3044, %v2803
        %3055 = vst.msk [vmem:[%s298 + $0x50] sm:$0xff] %vm3044, %v2805
        %3056 = vst.msk [vmem:[%s298 + $0x58] sm:$0xff] %vm3044, %v2807
        %3057 = vst.msk [vmem:[%s298 + $0x60] sm:$0xff] %vm3044, %v2809
        %3058 = vst.msk [vmem:[%s298 + $0x68] sm:$0xff] %vm3044, %v2811
        %3059 = vst.msk [vmem:[%s298 + $0x70] sm:$0xff] %vm3044, %v2813
        %3060 = vst.msk [vmem:[%s298 + $0x78] sm:$0xff] %vm3044, %v2815
        %3061 = vst.msk [vmem:[%s298 + $0x80] sm:$0xff] %vm3044, %v2817
        %3062 = vst.msk [vmem:[%s298 + $0x88] sm:$0xff] %vm3044, %v2819
        %3063 = vst.msk [vmem:[%s298 + $0x90] sm:$0xff] %vm3044, %v2821
        %3064 = vst.msk [vmem:[%s298 + $0x98] sm:$0xff] %vm3044, %v2823
        %3065 = vst.msk [vmem:[%s298 + $0xa0] sm:$0xff] %vm3044, %v2825
        %3066 = vst.msk [vmem:[%s298 + $0xa8] sm:$0xff] %vm3044, %v2827
        %3067 = vst.msk [vmem:[%s298 + $0xb0] sm:$0xff] %vm3044, %v2829
        %3068 = vst.msk [vmem:[%s298 + $0xb8] sm:$0xff] %vm3044, %v2831
        %3069 = vst.msk [vmem:[%s298 + $0xc0] sm:$0xff] %vm3044, %v2833
        %3070 = vst.msk [vmem:[%s298 + $0xc8] sm:$0xff] %vm3044, %v2835
        %3071 = vst.msk [vmem:[%s298 + $0xd0] sm:$0xff] %vm3044, %v2837
        %3072 = vst.msk [vmem:[%s298 + $0xd8] sm:$0xff] %vm3044, %v2839
        %3073 = vst.msk [vmem:[%s298 + $0xe0] sm:$0xff] %vm3044, %v2841
        %3074 = vst.msk [vmem:[%s298 + $0xe8] sm:$0xff] %vm3044, %v2843
        %3075 = vst.msk [vmem:[%s298 + $0xf0] sm:$0xff] %vm3044, %v2845
        %3076 = vst.msk [vmem:[%s298 + $0xf8] sm:$0xff] %vm3044, %v2847
        %3077 = vst.msk [vmem:[%s298 + $0x100] sm:$0xff] %vm3044, %v2849
        %3078 = vst.msk [vmem:[%s298 + $0x108] sm:$0xff] %vm3044, %v2851
        %3079 = vst.msk [vmem:[%s298 + $0x110] sm:$0xff] %vm3044, %v2853
        %3080 = vst.msk [vmem:[%s298 + $0x118] sm:$0xff] %vm3044, %v2855
        %3081 = vst.msk [vmem:[%s298 + $0x120] sm:$0xff] %vm3044, %v2857
        %3082 = vst.msk [vmem:[%s298 + $0x128] sm:$0xff] %vm3044, %v2859
        %3083 = vst.msk [vmem:[%s298 + $0x130] sm:$0xff] %vm3044, %v2861
        %3084 = vst.msk [vmem:[%s298 + $0x138] sm:$0xff] %vm3044, %v2863
        %3085 = vst.msk [vmem:[%s298 + $0x140] sm:$0xff] %vm3044, %v2865
        %3086 = vst.msk [vmem:[%s298 + $0x148] sm:$0xff] %vm3044, %v2867
        %3087 = vst.msk [vmem:[%s298 + $0x150] sm:$0xff] %vm3044, %v2869
        %3088 = vst.msk [vmem:[%s298 + $0x158] sm:$0xff] %vm3044, %v2871
        %3089 = vst.msk [vmem:[%s298 + $0x160] sm:$0xff] %vm3044, %v2873
        %3090 = vst.msk [vmem:[%s298 + $0x168] sm:$0xff] %vm3044, %v2875
        %3091 = vst.msk [vmem:[%s298 + $0x170] sm:$0xff] %vm3044, %v2877
        %3092 = vst.msk [vmem:[%s298 + $0x178] sm:$0xff] %vm3044, %v2879
        %3093 = vst.msk [vmem:[%s298 + $0x180] sm:$0xff] %vm3044, %v2881
        %3094 = vst.msk [vmem:[%s298 + $0x188] sm:$0xff] %vm3044, %v2883
        %3095 = vst.msk [vmem:[%s298 + $0x190] sm:$0xff] %vm3044, %v2885
        %3096 = vst.msk [vmem:[%s298 + $0x198] sm:$0xff] %vm3044, %v2887
        %3097 = vst.msk [vmem:[%s298 + $0x1a0] sm:$0xff] %vm3044, %v2889
        %3098 = vst.msk [vmem:[%s298 + $0x1a8] sm:$0xff] %vm3044, %v2891
        %3099 = vst.msk [vmem:[%s298 + $0x1b0] sm:$0xff] %vm3044, %v2893
        %3100 = vst.msk [vmem:[%s298 + $0x1b8] sm:$0xff] %vm3044, %v2895
        %3101 = vst.msk [vmem:[%s298 + $0x1c0] sm:$0xff] %vm3044, %v2897
        %3102 = vst.msk [vmem:[%s298 + $0x1c8] sm:$0xff] %vm3044, %v2899
        %3103 = vst.msk [vmem:[%s298 + $0x1d0] sm:$0xff] %vm3044, %v2901
        %3104 = vst.msk [vmem:[%s298 + $0x1d8] sm:$0xff] %vm3044, %v2903
        %3105 = vst.msk [vmem:[%s298 + $0x1e0] sm:$0xff] %vm3044, %v2905
        %3106 = vst.msk [vmem:[%s298 + $0x1e8] sm:$0xff] %vm3044, %v2907
        %3107 = vst.msk [vmem:[%s298 + $0x1f0] sm:$0xff] %vm3044, %v2909
        %3108 = vst.msk [vmem:[%s298 + $0x1f8] sm:$0xff] %vm3044, %v2911
        %3109 = vst.msk [vmem:[%s298 + $0x200] sm:$0xff] %vm3044, %v2913
        %3110 = vst.msk [vmem:[%s298 + $0x208] sm:$0xff] %vm3044, %v2915
        %3111 = vst.msk [vmem:[%s298 + $0x210] sm:$0xff] %vm3044, %v2917
        %3112 = vst.msk [vmem:[%s298 + $0x218] sm:$0xff] %vm3044, %v2919
        %3113 = vst.msk [vmem:[%s298 + $0x220] sm:$0xff] %vm3044, %v2921
        %3114 = vst.msk [vmem:[%s298 + $0x228] sm:$0xff] %vm3044, %v2923
        %3115 = vst.msk [vmem:[%s298 + $0x230] sm:$0xff] %vm3044, %v2925
        %3116 = vst.msk [vmem:[%s298 + $0x238] sm:$0xff] %vm3044, %v2927
        %3117 = vst.msk [vmem:[%s298 + $0x240] sm:$0xff] %vm3044, %v2929
        %3118 = vst.msk [vmem:[%s298 + $0x248] sm:$0xff] %vm3044, %v2931
        %3119 = vst.msk [vmem:[%s298 + $0x250] sm:$0xff] %vm3044, %v2933
        %3120 = vst.msk [vmem:[%s298 + $0x258] sm:$0xff] %vm3044, %v2935
        %3121 = vst.msk [vmem:[%s298 + $0x260] sm:$0xff] %vm3044, %v2937
        %3122 = vst.msk [vmem:[%s298 + $0x268] sm:$0xff] %vm3044, %v2939
        %3123 = vst.msk [vmem:[%s298 + $0x270] sm:$0xff] %vm3044, %v2941
        %3124 = vst.msk [vmem:[%s298 + $0x278] sm:$0xff] %vm3044, %v2943
        %3125 = vst.msk [vmem:[%s298 + $0x280] sm:$0xff] %vm3044, %v2945
        %3126 = vst.msk [vmem:[%s298 + $0x288] sm:$0xff] %vm3044, %v2947
        %3127 = vst.msk [vmem:[%s298 + $0x290] sm:$0xff] %vm3044, %v2949
        %3128 = vst.msk [vmem:[%s298 + $0x298] sm:$0xff] %vm3044, %v2951
        %3129 = vst.msk [vmem:[%s298 + $0x2a0] sm:$0xff] %vm3044, %v2953
        %3130 = vst.msk [vmem:[%s298 + $0x2a8] sm:$0xff] %vm3044, %v2955
        %3131 = vst.msk [vmem:[%s298 + $0x2b0] sm:$0xff] %vm3044, %v2957
        %3132 = vst.msk [vmem:[%s298 + $0x2b8] sm:$0xff] %vm3044, %v2959
        %3133 = vst.msk [vmem:[%s298 + $0x2c0] sm:$0xff] %vm3044, %v2961
        %3134 = vst.msk [vmem:[%s298 + $0x2c8] sm:$0xff] %vm3044, %v2963
        %3135 = vst.msk [vmem:[%s298 + $0x2d0] sm:$0xff] %vm3044, %v2965
        %3136 = vst.msk [vmem:[%s298 + $0x2d8] sm:$0xff] %vm3044, %v2967
        %3137 = vst.msk [vmem:[%s298 + $0x2e0] sm:$0xff] %vm3044, %v2969
        %3138 = vst.msk [vmem:[%s298 + $0x2e8] sm:$0xff] %vm3044, %v2971
        %3139 = vst.msk [vmem:[%s298 + $0x2f0] sm:$0xff] %vm3044, %v2973
        %3140 = vst.msk [vmem:[%s298 + $0x2f8] sm:$0xff] %vm3044, %v2975
        %3141 = vst.msk [vmem:[%s298 + $0x300] sm:$0xff] %vm3044, %v2977
        %3142 = vst.msk [vmem:[%s298 + $0x308] sm:$0xff] %vm3044, %v2979
        %3143 = vst.msk [vmem:[%s298 + $0x310] sm:$0xff] %vm3044, %v2981
        %3144 = vst.msk [vmem:[%s298 + $0x318] sm:$0xff] %vm3044, %v2983
        %3145 = vst.msk [vmem:[%s298 + $0x320] sm:$0xff] %vm3044, %v2985
        %3146 = vst.msk [vmem:[%s298 + $0x328] sm:$0xff] %vm3044, %v2987
        %3147 = vst.msk [vmem:[%s298 + $0x330] sm:$0xff] %vm3044, %v2989
        %3148 = vst.msk [vmem:[%s298 + $0x338] sm:$0xff] %vm3044, %v2991
        %3149 = vst.msk [vmem:[%s298 + $0x340] sm:$0xff] %vm3044, %v2993
        %3150 = vst.msk [vmem:[%s298 + $0x348] sm:$0xff] %vm3044, %v2995
        %3151 = vst.msk [vmem:[%s298 + $0x350] sm:$0xff] %vm3044, %v2997
        %3152 = vst.msk [vmem:[%s298 + $0x358] sm:$0xff] %vm3044, %v2999
        %3153 = vst.msk [vmem:[%s298 + $0x360] sm:$0xff] %vm3044, %v3001
        %3154 = vst.msk [vmem:[%s298 + $0x368] sm:$0xff] %vm3044, %v3003
        %3155 = vst.msk [vmem:[%s298 + $0x370] sm:$0xff] %vm3044, %v3005
        %3156 = vst.msk [vmem:[%s298 + $0x378] sm:$0xff] %vm3044, %v3007
        %3157 = vst.msk [vmem:[%s298 + $0x380] sm:$0xff] %vm3044, %v3009
        %3158 = vst.msk [vmem:[%s298 + $0x388] sm:$0xff] %vm3044, %v3011
        %3159 = vst.msk [vmem:[%s298 + $0x390] sm:$0xff] %vm3044, %v3013
        %3160 = vst.msk [vmem:[%s298 + $0x398] sm:$0xff] %vm3044, %v3015
        %3161 = vst.msk [vmem:[%s298 + $0x3a0] sm:$0xff] %vm3044, %v3017
        %3162 = vst.msk [vmem:[%s298 + $0x3a8] sm:$0xff] %vm3044, %v3019
        %3163 = vst.msk [vmem:[%s298 + $0x3b0] sm:$0xff] %vm3044, %v3021
        %3164 = vst.msk [vmem:[%s298 + $0x3b8] sm:$0xff] %vm3044, %v3023
        %3165 = vst.msk [vmem:[%s298 + $0x3c0] sm:$0xff] %vm3044, %v3025
        %3166 = vst.msk [vmem:[%s298 + $0x3c8] sm:$0xff] %vm3044, %v3027
        %3167 = vst.msk [vmem:[%s298 + $0x3d0] sm:$0xff] %vm3044, %v3029
        %3168 = vst.msk [vmem:[%s298 + $0x3d8] sm:$0xff] %vm3044, %v3031
        %3169 = vst.msk [vmem:[%s298 + $0x3e0] sm:$0xff] %vm3044, %v3033
        %3170 = vst.msk [vmem:[%s298 + $0x3e8] sm:$0xff] %vm3044, %v3035
        %3171 = vst.msk [vmem:[%s298 + $0x3f0] sm:$0xff] %vm3044, %v3037
        %3172 = vst.msk [vmem:[%s298 + $0x3f8] sm:$0xff] %vm3044, %v3039
      $region52: #{_forward_jit.4} parent=47 // pred_fallthru
        _
      %p3173 = scmp.gt.s32.totalorder %s23, 0
      // Predicated region
      $region53: #{_forward_jit.4} parent=47 // pred_check
        %p3174 = pneg %p3173
      $region54: #{_forward_jit.4} parent=47 // pred_check_branch
        %3176 = sbr.rel (%p3174) target = $region56
      $region55: #{_forward_jit.4} parent=47 // pred_region
        %v3177 = vld [vmem:[%s298] sm:$0xff]
        %v3178 = vld [vmem:[%s298 + $0x8] sm:$0xff]
        %v3179 = vld [vmem:[%s298 + $0x10] sm:$0xff]
        %v3180 = vld [vmem:[%s298 + $0x18] sm:$0xff]
        %v3181 = vld [vmem:[%s298 + $0x20] sm:$0xff]
        %v3182 = vld [vmem:[%s298 + $0x28] sm:$0xff]
        %v3183 = vld [vmem:[%s298 + $0x30] sm:$0xff]
        %v3184 = vld [vmem:[%s298 + $0x38] sm:$0xff]
        %v3185 = vld [vmem:[%s298 + $0x40] sm:$0xff]
        %v3186 = vld [vmem:[%s298 + $0x48] sm:$0xff]
        %v3187 = vld [vmem:[%s298 + $0x50] sm:$0xff]
        %v3188 = vld [vmem:[%s298 + $0x58] sm:$0xff]
        %v3189 = vld [vmem:[%s298 + $0x60] sm:$0xff]
        %v3190 = vld [vmem:[%s298 + $0x68] sm:$0xff]
        %v3191 = vld [vmem:[%s298 + $0x70] sm:$0xff]
        %v3192 = vld [vmem:[%s298 + $0x78] sm:$0xff]
        %v3193 = vld [vmem:[%s298 + $0x80] sm:$0xff]
        %v3194 = vld [vmem:[%s298 + $0x88] sm:$0xff]
        %v3195 = vld [vmem:[%s298 + $0x90] sm:$0xff]
        %v3196 = vld [vmem:[%s298 + $0x98] sm:$0xff]
        %v3197 = vld [vmem:[%s298 + $0xa0] sm:$0xff]
        %v3198 = vld [vmem:[%s298 + $0xa8] sm:$0xff]
        %v3199 = vld [vmem:[%s298 + $0xb0] sm:$0xff]
        %v3200 = vld [vmem:[%s298 + $0xb8] sm:$0xff]
        %v3201 = vld [vmem:[%s298 + $0xc0] sm:$0xff]
        %v3202 = vld [vmem:[%s298 + $0xc8] sm:$0xff]
        %v3203 = vld [vmem:[%s298 + $0xd0] sm:$0xff]
        %v3204 = vld [vmem:[%s298 + $0xd8] sm:$0xff]
        %v3205 = vld [vmem:[%s298 + $0xe0] sm:$0xff]
        %v3206 = vld [vmem:[%s298 + $0xe8] sm:$0xff]
        %v3207 = vld [vmem:[%s298 + $0xf0] sm:$0xff]
        %v3208 = vld [vmem:[%s298 + $0xf8] sm:$0xff]
        %v3209 = vld [vmem:[%s298 + $0x100] sm:$0xff]
        %v3210 = vld [vmem:[%s298 + $0x108] sm:$0xff]
        %v3211 = vld [vmem:[%s298 + $0x110] sm:$0xff]
        %v3212 = vld [vmem:[%s298 + $0x118] sm:$0xff]
        %v3213 = vld [vmem:[%s298 + $0x120] sm:$0xff]
        %v3214 = vld [vmem:[%s298 + $0x128] sm:$0xff]
        %v3215 = vld [vmem:[%s298 + $0x130] sm:$0xff]
        %v3216 = vld [vmem:[%s298 + $0x138] sm:$0xff]
        %v3217 = vld [vmem:[%s298 + $0x140] sm:$0xff]
        %v3218 = vld [vmem:[%s298 + $0x148] sm:$0xff]
        %v3219 = vld [vmem:[%s298 + $0x150] sm:$0xff]
        %v3220 = vld [vmem:[%s298 + $0x158] sm:$0xff]
        %v3221 = vld [vmem:[%s298 + $0x160] sm:$0xff]
        %v3222 = vld [vmem:[%s298 + $0x168] sm:$0xff]
        %v3223 = vld [vmem:[%s298 + $0x170] sm:$0xff]
        %v3224 = vld [vmem:[%s298 + $0x178] sm:$0xff]
        %v3225 = vld [vmem:[%s298 + $0x180] sm:$0xff]
        %v3226 = vld [vmem:[%s298 + $0x188] sm:$0xff]
        %v3227 = vld [vmem:[%s298 + $0x190] sm:$0xff]
        %v3228 = vld [vmem:[%s298 + $0x198] sm:$0xff]
        %v3229 = vld [vmem:[%s298 + $0x1a0] sm:$0xff]
        %v3230 = vld [vmem:[%s298 + $0x1a8] sm:$0xff]
        %v3231 = vld [vmem:[%s298 + $0x1b0] sm:$0xff]
        %v3232 = vld [vmem:[%s298 + $0x1b8] sm:$0xff]
        %v3233 = vld [vmem:[%s298 + $0x1c0] sm:$0xff]
        %v3234 = vld [vmem:[%s298 + $0x1c8] sm:$0xff]
        %v3235 = vld [vmem:[%s298 + $0x1d0] sm:$0xff]
        %v3236 = vld [vmem:[%s298 + $0x1d8] sm:$0xff]
        %v3237 = vld [vmem:[%s298 + $0x1e0] sm:$0xff]
        %v3238 = vld [vmem:[%s298 + $0x1e8] sm:$0xff]
        %v3239 = vld [vmem:[%s298 + $0x1f0] sm:$0xff]
        %v3240 = vld [vmem:[%s298 + $0x1f8] sm:$0xff]
        %v3241 = vld [vmem:[%s298 + $0x200] sm:$0xff]
        %v3242 = vld [vmem:[%s298 + $0x208] sm:$0xff]
        %v3243 = vld [vmem:[%s298 + $0x210] sm:$0xff]
        %v3244 = vld [vmem:[%s298 + $0x218] sm:$0xff]
        %v3245 = vld [vmem:[%s298 + $0x220] sm:$0xff]
        %v3246 = vld [vmem:[%s298 + $0x228] sm:$0xff]
        %v3247 = vld [vmem:[%s298 + $0x230] sm:$0xff]
        %v3248 = vld [vmem:[%s298 + $0x238] sm:$0xff]
        %v3249 = vld [vmem:[%s298 + $0x240] sm:$0xff]
        %v3250 = vld [vmem:[%s298 + $0x248] sm:$0xff]
        %v3251 = vld [vmem:[%s298 + $0x250] sm:$0xff]
        %v3252 = vld [vmem:[%s298 + $0x258] sm:$0xff]
        %v3253 = vld [vmem:[%s298 + $0x260] sm:$0xff]
        %v3254 = vld [vmem:[%s298 + $0x268] sm:$0xff]
        %v3255 = vld [vmem:[%s298 + $0x270] sm:$0xff]
        %v3256 = vld [vmem:[%s298 + $0x278] sm:$0xff]
        %v3257 = vld [vmem:[%s298 + $0x280] sm:$0xff]
        %v3258 = vld [vmem:[%s298 + $0x288] sm:$0xff]
        %v3259 = vld [vmem:[%s298 + $0x290] sm:$0xff]
        %v3260 = vld [vmem:[%s298 + $0x298] sm:$0xff]
        %v3261 = vld [vmem:[%s298 + $0x2a0] sm:$0xff]
        %v3262 = vld [vmem:[%s298 + $0x2a8] sm:$0xff]
        %v3263 = vld [vmem:[%s298 + $0x2b0] sm:$0xff]
        %v3264 = vld [vmem:[%s298 + $0x2b8] sm:$0xff]
        %v3265 = vld [vmem:[%s298 + $0x2c0] sm:$0xff]
        %v3266 = vld [vmem:[%s298 + $0x2c8] sm:$0xff]
        %v3267 = vld [vmem:[%s298 + $0x2d0] sm:$0xff]
        %v3268 = vld [vmem:[%s298 + $0x2d8] sm:$0xff]
        %v3269 = vld [vmem:[%s298 + $0x2e0] sm:$0xff]
        %v3270 = vld [vmem:[%s298 + $0x2e8] sm:$0xff]
        %v3271 = vld [vmem:[%s298 + $0x2f0] sm:$0xff]
        %v3272 = vld [vmem:[%s298 + $0x2f8] sm:$0xff]
        %v3273 = vld [vmem:[%s298 + $0x300] sm:$0xff]
        %v3274 = vld [vmem:[%s298 + $0x308] sm:$0xff]
        %v3275 = vld [vmem:[%s298 + $0x310] sm:$0xff]
        %v3276 = vld [vmem:[%s298 + $0x318] sm:$0xff]
        %v3277 = vld [vmem:[%s298 + $0x320] sm:$0xff]
        %v3278 = vld [vmem:[%s298 + $0x328] sm:$0xff]
        %v3279 = vld [vmem:[%s298 + $0x330] sm:$0xff]
        %v3280 = vld [vmem:[%s298 + $0x338] sm:$0xff]
        %v3281 = vld [vmem:[%s298 + $0x340] sm:$0xff]
        %v3282 = vld [vmem:[%s298 + $0x348] sm:$0xff]
        %v3283 = vld [vmem:[%s298 + $0x350] sm:$0xff]
        %v3284 = vld [vmem:[%s298 + $0x358] sm:$0xff]
        %v3285 = vld [vmem:[%s298 + $0x360] sm:$0xff]
        %v3286 = vld [vmem:[%s298 + $0x368] sm:$0xff]
        %v3287 = vld [vmem:[%s298 + $0x370] sm:$0xff]
        %v3288 = vld [vmem:[%s298 + $0x378] sm:$0xff]
        %v3289 = vld [vmem:[%s298 + $0x380] sm:$0xff]
        %v3290 = vld [vmem:[%s298 + $0x388] sm:$0xff]
        %v3291 = vld [vmem:[%s298 + $0x390] sm:$0xff]
        %v3292 = vld [vmem:[%s298 + $0x398] sm:$0xff]
        %v3293 = vld [vmem:[%s298 + $0x3a0] sm:$0xff]
        %v3294 = vld [vmem:[%s298 + $0x3a8] sm:$0xff]
        %v3295 = vld [vmem:[%s298 + $0x3b0] sm:$0xff]
        %v3296 = vld [vmem:[%s298 + $0x3b8] sm:$0xff]
        %v3297 = vld [vmem:[%s298 + $0x3c0] sm:$0xff]
        %v3298 = vld [vmem:[%s298 + $0x3c8] sm:$0xff]
        %v3299 = vld [vmem:[%s298 + $0x3d0] sm:$0xff]
        %v3300 = vld [vmem:[%s298 + $0x3d8] sm:$0xff]
        %v3301 = vld [vmem:[%s298 + $0x3e0] sm:$0xff]
        %v3302 = vld [vmem:[%s298 + $0x3e8] sm:$0xff]
        %v3303 = vld [vmem:[%s298 + $0x3f0] sm:$0xff]
        %v3304 = vld [vmem:[%s298 + $0x3f8] sm:$0xff]
        %v3305 = vmax.f32 %v3177, %v2785
        %v3306 = vmax.f32 %v3178, %v2787
        %v3307 = vmax.f32 %v3179, %v2789
        %v3308 = vmax.f32 %v3180, %v2791
        %v3309 = vmax.f32 %v3181, %v2793
        %v3310 = vmax.f32 %v3182, %v2795
        %v3311 = vmax.f32 %v3183, %v2797
        %v3312 = vmax.f32 %v3184, %v2799
        %v3313 = vmax.f32 %v3185, %v2801
        %v3314 = vmax.f32 %v3186, %v2803
        %v3315 = vmax.f32 %v3187, %v2805
        %v3316 = vmax.f32 %v3188, %v2807
        %v3317 = vmax.f32 %v3189, %v2809
        %v3318 = vmax.f32 %v3190, %v2811
        %v3319 = vmax.f32 %v3191, %v2813
        %v3320 = vmax.f32 %v3192, %v2815
        %v3321 = vmax.f32 %v3193, %v2817
        %v3322 = vmax.f32 %v3194, %v2819
        %v3323 = vmax.f32 %v3195, %v2821
        %v3324 = vmax.f32 %v3196, %v2823
        %v3325 = vmax.f32 %v3197, %v2825
        %v3326 = vmax.f32 %v3198, %v2827
        %v3327 = vmax.f32 %v3199, %v2829
        %v3328 = vmax.f32 %v3200, %v2831
        %v3329 = vmax.f32 %v3201, %v2833
        %v3330 = vmax.f32 %v3202, %v2835
        %v3331 = vmax.f32 %v3203, %v2837
        %v3332 = vmax.f32 %v3204, %v2839
        %v3333 = vmax.f32 %v3205, %v2841
        %v3334 = vmax.f32 %v3206, %v2843
        %v3335 = vmax.f32 %v3207, %v2845
        %v3336 = vmax.f32 %v3208, %v2847
        %v3337 = vmax.f32 %v3209, %v2849
        %v3338 = vmax.f32 %v3210, %v2851
        %v3339 = vmax.f32 %v3211, %v2853
        %v3340 = vmax.f32 %v3212, %v2855
        %v3341 = vmax.f32 %v3213, %v2857
        %v3342 = vmax.f32 %v3214, %v2859
        %v3343 = vmax.f32 %v3215, %v2861
        %v3344 = vmax.f32 %v3216, %v2863
        %v3345 = vmax.f32 %v3217, %v2865
        %v3346 = vmax.f32 %v3218, %v2867
        %v3347 = vmax.f32 %v3219, %v2869
        %v3348 = vmax.f32 %v3220, %v2871
        %v3349 = vmax.f32 %v3221, %v2873
        %v3350 = vmax.f32 %v3222, %v2875
        %v3351 = vmax.f32 %v3223, %v2877
        %v3352 = vmax.f32 %v3224, %v2879
        %v3353 = vmax.f32 %v3225, %v2881
        %v3354 = vmax.f32 %v3226, %v2883
        %v3355 = vmax.f32 %v3227, %v2885
        %v3356 = vmax.f32 %v3228, %v2887
        %v3357 = vmax.f32 %v3229, %v2889
        %v3358 = vmax.f32 %v3230, %v2891
        %v3359 = vmax.f32 %v3231, %v2893
        %v3360 = vmax.f32 %v3232, %v2895
        %v3361 = vmax.f32 %v3233, %v2897
        %v3362 = vmax.f32 %v3234, %v2899
        %v3363 = vmax.f32 %v3235, %v2901
        %v3364 = vmax.f32 %v3236, %v2903
        %v3365 = vmax.f32 %v3237, %v2905
        %v3366 = vmax.f32 %v3238, %v2907
        %v3367 = vmax.f32 %v3239, %v2909
        %v3368 = vmax.f32 %v3240, %v2911
        %v3369 = vmax.f32 %v3241, %v2913
        %v3370 = vmax.f32 %v3242, %v2915
        %v3371 = vmax.f32 %v3243, %v2917
        %v3372 = vmax.f32 %v3244, %v2919
        %v3373 = vmax.f32 %v3245, %v2921
        %v3374 = vmax.f32 %v3246, %v2923
        %v3375 = vmax.f32 %v3247, %v2925
        %v3376 = vmax.f32 %v3248, %v2927
        %v3377 = vmax.f32 %v3249, %v2929
        %v3378 = vmax.f32 %v3250, %v2931
        %v3379 = vmax.f32 %v3251, %v2933
        %v3380 = vmax.f32 %v3252, %v2935
        %v3381 = vmax.f32 %v3253, %v2937
        %v3382 = vmax.f32 %v3254, %v2939
        %v3383 = vmax.f32 %v3255, %v2941
        %v3384 = vmax.f32 %v3256, %v2943
        %v3385 = vmax.f32 %v3257, %v2945
        %v3386 = vmax.f32 %v3258, %v2947
        %v3387 = vmax.f32 %v3259, %v2949
        %v3388 = vmax.f32 %v3260, %v2951
        %v3389 = vmax.f32 %v3261, %v2953
        %v3390 = vmax.f32 %v3262, %v2955
        %v3391 = vmax.f32 %v3263, %v2957
        %v3392 = vmax.f32 %v3264, %v2959
        %v3393 = vmax.f32 %v3265, %v2961
        %v3394 = vmax.f32 %v3266, %v2963
        %v3395 = vmax.f32 %v3267, %v2965
        %v3396 = vmax.f32 %v3268, %v2967
        %v3397 = vmax.f32 %v3269, %v2969
        %v3398 = vmax.f32 %v3270, %v2971
        %v3399 = vmax.f32 %v3271, %v2973
        %v3400 = vmax.f32 %v3272, %v2975
        %v3401 = vmax.f32 %v3273, %v2977
        %v3402 = vmax.f32 %v3274, %v2979
        %v3403 = vmax.f32 %v3275, %v2981
        %v3404 = vmax.f32 %v3276, %v2983
        %v3405 = vmax.f32 %v3277, %v2985
        %v3406 = vmax.f32 %v3278, %v2987
        %v3407 = vmax.f32 %v3279, %v2989
        %v3408 = vmax.f32 %v3280, %v2991
        %v3409 = vmax.f32 %v3281, %v2993
        %v3410 = vmax.f32 %v3282, %v2995
        %v3411 = vmax.f32 %v3283, %v2997
        %v3412 = vmax.f32 %v3284, %v2999
        %v3413 = vmax.f32 %v3285, %v3001
        %v3414 = vmax.f32 %v3286, %v3003
        %v3415 = vmax.f32 %v3287, %v3005
        %v3416 = vmax.f32 %v3288, %v3007
        %v3417 = vmax.f32 %v3289, %v3009
        %v3418 = vmax.f32 %v3290, %v3011
        %v3419 = vmax.f32 %v3291, %v3013
        %v3420 = vmax.f32 %v3292, %v3015
        %v3421 = vmax.f32 %v3293, %v3017
        %v3422 = vmax.f32 %v3294, %v3019
        %v3423 = vmax.f32 %v3295, %v3021
        %v3424 = vmax.f32 %v3296, %v3023
        %v3425 = vmax.f32 %v3297, %v3025
        %v3426 = vmax.f32 %v3298, %v3027
        %v3427 = vmax.f32 %v3299, %v3029
        %v3428 = vmax.f32 %v3300, %v3031
        %v3429 = vmax.f32 %v3301, %v3033
        %v3430 = vmax.f32 %v3302, %v3035
        %v3431 = vmax.f32 %v3303, %v3037
        %v3432 = vmax.f32 %v3304, %v3039
        %vm3433 = vcmask 7168
        %3434 = vst.msk [vmem:[%s298] sm:$0xff] %vm3433, %v3305
        %3435 = vst.msk [vmem:[%s298 + $0x8] sm:$0xff] %vm3433, %v3306
        %3436 = vst.msk [vmem:[%s298 + $0x10] sm:$0xff] %vm3433, %v3307
        %3437 = vst.msk [vmem:[%s298 + $0x18] sm:$0xff] %vm3433, %v3308
        %3438 = vst.msk [vmem:[%s298 + $0x20] sm:$0xff] %vm3433, %v3309
        %3439 = vst.msk [vmem:[%s298 + $0x28] sm:$0xff] %vm3433, %v3310
        %3440 = vst.msk [vmem:[%s298 + $0x30] sm:$0xff] %vm3433, %v3311
        %3441 = vst.msk [vmem:[%s298 + $0x38] sm:$0xff] %vm3433, %v3312
        %3442 = vst.msk [vmem:[%s298 + $0x40] sm:$0xff] %vm3433, %v3313
        %3443 = vst.msk [vmem:[%s298 + $0x48] sm:$0xff] %vm3433, %v3314
        %3444 = vst.msk [vmem:[%s298 + $0x50] sm:$0xff] %vm3433, %v3315
        %3445 = vst.msk [vmem:[%s298 + $0x58] sm:$0xff] %vm3433, %v3316
        %3446 = vst.msk [vmem:[%s298 + $0x60] sm:$0xff] %vm3433, %v3317
        %3447 = vst.msk [vmem:[%s298 + $0x68] sm:$0xff] %vm3433, %v3318
        %3448 = vst.msk [vmem:[%s298 + $0x70] sm:$0xff] %vm3433, %v3319
        %3449 = vst.msk [vmem:[%s298 + $0x78] sm:$0xff] %vm3433, %v3320
        %3450 = vst.msk [vmem:[%s298 + $0x80] sm:$0xff] %vm3433, %v3321
        %3451 = vst.msk [vmem:[%s298 + $0x88] sm:$0xff] %vm3433, %v3322
        %3452 = vst.msk [vmem:[%s298 + $0x90] sm:$0xff] %vm3433, %v3323
        %3453 = vst.msk [vmem:[%s298 + $0x98] sm:$0xff] %vm3433, %v3324
        %3454 = vst.msk [vmem:[%s298 + $0xa0] sm:$0xff] %vm3433, %v3325
        %3455 = vst.msk [vmem:[%s298 + $0xa8] sm:$0xff] %vm3433, %v3326
        %3456 = vst.msk [vmem:[%s298 + $0xb0] sm:$0xff] %vm3433, %v3327
        %3457 = vst.msk [vmem:[%s298 + $0xb8] sm:$0xff] %vm3433, %v3328
        %3458 = vst.msk [vmem:[%s298 + $0xc0] sm:$0xff] %vm3433, %v3329
        %3459 = vst.msk [vmem:[%s298 + $0xc8] sm:$0xff] %vm3433, %v3330
        %3460 = vst.msk [vmem:[%s298 + $0xd0] sm:$0xff] %vm3433, %v3331
        %3461 = vst.msk [vmem:[%s298 + $0xd8] sm:$0xff] %vm3433, %v3332
        %3462 = vst.msk [vmem:[%s298 + $0xe0] sm:$0xff] %vm3433, %v3333
        %3463 = vst.msk [vmem:[%s298 + $0xe8] sm:$0xff] %vm3433, %v3334
        %3464 = vst.msk [vmem:[%s298 + $0xf0] sm:$0xff] %vm3433, %v3335
        %3465 = vst.msk [vmem:[%s298 + $0xf8] sm:$0xff] %vm3433, %v3336
        %3466 = vst.msk [vmem:[%s298 + $0x100] sm:$0xff] %vm3433, %v3337
        %3467 = vst.msk [vmem:[%s298 + $0x108] sm:$0xff] %vm3433, %v3338
        %3468 = vst.msk [vmem:[%s298 + $0x110] sm:$0xff] %vm3433, %v3339
        %3469 = vst.msk [vmem:[%s298 + $0x118] sm:$0xff] %vm3433, %v3340
        %3470 = vst.msk [vmem:[%s298 + $0x120] sm:$0xff] %vm3433, %v3341
        %3471 = vst.msk [vmem:[%s298 + $0x128] sm:$0xff] %vm3433, %v3342
        %3472 = vst.msk [vmem:[%s298 + $0x130] sm:$0xff] %vm3433, %v3343
        %3473 = vst.msk [vmem:[%s298 + $0x138] sm:$0xff] %vm3433, %v3344
        %3474 = vst.msk [vmem:[%s298 + $0x140] sm:$0xff] %vm3433, %v3345
        %3475 = vst.msk [vmem:[%s298 + $0x148] sm:$0xff] %vm3433, %v3346
        %3476 = vst.msk [vmem:[%s298 + $0x150] sm:$0xff] %vm3433, %v3347
        %3477 = vst.msk [vmem:[%s298 + $0x158] sm:$0xff] %vm3433, %v3348
        %3478 = vst.msk [vmem:[%s298 + $0x160] sm:$0xff] %vm3433, %v3349
        %3479 = vst.msk [vmem:[%s298 + $0x168] sm:$0xff] %vm3433, %v3350
        %3480 = vst.msk [vmem:[%s298 + $0x170] sm:$0xff] %vm3433, %v3351
        %3481 = vst.msk [vmem:[%s298 + $0x178] sm:$0xff] %vm3433, %v3352
        %3482 = vst.msk [vmem:[%s298 + $0x180] sm:$0xff] %vm3433, %v3353
        %3483 = vst.msk [vmem:[%s298 + $0x188] sm:$0xff] %vm3433, %v3354
        %3484 = vst.msk [vmem:[%s298 + $0x190] sm:$0xff] %vm3433, %v3355
        %3485 = vst.msk [vmem:[%s298 + $0x198] sm:$0xff] %vm3433, %v3356
        %3486 = vst.msk [vmem:[%s298 + $0x1a0] sm:$0xff] %vm3433, %v3357
        %3487 = vst.msk [vmem:[%s298 + $0x1a8] sm:$0xff] %vm3433, %v3358
        %3488 = vst.msk [vmem:[%s298 + $0x1b0] sm:$0xff] %vm3433, %v3359
        %3489 = vst.msk [vmem:[%s298 + $0x1b8] sm:$0xff] %vm3433, %v3360
        %3490 = vst.msk [vmem:[%s298 + $0x1c0] sm:$0xff] %vm3433, %v3361
        %3491 = vst.msk [vmem:[%s298 + $0x1c8] sm:$0xff] %vm3433, %v3362
        %3492 = vst.msk [vmem:[%s298 + $0x1d0] sm:$0xff] %vm3433, %v3363
        %3493 = vst.msk [vmem:[%s298 + $0x1d8] sm:$0xff] %vm3433, %v3364
        %3494 = vst.msk [vmem:[%s298 + $0x1e0] sm:$0xff] %vm3433, %v3365
        %3495 = vst.msk [vmem:[%s298 + $0x1e8] sm:$0xff] %vm3433, %v3366
        %3496 = vst.msk [vmem:[%s298 + $0x1f0] sm:$0xff] %vm3433, %v3367
        %3497 = vst.msk [vmem:[%s298 + $0x1f8] sm:$0xff] %vm3433, %v3368
        %3498 = vst.msk [vmem:[%s298 + $0x200] sm:$0xff] %vm3433, %v3369
        %3499 = vst.msk [vmem:[%s298 + $0x208] sm:$0xff] %vm3433, %v3370
        %3500 = vst.msk [vmem:[%s298 + $0x210] sm:$0xff] %vm3433, %v3371
        %3501 = vst.msk [vmem:[%s298 + $0x218] sm:$0xff] %vm3433, %v3372
        %3502 = vst.msk [vmem:[%s298 + $0x220] sm:$0xff] %vm3433, %v3373
        %3503 = vst.msk [vmem:[%s298 + $0x228] sm:$0xff] %vm3433, %v3374
        %3504 = vst.msk [vmem:[%s298 + $0x230] sm:$0xff] %vm3433, %v3375
        %3505 = vst.msk [vmem:[%s298 + $0x238] sm:$0xff] %vm3433, %v3376
        %3506 = vst.msk [vmem:[%s298 + $0x240] sm:$0xff] %vm3433, %v3377
        %3507 = vst.msk [vmem:[%s298 + $0x248] sm:$0xff] %vm3433, %v3378
        %3508 = vst.msk [vmem:[%s298 + $0x250] sm:$0xff] %vm3433, %v3379
        %3509 = vst.msk [vmem:[%s298 + $0x258] sm:$0xff] %vm3433, %v3380
        %3510 = vst.msk [vmem:[%s298 + $0x260] sm:$0xff] %vm3433, %v3381
        %3511 = vst.msk [vmem:[%s298 + $0x268] sm:$0xff] %vm3433, %v3382
        %3512 = vst.msk [vmem:[%s298 + $0x270] sm:$0xff] %vm3433, %v3383
        %3513 = vst.msk [vmem:[%s298 + $0x278] sm:$0xff] %vm3433, %v3384
        %3514 = vst.msk [vmem:[%s298 + $0x280] sm:$0xff] %vm3433, %v3385
        %3515 = vst.msk [vmem:[%s298 + $0x288] sm:$0xff] %vm3433, %v3386
        %3516 = vst.msk [vmem:[%s298 + $0x290] sm:$0xff] %vm3433, %v3387
        %3517 = vst.msk [vmem:[%s298 + $0x298] sm:$0xff] %vm3433, %v3388
        %3518 = vst.msk [vmem:[%s298 + $0x2a0] sm:$0xff] %vm3433, %v3389
        %3519 = vst.msk [vmem:[%s298 + $0x2a8] sm:$0xff] %vm3433, %v3390
        %3520 = vst.msk [vmem:[%s298 + $0x2b0] sm:$0xff] %vm3433, %v3391
        %3521 = vst.msk [vmem:[%s298 + $0x2b8] sm:$0xff] %vm3433, %v3392
        %3522 = vst.msk [vmem:[%s298 + $0x2c0] sm:$0xff] %vm3433, %v3393
        %3523 = vst.msk [vmem:[%s298 + $0x2c8] sm:$0xff] %vm3433, %v3394
        %3524 = vst.msk [vmem:[%s298 + $0x2d0] sm:$0xff] %vm3433, %v3395
        %3525 = vst.msk [vmem:[%s298 + $0x2d8] sm:$0xff] %vm3433, %v3396
        %3526 = vst.msk [vmem:[%s298 + $0x2e0] sm:$0xff] %vm3433, %v3397
        %3527 = vst.msk [vmem:[%s298 + $0x2e8] sm:$0xff] %vm3433, %v3398
        %3528 = vst.msk [vmem:[%s298 + $0x2f0] sm:$0xff] %vm3433, %v3399
        %3529 = vst.msk [vmem:[%s298 + $0x2f8] sm:$0xff] %vm3433, %v3400
        %3530 = vst.msk [vmem:[%s298 + $0x300] sm:$0xff] %vm3433, %v3401
        %3531 = vst.msk [vmem:[%s298 + $0x308] sm:$0xff] %vm3433, %v3402
        %3532 = vst.msk [vmem:[%s298 + $0x310] sm:$0xff] %vm3433, %v3403
        %3533 = vst.msk [vmem:[%s298 + $0x318] sm:$0xff] %vm3433, %v3404
        %3534 = vst.msk [vmem:[%s298 + $0x320] sm:$0xff] %vm3433, %v3405
        %3535 = vst.msk [vmem:[%s298 + $0x328] sm:$0xff] %vm3433, %v3406
        %3536 = vst.msk [vmem:[%s298 + $0x330] sm:$0xff] %vm3433, %v3407
        %3537 = vst.msk [vmem:[%s298 + $0x338] sm:$0xff] %vm3433, %v3408
        %3538 = vst.msk [vmem:[%s298 + $0x340] sm:$0xff] %vm3433, %v3409
        %3539 = vst.msk [vmem:[%s298 + $0x348] sm:$0xff] %vm3433, %v3410
        %3540 = vst.msk [vmem:[%s298 + $0x350] sm:$0xff] %vm3433, %v3411
        %3541 = vst.msk [vmem:[%s298 + $0x358] sm:$0xff] %vm3433, %v3412
        %3542 = vst.msk [vmem:[%s298 + $0x360] sm:$0xff] %vm3433, %v3413
        %3543 = vst.msk [vmem:[%s298 + $0x368] sm:$0xff] %vm3433, %v3414
        %3544 = vst.msk [vmem:[%s298 + $0x370] sm:$0xff] %vm3433, %v3415
        %3545 = vst.msk [vmem:[%s298 + $0x378] sm:$0xff] %vm3433, %v3416
        %3546 = vst.msk [vmem:[%s298 + $0x380] sm:$0xff] %vm3433, %v3417
        %3547 = vst.msk [vmem:[%s298 + $0x388] sm:$0xff] %vm3433, %v3418
        %3548 = vst.msk [vmem:[%s298 + $0x390] sm:$0xff] %vm3433, %v3419
        %3549 = vst.msk [vmem:[%s298 + $0x398] sm:$0xff] %vm3433, %v3420
        %3550 = vst.msk [vmem:[%s298 + $0x3a0] sm:$0xff] %vm3433, %v3421
        %3551 = vst.msk [vmem:[%s298 + $0x3a8] sm:$0xff] %vm3433, %v3422
        %3552 = vst.msk [vmem:[%s298 + $0x3b0] sm:$0xff] %vm3433, %v3423
        %3553 = vst.msk [vmem:[%s298 + $0x3b8] sm:$0xff] %vm3433, %v3424
        %3554 = vst.msk [vmem:[%s298 + $0x3c0] sm:$0xff] %vm3433, %v3425
        %3555 = vst.msk [vmem:[%s298 + $0x3c8] sm:$0xff] %vm3433, %v3426
        %3556 = vst.msk [vmem:[%s298 + $0x3d0] sm:$0xff] %vm3433, %v3427
        %3557 = vst.msk [vmem:[%s298 + $0x3d8] sm:$0xff] %vm3433, %v3428
        %3558 = vst.msk [vmem:[%s298 + $0x3e0] sm:$0xff] %vm3433, %v3429
        %3559 = vst.msk [vmem:[%s298 + $0x3e8] sm:$0xff] %vm3433, %v3430
        %3560 = vst.msk [vmem:[%s298 + $0x3f0] sm:$0xff] %vm3433, %v3431
        %3561 = vst.msk [vmem:[%s298 + $0x3f8] sm:$0xff] %vm3433, %v3432
      $region56: #{_forward_jit.4} parent=47 // pred_fallthru
        _
      %p3562 = scmp.lt.s32.totalorder %s22, 1
      %s3563 = scalar_select %p3562, %s22, 1
      %s3564 = smul.addr %s3563, 128
      %s3565 = smul.addr %s3564, 8
      %s3566 = scalar_lea.vmem %s7, %s3565
      // Predicated region
      $region57: #{_forward_jit.4} parent=47 // pred_check
        %p3567 = pneg %p202
      $region58: #{_forward_jit.4} parent=47 // pred_check_branch
        %3569 = sbr.rel (%p3567) target = $region60
      $region59: #{_forward_jit.4} parent=47 // pred_region
        _
      $region60: #{_forward_jit.4} parent=47 // pred_fallthru
        _
    $region48: #{_forward_jit.4} parent=5 // pred_fallthru
      _
    %p3570 = scmp.le.s32.totalorder 2, %s13
    // Predicated region
    $region61: #{_forward_jit.4} parent=5 // pred_check
      %p3571 = pneg %p3570
    $region62: #{_forward_jit.4} parent=5 // pred_check_branch
      %3573 = sbr.rel (%p3571) target = $region64
    $region63: #{_forward_jit.4} parent=5 // pred_region
      %s3574 = ssub.s32 %s13, 2
      // Predicated region
      $region65: #{_forward_jit.4} parent=63 // pred_check
        %p3575 = pneg %p208
      $region66: #{_forward_jit.4} parent=63 // pred_check_branch
        %3577 = sbr.rel (%p3575) target = $region68
      $region67: #{_forward_jit.4} parent=63 // pred_region
        %p3578 = scmp.lt.s32.totalorder %s24, 1
        %s3579 = scalar_select %p3578, %s24, 1
        %s3580 = smul.addr %s3579, 128
        %s3581 = smul.addr %s3580, 8
        %s3582 = scalar_lea.vmem %s7, %s3581
      $region68: #{_forward_jit.4} parent=63 // pred_fallthru
        _
    $region64: #{_forward_jit.4} parent=5 // pred_fallthru
      _
  $region6: #{_forward_jit.4} parent=0 // loop_footer
    %s17 = sadd.s32 1, %s13
  $region7: #{_forward_jit.4} parent=0 // loop_footer_branch
    %12 = sbr.rel target = $region3
  $region8: #{_forward_jit.4} parent=0 // loop_exit
    _

// kernel: _forward_jit.6
$region0: #{_forward_jit.6}
  #allocation0 [shape = 'u32[]', space=smem, size = 0x4, offset = 0x4, fixed_abs, tag = 'smem constant byte address 0x4 - core index']
  #allocation1 [shape = 'u32[144,128]{1,0:T(1,128)}', space=vmem, size = 0x12000, scoped, tag = 'internal scratch']
  %s0 = inlined_call_operand.vmem [shape: f32[2,1,9], index: 0, kind: input, shape index: {}]
  %s1 = inlined_call_operand.vmem [shape: f32[2,3,128], index: 1, kind: input, shape index: {}]
  %s2 = inlined_call_operand.vmem [shape: f32[64,3], index: 2, kind: input, shape index: {}]
  %s3 = inlined_call_operand.vmem [shape: f32[64,1], index: 3, kind: input, shape index: {}]
  %s4 = inlined_call_operand.vmem [shape: bf16[128,64], index: 4, kind: input, shape index: {}]
  %s5 = inlined_call_operand.vmem [shape: f32[128,1], index: 5, kind: input, shape index: {}]
  %s6 = inlined_call_operand.vmem [shape: bf16[1024,128], index: 6, kind: input, shape index: {}]
  %s7 = inlined_call_operand.vmem [shape: f32[1024,1], index: 7, kind: input, shape index: {}]
  %s8 = inlined_call_operand.hbm [shape: f32[2,1024,128], index: 8, kind: output, shape index: {0}]
  %s9 = inlined_call_operand.vmem [shape: f32[2,1024,1], index: 9, kind: output, shape index: {1}]
  %10 = xla_tuple %s8, %s9
  %s11 = sld [smem:[#allocation0]]
  $region81: #{_forward_jit.6} parent=0
    _
  %s13 = ssub.s32 1, %s11
  %s14 = scalar_select 0, %s13, %s11
  $region1: #{_forward_jit.6} parent=0
    #allocation2 [shape = 'u8[1048576]{0}', space=vmem, size = 0x100000, scoped, tag = 'output window, operand 0']
    #allocation3 [shape = 's32[2]{0}', space=sflag, size = 0x8, scoped, tag = 'scoped memory for _forward_jit.6']
    %15 = vsyncpa [#allocation3], 0
    %s16 = scalar_lea.sflag [#allocation3], 1
    %17 = vsyncpa %s16, 0
    loop: start=0, step=1, limit=4
    $region2: #{_forward_jit.6} parent=1 // loop_pre_header
      _
    $region3: #{_forward_jit.6} parent=1 // loop_header
      %s19 = sphi 0, %s23
      %p20 = scmp.ge.s32.totalorder %s19, 4
      %s26 = sphi 0, %s38
      %s27 = sphi 0, %s34
      %s28 = sphi 0, %s26
      %s29 = sphi 0, %s27
      %s30 = sphi 0, %s28
      %s31 = sphi 0, %s29
      %s41 = sphi 0, %s43
      %s44 = sphi 0, %s41
      %s45 = sphi 0, %s44
      %s61 = sphi 0, %s45
      %s69 = sphi 0, %s71
      %s72 = sphi 0, %s69
      %s73 = sphi 0, %s72
      %s89 = sphi 0, %s73
      %s93 = sphi 0, %s93
      %s95 = sphi 0, %s93
      %s96 = sphi 0, %s95
      %s110 = sphi 0, %s96
      %s114 = sphi 0, %s114
      %s116 = sphi 0, %s114
      %s117 = sphi 0, %s116
      %s131 = sphi 0, %s117
      %s135 = sphi 0, %s135
      %s137 = sphi 0, %s135
      %s138 = sphi 0, %s137
      %s152 = sphi 0, %s138
      %s156 = sphi 0, %s156
      %s158 = sphi 0, %s156
      %s159 = sphi 0, %s158
      %s173 = sphi 0, %s159
      %s177 = sphi 0, %s177
      %s179 = sphi 0, %s177
      %s180 = sphi 0, %s179
      %s194 = sphi 0, %s180
      %s198 = sphi 0, %s198
      %s200 = sphi 0, %s198
      %s201 = sphi 0, %s200
      %s215 = sphi 0, %s201
      %s223 = sphi 0, %s225
      %s226 = sphi 0, %s223
      %s227 = sphi 0, %s226
      %s243 = sphi 0, %s227
      %s249 = sphi 0, %s251
      %s252 = sphi 0, %s249
      %s253 = sphi 0, %s252
      %s269 = sphi 0, %s253
    $region4: #{_forward_jit.6} parent=1 // loop_header_branch
      %22 = sbr.rel (%p20) target = $region8
    $region5: #{_forward_jit.6} parent=1 // loop_body
      %s24 = ssub.s32 %s19, 1
      %s25 = ssub.s32 %s19, 2
      %s32 = sadd.s32 1, %s27
      %p33 = scmp.ge.s32.totalorder %s32, 1
      %s34 = scalar_select %p33, 0, %s32
      %s35 = sadd.s32 1, %s26
      %s36 = scalar_select %p33, %s35, %s26
      %p37 = scmp.ge.s32.totalorder %s36, 2
      %s38 = scalar_select %p37, 0, %s36
      %s39 = ssub.s32 %s26, %s38
      %p40 = scmp.eq.s32.totalorder %s39, 0
      %s42 = sadd.s32 %s41, 1
      %s43 = scalar_select %p40, %s41, %s42
      %p46 = pneg %p40
      %p47 = scmp.eq.s32.totalorder %s19, 1
      %p48 = por %p46, %p47
      %p49 = scmp.ne.s32.totalorder %s41, %s44
      %p50 = scmp.eq.s32.totalorder %s19, 0
      %p51 = por %p49, %p50
      %p52 = scmp.ne.s32.totalorder %s41, %s44
      %p53 = scmp.eq.s32.totalorder %s24, 1
      %p54 = por %p52, %p53
      %p55 = scmp.ne.s32.totalorder %s44, %s45
      %p56 = scmp.eq.s32.totalorder %s24, 0
      %p57 = por %p55, %p56
      %p58 = scmp.ne.s32.totalorder %s44, %s45
      %p59 = scmp.eq.s32.totalorder %s25, 1
      %p60 = por %p58, %p59
      %p62 = scmp.ne.s32.totalorder %s45, %s61
      %p63 = scmp.eq.s32.totalorder %s25, 0
      %p64 = por %p62, %p63
      %s65 = ssub.s32 %s26, %s38
      %s66 = ssub.s32 %s27, %s34
      %s67 = sor.u32 %s65, %s66
      %p68 = scmp.eq.s32.totalorder %s67, 0
      %s70 = sadd.s32 %s69, 1
      %s71 = scalar_select %p68, %s69, %s70
      %p74 = pneg %p68
      %p75 = scmp.eq.s32.totalorder %s19, 1
      %p76 = por %p74, %p75
      %p77 = scmp.ne.s32.totalorder %s69, %s72
      %p78 = scmp.eq.s32.totalorder %s19, 0
      %p79 = por %p77, %p78
      %p80 = scmp.ne.s32.totalorder %s69, %s72
      %p81 = scmp.eq.s32.totalorder %s24, 1
      %p82 = por %p80, %p81
      %p83 = scmp.ne.s32.totalorder %s72, %s73
      %p84 = scmp.eq.s32.totalorder %s24, 0
      %p85 = por %p83, %p84
      %p86 = scmp.ne.s32.totalorder %s72, %s73
      %p87 = scmp.eq.s32.totalorder %s25, 1
      %p88 = por %p86, %p87
      %p90 = scmp.ne.s32.totalorder %s73, %s89
      %p91 = scmp.eq.s32.totalorder %s25, 0
      %p92 = por %p90, %p91
      %s94 = sadd.s32 %s93, 1
      %p97 = scmp.eq.s32.totalorder %s19, 1
      %p98 = scmp.ne.s32.totalorder %s93, %s95
      %p99 = scmp.eq.s32.totalorder %s19, 0
      %p100 = por %p98, %p99
      %p101 = scmp.ne.s32.totalorder %s93, %s95
      %p102 = scmp.eq.s32.totalorder %s24, 1
      %p103 = por %p101, %p102
      %p104 = scmp.ne.s32.totalorder %s95, %s96
      %p105 = scmp.eq.s32.totalorder %s24, 0
      %p106 = por %p104, %p105
      %p107 = scmp.ne.s32.totalorder %s95, %s96
      %p108 = scmp.eq.s32.totalorder %s25, 1
      %p109 = por %p107, %p108
      %p111 = scmp.ne.s32.totalorder %s96, %s110
      %p112 = scmp.eq.s32.totalorder %s25, 0
      %p113 = por %p111, %p112
      %s115 = sadd.s32 %s114, 1
      %p118 = scmp.eq.s32.totalorder %s19, 1
      %p119 = scmp.ne.s32.totalorder %s114, %s116
      %p120 = scmp.eq.s32.totalorder %s19, 0
      %p121 = por %p119, %p120
      %p122 = scmp.ne.s32.totalorder %s114, %s116
      %p123 = scmp.eq.s32.totalorder %s24, 1
      %p124 = por %p122, %p123
      %p125 = scmp.ne.s32.totalorder %s116, %s117
      %p126 = scmp.eq.s32.totalorder %s24, 0
      %p127 = por %p125, %p126
      %p128 = scmp.ne.s32.totalorder %s116, %s117
      %p129 = scmp.eq.s32.totalorder %s25, 1
      %p130 = por %p128, %p129
      %p132 = scmp.ne.s32.totalorder %s117, %s131
      %p133 = scmp.eq.s32.totalorder %s25, 0
      %p134 = por %p132, %p133
      %s136 = sadd.s32 %s135, 1
      %p139 = scmp.eq.s32.totalorder %s19, 1
      %p140 = scmp.ne.s32.totalorder %s135, %s137
      %p141 = scmp.eq.s32.totalorder %s19, 0
      %p142 = por %p140, %p141
      %p143 = scmp.ne.s32.totalorder %s135, %s137
      %p144 = scmp.eq.s32.totalorder %s24, 1
      %p145 = por %p143, %p144
      %p146 = scmp.ne.s32.totalorder %s137, %s138
      %p147 = scmp.eq.s32.totalorder %s24, 0
      %p148 = por %p146, %p147
      %p149 = scmp.ne.s32.totalorder %s137, %s138
      %p150 = scmp.eq.s32.totalorder %s25, 1
      %p151 = por %p149, %p150
      %p153 = scmp.ne.s32.totalorder %s138, %s152
      %p154 = scmp.eq.s32.totalorder %s25, 0
      %p155 = por %p153, %p154
      %s157 = sadd.s32 %s156, 1
      %p160 = scmp.eq.s32.totalorder %s19, 1
      %p161 = scmp.ne.s32.totalorder %s156, %s158
      %p162 = scmp.eq.s32.totalorder %s19, 0
      %p163 = por %p161, %p162
      %p164 = scmp.ne.s32.totalorder %s156, %s158
      %p165 = scmp.eq.s32.totalorder %s24, 1
      %p166 = por %p164, %p165
      %p167 = scmp.ne.s32.totalorder %s158, %s159
      %p168 = scmp.eq.s32.totalorder %s24, 0
      %p169 = por %p167, %p168
      %p170 = scmp.ne.s32.totalorder %s158, %s159
      %p171 = scmp.eq.s32.totalorder %s25, 1
      %p172 = por %p170, %p171
      %p174 = scmp.ne.s32.totalorder %s159, %s173
      %p175 = scmp.eq.s32.totalorder %s25, 0
      %p176 = por %p174, %p175
      %s178 = sadd.s32 %s177, 1
      %p181 = scmp.eq.s32.totalorder %s19, 1
      %p182 = scmp.ne.s32.totalorder %s177, %s179
      %p183 = scmp.eq.s32.totalorder %s19, 0
      %p184 = por %p182, %p183
      %p185 = scmp.ne.s32.totalorder %s177, %s179
      %p186 = scmp.eq.s32.totalorder %s24, 1
      %p187 = por %p185, %p186
      %p188 = scmp.ne.s32.totalorder %s179, %s180
      %p189 = scmp.eq.s32.totalorder %s24, 0
      %p190 = por %p188, %p189
      %p191 = scmp.ne.s32.totalorder %s179, %s180
      %p192 = scmp.eq.s32.totalorder %s25, 1
      %p193 = por %p191, %p192
      %p195 = scmp.ne.s32.totalorder %s180, %s194
      %p196 = scmp.eq.s32.totalorder %s25, 0
      %p197 = por %p195, %p196
      %s199 = sadd.s32 %s198, 1
      %p202 = scmp.eq.s32.totalorder %s19, 1
      %p203 = scmp.ne.s32.totalorder %s198, %s200
      %p204 = scmp.eq.s32.totalorder %s19, 0
      %p205 = por %p203, %p204
      %p206 = scmp.ne.s32.totalorder %s198, %s200
      %p207 = scmp.eq.s32.totalorder %s24, 1
      %p208 = por %p206, %p207
      %p209 = scmp.ne.s32.totalorder %s200, %s201
      %p210 = scmp.eq.s32.totalorder %s24, 0
      %p211 = por %p209, %p210
      %p212 = scmp.ne.s32.totalorder %s200, %s201
      %p213 = scmp.eq.s32.totalorder %s25, 1
      %p214 = por %p212, %p213
      %p216 = scmp.ne.s32.totalorder %s201, %s215
      %p217 = scmp.eq.s32.totalorder %s25, 0
      %p218 = por %p216, %p217
      %s219 = ssub.s32 %s26, %s38
      %s220 = ssub.s32 %s27, %s34
      %s221 = sor.u32 %s219, %s220
      %p222 = scmp.eq.s32.totalorder %s221, 0
      %s224 = sadd.s32 %s223, 1
      %s225 = scalar_select %p222, %s223, %s224
      %p228 = pneg %p222
      %p229 = scmp.eq.s32.totalorder %s19, 1
      %p230 = por %p228, %p229
      %p231 = scmp.ne.s32.totalorder %s223, %s226
      %p232 = scmp.eq.s32.totalorder %s19, 0
      %p233 = por %p231, %p232
      %p234 = scmp.ne.s32.totalorder %s223, %s226
      %p235 = scmp.eq.s32.totalorder %s24, 1
      %p236 = por %p234, %p235
      %p237 = scmp.ne.s32.totalorder %s226, %s227
      %p238 = scmp.eq.s32.totalorder %s24, 0
      %p239 = por %p237, %p238
      %p240 = scmp.ne.s32.totalorder %s226, %s227
      %p241 = scmp.eq.s32.totalorder %s25, 1
      %p242 = por %p240, %p241
      %p244 = scmp.ne.s32.totalorder %s227, %s243
      %p245 = scmp.eq.s32.totalorder %s25, 0
      %p246 = por %p244, %p245
      %s247 = ssub.s32 %s26, %s38
      %p248 = scmp.eq.s32.totalorder %s247, 0
      %s250 = sadd.s32 %s249, 1
      %s251 = scalar_select %p248, %s249, %s250
      %p254 = pneg %p248
      %p255 = scmp.eq.s32.totalorder %s19, 1
      %p256 = por %p254, %p255
      %p257 = scmp.ne.s32.totalorder %s249, %s252
      %p258 = scmp.eq.s32.totalorder %s19, 0
      %p259 = por %p257, %p258
      %p260 = scmp.ne.s32.totalorder %s249, %s252
      %p261 = scmp.eq.s32.totalorder %s24, 1
      %p262 = por %p260, %p261
      %p263 = scmp.ne.s32.totalorder %s252, %s253
      %p264 = scmp.eq.s32.totalorder %s24, 0
      %p265 = por %p263, %p264
      %p266 = scmp.ne.s32.totalorder %s252, %s253
      %p267 = scmp.eq.s32.totalorder %s25, 1
      %p268 = por %p266, %p267
      %p270 = scmp.ne.s32.totalorder %s253, %s269
      %p271 = scmp.eq.s32.totalorder %s25, 0
      %p272 = por %p270, %p271
      %p273 = scmp.le.s32.totalorder 1, %s19
      %p274 = scmp.lt.s32.totalorder %s19, 3
      %p275 = pnand %p273, %p274
      %p276 = pneg %p275
      // Predicated region
      $region9: #{_forward_jit.6} parent=5 // pred_check
        _
      $region10: #{_forward_jit.6} parent=5 // pred_check_branch
        %278 = sbr.rel (%p275) target = $region12
      $region11: #{_forward_jit.6} parent=5 // pred_region
        %s279 = ssub.s32 %s19, 1
        // Predicated region
        $region13: #{_forward_jit.6} parent=11 // pred_check
          %p280 = pneg %p106
        $region14: #{_forward_jit.6} parent=11 // pred_check_branch
          %282 = sbr.rel (%p280) target = $region16
        $region15: #{_forward_jit.6} parent=11 // pred_region
          _
        $region16: #{_forward_jit.6} parent=11 // pred_fallthru
          _
        // Predicated region
        $region17: #{_forward_jit.6} parent=11 // pred_check
          %p283 = pneg %p127
        $region18: #{_forward_jit.6} parent=11 // pred_check_branch
          %285 = sbr.rel (%p283) target = $region20
        $region19: #{_forward_jit.6} parent=11 // pred_region
          _
        $region20: #{_forward_jit.6} parent=11 // pred_fallthru
          _
        // Predicated region
        $region21: #{_forward_jit.6} parent=11 // pred_check
          %p286 = pneg %p148
        $region22: #{_forward_jit.6} parent=11 // pred_check_branch
          %288 = sbr.rel (%p286) target = $region24
        $region23: #{_forward_jit.6} parent=11 // pred_region
          _
        $region24: #{_forward_jit.6} parent=11 // pred_fallthru
          _
        // Predicated region
        $region25: #{_forward_jit.6} parent=11 // pred_check
          %p289 = pneg %p169
        $region26: #{_forward_jit.6} parent=11 // pred_check_branch
          %291 = sbr.rel (%p289) target = $region28
        $region27: #{_forward_jit.6} parent=11 // pred_region
          _
        $region28: #{_forward_jit.6} parent=11 // pred_fallthru
          _
        // Predicated region
        $region29: #{_forward_jit.6} parent=11 // pred_check
          %p292 = pneg %p190
        $region30: #{_forward_jit.6} parent=11 // pred_check_branch
          %294 = sbr.rel (%p292) target = $region32
        $region31: #{_forward_jit.6} parent=11 // pred_region
          _
        $region32: #{_forward_jit.6} parent=11 // pred_fallthru
          _
        // Predicated region
        $region33: #{_forward_jit.6} parent=11 // pred_check
          %p295 = pneg %p211
        $region34: #{_forward_jit.6} parent=11 // pred_check_branch
          %297 = sbr.rel (%p295) target = $region36
        $region35: #{_forward_jit.6} parent=11 // pred_region
          _
        $region36: #{_forward_jit.6} parent=11 // pred_fallthru
          _
      $region12: #{_forward_jit.6} parent=5 // pred_fallthru
        _
      %p298 = scmp.lt.s32.totalorder %s19, 2
      // Predicated region
      $region37: #{_forward_jit.6} parent=5 // pred_check
        %p299 = pneg %p298
      $region38: #{_forward_jit.6} parent=5 // pred_check_branch
        %301 = sbr.rel (%p299) target = $region40
      $region39: #{_forward_jit.6} parent=5 // pred_region
        // Predicated region
        $region41: #{_forward_jit.6} parent=39 // pred_check
          %p302 = pneg %p51
        $region42: #{_forward_jit.6} parent=39 // pred_check_branch
          %304 = sbr.rel (%p302) target = $region44
        $region43: #{_forward_jit.6} parent=39 // pred_region
          %p305 = scmp.lt.s32.totalorder %s26, 1
          %s306 = scalar_select %p305, %s26, 1
          %s307 = scalar_lea.vmem %s0, %s306
        $region44: #{_forward_jit.6} parent=39 // pred_fallthru
          _
        // Predicated region
        $region45: #{_forward_jit.6} parent=39 // pred_check
          %p308 = pneg %p79
        $region46: #{_forward_jit.6} parent=39 // pred_check_branch
          %310 = sbr.rel (%p308) target = $region48
        $region47: #{_forward_jit.6} parent=39 // pred_region
          %p311 = scmp.lt.s32.totalorder %s26, 1
          %s312 = scalar_select %p311, %s26, 1
          %p313 = scmp.lt.s32.totalorder %s27, 0
          %s314 = scalar_select %p313, %s27, 0
          %s315 = sadd.s32 %s314, %s312
          %s316 = smul.addr %s315, 4
          %s317 = scalar_lea.vmem %s1, %s316
        $region48: #{_forward_jit.6} parent=39 // pred_fallthru
          _
      $region40: #{_forward_jit.6} parent=5 // pred_fallthru
        _
      %p318 = scmp.le.s32.totalorder 1, %s19
      %p319 = scmp.lt.s32.totalorder %s19, 3
      %p320 = pnand %p318, %p319
      %p321 = pneg %p320
      // Predicated region
      $region49: #{_forward_jit.6} parent=5 // pred_check
        _
      $region50: #{_forward_jit.6} parent=5 // pred_check_branch
        %323 = sbr.rel (%p320) target = $region52
      $region51: #{_forward_jit.6} parent=5 // pred_region
        %s324 = ssub.s32 %s19, 1
        %p325 = scmp.lt.s32.totalorder %s28, 1
        %s326 = scalar_select %p325, %s28, 1
        %s327 = scalar_lea.vmem %s0, %s326
        %p328 = pneg %p57
        %p329 = pneg %p54
        %p330 = scmp.lt.s32.totalorder %s28, 1
        %s331 = scalar_select %p330, %s28, 1
        %p332 = scmp.lt.s32.totalorder %s29, 0
        %s333 = scalar_select %p332, %s29, 0
        %s334 = sadd.s32 %s333, %s331
        %s335 = smul.addr %s334, 4
        %s336 = scalar_lea.vmem %s1, %s335
        %p337 = pneg %p85
        %p338 = pneg %p82
        %p339 = pneg %p106
        %p340 = pneg %p103
        %p341 = pneg %p127
        %p342 = pneg %p124
        %p343 = pneg %p148
        %p344 = pneg %p145
        %p345 = pneg %p169
        %p346 = pneg %p166
        %p347 = pneg %p190
        %p348 = pneg %p187
        %p349 = pneg %p211
        %p350 = pneg %p208
        %p351 = pneg %p239
        %p352 = pneg %p236
        %s353 = sand.u32 %s226, 1
        %s354 = scalar_lea.sflag [#allocation3], %s353
        %s355 = sand.u32 %s226, 1
        %s356 = smul.addr %s355, 1024
        %s357 = scalar_lea.vmem [#allocation2], %s356
        %p358 = pneg %p265
        %p359 = pneg %p262
        %p360 = scmp.lt.s32.totalorder %s28, 1
        %s361 = scalar_select %p360, %s28, 1
        %s362 = smul.addr %s361, 128
        %s363 = smul.addr %s362, 8
        %s364 = scalar_lea.vmem %s9, %s363
        %p365 = scmp.lt.s32.totalorder %s28, 1
        %s366 = scalar_select %p365, %s28, 1
        %s367 = scalar_lea.vmem %s0, %s366
        %p368 = scmp.lt.s32.totalorder %s28, 1
        %s369 = scalar_select %p368, %s28, 1
        %p370 = scmp.lt.s32.totalorder %s29, 0
        %s371 = scalar_select %p370, %s29, 0
        %s372 = sadd.s32 %s371, %s369
        %s373 = smul.addr %s372, 4
        %s374 = scalar_lea.vmem %s1, %s373
        %p375 = scmp.lt.s32.totalorder %s28, 1
        %s376 = scalar_select %p375, %s28, 1
        %s377 = smul.addr %s376, 128
        %s378 = smul.addr %s377, 8
        %s379 = scalar_lea.vmem %s9, %s378
        %v381 = vld [vmem:[%s374] sm:$0x7]
        %v382 = vld [vmem:[%s367] sm:$0x1]
        %v383 = vadd.f32 %v382, 1.0
        %385 = vset.pattern.permute.xlu0 0
        %386 = vperm.xlu0 %385, %v383
        %v387 = vpop.permute.xlu0 %386
        %v389 = vlaneseq
        %v390 = vshrl.u32 %v389, 7
        %v391 = vsub.s32 0, %v390
        %v392 = vrot.slane %v387, %v391
        %v393 = vmul.f32 %v392, %v381
        %395 = vset.pattern.permute.xlu0 3
        %396 = vperm.xlu0 %395, %v382
        %v397 = vpop.permute.xlu0 %396
        %v399 = vlaneseq
        %v400 = vshrl.u32 %v399, 7
        %v401 = vsub.s32 0, %v400
        %v402 = vrot.slane %v397, %v401
        %v403 = vmul.f32 %v402, %v381
        %v405 = vrot.slane %v403, 1
        %v407 = vadd.f32 %v393, %v405
        %408 = vset.pattern.permute.xlu0 6
        %409 = vperm.xlu0 %408, %v382
        %v410 = vpop.permute.xlu0 %409
        %v412 = vlaneseq
        %v413 = vshrl.u32 %v412, 7
        %v414 = vsub.s32 0, %v413
        %v415 = vrot.slane %v410, %v414
        %v416 = vmul.f32 %v415, %v381
        %v418 = vrot.slane %v416, 2
        %v420 = vadd.f32 %v407, %v418
        %421 = vset.pattern.permute.xlu0 1
        %422 = vperm.xlu0 %421, %v382
        %v423 = vpop.permute.xlu0 %422
        %v425 = vlaneseq
        %v426 = vshrl.u32 %v425, 7
        %v427 = vsub.s32 0, %v426
        %v428 = vrot.slane %v423, %v427
        %v429 = vmul.f32 %v428, %v381
        %430 = vset.pattern.permute.xlu0 4
        %431 = vperm.xlu0 %430, %v383
        %v432 = vpop.permute.xlu0 %431
        %v434 = vlaneseq
        %v435 = vshrl.u32 %v434, 7
        %v436 = vsub.s32 0, %v435
        %v437 = vrot.slane %v432, %v436
        %v438 = vmul.f32 %v437, %v381
        %v440 = vrot.slane %v438, 1
        %v442 = vadd.f32 %v429, %v440
        %443 = vset.pattern.permute.xlu0 7
        %444 = vperm.xlu0 %443, %v382
        %v445 = vpop.permute.xlu0 %444
        %v447 = vlaneseq
        %v448 = vshrl.u32 %v447, 7
        %v449 = vsub.s32 0, %v448
        %v450 = vrot.slane %v445, %v449
        %v451 = vmul.f32 %v450, %v381
        %v453 = vrot.slane %v451, 2
        %v455 = vadd.f32 %v442, %v453
        %456 = vset.pattern.permute.xlu0 2
        %457 = vperm.xlu0 %456, %v382
        %v458 = vpop.permute.xlu0 %457
        %v460 = vlaneseq
        %v461 = vshrl.u32 %v460, 7
        %v462 = vsub.s32 0, %v461
        %v463 = vrot.slane %v458, %v462
        %v464 = vmul.f32 %v463, %v381
        %465 = vset.pattern.permute.xlu0 5
        %466 = vperm.xlu0 %465, %v382
        %v467 = vpop.permute.xlu0 %466
        %v469 = vlaneseq
        %v470 = vshrl.u32 %v469, 7
        %v471 = vsub.s32 0, %v470
        %v472 = vrot.slane %v467, %v471
        %v473 = vmul.f32 %v472, %v381
        %v475 = vrot.slane %v473, 1
        %v477 = vadd.f32 %v464, %v475
        %478 = vset.pattern.permute.xlu0 8
        %479 = vperm.xlu0 %478, %v383
        %v480 = vpop.permute.xlu0 %479
        %v482 = vlaneseq
        %v483 = vshrl.u32 %v482, 7
        %v484 = vsub.s32 0, %v483
        %v485 = vrot.slane %v480, %v484
        %v486 = vmul.f32 %v485, %v381
        %v488 = vrot.slane %v486, 2
        %v490 = vadd.f32 %v477, %v488
        %v491 = vld [vmem:[%s2] sm:$0xff]
        %v492 = vld [vmem:[%s2 + $0x8] sm:$0xff]
        %v493 = vld [vmem:[%s2 + $0x10] sm:$0xff]
        %v494 = vld [vmem:[%s2 + $0x18] sm:$0xff]
        %v495 = vld [vmem:[%s2 + $0x20] sm:$0xff]
        %v496 = vld [vmem:[%s2 + $0x28] sm:$0xff]
        %v497 = vld [vmem:[%s2 + $0x30] sm:$0xff]
        %v498 = vld [vmem:[%s2 + $0x38] sm:$0xff]
        %500 = vset.pattern.permute.xlu0 0
        %501 = vperm.xlu0 %500, %v491
        %v502 = vpop.permute.xlu0 %501
        %505 = vset.pattern.permute.xlu0 0
        %506 = vperm.xlu0 %505, %v492
        %v507 = vpop.permute.xlu0 %506
        %510 = vset.pattern.permute.xlu0 0
        %511 = vperm.xlu0 %510, %v493
        %v512 = vpop.permute.xlu0 %511
        %515 = vset.pattern.permute.xlu0 0
        %516 = vperm.xlu0 %515, %v494
        %v517 = vpop.permute.xlu0 %516
        %520 = vset.pattern.permute.xlu0 0
        %521 = vperm.xlu0 %520, %v495
        %v522 = vpop.permute.xlu0 %521
        %525 = vset.pattern.permute.xlu0 0
        %526 = vperm.xlu0 %525, %v496
        %v527 = vpop.permute.xlu0 %526
        %530 = vset.pattern.permute.xlu0 0
        %531 = vperm.xlu0 %530, %v497
        %v532 = vpop.permute.xlu0 %531
        %535 = vset.pattern.permute.xlu0 0
        %536 = vperm.xlu0 %535, %v498
        %v537 = vpop.permute.xlu0 %536
        %v539 = vlaneseq
        %v540 = vshrl.u32 %v539, 7
        %v541 = vsub.s32 0, %v540
        %v542 = vrot.slane %v420, %v541
        %v543 = vmul.f32 %v502, %v542
        %v544 = vmul.f32 %v507, %v542
        %v545 = vmul.f32 %v512, %v542
        %v546 = vmul.f32 %v517, %v542
        %v547 = vmul.f32 %v522, %v542
        %v548 = vmul.f32 %v527, %v542
        %v549 = vmul.f32 %v532, %v542
        %v550 = vmul.f32 %v537, %v542
        %551 = vset.pattern.permute.xlu0 1
        %552 = vperm.xlu0 %551, %v491
        %v553 = vpop.permute.xlu0 %552
        %555 = vset.pattern.permute.xlu0 1
        %556 = vperm.xlu0 %555, %v492
        %v557 = vpop.permute.xlu0 %556
        %559 = vset.pattern.permute.xlu0 1
        %560 = vperm.xlu0 %559, %v493
        %v561 = vpop.permute.xlu0 %560
        %563 = vset.pattern.permute.xlu0 1
        %564 = vperm.xlu0 %563, %v494
        %v565 = vpop.permute.xlu0 %564
        %567 = vset.pattern.permute.xlu0 1
        %568 = vperm.xlu0 %567, %v495
        %v569 = vpop.permute.xlu0 %568
        %571 = vset.pattern.permute.xlu0 1
        %572 = vperm.xlu0 %571, %v496
        %v573 = vpop.permute.xlu0 %572
        %575 = vset.pattern.permute.xlu0 1
        %576 = vperm.xlu0 %575, %v497
        %v577 = vpop.permute.xlu0 %576
        %579 = vset.pattern.permute.xlu0 1
        %580 = vperm.xlu0 %579, %v498
        %v581 = vpop.permute.xlu0 %580
        %v583 = vlaneseq
        %v584 = vshrl.u32 %v583, 7
        %v585 = vsub.s32 0, %v584
        %v586 = vrot.slane %v455, %v585
        %v587 = vmul.f32 %v553, %v586
        %v588 = vmul.f32 %v557, %v586
        %v589 = vmul.f32 %v561, %v586
        %v590 = vmul.f32 %v565, %v586
        %v591 = vmul.f32 %v569, %v586
        %v592 = vmul.f32 %v573, %v586
        %v593 = vmul.f32 %v577, %v586
        %v594 = vmul.f32 %v581, %v586
        %v595 = vadd.f32 %v543, %v587
        %v596 = vadd.f32 %v544, %v588
        %v597 = vadd.f32 %v545, %v589
        %v598 = vadd.f32 %v546, %v590
        %v599 = vadd.f32 %v547, %v591
        %v600 = vadd.f32 %v548, %v592
        %v601 = vadd.f32 %v549, %v593
        %v602 = vadd.f32 %v550, %v594
        %603 = vset.pattern.permute.xlu0 2
        %604 = vperm.xlu0 %603, %v491
        %v605 = vpop.permute.xlu0 %604
        %607 = vset.pattern.permute.xlu0 2
        %608 = vperm.xlu0 %607, %v492
        %v609 = vpop.permute.xlu0 %608
        %611 = vset.pattern.permute.xlu0 2
        %612 = vperm.xlu0 %611, %v493
        %v613 = vpop.permute.xlu0 %612
        %615 = vset.pattern.permute.xlu0 2
        %616 = vperm.xlu0 %615, %v494
        %v617 = vpop.permute.xlu0 %616
        %619 = vset.pattern.permute.xlu0 2
        %620 = vperm.xlu0 %619, %v495
        %v621 = vpop.permute.xlu0 %620
        %623 = vset.pattern.permute.xlu0 2
        %624 = vperm.xlu0 %623, %v496
        %v625 = vpop.permute.xlu0 %624
        %627 = vset.pattern.permute.xlu0 2
        %628 = vperm.xlu0 %627, %v497
        %v629 = vpop.permute.xlu0 %628
        %631 = vset.pattern.permute.xlu0 2
        %632 = vperm.xlu0 %631, %v498
        %v633 = vpop.permute.xlu0 %632
        %v635 = vlaneseq
        %v636 = vshrl.u32 %v635, 7
        %v637 = vsub.s32 0, %v636
        %v638 = vrot.slane %v490, %v637
        %v639 = vmul.f32 %v605, %v638
        %v640 = vmul.f32 %v609, %v638
        %v641 = vmul.f32 %v613, %v638
        %v642 = vmul.f32 %v617, %v638
        %v643 = vmul.f32 %v621, %v638
        %v644 = vmul.f32 %v625, %v638
        %v645 = vmul.f32 %v629, %v638
        %v646 = vmul.f32 %v633, %v638
        %v647 = vadd.f32 %v595, %v639
        %v648 = vadd.f32 %v596, %v640
        %v649 = vadd.f32 %v597, %v641
        %v650 = vadd.f32 %v598, %v642
        %v651 = vadd.f32 %v599, %v643
        %v652 = vadd.f32 %v600, %v644
        %v653 = vadd.f32 %v601, %v645
        %v654 = vadd.f32 %v602, %v646
        %v655 = vld [vmem:[%s3] sm:$0xff]
        %v656 = vld [vmem:[%s3 + $0x8] sm:$0xff]
        %v657 = vld [vmem:[%s3 + $0x10] sm:$0xff]
        %v658 = vld [vmem:[%s3 + $0x18] sm:$0xff]
        %v659 = vld [vmem:[%s3 + $0x20] sm:$0xff]
        %v660 = vld [vmem:[%s3 + $0x28] sm:$0xff]
        %v661 = vld [vmem:[%s3 + $0x30] sm:$0xff]
        %v662 = vld [vmem:[%s3 + $0x38] sm:$0xff]
        %664 = vset.pattern.permute.xlu0 0
        %665 = vperm.xlu0 %664, %v655
        %v666 = vpop.permute.xlu0 %665
        %669 = vset.pattern.permute.xlu0 0
        %670 = vperm.xlu0 %669, %v656
        %v671 = vpop.permute.xlu0 %670
        %674 = vset.pattern.permute.xlu0 0
        %675 = vperm.xlu0 %674, %v657
        %v676 = vpop.permute.xlu0 %675
        %679 = vset.pattern.permute.xlu0 0
        %680 = vperm.xlu0 %679, %v658
        %v681 = vpop.permute.xlu0 %680
        %684 = vset.pattern.permute.xlu0 0
        %685 = vperm.xlu0 %684, %v659
        %v686 = vpop.permute.xlu0 %685
        %689 = vset.pattern.permute.xlu0 0
        %690 = vperm.xlu0 %689, %v660
        %v691 = vpop.permute.xlu0 %690
        %694 = vset.pattern.permute.xlu0 0
        %695 = vperm.xlu0 %694, %v661
        %v696 = vpop.permute.xlu0 %695
        %699 = vset.pattern.permute.xlu0 0
        %700 = vperm.xlu0 %699, %v662
        %v701 = vpop.permute.xlu0 %700
        %v703 = vadd.f32 %v647, %v666
        %v704 = vadd.f32 %v648, %v671
        %v705 = vadd.f32 %v649, %v676
        %v706 = vadd.f32 %v650, %v681
        %v707 = vadd.f32 %v651, %v686
        %v708 = vadd.f32 %v652, %v691
        %v709 = vadd.f32 %v653, %v696
        %v710 = vadd.f32 %v654, %v701
        %v711 = vmax.f32 %v703, 0.0
        %v712 = vmax.f32 %v704, 0.0
        %v713 = vmax.f32 %v705, 0.0
        %v714 = vmax.f32 %v706, 0.0
        %v715 = vmax.f32 %v707, 0.0
        %v716 = vmax.f32 %v708, 0.0
        %v717 = vmax.f32 %v709, 0.0
        %v718 = vmax.f32 %v710, 0.0
        %v719 = vld [vmem:[%s4] sm:$0xf]
        %v720 = vld [vmem:[%s4 + $0x4] sm:$0xf]
        %v721 = vld [vmem:[%s4 + $0x8] sm:$0xf]
        %v722 = vld [vmem:[%s4 + $0xc] sm:$0xf]
        %v723 = vld [vmem:[%s4 + $0x10] sm:$0xf]
        %v724 = vld [vmem:[%s4 + $0x14] sm:$0xf]
        %v725 = vld [vmem:[%s4 + $0x18] sm:$0xf]
        %v726 = vld [vmem:[%s4 + $0x1c] sm:$0xf]
        %v727 = vld [vmem:[%s4 + $0x20] sm:$0xf]
        %v728 = vld [vmem:[%s4 + $0x24] sm:$0xf]
        %v729 = vld [vmem:[%s4 + $0x28] sm:$0xf]
        %v730 = vld [vmem:[%s4 + $0x2c] sm:$0xf]
        %v731 = vld [vmem:[%s4 + $0x30] sm:$0xf]
        %v732 = vld [vmem:[%s4 + $0x34] sm:$0xf]
        %v733 = vld [vmem:[%s4 + $0x38] sm:$0xf]
        %v734 = vld [vmem:[%s4 + $0x3c] sm:$0xf]
        %v735 = vpack.c.bf16 %v712, %v711
        %v736 = vpack.c.bf16 %v714, %v713
        %v737 = vpack.c.bf16 %v716, %v715
        %v738 = vpack.c.bf16 %v718, %v717
        %v739 = vld [vmem:[%s5] sm:$0xff]
        %v740 = vld [vmem:[%s5 + $0x8] sm:$0xff]
        %v741 = vld [vmem:[%s5 + $0x10] sm:$0xff]
        %v742 = vld [vmem:[%s5 + $0x18] sm:$0xff]
        %v743 = vld [vmem:[%s5 + $0x20] sm:$0xff]
        %v744 = vld [vmem:[%s5 + $0x28] sm:$0xff]
        %v745 = vld [vmem:[%s5 + $0x30] sm:$0xff]
        %v746 = vld [vmem:[%s5 + $0x38] sm:$0xff]
        %v747 = vld [vmem:[%s5 + $0x40] sm:$0xff]
        %v748 = vld [vmem:[%s5 + $0x48] sm:$0xff]
        %v749 = vld [vmem:[%s5 + $0x50] sm:$0xff]
        %v750 = vld [vmem:[%s5 + $0x58] sm:$0xff]
        %v751 = vld [vmem:[%s5 + $0x60] sm:$0xff]
        %v752 = vld [vmem:[%s5 + $0x68] sm:$0xff]
        %v753 = vld [vmem:[%s5 + $0x70] sm:$0xff]
        %v754 = vld [vmem:[%s5 + $0x78] sm:$0xff]
        %756 = vset.pattern.permute.xlu0 0
        %757 = vperm.xlu0 %756, %v739
        %v758 = vpop.permute.xlu0 %757
        %761 = vset.pattern.permute.xlu0 0
        %762 = vperm.xlu0 %761, %v740
        %v763 = vpop.permute.xlu0 %762
        %766 = vset.pattern.permute.xlu0 0
        %767 = vperm.xlu0 %766, %v741
        %v768 = vpop.permute.xlu0 %767
        %771 = vset.pattern.permute.xlu0 0
        %772 = vperm.xlu0 %771, %v742
        %v773 = vpop.permute.xlu0 %772
        %776 = vset.pattern.permute.xlu0 0
        %777 = vperm.xlu0 %776, %v743
        %v778 = vpop.permute.xlu0 %777
        %781 = vset.pattern.permute.xlu0 0
        %782 = vperm.xlu0 %781, %v744
        %v783 = vpop.permute.xlu0 %782
        %786 = vset.pattern.permute.xlu0 0
        %787 = vperm.xlu0 %786, %v745
        %v788 = vpop.permute.xlu0 %787
        %791 = vset.pattern.permute.xlu0 0
        %792 = vperm.xlu0 %791, %v746
        %v793 = vpop.permute.xlu0 %792
        %796 = vset.pattern.permute.xlu0 0
        %797 = vperm.xlu0 %796, %v747
        %v798 = vpop.permute.xlu0 %797
        %801 = vset.pattern.permute.xlu0 0
        %802 = vperm.xlu0 %801, %v748
        %v803 = vpop.permute.xlu0 %802
        %806 = vset.pattern.permute.xlu0 0
        %807 = vperm.xlu0 %806, %v749
        %v808 = vpop.permute.xlu0 %807
        %811 = vset.pattern.permute.xlu0 0
        %812 = vperm.xlu0 %811, %v750
        %v813 = vpop.permute.xlu0 %812
        %816 = vset.pattern.permute.xlu0 0
        %817 = vperm.xlu0 %816, %v751
        %v818 = vpop.permute.xlu0 %817
        %821 = vset.pattern.permute.xlu0 0
        %822 = vperm.xlu0 %821, %v752
        %v823 = vpop.permute.xlu0 %822
        %826 = vset.pattern.permute.xlu0 0
        %827 = vperm.xlu0 %826, %v753
        %v828 = vpop.permute.xlu0 %827
        %831 = vset.pattern.permute.xlu0 0
        %832 = vperm.xlu0 %831, %v754
        %v833 = vpop.permute.xlu0 %832
        %v851 = vunpack.c.l.b16 %v719
        %v852 = vunpack.c.l.b16 %v720
        %v853 = vunpack.c.l.b16 %v721
        %v854 = vunpack.c.l.b16 %v722
        %v855 = vunpack.c.l.b16 %v723
        %v856 = vunpack.c.l.b16 %v724
        %v857 = vunpack.c.l.b16 %v725
        %v858 = vunpack.c.l.b16 %v726
        %v859 = vunpack.c.l.b16 %v727
        %v860 = vunpack.c.l.b16 %v728
        %v861 = vunpack.c.l.b16 %v729
        %v862 = vunpack.c.l.b16 %v730
        %v863 = vunpack.c.l.b16 %v731
        %v864 = vunpack.c.l.b16 %v732
        %v865 = vunpack.c.l.b16 %v733
        %v866 = vunpack.c.l.b16 %v734
        %v867 = vpack.c.b16 %v852, %v851
        %v868 = vpack.c.b16 %v854, %v853
        %v869 = vpack.c.b16 %v856, %v855
        %v870 = vpack.c.b16 %v858, %v857
        %v871 = vpack.c.b16 %v860, %v859
        %v872 = vpack.c.b16 %v862, %v861
        %v873 = vpack.c.b16 %v864, %v863
        %v874 = vpack.c.b16 %v866, %v865
        %vm875 = vcmask 523264
        %v877 = vsel %vm875, %v867, 0
        %v880 = vsel %vm875, %v868, 0
        %v883 = vsel %vm875, %v869, 0
        %v886 = vsel %vm875, %v870, 0
        %v889 = vsel %vm875, %v871, 0
        %v892 = vsel %vm875, %v872, 0
        %v895 = vsel %vm875, %v873, 0
        %v898 = vsel %vm875, %v874, 0
        %900 = vmatprep.subr.bf16.mxu0 0
        %901 = vmatpush1.bf16.msra.mxu0 %v735
        %902 = vmatprep.subr.bf16.mxu0 0
        %903 = vmatpush1.bf16.msra.mxu0 %v736
        %904 = vmatprep.subr.bf16.mxu0 0
        %905 = vmatpush1.bf16.msra.mxu0 %v737
        %906 = vmatprep.subr.bf16.mxu0 0
        %907 = vmatpush1.bf16.msra.mxu0 %v738
        %908 = vmatprep.subr.bf16.mxu0 0
        %909 = vmatpush1.bf16.msra.mxu0 0
        %910 = vmatprep.subr.bf16.mxu0 0
        %911 = vmatpush1.bf16.msra.mxu0 0
        %912 = vmatprep.subr.bf16.mxu0 0
        %913 = vmatpush1.bf16.msra.mxu0 0
        %914 = vmatprep.subr.bf16.mxu0 0
        %915 = vmatpush1.bf16.msra.mxu0 0
        %916 = vmatprep.subr.bf16.mxu0 0
        %917 = vmatpush1.bf16.msra.mxu0 0
        %918 = vmatprep.subr.bf16.mxu0 0
        %919 = vmatpush1.bf16.msra.mxu0 0
        %920 = vmatprep.subr.bf16.mxu0 0
        %921 = vmatpush1.bf16.msra.mxu0 0
        %922 = vmatprep.subr.bf16.mxu0 0
        %923 = vmatpush1.bf16.msra.mxu0 0
        %924 = vmatprep.subr.bf16.mxu0 0
        %925 = vmatpush1.bf16.msra.mxu0 0
        %926 = vmatprep.subr.bf16.mxu0 0
        %927 = vmatpush1.bf16.msra.mxu0 0
        %928 = vmatprep.subr.bf16.mxu0 0
        %929 = vmatpush1.bf16.msra.mxu0 0
        %930 = vmatprep.subr.bf16.mxu0 0
        %931 = vmatpush1.bf16.msra.mxu0 0
        %932 = vmatprep.mubr.bf16.mxu0 0
        %933 = vmatmul.mubr.bf16.gmra.mrb[0].mxu0 %v877
        %v934 = vpop.f32.mrb[0].mxu0
        %v935 = vadd.f32 %v758, %v934
        %v936 = vpop.f32.mrb[0].mxu0
        %v937 = vpop.f32.mrb[0].mxu0
        %v938 = vadd.f32 %v763, %v937
        %v939 = vpop.f32.mrb[0].mxu0
        %940 = vmatprep.mubr.bf16.mxu0 0
        %941 = vmatmul.mubr.bf16.gmra.mrb[0].mxu0 %v880
        %v942 = vpop.f32.mrb[0].mxu0
        %v943 = vadd.f32 %v768, %v942
        %v944 = vpop.f32.mrb[0].mxu0
        %v945 = vpop.f32.mrb[0].mxu0
        %v946 = vadd.f32 %v773, %v945
        %v947 = vpop.f32.mrb[0].mxu0
        %948 = vmatprep.mubr.bf16.mxu0 0
        %949 = vmatmul.mubr.bf16.gmra.mrb[0].mxu0 %v883
        %v950 = vpop.f32.mrb[0].mxu0
        %v951 = vadd.f32 %v778, %v950
        %v952 = vpop.f32.mrb[0].mxu0
        %v953 = vpop.f32.mrb[0].mxu0
        %v954 = vadd.f32 %v783, %v953
        %v955 = vpop.f32.mrb[0].mxu0
        %956 = vmatprep.mubr.bf16.mxu0 0
        %957 = vmatmul.mubr.bf16.gmra.mrb[0].mxu0 %v886
        %v958 = vpop.f32.mrb[0].mxu0
        %v959 = vadd.f32 %v788, %v958
        %v960 = vpop.f32.mrb[0].mxu0
        %v961 = vpop.f32.mrb[0].mxu0
        %v962 = vadd.f32 %v793, %v961
        %v963 = vpop.f32.mrb[0].mxu0
        %964 = vmatprep.mubr.bf16.mxu0 0
        %965 = vmatmul.mubr.bf16.gmra.mrb[0].mxu0 %v889
        %v966 = vpop.f32.mrb[0].mxu0
        %v967 = vadd.f32 %v798, %v966
        %v968 = vpop.f32.mrb[0].mxu0
        %v969 = vpop.f32.mrb[0].mxu0
        %v970 = vadd.f32 %v803, %v969
        %v971 = vpop.f32.mrb[0].mxu0
        %972 = vmatprep.mubr.bf16.mxu0 0
        %973 = vmatmul.mubr.bf16.gmra.mrb[0].mxu0 %v892
        %v974 = vpop.f32.mrb[0].mxu0
        %v975 = vadd.f32 %v808, %v974
        %v976 = vpop.f32.mrb[0].mxu0
        %v977 = vpop.f32.mrb[0].mxu0
        %v978 = vadd.f32 %v813, %v977
        %v979 = vpop.f32.mrb[0].mxu0
        %980 = vmatprep.mubr.bf16.mxu0 0
        %981 = vmatmul.mubr.bf16.gmra.mrb[0].mxu0 %v895
        %v982 = vpop.f32.mrb[0].mxu0
        %v983 = vadd.f32 %v818, %v982
        %v984 = vpop.f32.mrb[0].mxu0
        %v985 = vpop.f32.mrb[0].mxu0
        %v986 = vadd.f32 %v823, %v985
        %v987 = vpop.f32.mrb[0].mxu0
        %988 = vmatprep.mubr.bf16.mxu0 0
        %989 = vmatmul.mubr.bf16.gmra.mrb[0].mxu0 %v898
        %v990 = vpop.f32.mrb[0].mxu0
        %v991 = vadd.f32 %v828, %v990
        %v992 = vpop.f32.mrb[0].mxu0
        %v993 = vpop.f32.mrb[0].mxu0
        %v994 = vadd.f32 %v833, %v993
        %v995 = vpop.f32.mrb[0].mxu0
        %996 = vdwg.mxu0
        %v997 = vmax.f32 %v935, 0.0
        %v998 = vmax.f32 %v938, 0.0
        %v999 = vmax.f32 %v943, 0.0
        %v1000 = vmax.f32 %v946, 0.0
        %v1001 = vmax.f32 %v951, 0.0
        %v1002 = vmax.f32 %v954, 0.0
        %v1003 = vmax.f32 %v959, 0.0
        %v1004 = vmax.f32 %v962, 0.0
        %v1005 = vmax.f32 %v967, 0.0
        %v1006 = vmax.f32 %v970, 0.0
        %v1007 = vmax.f32 %v975, 0.0
        %v1008 = vmax.f32 %v978, 0.0
        %v1009 = vmax.f32 %v983, 0.0
        %v1010 = vmax.f32 %v986, 0.0
        %v1011 = vmax.f32 %v991, 0.0
        %v1012 = vmax.f32 %v994, 0.0
        %v1013 = vld [vmem:[%s6] sm:$0xf]
        %v1014 = vld [vmem:[%s6 + $0x4] sm:$0xf]
        %v1015 = vld [vmem:[%s6 + $0x8] sm:$0xf]
        %v1016 = vld [vmem:[%s6 + $0xc] sm:$0xf]
        %v1017 = vld [vmem:[%s6 + $0x10] sm:$0xf]
        %v1018 = vld [vmem:[%s6 + $0x14] sm:$0xf]
        %v1019 = vld [vmem:[%s6 + $0x18] sm:$0xf]
        %v1020 = vld [vmem:[%s6 + $0x1c] sm:$0xf]
        %v1021 = vld [vmem:[%s6 + $0x20] sm:$0xf]
        %v1022 = vld [vmem:[%s6 + $0x24] sm:$0xf]
        %v1023 = vld [vmem:[%s6 + $0x28] sm:$0xf]
        %v1024 = vld [vmem:[%s6 + $0x2c] sm:$0xf]
        %v1025 = vld [vmem:[%s6 + $0x30] sm:$0xf]
        %v1026 = vld [vmem:[%s6 + $0x34] sm:$0xf]
        %v1027 = vld [vmem:[%s6 + $0x38] sm:$0xf]
        %v1028 = vld [vmem:[%s6 + $0x3c] sm:$0xf]
        %v1029 = vld [vmem:[%s6 + $0x40] sm:$0xf]
        %v1030 = vld [vmem:[%s6 + $0x44] sm:$0xf]
        %v1031 = vld [vmem:[%s6 + $0x48] sm:$0xf]
        %v1032 = vld [vmem:[%s6 + $0x4c] sm:$0xf]
        %v1033 = vld [vmem:[%s6 + $0x50] sm:$0xf]
        %v1034 = vld [vmem:[%s6 + $0x54] sm:$0xf]
        %v1035 = vld [vmem:[%s6 + $0x58] sm:$0xf]
        %v1036 = vld [vmem:[%s6 + $0x5c] sm:$0xf]
        %v1037 = vld [vmem:[%s6 + $0x60] sm:$0xf]
        %v1038 = vld [vmem:[%s6 + $0x64] sm:$0xf]
        %v1039 = vld [vmem:[%s6 + $0x68] sm:$0xf]
        %v1040 = vld [vmem:[%s6 + $0x6c] sm:$0xf]
        %v1041 = vld [vmem:[%s6 + $0x70] sm:$0xf]
        %v1042 = vld [vmem:[%s6 + $0x74] sm:$0xf]
        %v1043 = vld [vmem:[%s6 + $0x78] sm:$0xf]
        %v1044 = vld [vmem:[%s6 + $0x7c] sm:$0xf]
        %v1045 = vld [vmem:[%s6 + $0x80] sm:$0xf]
        %v1046 = vld [vmem:[%s6 + $0x84] sm:$0xf]
        %v1047 = vld [vmem:[%s6 + $0x88] sm:$0xf]
        %v1048 = vld [vmem:[%s6 + $0x8c] sm:$0xf]
        %v1049 = vld [vmem:[%s6 + $0x90] sm:$0xf]
        %v1050 = vld [vmem:[%s6 + $0x94] sm:$0xf]
        %v1051 = vld [vmem:[%s6 + $0x98] sm:$0xf]
        %v1052 = vld [vmem:[%s6 + $0x9c] sm:$0xf]
        %v1053 = vld [vmem:[%s6 + $0xa0] sm:$0xf]
        %v1054 = vld [vmem:[%s6 + $0xa4] sm:$0xf]
        %v1055 = vld [vmem:[%s6 + $0xa8] sm:$0xf]
        %v1056 = vld [vmem:[%s6 + $0xac] sm:$0xf]
        %v1057 = vld [vmem:[%s6 + $0xb0] sm:$0xf]
        %v1058 = vld [vmem:[%s6 + $0xb4] sm:$0xf]
        %v1059 = vld [vmem:[%s6 + $0xb8] sm:$0xf]
        %v1060 = vld [vmem:[%s6 + $0xbc] sm:$0xf]
        %v1061 = vld [vmem:[%s6 + $0xc0] sm:$0xf]
        %v1062 = vld [vmem:[%s6 + $0xc4] sm:$0xf]
        %v1063 = vld [vmem:[%s6 + $0xc8] sm:$0xf]
        %v1064 = vld [vmem:[%s6 + $0xcc] sm:$0xf]
        %v1065 = vld [vmem:[%s6 + $0xd0] sm:$0xf]
        %v1066 = vld [vmem:[%s6 + $0xd4] sm:$0xf]
        %v1067 = vld [vmem:[%s6 + $0xd8] sm:$0xf]
        %v1068 = vld [vmem:[%s6 + $0xdc] sm:$0xf]
        %v1069 = vld [vmem:[%s6 + $0xe0] sm:$0xf]
        %v1070 = vld [vmem:[%s6 + $0xe4] sm:$0xf]
        %v1071 = vld [vmem:[%s6 + $0xe8] sm:$0xf]
        %v1072 = vld [vmem:[%s6 + $0xec] sm:$0xf]
        %v1073 = vld [vmem:[%s6 + $0xf0] sm:$0xf]
        %v1074 = vld [vmem:[%s6 + $0xf4] sm:$0xf]
        %v1075 = vld [vmem:[%s6 + $0xf8] sm:$0xf]
        %v1076 = vld [vmem:[%s6 + $0xfc] sm:$0xf]
        %v1077 = vld [vmem:[%s6 + $0x100] sm:$0xf]
        %v1078 = vld [vmem:[%s6 + $0x104] sm:$0xf]
        %v1079 = vld [vmem:[%s6 + $0x108] sm:$0xf]
        %v1080 = vld [vmem:[%s6 + $0x10c] sm:$0xf]
        %v1081 = vld [vmem:[%s6 + $0x110] sm:$0xf]
        %v1082 = vld [vmem:[%s6 + $0x114] sm:$0xf]
        %v1083 = vld [vmem:[%s6 + $0x118] sm:$0xf]
        %v1084 = vld [vmem:[%s6 + $0x11c] sm:$0xf]
        %v1085 = vld [vmem:[%s6 + $0x120] sm:$0xf]
        %v1086 = vld [vmem:[%s6 + $0x124] sm:$0xf]
        %v1087 = vld [vmem:[%s6 + $0x128] sm:$0xf]
        %v1088 = vld [vmem:[%s6 + $0x12c] sm:$0xf]
        %v1089 = vld [vmem:[%s6 + $0x130] sm:$0xf]
        %v1090 = vld [vmem:[%s6 + $0x134] sm:$0xf]
        %v1091 = vld [vmem:[%s6 + $0x138] sm:$0xf]
        %v1092 = vld [vmem:[%s6 + $0x13c] sm:$0xf]
        %v1093 = vld [vmem:[%s6 + $0x140] sm:$0xf]
        %v1094 = vld [vmem:[%s6 + $0x144] sm:$0xf]
        %v1095 = vld [vmem:[%s6 + $0x148] sm:$0xf]
        %v1096 = vld [vmem:[%s6 + $0x14c] sm:$0xf]
        %v1097 = vld [vmem:[%s6 + $0x150] sm:$0xf]
        %v1098 = vld [vmem:[%s6 + $0x154] sm:$0xf]
        %v1099 = vld [vmem:[%s6 + $0x158] sm:$0xf]
        %v1100 = vld [vmem:[%s6 + $0x15c] sm:$0xf]
        %v1101 = vld [vmem:[%s6 + $0x160] sm:$0xf]
        %v1102 = vld [vmem:[%s6 + $0x164] sm:$0xf]
        %v1103 = vld [vmem:[%s6 + $0x168] sm:$0xf]
        %v1104 = vld [vmem:[%s6 + $0x16c] sm:$0xf]
        %v1105 = vld [vmem:[%s6 + $0x170] sm:$0xf]
        %v1106 = vld [vmem:[%s6 + $0x174] sm:$0xf]
        %v1107 = vld [vmem:[%s6 + $0x178] sm:$0xf]
        %v1108 = vld [vmem:[%s6 + $0x17c] sm:$0xf]
        %v1109 = vld [vmem:[%s6 + $0x180] sm:$0xf]
        %v1110 = vld [vmem:[%s6 + $0x184] sm:$0xf]
        %v1111 = vld [vmem:[%s6 + $0x188] sm:$0xf]
        %v1112 = vld [vmem:[%s6 + $0x18c] sm:$0xf]
        %v1113 = vld [vmem:[%s6 + $0x190] sm:$0xf]
        %v1114 = vld [vmem:[%s6 + $0x194] sm:$0xf]
        %v1115 = vld [vmem:[%s6 + $0x198] sm:$0xf]
        %v1116 = vld [vmem:[%s6 + $0x19c] sm:$0xf]
        %v1117 = vld [vmem:[%s6 + $0x1a0] sm:$0xf]
        %v1118 = vld [vmem:[%s6 + $0x1a4] sm:$0xf]
        %v1119 = vld [vmem:[%s6 + $0x1a8] sm:$0xf]
        %v1120 = vld [vmem:[%s6 + $0x1ac] sm:$0xf]
        %v1121 = vld [vmem:[%s6 + $0x1b0] sm:$0xf]
        %v1122 = vld [vmem:[%s6 + $0x1b4] sm:$0xf]
        %v1123 = vld [vmem:[%s6 + $0x1b8] sm:$0xf]
        %v1124 = vld [vmem:[%s6 + $0x1bc] sm:$0xf]
        %v1125 = vld [vmem:[%s6 + $0x1c0] sm:$0xf]
        %v1126 = vld [vmem:[%s6 + $0x1c4] sm:$0xf]
        %v1127 = vld [vmem:[%s6 + $0x1c8] sm:$0xf]
        %v1128 = vld [vmem:[%s6 + $0x1cc] sm:$0xf]
        %v1129 = vld [vmem:[%s6 + $0x1d0] sm:$0xf]
        %v1130 = vld [vmem:[%s6 + $0x1d4] sm:$0xf]
        %v1131 = vld [vmem:[%s6 + $0x1d8] sm:$0xf]
        %v1132 = vld [vmem:[%s6 + $0x1dc] sm:$0xf]
        %v1133 = vld [vmem:[%s6 + $0x1e0] sm:$0xf]
        %v1134 = vld [vmem:[%s6 + $0x1e4] sm:$0xf]
        %v1135 = vld [vmem:[%s6 + $0x1e8] sm:$0xf]
        %v1136 = vld [vmem:[%s6 + $0x1ec] sm:$0xf]
        %v1137 = vld [vmem:[%s6 + $0x1f0] sm:$0xf]
        %v1138 = vld [vmem:[%s6 + $0x1f4] sm:$0xf]
        %v1139 = vld [vmem:[%s6 + $0x1f8] sm:$0xf]
        %v1140 = vld [vmem:[%s6 + $0x1fc] sm:$0xf]
        %v1141 = vpack.c.bf16 %v998, %v997
        %v1142 = vpack.c.bf16 %v1000, %v999
        %v1143 = vpack.c.bf16 %v1002, %v1001
        %v1144 = vpack.c.bf16 %v1004, %v1003
        %v1145 = vpack.c.bf16 %v1006, %v1005
        %v1146 = vpack.c.bf16 %v1008, %v1007
        %v1147 = vpack.c.bf16 %v1010, %v1009
        %v1148 = vpack.c.bf16 %v1012, %v1011
        %v1149 = vld [vmem:[%s7] sm:$0xff]
        %v1150 = vld [vmem:[%s7 + $0x8] sm:$0xff]
        %v1151 = vld [vmem:[%s7 + $0x10] sm:$0xff]
        %v1152 = vld [vmem:[%s7 + $0x18] sm:$0xff]
        %v1153 = vld [vmem:[%s7 + $0x20] sm:$0xff]
        %v1154 = vld [vmem:[%s7 + $0x28] sm:$0xff]
        %v1155 = vld [vmem:[%s7 + $0x30] sm:$0xff]
        %v1156 = vld [vmem:[%s7 + $0x38] sm:$0xff]
        %v1157 = vld [vmem:[%s7 + $0x40] sm:$0xff]
        %v1158 = vld [vmem:[%s7 + $0x48] sm:$0xff]
        %v1159 = vld [vmem:[%s7 + $0x50] sm:$0xff]
        %v1160 = vld [vmem:[%s7 + $0x58] sm:$0xff]
        %v1161 = vld [vmem:[%s7 + $0x60] sm:$0xff]
        %v1162 = vld [vmem:[%s7 + $0x68] sm:$0xff]
        %v1163 = vld [vmem:[%s7 + $0x70] sm:$0xff]
        %v1164 = vld [vmem:[%s7 + $0x78] sm:$0xff]
        %v1165 = vld [vmem:[%s7 + $0x80] sm:$0xff]
        %v1166 = vld [vmem:[%s7 + $0x88] sm:$0xff]
        %v1167 = vld [vmem:[%s7 + $0x90] sm:$0xff]
        %v1168 = vld [vmem:[%s7 + $0x98] sm:$0xff]
        %v1169 = vld [vmem:[%s7 + $0xa0] sm:$0xff]
        %v1170 = vld [vmem:[%s7 + $0xa8] sm:$0xff]
        %v1171 = vld [vmem:[%s7 + $0xb0] sm:$0xff]
        %v1172 = vld [vmem:[%s7 + $0xb8] sm:$0xff]
        %v1173 = vld [vmem:[%s7 + $0xc0] sm:$0xff]
        %v1174 = vld [vmem:[%s7 + $0xc8] sm:$0xff]
        %v1175 = vld [vmem:[%s7 + $0xd0] sm:$0xff]
        %v1176 = vld [vmem:[%s7 + $0xd8] sm:$0xff]
        %v1177 = vld [vmem:[%s7 + $0xe0] sm:$0xff]
        %v1178 = vld [vmem:[%s7 + $0xe8] sm:$0xff]
        %v1179 = vld [vmem:[%s7 + $0xf0] sm:$0xff]
        %v1180 = vld [vmem:[%s7 + $0xf8] sm:$0xff]
        %v1181 = vld [vmem:[%s7 + $0x100] sm:$0xff]
        %v1182 = vld [vmem:[%s7 + $0x108] sm:$0xff]
        %v1183 = vld [vmem:[%s7 + $0x110] sm:$0xff]
        %v1184 = vld [vmem:[%s7 + $0x118] sm:$0xff]
        %v1185 = vld [vmem:[%s7 + $0x120] sm:$0xff]
        %v1186 = vld [vmem:[%s7 + $0x128] sm:$0xff]
        %v1187 = vld [vmem:[%s7 + $0x130] sm:$0xff]
        %v1188 = vld [vmem:[%s7 + $0x138] sm:$0xff]
        %v1189 = vld [vmem:[%s7 + $0x140] sm:$0xff]
        %v1190 = vld [vmem:[%s7 + $0x148] sm:$0xff]
        %v1191 = vld [vmem:[%s7 + $0x150] sm:$0xff]
        %v1192 = vld [vmem:[%s7 + $0x158] sm:$0xff]
        %v1193 = vld [vmem:[%s7 + $0x160] sm:$0xff]
        %v1194 = vld [vmem:[%s7 + $0x168] sm:$0xff]
        %v1195 = vld [vmem:[%s7 + $0x170] sm:$0xff]
        %v1196 = vld [vmem:[%s7 + $0x178] sm:$0xff]
        %v1197 = vld [vmem:[%s7 + $0x180] sm:$0xff]
        %v1198 = vld [vmem:[%s7 + $0x188] sm:$0xff]
        %v1199 = vld [vmem:[%s7 + $0x190] sm:$0xff]
        %v1200 = vld [vmem:[%s7 + $0x198] sm:$0xff]
        %v1201 = vld [vmem:[%s7 + $0x1a0] sm:$0xff]
        %v1202 = vld [vmem:[%s7 + $0x1a8] sm:$0xff]
        %v1203 = vld [vmem:[%s7 + $0x1b0] sm:$0xff]
        %v1204 = vld [vmem:[%s7 + $0x1b8] sm:$0xff]
        %v1205 = vld [vmem:[%s7 + $0x1c0] sm:$0xff]
        %v1206 = vld [vmem:[%s7 + $0x1c8] sm:$0xff]
        %v1207 = vld [vmem:[%s7 + $0x1d0] sm:$0xff]
        %v1208 = vld [vmem:[%s7 + $0x1d8] sm:$0xff]
        %v1209 = vld [vmem:[%s7 + $0x1e0] sm:$0xff]
        %v1210 = vld [vmem:[%s7 + $0x1e8] sm:$0xff]
        %v1211 = vld [vmem:[%s7 + $0x1f0] sm:$0xff]
        %v1212 = vld [vmem:[%s7 + $0x1f8] sm:$0xff]
        %v1213 = vld [vmem:[%s7 + $0x200] sm:$0xff]
        %v1214 = vld [vmem:[%s7 + $0x208] sm:$0xff]
        %v1215 = vld [vmem:[%s7 + $0x210] sm:$0xff]
        %v1216 = vld [vmem:[%s7 + $0x218] sm:$0xff]
        %v1217 = vld [vmem:[%s7 + $0x220] sm:$0xff]
        %v1218 = vld [vmem:[%s7 + $0x228] sm:$0xff]
        %v1219 = vld [vmem:[%s7 + $0x230] sm:$0xff]
        %v1220 = vld [vmem:[%s7 + $0x238] sm:$0xff]
        %v1221 = vld [vmem:[%s7 + $0x240] sm:$0xff]
        %v1222 = vld [vmem:[%s7 + $0x248] sm:$0xff]
        %v1223 = vld [vmem:[%s7 + $0x250] sm:$0xff]
        %v1224 = vld [vmem:[%s7 + $0x258] sm:$0xff]
        %v1225 = vld [vmem:[%s7 + $0x260] sm:$0xff]
        %v1226 = vld [vmem:[%s7 + $0x268] sm:$0xff]
        %v1227 = vld [vmem:[%s7 + $0x270] sm:$0xff]
        %v1228 = vld [vmem:[%s7 + $0x278] sm:$0xff]
        %v1229 = vld [vmem:[%s7 + $0x280] sm:$0xff]
        %v1230 = vld [vmem:[%s7 + $0x288] sm:$0xff]
        %v1231 = vld [vmem:[%s7 + $0x290] sm:$0xff]
        %v1232 = vld [vmem:[%s7 + $0x298] sm:$0xff]
        %v1233 = vld [vmem:[%s7 + $0x2a0] sm:$0xff]
        %v1234 = vld [vmem:[%s7 + $0x2a8] sm:$0xff]
        %v1235 = vld [vmem:[%s7 + $0x2b0] sm:$0xff]
        %v1236 = vld [vmem:[%s7 + $0x2b8] sm:$0xff]
        %v1237 = vld [vmem:[%s7 + $0x2c0] sm:$0xff]
        %v1238 = vld [vmem:[%s7 + $0x2c8] sm:$0xff]
        %v1239 = vld [vmem:[%s7 + $0x2d0] sm:$0xff]
        %v1240 = vld [vmem:[%s7 + $0x2d8] sm:$0xff]
        %v1241 = vld [vmem:[%s7 + $0x2e0] sm:$0xff]
        %v1242 = vld [vmem:[%s7 + $0x2e8] sm:$0xff]
        %v1243 = vld [vmem:[%s7 + $0x2f0] sm:$0xff]
        %v1244 = vld [vmem:[%s7 + $0x2f8] sm:$0xff]
        %v1245 = vld [vmem:[%s7 + $0x300] sm:$0xff]
        %v1246 = vld [vmem:[%s7 + $0x308] sm:$0xff]
        %v1247 = vld [vmem:[%s7 + $0x310] sm:$0xff]
        %v1248 = vld [vmem:[%s7 + $0x318] sm:$0xff]
        %v1249 = vld [vmem:[%s7 + $0x320] sm:$0xff]
        %v1250 = vld [vmem:[%s7 + $0x328] sm:$0xff]
        %v1251 = vld [vmem:[%s7 + $0x330] sm:$0xff]
        %v1252 = vld [vmem:[%s7 + $0x338] sm:$0xff]
        %v1253 = vld [vmem:[%s7 + $0x340] sm:$0xff]
        %v1254 = vld [vmem:[%s7 + $0x348] sm:$0xff]
        %v1255 = vld [vmem:[%s7 + $0x350] sm:$0xff]
        %v1256 = vld [vmem:[%s7 + $0x358] sm:$0xff]
        %v1257 = vld [vmem:[%s7 + $0x360] sm:$0xff]
        %v1258 = vld [vmem:[%s7 + $0x368] sm:$0xff]
        %v1259 = vld [vmem:[%s7 + $0x370] sm:$0xff]
        %v1260 = vld [vmem:[%s7 + $0x378] sm:$0xff]
        %v1261 = vld [vmem:[%s7 + $0x380] sm:$0xff]
        %v1262 = vld [vmem:[%s7 + $0x388] sm:$0xff]
        %v1263 = vld [vmem:[%s7 + $0x390] sm:$0xff]
        %v1264 = vld [vmem:[%s7 + $0x398] sm:$0xff]
        %v1265 = vld [vmem:[%s7 + $0x3a0] sm:$0xff]
        %v1266 = vld [vmem:[%s7 + $0x3a8] sm:$0xff]
        %v1267 = vld [vmem:[%s7 + $0x3b0] sm:$0xff]
        %v1268 = vld [vmem:[%s7 + $0x3b8] sm:$0xff]
        %v1269 = vld [vmem:[%s7 + $0x3c0] sm:$0xff]
        %v1270 = vld [vmem:[%s7 + $0x3c8] sm:$0xff]
        %v1271 = vld [vmem:[%s7 + $0x3d0] sm:$0xff]
        %v1272 = vld [vmem:[%s7 + $0x3d8] sm:$0xff]
        %v1273 = vld [vmem:[%s7 + $0x3e0] sm:$0xff]
        %v1274 = vld [vmem:[%s7 + $0x3e8] sm:$0xff]
        %v1275 = vld [vmem:[%s7 + $0x3f0] sm:$0xff]
        %v1276 = vld [vmem:[%s7 + $0x3f8] sm:$0xff]
        %1278 = vset.pattern.permute.xlu0 0
        %1279 = vperm.xlu0 %1278, %v1149
        %v1280 = vpop.permute.xlu0 %1279
        %1283 = vset.pattern.permute.xlu0 0
        %1284 = vperm.xlu0 %1283, %v1150
        %v1285 = vpop.permute.xlu0 %1284
        %1288 = vset.pattern.permute.xlu0 0
        %1289 = vperm.xlu0 %1288, %v1151
        %v1290 = vpop.permute.xlu0 %1289
        %1293 = vset.pattern.permute.xlu0 0
        %1294 = vperm.xlu0 %1293, %v1152
        %v1295 = vpop.permute.xlu0 %1294
        %1298 = vset.pattern.permute.xlu0 0
        %1299 = vperm.xlu0 %1298, %v1153
        %v1300 = vpop.permute.xlu0 %1299
        %1303 = vset.pattern.permute.xlu0 0
        %1304 = vperm.xlu0 %1303, %v1154
        %v1305 = vpop.permute.xlu0 %1304
        %1308 = vset.pattern.permute.xlu0 0
        %1309 = vperm.xlu0 %1308, %v1155
        %v1310 = vpop.permute.xlu0 %1309
        %1313 = vset.pattern.permute.xlu0 0
        %1314 = vperm.xlu0 %1313, %v1156
        %v1315 = vpop.permute.xlu0 %1314
        %1318 = vset.pattern.permute.xlu0 0
        %1319 = vperm.xlu0 %1318, %v1157
        %v1320 = vpop.permute.xlu0 %1319
        %1323 = vset.pattern.permute.xlu0 0
        %1324 = vperm.xlu0 %1323, %v1158
        %v1325 = vpop.permute.xlu0 %1324
        %1328 = vset.pattern.permute.xlu0 0
        %1329 = vperm.xlu0 %1328, %v1159
        %v1330 = vpop.permute.xlu0 %1329
        %1333 = vset.pattern.permute.xlu0 0
        %1334 = vperm.xlu0 %1333, %v1160
        %v1335 = vpop.permute.xlu0 %1334
        %1338 = vset.pattern.permute.xlu0 0
        %1339 = vperm.xlu0 %1338, %v1161
        %v1340 = vpop.permute.xlu0 %1339
        %1343 = vset.pattern.permute.xlu0 0
        %1344 = vperm.xlu0 %1343, %v1162
        %v1345 = vpop.permute.xlu0 %1344
        %1348 = vset.pattern.permute.xlu0 0
        %1349 = vperm.xlu0 %1348, %v1163
        %v1350 = vpop.permute.xlu0 %1349
        %1353 = vset.pattern.permute.xlu0 0
        %1354 = vperm.xlu0 %1353, %v1164
        %v1355 = vpop.permute.xlu0 %1354
        %1358 = vset.pattern.permute.xlu0 0
        %1359 = vperm.xlu0 %1358, %v1165
        %v1360 = vpop.permute.xlu0 %1359
        %1363 = vset.pattern.permute.xlu0 0
        %1364 = vperm.xlu0 %1363, %v1166
        %v1365 = vpop.permute.xlu0 %1364
        %1368 = vset.pattern.permute.xlu0 0
        %1369 = vperm.xlu0 %1368, %v1167
        %v1370 = vpop.permute.xlu0 %1369
        %1373 = vset.pattern.permute.xlu0 0
        %1374 = vperm.xlu0 %1373, %v1168
        %v1375 = vpop.permute.xlu0 %1374
        %1378 = vset.pattern.permute.xlu0 0
        %1379 = vperm.xlu0 %1378, %v1169
        %v1380 = vpop.permute.xlu0 %1379
        %1383 = vset.pattern.permute.xlu0 0
        %1384 = vperm.xlu0 %1383, %v1170
        %v1385 = vpop.permute.xlu0 %1384
        %1388 = vset.pattern.permute.xlu0 0
        %1389 = vperm.xlu0 %1388, %v1171
        %v1390 = vpop.permute.xlu0 %1389
        %1393 = vset.pattern.permute.xlu0 0
        %1394 = vperm.xlu0 %1393, %v1172
        %v1395 = vpop.permute.xlu0 %1394
        %1398 = vset.pattern.permute.xlu0 0
        %1399 = vperm.xlu0 %1398, %v1173
        %v1400 = vpop.permute.xlu0 %1399
        %1403 = vset.pattern.permute.xlu0 0
        %1404 = vperm.xlu0 %1403, %v1174
        %v1405 = vpop.permute.xlu0 %1404
        %1408 = vset.pattern.permute.xlu0 0
        %1409 = vperm.xlu0 %1408, %v1175
        %v1410 = vpop.permute.xlu0 %1409
        %1413 = vset.pattern.permute.xlu0 0
        %1414 = vperm.xlu0 %1413, %v1176
        %v1415 = vpop.permute.xlu0 %1414
        %1418 = vset.pattern.permute.xlu0 0
        %1419 = vperm.xlu0 %1418, %v1177
        %v1420 = vpop.permute.xlu0 %1419
        %1423 = vset.pattern.permute.xlu0 0
        %1424 = vperm.xlu0 %1423, %v1178
        %v1425 = vpop.permute.xlu0 %1424
        %1428 = vset.pattern.permute.xlu0 0
        %1429 = vperm.xlu0 %1428, %v1179
        %v1430 = vpop.permute.xlu0 %1429
        %1433 = vset.pattern.permute.xlu0 0
        %1434 = vperm.xlu0 %1433, %v1180
        %v1435 = vpop.permute.xlu0 %1434
        %1438 = vset.pattern.permute.xlu0 0
        %1439 = vperm.xlu0 %1438, %v1181
        %v1440 = vpop.permute.xlu0 %1439
        %1443 = vset.pattern.permute.xlu0 0
        %1444 = vperm.xlu0 %1443, %v1182
        %v1445 = vpop.permute.xlu0 %1444
        %1448 = vset.pattern.permute.xlu0 0
        %1449 = vperm.xlu0 %1448, %v1183
        %v1450 = vpop.permute.xlu0 %1449
        %1453 = vset.pattern.permute.xlu0 0
        %1454 = vperm.xlu0 %1453, %v1184
        %v1455 = vpop.permute.xlu0 %1454
        %1458 = vset.pattern.permute.xlu0 0
        %1459 = vperm.xlu0 %1458, %v1185
        %v1460 = vpop.permute.xlu0 %1459
        %1463 = vset.pattern.permute.xlu0 0
        %1464 = vperm.xlu0 %1463, %v1186
        %v1465 = vpop.permute.xlu0 %1464
        %1468 = vset.pattern.permute.xlu0 0
        %1469 = vperm.xlu0 %1468, %v1187
        %v1470 = vpop.permute.xlu0 %1469
        %1473 = vset.pattern.permute.xlu0 0
        %1474 = vperm.xlu0 %1473, %v1188
        %v1475 = vpop.permute.xlu0 %1474
        %1478 = vset.pattern.permute.xlu0 0
        %1479 = vperm.xlu0 %1478, %v1189
        %v1480 = vpop.permute.xlu0 %1479
        %1483 = vset.pattern.permute.xlu0 0
        %1484 = vperm.xlu0 %1483, %v1190
        %v1485 = vpop.permute.xlu0 %1484
        %1488 = vset.pattern.permute.xlu0 0
        %1489 = vperm.xlu0 %1488, %v1191
        %v1490 = vpop.permute.xlu0 %1489
        %1493 = vset.pattern.permute.xlu0 0
        %1494 = vperm.xlu0 %1493, %v1192
        %v1495 = vpop.permute.xlu0 %1494
        %1498 = vset.pattern.permute.xlu0 0
        %1499 = vperm.xlu0 %1498, %v1193
        %v1500 = vpop.permute.xlu0 %1499
        %1503 = vset.pattern.permute.xlu0 0
        %1504 = vperm.xlu0 %1503, %v1194
        %v1505 = vpop.permute.xlu0 %1504
        %1508 = vset.pattern.permute.xlu0 0
        %1509 = vperm.xlu0 %1508, %v1195
        %v1510 = vpop.permute.xlu0 %1509
        %1513 = vset.pattern.permute.xlu0 0
        %1514 = vperm.xlu0 %1513, %v1196
        %v1515 = vpop.permute.xlu0 %1514
        %1518 = vset.pattern.permute.xlu0 0
        %1519 = vperm.xlu0 %1518, %v1197
        %v1520 = vpop.permute.xlu0 %1519
        %1523 = vset.pattern.permute.xlu0 0
        %1524 = vperm.xlu0 %1523, %v1198
        %v1525 = vpop.permute.xlu0 %1524
        %1528 = vset.pattern.permute.xlu0 0
        %1529 = vperm.xlu0 %1528, %v1199
        %v1530 = vpop.permute.xlu0 %1529
        %1533 = vset.pattern.permute.xlu0 0
        %1534 = vperm.xlu0 %1533, %v1200
        %v1535 = vpop.permute.xlu0 %1534
        %1538 = vset.pattern.permute.xlu0 0
        %1539 = vperm.xlu0 %1538, %v1201
        %v1540 = vpop.permute.xlu0 %1539
        %1543 = vset.pattern.permute.xlu0 0
        %1544 = vperm.xlu0 %1543, %v1202
        %v1545 = vpop.permute.xlu0 %1544
        %1548 = vset.pattern.permute.xlu0 0
        %1549 = vperm.xlu0 %1548, %v1203
        %v1550 = vpop.permute.xlu0 %1549
        %1553 = vset.pattern.permute.xlu0 0
        %1554 = vperm.xlu0 %1553, %v1204
        %v1555 = vpop.permute.xlu0 %1554
        %1558 = vset.pattern.permute.xlu0 0
        %1559 = vperm.xlu0 %1558, %v1205
        %v1560 = vpop.permute.xlu0 %1559
        %1563 = vset.pattern.permute.xlu0 0
        %1564 = vperm.xlu0 %1563, %v1206
        %v1565 = vpop.permute.xlu0 %1564
        %1568 = vset.pattern.permute.xlu0 0
        %1569 = vperm.xlu0 %1568, %v1207
        %v1570 = vpop.permute.xlu0 %1569
        %1573 = vset.pattern.permute.xlu0 0
        %1574 = vperm.xlu0 %1573, %v1208
        %v1575 = vpop.permute.xlu0 %1574
        %1578 = vset.pattern.permute.xlu0 0
        %1579 = vperm.xlu0 %1578, %v1209
        %v1580 = vpop.permute.xlu0 %1579
        %1583 = vset.pattern.permute.xlu0 0
        %1584 = vperm.xlu0 %1583, %v1210
        %v1585 = vpop.permute.xlu0 %1584
        %1588 = vset.pattern.permute.xlu0 0
        %1589 = vperm.xlu0 %1588, %v1211
        %v1590 = vpop.permute.xlu0 %1589
        %1593 = vset.pattern.permute.xlu0 0
        %1594 = vperm.xlu0 %1593, %v1212
        %v1595 = vpop.permute.xlu0 %1594
        %1598 = vset.pattern.permute.xlu0 0
        %1599 = vperm.xlu0 %1598, %v1213
        %v1600 = vpop.permute.xlu0 %1599
        %1603 = vset.pattern.permute.xlu0 0
        %1604 = vperm.xlu0 %1603, %v1214
        %v1605 = vpop.permute.xlu0 %1604
        %1608 = vset.pattern.permute.xlu0 0
        %1609 = vperm.xlu0 %1608, %v1215
        %v1610 = vpop.permute.xlu0 %1609
        %1613 = vset.pattern.permute.xlu0 0
        %1614 = vperm.xlu0 %1613, %v1216
        %v1615 = vpop.permute.xlu0 %1614
        %1618 = vset.pattern.permute.xlu0 0
        %1619 = vperm.xlu0 %1618, %v1217
        %v1620 = vpop.permute.xlu0 %1619
        %1623 = vset.pattern.permute.xlu0 0
        %1624 = vperm.xlu0 %1623, %v1218
        %v1625 = vpop.permute.xlu0 %1624
        %1628 = vset.pattern.permute.xlu0 0
        %1629 = vperm.xlu0 %1628, %v1219
        %v1630 = vpop.permute.xlu0 %1629
        %1633 = vset.pattern.permute.xlu0 0
        %1634 = vperm.xlu0 %1633, %v1220
        %v1635 = vpop.permute.xlu0 %1634
        %1638 = vset.pattern.permute.xlu0 0
        %1639 = vperm.xlu0 %1638, %v1221
        %v1640 = vpop.permute.xlu0 %1639
        %1643 = vset.pattern.permute.xlu0 0
        %1644 = vperm.xlu0 %1643, %v1222
        %v1645 = vpop.permute.xlu0 %1644
        %1648 = vset.pattern.permute.xlu0 0
        %1649 = vperm.xlu0 %1648, %v1223
        %v1650 = vpop.permute.xlu0 %1649
        %1653 = vset.pattern.permute.xlu0 0
        %1654 = vperm.xlu0 %1653, %v1224
        %v1655 = vpop.permute.xlu0 %1654
        %1658 = vset.pattern.permute.xlu0 0
        %1659 = vperm.xlu0 %1658, %v1225
        %v1660 = vpop.permute.xlu0 %1659
        %1663 = vset.pattern.permute.xlu0 0
        %1664 = vperm.xlu0 %1663, %v1226
        %v1665 = vpop.permute.xlu0 %1664
        %1668 = vset.pattern.permute.xlu0 0
        %1669 = vperm.xlu0 %1668, %v1227
        %v1670 = vpop.permute.xlu0 %1669
        %1673 = vset.pattern.permute.xlu0 0
        %1674 = vperm.xlu0 %1673, %v1228
        %v1675 = vpop.permute.xlu0 %1674
        %1678 = vset.pattern.permute.xlu0 0
        %1679 = vperm.xlu0 %1678, %v1229
        %v1680 = vpop.permute.xlu0 %1679
        %1683 = vset.pattern.permute.xlu0 0
        %1684 = vperm.xlu0 %1683, %v1230
        %v1685 = vpop.permute.xlu0 %1684
        %1688 = vset.pattern.permute.xlu0 0
        %1689 = vperm.xlu0 %1688, %v1231
        %v1690 = vpop.permute.xlu0 %1689
        %1693 = vset.pattern.permute.xlu0 0
        %1694 = vperm.xlu0 %1693, %v1232
        %v1695 = vpop.permute.xlu0 %1694
        %1698 = vset.pattern.permute.xlu0 0
        %1699 = vperm.xlu0 %1698, %v1233
        %v1700 = vpop.permute.xlu0 %1699
        %1703 = vset.pattern.permute.xlu0 0
        %1704 = vperm.xlu0 %1703, %v1234
        %v1705 = vpop.permute.xlu0 %1704
        %1708 = vset.pattern.permute.xlu0 0
        %1709 = vperm.xlu0 %1708, %v1235
        %v1710 = vpop.permute.xlu0 %1709
        %1713 = vset.pattern.permute.xlu0 0
        %1714 = vperm.xlu0 %1713, %v1236
        %v1715 = vpop.permute.xlu0 %1714
        %1718 = vset.pattern.permute.xlu0 0
        %1719 = vperm.xlu0 %1718, %v1237
        %v1720 = vpop.permute.xlu0 %1719
        %1723 = vset.pattern.permute.xlu0 0
        %1724 = vperm.xlu0 %1723, %v1238
        %v1725 = vpop.permute.xlu0 %1724
        %1728 = vset.pattern.permute.xlu0 0
        %1729 = vperm.xlu0 %1728, %v1239
        %v1730 = vpop.permute.xlu0 %1729
        %1733 = vset.pattern.permute.xlu0 0
        %1734 = vperm.xlu0 %1733, %v1240
        %v1735 = vpop.permute.xlu0 %1734
        %1738 = vset.pattern.permute.xlu0 0
        %1739 = vperm.xlu0 %1738, %v1241
        %v1740 = vpop.permute.xlu0 %1739
        %1743 = vset.pattern.permute.xlu0 0
        %1744 = vperm.xlu0 %1743, %v1242
        %v1745 = vpop.permute.xlu0 %1744
        %1748 = vset.pattern.permute.xlu0 0
        %1749 = vperm.xlu0 %1748, %v1243
        %v1750 = vpop.permute.xlu0 %1749
        %1753 = vset.pattern.permute.xlu0 0
        %1754 = vperm.xlu0 %1753, %v1244
        %v1755 = vpop.permute.xlu0 %1754
        %1758 = vset.pattern.permute.xlu0 0
        %1759 = vperm.xlu0 %1758, %v1245
        %v1760 = vpop.permute.xlu0 %1759
        %1763 = vset.pattern.permute.xlu0 0
        %1764 = vperm.xlu0 %1763, %v1246
        %v1765 = vpop.permute.xlu0 %1764
        %1768 = vset.pattern.permute.xlu0 0
        %1769 = vperm.xlu0 %1768, %v1247
        %v1770 = vpop.permute.xlu0 %1769
        %1773 = vset.pattern.permute.xlu0 0
        %1774 = vperm.xlu0 %1773, %v1248
        %v1775 = vpop.permute.xlu0 %1774
        %1778 = vset.pattern.permute.xlu0 0
        %1779 = vperm.xlu0 %1778, %v1249
        %v1780 = vpop.permute.xlu0 %1779
        %1783 = vset.pattern.permute.xlu0 0
        %1784 = vperm.xlu0 %1783, %v1250
        %v1785 = vpop.permute.xlu0 %1784
        %1788 = vset.pattern.permute.xlu0 0
        %1789 = vperm.xlu0 %1788, %v1251
        %v1790 = vpop.permute.xlu0 %1789
        %1793 = vset.pattern.permute.xlu0 0
        %1794 = vperm.xlu0 %1793, %v1252
        %v1795 = vpop.permute.xlu0 %1794
        %1798 = vset.pattern.permute.xlu0 0
        %1799 = vperm.xlu0 %1798, %v1253
        %v1800 = vpop.permute.xlu0 %1799
        %1803 = vset.pattern.permute.xlu0 0
        %1804 = vperm.xlu0 %1803, %v1254
        %v1805 = vpop.permute.xlu0 %1804
        %1808 = vset.pattern.permute.xlu0 0
        %1809 = vperm.xlu0 %1808, %v1255
        %v1810 = vpop.permute.xlu0 %1809
        %1813 = vset.pattern.permute.xlu0 0
        %1814 = vperm.xlu0 %1813, %v1256
        %v1815 = vpop.permute.xlu0 %1814
        %1818 = vset.pattern.permute.xlu0 0
        %1819 = vperm.xlu0 %1818, %v1257
        %v1820 = vpop.permute.xlu0 %1819
        %1823 = vset.pattern.permute.xlu0 0
        %1824 = vperm.xlu0 %1823, %v1258
        %v1825 = vpop.permute.xlu0 %1824
        %1828 = vset.pattern.permute.xlu0 0
        %1829 = vperm.xlu0 %1828, %v1259
        %v1830 = vpop.permute.xlu0 %1829
        %1833 = vset.pattern.permute.xlu0 0
        %1834 = vperm.xlu0 %1833, %v1260
        %v1835 = vpop.permute.xlu0 %1834
        %1838 = vset.pattern.permute.xlu0 0
        %1839 = vperm.xlu0 %1838, %v1261
        %v1840 = vpop.permute.xlu0 %1839
        %1843 = vset.pattern.permute.xlu0 0
        %1844 = vperm.xlu0 %1843, %v1262
        %v1845 = vpop.permute.xlu0 %1844
        %1848 = vset.pattern.permute.xlu0 0
        %1849 = vperm.xlu0 %1848, %v1263
        %v1850 = vpop.permute.xlu0 %1849
        %1853 = vset.pattern.permute.xlu0 0
        %1854 = vperm.xlu0 %1853, %v1264
        %v1855 = vpop.permute.xlu0 %1854
        %1858 = vset.pattern.permute.xlu0 0
        %1859 = vperm.xlu0 %1858, %v1265
        %v1860 = vpop.permute.xlu0 %1859
        %1863 = vset.pattern.permute.xlu0 0
        %1864 = vperm.xlu0 %1863, %v1266
        %v1865 = vpop.permute.xlu0 %1864
        %1868 = vset.pattern.permute.xlu0 0
        %1869 = vperm.xlu0 %1868, %v1267
        %v1870 = vpop.permute.xlu0 %1869
        %1873 = vset.pattern.permute.xlu0 0
        %1874 = vperm.xlu0 %1873, %v1268
        %v1875 = vpop.permute.xlu0 %1874
        %1878 = vset.pattern.permute.xlu0 0
        %1879 = vperm.xlu0 %1878, %v1269
        %v1880 = vpop.permute.xlu0 %1879
        %1883 = vset.pattern.permute.xlu0 0
        %1884 = vperm.xlu0 %1883, %v1270
        %v1885 = vpop.permute.xlu0 %1884
        %1888 = vset.pattern.permute.xlu0 0
        %1889 = vperm.xlu0 %1888, %v1271
        %v1890 = vpop.permute.xlu0 %1889
        %1893 = vset.pattern.permute.xlu0 0
        %1894 = vperm.xlu0 %1893, %v1272
        %v1895 = vpop.permute.xlu0 %1894
        %1898 = vset.pattern.permute.xlu0 0
        %1899 = vperm.xlu0 %1898, %v1273
        %v1900 = vpop.permute.xlu0 %1899
        %1903 = vset.pattern.permute.xlu0 0
        %1904 = vperm.xlu0 %1903, %v1274
        %v1905 = vpop.permute.xlu0 %1904
        %1908 = vset.pattern.permute.xlu0 0
        %1909 = vperm.xlu0 %1908, %v1275
        %v1910 = vpop.permute.xlu0 %1909
        %1913 = vset.pattern.permute.xlu0 0
        %1914 = vperm.xlu0 %1913, %v1276
        %v1915 = vpop.permute.xlu0 %1914
        %v2045 = vunpack.c.l.b16 %v1013
        %v2046 = vunpack.c.l.b16 %v1014
        %v2047 = vunpack.c.l.b16 %v1015
        %v2048 = vunpack.c.l.b16 %v1016
        %v2049 = vunpack.c.l.b16 %v1017
        %v2050 = vunpack.c.l.b16 %v1018
        %v2051 = vunpack.c.l.b16 %v1019
        %v2052 = vunpack.c.l.b16 %v1020
        %v2053 = vunpack.c.l.b16 %v1021
        %v2054 = vunpack.c.l.b16 %v1022
        %v2055 = vunpack.c.l.b16 %v1023
        %v2056 = vunpack.c.l.b16 %v1024
        %v2057 = vunpack.c.l.b16 %v1025
        %v2058 = vunpack.c.l.b16 %v1026
        %v2059 = vunpack.c.l.b16 %v1027
        %v2060 = vunpack.c.l.b16 %v1028
        %v2061 = vunpack.c.l.b16 %v1029
        %v2062 = vunpack.c.l.b16 %v1030
        %v2063 = vunpack.c.l.b16 %v1031
        %v2064 = vunpack.c.l.b16 %v1032
        %v2065 = vunpack.c.l.b16 %v1033
        %v2066 = vunpack.c.l.b16 %v1034
        %v2067 = vunpack.c.l.b16 %v1035
        %v2068 = vunpack.c.l.b16 %v1036
        %v2069 = vunpack.c.l.b16 %v1037
        %v2070 = vunpack.c.l.b16 %v1038
        %v2071 = vunpack.c.l.b16 %v1039
        %v2072 = vunpack.c.l.b16 %v1040
        %v2073 = vunpack.c.l.b16 %v1041
        %v2074 = vunpack.c.l.b16 %v1042
        %v2075 = vunpack.c.l.b16 %v1043
        %v2076 = vunpack.c.l.b16 %v1044
        %v2077 = vunpack.c.l.b16 %v1045
        %v2078 = vunpack.c.l.b16 %v1046
        %v2079 = vunpack.c.l.b16 %v1047
        %v2080 = vunpack.c.l.b16 %v1048
        %v2081 = vunpack.c.l.b16 %v1049
        %v2082 = vunpack.c.l.b16 %v1050
        %v2083 = vunpack.c.l.b16 %v1051
        %v2084 = vunpack.c.l.b16 %v1052
        %v2085 = vunpack.c.l.b16 %v1053
        %v2086 = vunpack.c.l.b16 %v1054
        %v2087 = vunpack.c.l.b16 %v1055
        %v2088 = vunpack.c.l.b16 %v1056
        %v2089 = vunpack.c.l.b16 %v1057
        %v2090 = vunpack.c.l.b16 %v1058
        %v2091 = vunpack.c.l.b16 %v1059
        %v2092 = vunpack.c.l.b16 %v1060
        %v2093 = vunpack.c.l.b16 %v1061
        %v2094 = vunpack.c.l.b16 %v1062
        %v2095 = vunpack.c.l.b16 %v1063
        %v2096 = vunpack.c.l.b16 %v1064
        %v2097 = vunpack.c.l.b16 %v1065
        %v2098 = vunpack.c.l.b16 %v1066
        %v2099 = vunpack.c.l.b16 %v1067
        %v2100 = vunpack.c.l.b16 %v1068
        %v2101 = vunpack.c.l.b16 %v1069
        %v2102 = vunpack.c.l.b16 %v1070
        %v2103 = vunpack.c.l.b16 %v1071
        %v2104 = vunpack.c.l.b16 %v1072
        %v2105 = vunpack.c.l.b16 %v1073
        %v2106 = vunpack.c.l.b16 %v1074
        %v2107 = vunpack.c.l.b16 %v1075
        %v2108 = vunpack.c.l.b16 %v1076
        %v2109 = vunpack.c.l.b16 %v1077
        %v2110 = vunpack.c.l.b16 %v1078
        %v2111 = vunpack.c.l.b16 %v1079
        %v2112 = vunpack.c.l.b16 %v1080
        %v2113 = vunpack.c.l.b16 %v1081
        %v2114 = vunpack.c.l.b16 %v1082
        %v2115 = vunpack.c.l.b16 %v1083
        %v2116 = vunpack.c.l.b16 %v1084
        %v2117 = vunpack.c.l.b16 %v1085
        %v2118 = vunpack.c.l.b16 %v1086
        %v2119 = vunpack.c.l.b16 %v1087
        %v2120 = vunpack.c.l.b16 %v1088
        %v2121 = vunpack.c.l.b16 %v1089
        %v2122 = vunpack.c.l.b16 %v1090
        %v2123 = vunpack.c.l.b16 %v1091
        %v2124 = vunpack.c.l.b16 %v1092
        %v2125 = vunpack.c.l.b16 %v1093
        %v2126 = vunpack.c.l.b16 %v1094
        %v2127 = vunpack.c.l.b16 %v1095
        %v2128 = vunpack.c.l.b16 %v1096
        %v2129 = vunpack.c.l.b16 %v1097
        %v2130 = vunpack.c.l.b16 %v1098
        %v2131 = vunpack.c.l.b16 %v1099
        %v2132 = vunpack.c.l.b16 %v1100
        %v2133 = vunpack.c.l.b16 %v1101
        %v2134 = vunpack.c.l.b16 %v1102
        %v2135 = vunpack.c.l.b16 %v1103
        %v2136 = vunpack.c.l.b16 %v1104
        %v2137 = vunpack.c.l.b16 %v1105
        %v2138 = vunpack.c.l.b16 %v1106
        %v2139 = vunpack.c.l.b16 %v1107
        %v2140 = vunpack.c.l.b16 %v1108
        %v2141 = vunpack.c.l.b16 %v1109
        %v2142 = vunpack.c.l.b16 %v1110
        %v2143 = vunpack.c.l.b16 %v1111
        %v2144 = vunpack.c.l.b16 %v1112
        %v2145 = vunpack.c.l.b16 %v1113
        %v2146 = vunpack.c.l.b16 %v1114
        %v2147 = vunpack.c.l.b16 %v1115
        %v2148 = vunpack.c.l.b16 %v1116
        %v2149 = vunpack.c.l.b16 %v1117
        %v2150 = vunpack.c.l.b16 %v1118
        %v2151 = vunpack.c.l.b16 %v1119
        %v2152 = vunpack.c.l.b16 %v1120
        %v2153 = vunpack.c.l.b16 %v1121
        %v2154 = vunpack.c.l.b16 %v1122
        %v2155 = vunpack.c.l.b16 %v1123
        %v2156 = vunpack.c.l.b16 %v1124
        %v2157 = vunpack.c.l.b16 %v1125
        %v2158 = vunpack.c.l.b16 %v1126
        %v2159 = vunpack.c.l.b16 %v1127
        %v2160 = vunpack.c.l.b16 %v1128
        %v2161 = vunpack.c.l.b16 %v1129
        %v2162 = vunpack.c.l.b16 %v1130
        %v2163 = vunpack.c.l.b16 %v1131
        %v2164 = vunpack.c.l.b16 %v1132
        %v2165 = vunpack.c.l.b16 %v1133
        %v2166 = vunpack.c.l.b16 %v1134
        %v2167 = vunpack.c.l.b16 %v1135
        %v2168 = vunpack.c.l.b16 %v1136
        %v2169 = vunpack.c.l.b16 %v1137
        %v2170 = vunpack.c.l.b16 %v1138
        %v2171 = vunpack.c.l.b16 %v1139
        %v2172 = vunpack.c.l.b16 %v1140
        %v2173 = vpack.c.b16 %v2046, %v2045
        %v2174 = vpack.c.b16 %v2048, %v2047
        %v2175 = vpack.c.b16 %v2050, %v2049
        %v2176 = vpack.c.b16 %v2052, %v2051
        %v2177 = vpack.c.b16 %v2054, %v2053
        %v2178 = vpack.c.b16 %v2056, %v2055
        %v2179 = vpack.c.b16 %v2058, %v2057
        %v2180 = vpack.c.b16 %v2060, %v2059
        %v2181 = vpack.c.b16 %v2062, %v2061
        %v2182 = vpack.c.b16 %v2064, %v2063
        %v2183 = vpack.c.b16 %v2066, %v2065
        %v2184 = vpack.c.b16 %v2068, %v2067
        %v2185 = vpack.c.b16 %v2070, %v2069
        %v2186 = vpack.c.b16 %v2072, %v2071
        %v2187 = vpack.c.b16 %v2074, %v2073
        %v2188 = vpack.c.b16 %v2076, %v2075
        %v2189 = vpack.c.b16 %v2078, %v2077
        %v2190 = vpack.c.b16 %v2080, %v2079
        %v2191 = vpack.c.b16 %v2082, %v2081
        %v2192 = vpack.c.b16 %v2084, %v2083
        %v2193 = vpack.c.b16 %v2086, %v2085
        %v2194 = vpack.c.b16 %v2088, %v2087
        %v2195 = vpack.c.b16 %v2090, %v2089
        %v2196 = vpack.c.b16 %v2092, %v2091
        %v2197 = vpack.c.b16 %v2094, %v2093
        %v2198 = vpack.c.b16 %v2096, %v2095
        %v2199 = vpack.c.b16 %v2098, %v2097
        %v2200 = vpack.c.b16 %v2100, %v2099
        %v2201 = vpack.c.b16 %v2102, %v2101
        %v2202 = vpack.c.b16 %v2104, %v2103
        %v2203 = vpack.c.b16 %v2106, %v2105
        %v2204 = vpack.c.b16 %v2108, %v2107
        %v2205 = vpack.c.b16 %v2110, %v2109
        %v2206 = vpack.c.b16 %v2112, %v2111
        %v2207 = vpack.c.b16 %v2114, %v2113
        %v2208 = vpack.c.b16 %v2116, %v2115
        %v2209 = vpack.c.b16 %v2118, %v2117
        %v2210 = vpack.c.b16 %v2120, %v2119
        %v2211 = vpack.c.b16 %v2122, %v2121
        %v2212 = vpack.c.b16 %v2124, %v2123
        %v2213 = vpack.c.b16 %v2126, %v2125
        %v2214 = vpack.c.b16 %v2128, %v2127
        %v2215 = vpack.c.b16 %v2130, %v2129
        %v2216 = vpack.c.b16 %v2132, %v2131
        %v2217 = vpack.c.b16 %v2134, %v2133
        %v2218 = vpack.c.b16 %v2136, %v2135
        %v2219 = vpack.c.b16 %v2138, %v2137
        %v2220 = vpack.c.b16 %v2140, %v2139
        %v2221 = vpack.c.b16 %v2142, %v2141
        %v2222 = vpack.c.b16 %v2144, %v2143
        %v2223 = vpack.c.b16 %v2146, %v2145
        %v2224 = vpack.c.b16 %v2148, %v2147
        %v2225 = vpack.c.b16 %v2150, %v2149
        %v2226 = vpack.c.b16 %v2152, %v2151
        %v2227 = vpack.c.b16 %v2154, %v2153
        %v2228 = vpack.c.b16 %v2156, %v2155
        %v2229 = vpack.c.b16 %v2158, %v2157
        %v2230 = vpack.c.b16 %v2160, %v2159
        %v2231 = vpack.c.b16 %v2162, %v2161
        %v2232 = vpack.c.b16 %v2164, %v2163
        %v2233 = vpack.c.b16 %v2166, %v2165
        %v2234 = vpack.c.b16 %v2168, %v2167
        %v2235 = vpack.c.b16 %v2170, %v2169
        %v2236 = vpack.c.b16 %v2172, %v2171
        %2301 = vmatprep.subr.bf16.mxu0 0
        %2302 = vmatpush1.bf16.msra.mxu0 %v1141
        %2303 = vmatprep.subr.bf16.mxu0 0
        %2304 = vmatpush1.bf16.msra.mxu0 %v1142
        %2305 = vmatprep.subr.bf16.mxu0 0
        %2306 = vmatpush1.bf16.msra.mxu0 %v1143
        %2307 = vmatprep.subr.bf16.mxu0 0
        %2308 = vmatpush1.bf16.msra.mxu0 %v1144
        %2309 = vmatprep.subr.bf16.mxu0 0
        %2310 = vmatpush1.bf16.msra.mxu0 %v1145
        %2311 = vmatprep.subr.bf16.mxu0 0
        %2312 = vmatpush1.bf16.msra.mxu0 %v1146
        %2313 = vmatprep.subr.bf16.mxu0 0
        %2314 = vmatpush1.bf16.msra.mxu0 %v1147
        %2315 = vmatprep.subr.bf16.mxu0 0
        %2316 = vmatpush1.bf16.msra.mxu0 %v1148
        %2317 = vmatprep.subr.bf16.mxu0 0
        %2318 = vmatpush1.bf16.msra.mxu0 0
        %2319 = vmatprep.subr.bf16.mxu0 0
        %2320 = vmatpush1.bf16.msra.mxu0 0
        %2321 = vmatprep.subr.bf16.mxu0 0
        %2322 = vmatpush1.bf16.msra.mxu0 0
        %2323 = vmatprep.subr.bf16.mxu0 0
        %2324 = vmatpush1.bf16.msra.mxu0 0
        %2325 = vmatprep.subr.bf16.mxu0 0
        %2326 = vmatpush1.bf16.msra.mxu0 0
        %2327 = vmatprep.subr.bf16.mxu0 0
        %2328 = vmatpush1.bf16.msra.mxu0 0
        %2329 = vmatprep.subr.bf16.mxu0 0
        %2330 = vmatpush1.bf16.msra.mxu0 0
        %2331 = vmatprep.subr.bf16.mxu0 0
        %2332 = vmatpush1.bf16.msra.mxu0 0
        %2333 = vmatprep.mubr.bf16.mxu0 0
        %2334 = vmatmul.mubr.bf16.gmra.mrb[0].mxu0 %v2173
        %v2335 = vpop.f32.mrb[0].mxu0
        %v2336 = vadd.f32 %v1280, %v2335
        %v2337 = vpop.f32.mrb[0].mxu0
        %v2338 = vpop.f32.mrb[0].mxu0
        %v2339 = vadd.f32 %v1285, %v2338
        %v2340 = vpop.f32.mrb[0].mxu0
        %2341 = vmatprep.mubr.bf16.mxu0 0
        %2342 = vmatmul.mubr.bf16.gmra.mrb[0].mxu0 %v2174
        %v2343 = vpop.f32.mrb[0].mxu0
        %v2344 = vadd.f32 %v1290, %v2343
        %v2345 = vpop.f32.mrb[0].mxu0
        %v2346 = vpop.f32.mrb[0].mxu0
        %v2347 = vadd.f32 %v1295, %v2346
        %v2348 = vpop.f32.mrb[0].mxu0
        %2349 = vmatprep.mubr.bf16.mxu0 0
        %2350 = vmatmul.mubr.bf16.gmra.mrb[0].mxu0 %v2175
        %v2351 = vpop.f32.mrb[0].mxu0
        %v2352 = vadd.f32 %v1300, %v2351
        %v2353 = vpop.f32.mrb[0].mxu0
        %v2354 = vpop.f32.mrb[0].mxu0
        %v2355 = vadd.f32 %v1305, %v2354
        %v2356 = vpop.f32.mrb[0].mxu0
        %2357 = vmatprep.mubr.bf16.mxu0 0
        %2358 = vmatmul.mubr.bf16.gmra.mrb[0].mxu0 %v2176
        %v2359 = vpop.f32.mrb[0].mxu0
        %v2360 = vadd.f32 %v1310, %v2359
        %v2361 = vpop.f32.mrb[0].mxu0
        %v2362 = vpop.f32.mrb[0].mxu0
        %v2363 = vadd.f32 %v1315, %v2362
        %v2364 = vpop.f32.mrb[0].mxu0
        %2365 = vmatprep.mubr.bf16.mxu0 0
        %2366 = vmatmul.mubr.bf16.gmra.mrb[0].mxu0 %v2177
        %v2367 = vpop.f32.mrb[0].mxu0
        %v2368 = vadd.f32 %v1320, %v2367
        %v2369 = vpop.f32.mrb[0].mxu0
        %v2370 = vpop.f32.mrb[0].mxu0
        %v2371 = vadd.f32 %v1325, %v2370
        %v2372 = vpop.f32.mrb[0].mxu0
        %2373 = vmatprep.mubr.bf16.mxu0 0
        %2374 = vmatmul.mubr.bf16.gmra.mrb[0].mxu0 %v2178
        %v2375 = vpop.f32.mrb[0].mxu0
        %v2376 = vadd.f32 %v1330, %v2375
        %v2377 = vpop.f32.mrb[0].mxu0
        %v2378 = vpop.f32.mrb[0].mxu0
        %v2379 = vadd.f32 %v1335, %v2378
        %v2380 = vpop.f32.mrb[0].mxu0
        %2381 = vmatprep.mubr.bf16.mxu0 0
        %2382 = vmatmul.mubr.bf16.gmra.mrb[0].mxu0 %v2179
        %v2383 = vpop.f32.mrb[0].mxu0
        %v2384 = vadd.f32 %v1340, %v2383
        %v2385 = vpop.f32.mrb[0].mxu0
        %v2386 = vpop.f32.mrb[0].mxu0
        %v2387 = vadd.f32 %v1345, %v2386
        %v2388 = vpop.f32.mrb[0].mxu0
        %2389 = vmatprep.mubr.bf16.mxu0 0
        %2390 = vmatmul.mubr.bf16.gmra.mrb[0].mxu0 %v2180
        %v2391 = vpop.f32.mrb[0].mxu0
        %v2392 = vadd.f32 %v1350, %v2391
        %v2393 = vpop.f32.mrb[0].mxu0
        %v2394 = vpop.f32.mrb[0].mxu0
        %v2395 = vadd.f32 %v1355, %v2394
        %v2396 = vpop.f32.mrb[0].mxu0
        %2397 = vmatprep.mubr.bf16.mxu0 0
        %2398 = vmatmul.mubr.bf16.gmra.mrb[0].mxu0 %v2181
        %v2399 = vpop.f32.mrb[0].mxu0
        %v2400 = vadd.f32 %v1360, %v2399
        %v2401 = vpop.f32.mrb[0].mxu0
        %v2402 = vpop.f32.mrb[0].mxu0
        %v2403 = vadd.f32 %v1365, %v2402
        %v2404 = vpop.f32.mrb[0].mxu0
        %2405 = vmatprep.mubr.bf16.mxu0 0
        %2406 = vmatmul.mubr.bf16.gmra.mrb[0].mxu0 %v2182
        %v2407 = vpop.f32.mrb[0].mxu0
        %v2408 = vadd.f32 %v1370, %v2407
        %v2409 = vpop.f32.mrb[0].mxu0
        %v2410 = vpop.f32.mrb[0].mxu0
        %v2411 = vadd.f32 %v1375, %v2410
        %v2412 = vpop.f32.mrb[0].mxu0
        %2413 = vmatprep.mubr.bf16.mxu0 0
        %2414 = vmatmul.mubr.bf16.gmra.mrb[0].mxu0 %v2183
        %v2415 = vpop.f32.mrb[0].mxu0
        %v2416 = vadd.f32 %v1380, %v2415
        %v2417 = vpop.f32.mrb[0].mxu0
        %v2418 = vpop.f32.mrb[0].mxu0
        %v2419 = vadd.f32 %v1385, %v2418
        %v2420 = vpop.f32.mrb[0].mxu0
        %2421 = vmatprep.mubr.bf16.mxu0 0
        %2422 = vmatmul.mubr.bf16.gmra.mrb[0].mxu0 %v2184
        %v2423 = vpop.f32.mrb[0].mxu0
        %v2424 = vadd.f32 %v1390, %v2423
        %v2425 = vpop.f32.mrb[0].mxu0
        %v2426 = vpop.f32.mrb[0].mxu0
        %v2427 = vadd.f32 %v1395, %v2426
        %v2428 = vpop.f32.mrb[0].mxu0
        %2429 = vmatprep.mubr.bf16.mxu0 0
        %2430 = vmatmul.mubr.bf16.gmra.mrb[0].mxu0 %v2185
        %v2431 = vpop.f32.mrb[0].mxu0
        %v2432 = vadd.f32 %v1400, %v2431
        %v2433 = vpop.f32.mrb[0].mxu0
        %v2434 = vpop.f32.mrb[0].mxu0
        %v2435 = vadd.f32 %v1405, %v2434
        %v2436 = vpop.f32.mrb[0].mxu0
        %2437 = vmatprep.mubr.bf16.mxu0 0
        %2438 = vmatmul.mubr.bf16.gmra.mrb[0].mxu0 %v2186
        %v2439 = vpop.f32.mrb[0].mxu0
        %v2440 = vadd.f32 %v1410, %v2439
        %v2441 = vpop.f32.mrb[0].mxu0
        %v2442 = vpop.f32.mrb[0].mxu0
        %v2443 = vadd.f32 %v1415, %v2442
        %v2444 = vpop.f32.mrb[0].mxu0
        %2445 = vmatprep.mubr.bf16.mxu0 0
        %2446 = vmatmul.mubr.bf16.gmra.mrb[0].mxu0 %v2187
        %v2447 = vpop.f32.mrb[0].mxu0
        %v2448 = vadd.f32 %v1420, %v2447
        %v2449 = vpop.f32.mrb[0].mxu0
        %v2450 = vpop.f32.mrb[0].mxu0
        %v2451 = vadd.f32 %v1425, %v2450
        %v2452 = vpop.f32.mrb[0].mxu0
        %2453 = vmatprep.mubr.bf16.mxu0 0
        %2454 = vmatmul.mubr.bf16.gmra.mrb[0].mxu0 %v2188
        %v2455 = vpop.f32.mrb[0].mxu0
        %v2456 = vadd.f32 %v1430, %v2455
        %v2457 = vpop.f32.mrb[0].mxu0
        %v2458 = vpop.f32.mrb[0].mxu0
        %v2459 = vadd.f32 %v1435, %v2458
        %v2460 = vpop.f32.mrb[0].mxu0
        %2461 = vmatprep.mubr.bf16.mxu0 0
        %2462 = vmatmul.mubr.bf16.gmra.mrb[0].mxu0 %v2189
        %v2463 = vpop.f32.mrb[0].mxu0
        %v2464 = vadd.f32 %v1440, %v2463
        %v2465 = vpop.f32.mrb[0].mxu0
        %v2466 = vpop.f32.mrb[0].mxu0
        %v2467 = vadd.f32 %v1445, %v2466
        %v2468 = vpop.f32.mrb[0].mxu0
        %2469 = vmatprep.mubr.bf16.mxu0 0
        %2470 = vmatmul.mubr.bf16.gmra.mrb[0].mxu0 %v2190
        %v2471 = vpop.f32.mrb[0].mxu0
        %v2472 = vadd.f32 %v1450, %v2471
        %v2473 = vpop.f32.mrb[0].mxu0
        %v2474 = vpop.f32.mrb[0].mxu0
        %v2475 = vadd.f32 %v1455, %v2474
        %v2476 = vpop.f32.mrb[0].mxu0
        %2477 = vmatprep.mubr.bf16.mxu0 0
        %2478 = vmatmul.mubr.bf16.gmra.mrb[0].mxu0 %v2191
        %v2479 = vpop.f32.mrb[0].mxu0
        %v2480 = vadd.f32 %v1460, %v2479
        %v2481 = vpop.f32.mrb[0].mxu0
        %v2482 = vpop.f32.mrb[0].mxu0
        %v2483 = vadd.f32 %v1465, %v2482
        %v2484 = vpop.f32.mrb[0].mxu0
        %2485 = vmatprep.mubr.bf16.mxu0 0
        %2486 = vmatmul.mubr.bf16.gmra.mrb[0].mxu0 %v2192
        %v2487 = vpop.f32.mrb[0].mxu0
        %v2488 = vadd.f32 %v1470, %v2487
        %v2489 = vpop.f32.mrb[0].mxu0
        %v2490 = vpop.f32.mrb[0].mxu0
        %v2491 = vadd.f32 %v1475, %v2490
        %v2492 = vpop.f32.mrb[0].mxu0
        %2493 = vmatprep.mubr.bf16.mxu0 0
        %2494 = vmatmul.mubr.bf16.gmra.mrb[0].mxu0 %v2193
        %v2495 = vpop.f32.mrb[0].mxu0
        %v2496 = vadd.f32 %v1480, %v2495
        %v2497 = vpop.f32.mrb[0].mxu0
        %v2498 = vpop.f32.mrb[0].mxu0
        %v2499 = vadd.f32 %v1485, %v2498
        %v2500 = vpop.f32.mrb[0].mxu0
        %2501 = vmatprep.mubr.bf16.mxu0 0
        %2502 = vmatmul.mubr.bf16.gmra.mrb[0].mxu0 %v2194
        %v2503 = vpop.f32.mrb[0].mxu0
        %v2504 = vadd.f32 %v1490, %v2503
        %v2505 = vpop.f32.mrb[0].mxu0
        %v2506 = vpop.f32.mrb[0].mxu0
        %v2507 = vadd.f32 %v1495, %v2506
        %v2508 = vpop.f32.mrb[0].mxu0
        %2509 = vmatprep.mubr.bf16.mxu0 0
        %2510 = vmatmul.mubr.bf16.gmra.mrb[0].mxu0 %v2195
        %v2511 = vpop.f32.mrb[0].mxu0
        %v2512 = vadd.f32 %v1500, %v2511
        %v2513 = vpop.f32.mrb[0].mxu0
        %v2514 = vpop.f32.mrb[0].mxu0
        %v2515 = vadd.f32 %v1505, %v2514
        %v2516 = vpop.f32.mrb[0].mxu0
        %2517 = vmatprep.mubr.bf16.mxu0 0
        %2518 = vmatmul.mubr.bf16.gmra.mrb[0].mxu0 %v2196
        %v2519 = vpop.f32.mrb[0].mxu0
        %v2520 = vadd.f32 %v1510, %v2519
        %v2521 = vpop.f32.mrb[0].mxu0
        %v2522 = vpop.f32.mrb[0].mxu0
        %v2523 = vadd.f32 %v1515, %v2522
        %v2524 = vpop.f32.mrb[0].mxu0
        %2525 = vmatprep.mubr.bf16.mxu0 0
        %2526 = vmatmul.mubr.bf16.gmra.mrb[0].mxu0 %v2197
        %v2527 = vpop.f32.mrb[0].mxu0
        %v2528 = vadd.f32 %v1520, %v2527
        %v2529 = vpop.f32.mrb[0].mxu0
        %v2530 = vpop.f32.mrb[0].mxu0
        %v2531 = vadd.f32 %v1525, %v2530
        %v2532 = vpop.f32.mrb[0].mxu0
        %2533 = vmatprep.mubr.bf16.mxu0 0
        %2534 = vmatmul.mubr.bf16.gmra.mrb[0].mxu0 %v2198
        %v2535 = vpop.f32.mrb[0].mxu0
        %v2536 = vadd.f32 %v1530, %v2535
        %v2537 = vpop.f32.mrb[0].mxu0
        %v2538 = vpop.f32.mrb[0].mxu0
        %v2539 = vadd.f32 %v1535, %v2538
        %v2540 = vpop.f32.mrb[0].mxu0
        %2541 = vmatprep.mubr.bf16.mxu0 0
        %2542 = vmatmul.mubr.bf16.gmra.mrb[0].mxu0 %v2199
        %v2543 = vpop.f32.mrb[0].mxu0
        %v2544 = vadd.f32 %v1540, %v2543
        %v2545 = vpop.f32.mrb[0].mxu0
        %v2546 = vpop.f32.mrb[0].mxu0
        %v2547 = vadd.f32 %v1545, %v2546
        %v2548 = vpop.f32.mrb[0].mxu0
        %2549 = vmatprep.mubr.bf16.mxu0 0
        %2550 = vmatmul.mubr.bf16.gmra.mrb[0].mxu0 %v2200
        %v2551 = vpop.f32.mrb[0].mxu0
        %v2552 = vadd.f32 %v1550, %v2551
        %v2553 = vpop.f32.mrb[0].mxu0
        %v2554 = vpop.f32.mrb[0].mxu0
        %v2555 = vadd.f32 %v1555, %v2554
        %v2556 = vpop.f32.mrb[0].mxu0
        %2557 = vmatprep.mubr.bf16.mxu0 0
        %2558 = vmatmul.mubr.bf16.gmra.mrb[0].mxu0 %v2201
        %v2559 = vpop.f32.mrb[0].mxu0
        %v2560 = vadd.f32 %v1560, %v2559
        %v2561 = vpop.f32.mrb[0].mxu0
        %v2562 = vpop.f32.mrb[0].mxu0
        %v2563 = vadd.f32 %v1565, %v2562
        %v2564 = vpop.f32.mrb[0].mxu0
        %2565 = vmatprep.mubr.bf16.mxu0 0
        %2566 = vmatmul.mubr.bf16.gmra.mrb[0].mxu0 %v2202
        %v2567 = vpop.f32.mrb[0].mxu0
        %v2568 = vadd.f32 %v1570, %v2567
        %v2569 = vpop.f32.mrb[0].mxu0
        %v2570 = vpop.f32.mrb[0].mxu0
        %v2571 = vadd.f32 %v1575, %v2570
        %v2572 = vpop.f32.mrb[0].mxu0
        %2573 = vmatprep.mubr.bf16.mxu0 0
        %2574 = vmatmul.mubr.bf16.gmra.mrb[0].mxu0 %v2203
        %v2575 = vpop.f32.mrb[0].mxu0
        %v2576 = vadd.f32 %v1580, %v2575
        %v2577 = vpop.f32.mrb[0].mxu0
        %v2578 = vpop.f32.mrb[0].mxu0
        %v2579 = vadd.f32 %v1585, %v2578
        %v2580 = vpop.f32.mrb[0].mxu0
        %2581 = vmatprep.mubr.bf16.mxu0 0
        %2582 = vmatmul.mubr.bf16.gmra.mrb[0].mxu0 %v2204
        %v2583 = vpop.f32.mrb[0].mxu0
        %v2584 = vadd.f32 %v1590, %v2583
        %v2585 = vpop.f32.mrb[0].mxu0
        %v2586 = vpop.f32.mrb[0].mxu0
        %v2587 = vadd.f32 %v1595, %v2586
        %v2588 = vpop.f32.mrb[0].mxu0
        %2589 = vmatprep.mubr.bf16.mxu0 0
        %2590 = vmatmul.mubr.bf16.gmra.mrb[0].mxu0 %v2205
        %v2591 = vpop.f32.mrb[0].mxu0
        %v2592 = vadd.f32 %v1600, %v2591
        %v2593 = vpop.f32.mrb[0].mxu0
        %v2594 = vpop.f32.mrb[0].mxu0
        %v2595 = vadd.f32 %v1605, %v2594
        %v2596 = vpop.f32.mrb[0].mxu0
        %2597 = vmatprep.mubr.bf16.mxu0 0
        %2598 = vmatmul.mubr.bf16.gmra.mrb[0].mxu0 %v2206
        %v2599 = vpop.f32.mrb[0].mxu0
        %v2600 = vadd.f32 %v1610, %v2599
        %v2601 = vpop.f32.mrb[0].mxu0
        %v2602 = vpop.f32.mrb[0].mxu0
        %v2603 = vadd.f32 %v1615, %v2602
        %v2604 = vpop.f32.mrb[0].mxu0
        %2605 = vmatprep.mubr.bf16.mxu0 0
        %2606 = vmatmul.mubr.bf16.gmra.mrb[0].mxu0 %v2207
        %v2607 = vpop.f32.mrb[0].mxu0
        %v2608 = vadd.f32 %v1620, %v2607
        %v2609 = vpop.f32.mrb[0].mxu0
        %v2610 = vpop.f32.mrb[0].mxu0
        %v2611 = vadd.f32 %v1625, %v2610
        %v2612 = vpop.f32.mrb[0].mxu0
        %2613 = vmatprep.mubr.bf16.mxu0 0
        %2614 = vmatmul.mubr.bf16.gmra.mrb[0].mxu0 %v2208
        %v2615 = vpop.f32.mrb[0].mxu0
        %v2616 = vadd.f32 %v1630, %v2615
        %v2617 = vpop.f32.mrb[0].mxu0
        %v2618 = vpop.f32.mrb[0].mxu0
        %v2619 = vadd.f32 %v1635, %v2618
        %v2620 = vpop.f32.mrb[0].mxu0
        %2621 = vmatprep.mubr.bf16.mxu0 0
        %2622 = vmatmul.mubr.bf16.gmra.mrb[0].mxu0 %v2209
        %v2623 = vpop.f32.mrb[0].mxu0
        %v2624 = vadd.f32 %v1640, %v2623
        %v2625 = vpop.f32.mrb[0].mxu0
        %v2626 = vpop.f32.mrb[0].mxu0
        %v2627 = vadd.f32 %v1645, %v2626
        %v2628 = vpop.f32.mrb[0].mxu0
        %2629 = vmatprep.mubr.bf16.mxu0 0
        %2630 = vmatmul.mubr.bf16.gmra.mrb[0].mxu0 %v2210
        %v2631 = vpop.f32.mrb[0].mxu0
        %v2632 = vadd.f32 %v1650, %v2631
        %v2633 = vpop.f32.mrb[0].mxu0
        %v2634 = vpop.f32.mrb[0].mxu0
        %v2635 = vadd.f32 %v1655, %v2634
        %v2636 = vpop.f32.mrb[0].mxu0
        %2637 = vmatprep.mubr.bf16.mxu0 0
        %2638 = vmatmul.mubr.bf16.gmra.mrb[0].mxu0 %v2211
        %v2639 = vpop.f32.mrb[0].mxu0
        %v2640 = vadd.f32 %v1660, %v2639
        %v2641 = vpop.f32.mrb[0].mxu0
        %v2642 = vpop.f32.mrb[0].mxu0
        %v2643 = vadd.f32 %v1665, %v2642
        %v2644 = vpop.f32.mrb[0].mxu0
        %2645 = vmatprep.mubr.bf16.mxu0 0
        %2646 = vmatmul.mubr.bf16.gmra.mrb[0].mxu0 %v2212
        %v2647 = vpop.f32.mrb[0].mxu0
        %v2648 = vadd.f32 %v1670, %v2647
        %v2649 = vpop.f32.mrb[0].mxu0
        %v2650 = vpop.f32.mrb[0].mxu0
        %v2651 = vadd.f32 %v1675, %v2650
        %v2652 = vpop.f32.mrb[0].mxu0
        %2653 = vmatprep.mubr.bf16.mxu0 0
        %2654 = vmatmul.mubr.bf16.gmra.mrb[0].mxu0 %v2213
        %v2655 = vpop.f32.mrb[0].mxu0
        %v2656 = vadd.f32 %v1680, %v2655
        %v2657 = vpop.f32.mrb[0].mxu0
        %v2658 = vpop.f32.mrb[0].mxu0
        %v2659 = vadd.f32 %v1685, %v2658
        %v2660 = vpop.f32.mrb[0].mxu0
        %2661 = vmatprep.mubr.bf16.mxu0 0
        %2662 = vmatmul.mubr.bf16.gmra.mrb[0].mxu0 %v2214
        %v2663 = vpop.f32.mrb[0].mxu0
        %v2664 = vadd.f32 %v1690, %v2663
        %v2665 = vpop.f32.mrb[0].mxu0
        %v2666 = vpop.f32.mrb[0].mxu0
        %v2667 = vadd.f32 %v1695, %v2666
        %v2668 = vpop.f32.mrb[0].mxu0
        %2669 = vmatprep.mubr.bf16.mxu0 0
        %2670 = vmatmul.mubr.bf16.gmra.mrb[0].mxu0 %v2215
        %v2671 = vpop.f32.mrb[0].mxu0
        %v2672 = vadd.f32 %v1700, %v2671
        %v2673 = vpop.f32.mrb[0].mxu0
        %v2674 = vpop.f32.mrb[0].mxu0
        %v2675 = vadd.f32 %v1705, %v2674
        %v2676 = vpop.f32.mrb[0].mxu0
        %2677 = vmatprep.mubr.bf16.mxu0 0
        %2678 = vmatmul.mubr.bf16.gmra.mrb[0].mxu0 %v2216
        %v2679 = vpop.f32.mrb[0].mxu0
        %v2680 = vadd.f32 %v1710, %v2679
        %v2681 = vpop.f32.mrb[0].mxu0
        %v2682 = vpop.f32.mrb[0].mxu0
        %v2683 = vadd.f32 %v1715, %v2682
        %v2684 = vpop.f32.mrb[0].mxu0
        %2685 = vmatprep.mubr.bf16.mxu0 0
        %2686 = vmatmul.mubr.bf16.gmra.mrb[0].mxu0 %v2217
        %v2687 = vpop.f32.mrb[0].mxu0
        %v2688 = vadd.f32 %v1720, %v2687
        %v2689 = vpop.f32.mrb[0].mxu0
        %v2690 = vpop.f32.mrb[0].mxu0
        %v2691 = vadd.f32 %v1725, %v2690
        %v2692 = vpop.f32.mrb[0].mxu0
        %2693 = vmatprep.mubr.bf16.mxu0 0
        %2694 = vmatmul.mubr.bf16.gmra.mrb[0].mxu0 %v2218
        %v2695 = vpop.f32.mrb[0].mxu0
        %v2696 = vadd.f32 %v1730, %v2695
        %v2697 = vpop.f32.mrb[0].mxu0
        %v2698 = vpop.f32.mrb[0].mxu0
        %v2699 = vadd.f32 %v1735, %v2698
        %v2700 = vpop.f32.mrb[0].mxu0
        %2701 = vmatprep.mubr.bf16.mxu0 0
        %2702 = vmatmul.mubr.bf16.gmra.mrb[0].mxu0 %v2219
        %v2703 = vpop.f32.mrb[0].mxu0
        %v2704 = vadd.f32 %v1740, %v2703
        %v2705 = vpop.f32.mrb[0].mxu0
        %v2706 = vpop.f32.mrb[0].mxu0
        %v2707 = vadd.f32 %v1745, %v2706
        %v2708 = vpop.f32.mrb[0].mxu0
        %2709 = vmatprep.mubr.bf16.mxu0 0
        %2710 = vmatmul.mubr.bf16.gmra.mrb[0].mxu0 %v2220
        %v2711 = vpop.f32.mrb[0].mxu0
        %v2712 = vadd.f32 %v1750, %v2711
        %v2713 = vpop.f32.mrb[0].mxu0
        %v2714 = vpop.f32.mrb[0].mxu0
        %v2715 = vadd.f32 %v1755, %v2714
        %v2716 = vpop.f32.mrb[0].mxu0
        %2717 = vmatprep.mubr.bf16.mxu0 0
        %2718 = vmatmul.mubr.bf16.gmra.mrb[0].mxu0 %v2221
        %v2719 = vpop.f32.mrb[0].mxu0
        %v2720 = vadd.f32 %v1760, %v2719
        %v2721 = vpop.f32.mrb[0].mxu0
        %v2722 = vpop.f32.mrb[0].mxu0
        %v2723 = vadd.f32 %v1765, %v2722
        %v2724 = vpop.f32.mrb[0].mxu0
        %2725 = vmatprep.mubr.bf16.mxu0 0
        %2726 = vmatmul.mubr.bf16.gmra.mrb[0].mxu0 %v2222
        %v2727 = vpop.f32.mrb[0].mxu0
        %v2728 = vadd.f32 %v1770, %v2727
        %v2729 = vpop.f32.mrb[0].mxu0
        %v2730 = vpop.f32.mrb[0].mxu0
        %v2731 = vadd.f32 %v1775, %v2730
        %v2732 = vpop.f32.mrb[0].mxu0
        %2733 = vmatprep.mubr.bf16.mxu0 0
        %2734 = vmatmul.mubr.bf16.gmra.mrb[0].mxu0 %v2223
        %v2735 = vpop.f32.mrb[0].mxu0
        %v2736 = vadd.f32 %v1780, %v2735
        %v2737 = vpop.f32.mrb[0].mxu0
        %v2738 = vpop.f32.mrb[0].mxu0
        %v2739 = vadd.f32 %v1785, %v2738
        %v2740 = vpop.f32.mrb[0].mxu0
        %2741 = vmatprep.mubr.bf16.mxu0 0
        %2742 = vmatmul.mubr.bf16.gmra.mrb[0].mxu0 %v2224
        %v2743 = vpop.f32.mrb[0].mxu0
        %v2744 = vadd.f32 %v1790, %v2743
        %v2745 = vpop.f32.mrb[0].mxu0
        %v2746 = vpop.f32.mrb[0].mxu0
        %v2747 = vadd.f32 %v1795, %v2746
        %v2748 = vpop.f32.mrb[0].mxu0
        %2749 = vmatprep.mubr.bf16.mxu0 0
        %2750 = vmatmul.mubr.bf16.gmra.mrb[0].mxu0 %v2225
        %v2751 = vpop.f32.mrb[0].mxu0
        %v2752 = vadd.f32 %v1800, %v2751
        %v2753 = vpop.f32.mrb[0].mxu0
        %v2754 = vpop.f32.mrb[0].mxu0
        %v2755 = vadd.f32 %v1805, %v2754
        %v2756 = vpop.f32.mrb[0].mxu0
        %2757 = vmatprep.mubr.bf16.mxu0 0
        %2758 = vmatmul.mubr.bf16.gmra.mrb[0].mxu0 %v2226
        %v2759 = vpop.f32.mrb[0].mxu0
        %v2760 = vadd.f32 %v1810, %v2759
        %v2761 = vpop.f32.mrb[0].mxu0
        %v2762 = vpop.f32.mrb[0].mxu0
        %v2763 = vadd.f32 %v1815, %v2762
        %v2764 = vpop.f32.mrb[0].mxu0
        %2765 = vmatprep.mubr.bf16.mxu0 0
        %2766 = vmatmul.mubr.bf16.gmra.mrb[0].mxu0 %v2227
        %v2767 = vpop.f32.mrb[0].mxu0
        %v2768 = vadd.f32 %v1820, %v2767
        %v2769 = vpop.f32.mrb[0].mxu0
        %v2770 = vpop.f32.mrb[0].mxu0
        %v2771 = vadd.f32 %v1825, %v2770
        %v2772 = vpop.f32.mrb[0].mxu0
        %2773 = vmatprep.mubr.bf16.mxu0 0
        %2774 = vmatmul.mubr.bf16.gmra.mrb[0].mxu0 %v2228
        %v2775 = vpop.f32.mrb[0].mxu0
        %v2776 = vadd.f32 %v1830, %v2775
        %v2777 = vpop.f32.mrb[0].mxu0
        %v2778 = vpop.f32.mrb[0].mxu0
        %v2779 = vadd.f32 %v1835, %v2778
        %v2780 = vpop.f32.mrb[0].mxu0
        %2781 = vmatprep.mubr.bf16.mxu0 0
        %2782 = vmatmul.mubr.bf16.gmra.mrb[0].mxu0 %v2229
        %v2783 = vpop.f32.mrb[0].mxu0
        %v2784 = vadd.f32 %v1840, %v2783
        %v2785 = vpop.f32.mrb[0].mxu0
        %v2786 = vpop.f32.mrb[0].mxu0
        %v2787 = vadd.f32 %v1845, %v2786
        %v2788 = vpop.f32.mrb[0].mxu0
        %2789 = vmatprep.mubr.bf16.mxu0 0
        %2790 = vmatmul.mubr.bf16.gmra.mrb[0].mxu0 %v2230
        %v2791 = vpop.f32.mrb[0].mxu0
        %v2792 = vadd.f32 %v1850, %v2791
        %v2793 = vpop.f32.mrb[0].mxu0
        %v2794 = vpop.f32.mrb[0].mxu0
        %v2795 = vadd.f32 %v1855, %v2794
        %v2796 = vpop.f32.mrb[0].mxu0
        %2797 = vmatprep.mubr.bf16.mxu0 0
        %2798 = vmatmul.mubr.bf16.gmra.mrb[0].mxu0 %v2231
        %v2799 = vpop.f32.mrb[0].mxu0
        %v2800 = vadd.f32 %v1860, %v2799
        %v2801 = vpop.f32.mrb[0].mxu0
        %v2802 = vpop.f32.mrb[0].mxu0
        %v2803 = vadd.f32 %v1865, %v2802
        %v2804 = vpop.f32.mrb[0].mxu0
        %2805 = vmatprep.mubr.bf16.mxu0 0
        %2806 = vmatmul.mubr.bf16.gmra.mrb[0].mxu0 %v2232
        %v2807 = vpop.f32.mrb[0].mxu0
        %v2808 = vadd.f32 %v1870, %v2807
        %v2809 = vpop.f32.mrb[0].mxu0
        %v2810 = vpop.f32.mrb[0].mxu0
        %v2811 = vadd.f32 %v1875, %v2810
        %v2812 = vpop.f32.mrb[0].mxu0
        %2813 = vmatprep.mubr.bf16.mxu0 0
        %2814 = vmatmul.mubr.bf16.gmra.mrb[0].mxu0 %v2233
        %v2815 = vpop.f32.mrb[0].mxu0
        %v2816 = vadd.f32 %v1880, %v2815
        %v2817 = vpop.f32.mrb[0].mxu0
        %v2818 = vpop.f32.mrb[0].mxu0
        %v2819 = vadd.f32 %v1885, %v2818
        %v2820 = vpop.f32.mrb[0].mxu0
        %2821 = vmatprep.mubr.bf16.mxu0 0
        %2822 = vmatmul.mubr.bf16.gmra.mrb[0].mxu0 %v2234
        %v2823 = vpop.f32.mrb[0].mxu0
        %v2824 = vadd.f32 %v1890, %v2823
        %v2825 = vpop.f32.mrb[0].mxu0
        %v2826 = vpop.f32.mrb[0].mxu0
        %v2827 = vadd.f32 %v1895, %v2826
        %v2828 = vpop.f32.mrb[0].mxu0
        %2829 = vmatprep.mubr.bf16.mxu0 0
        %2830 = vmatmul.mubr.bf16.gmra.mrb[0].mxu0 %v2235
        %v2831 = vpop.f32.mrb[0].mxu0
        %v2832 = vadd.f32 %v1900, %v2831
        %v2833 = vpop.f32.mrb[0].mxu0
        %v2834 = vpop.f32.mrb[0].mxu0
        %v2835 = vadd.f32 %v1905, %v2834
        %v2836 = vpop.f32.mrb[0].mxu0
        %2837 = vmatprep.mubr.bf16.mxu0 0
        %2838 = vmatmul.mubr.bf16.gmra.mrb[0].mxu0 %v2236
        %v2839 = vpop.f32.mrb[0].mxu0
        %v2840 = vadd.f32 %v1910, %v2839
        %v2841 = vpop.f32.mrb[0].mxu0
        %v2842 = vpop.f32.mrb[0].mxu0
        %v2843 = vadd.f32 %v1915, %v2842
        %v2844 = vpop.f32.mrb[0].mxu0
        %2845 = vdwg.mxu0
        %2846 = vst [vmem:[%s357] sm:$0xff] %v2336
        %2847 = vst [vmem:[%s357 + $0x8] sm:$0xff] %v2339
        %2848 = vst [vmem:[%s357 + $0x10] sm:$0xff] %v2344
        %2849 = vst [vmem:[%s357 + $0x18] sm:$0xff] %v2347
        %2850 = vst [vmem:[%s357 + $0x20] sm:$0xff] %v2352
        %2851 = vst [vmem:[%s357 + $0x28] sm:$0xff] %v2355
        %2852 = vst [vmem:[%s357 + $0x30] sm:$0xff] %v2360
        %2853 = vst [vmem:[%s357 + $0x38] sm:$0xff] %v2363
        %2854 = vst [vmem:[%s357 + $0x40] sm:$0xff] %v2368
        %2855 = vst [vmem:[%s357 + $0x48] sm:$0xff] %v2371
        %2856 = vst [vmem:[%s357 + $0x50] sm:$0xff] %v2376
        %2857 = vst [vmem:[%s357 + $0x58] sm:$0xff] %v2379
        %2858 = vst [vmem:[%s357 + $0x60] sm:$0xff] %v2384
        %2859 = vst [vmem:[%s357 + $0x68] sm:$0xff] %v2387
        %2860 = vst [vmem:[%s357 + $0x70] sm:$0xff] %v2392
        %2861 = vst [vmem:[%s357 + $0x78] sm:$0xff] %v2395
        %2862 = vst [vmem:[%s357 + $0x80] sm:$0xff] %v2400
        %2863 = vst [vmem:[%s357 + $0x88] sm:$0xff] %v2403
        %2864 = vst [vmem:[%s357 + $0x90] sm:$0xff] %v2408
        %2865 = vst [vmem:[%s357 + $0x98] sm:$0xff] %v2411
        %2866 = vst [vmem:[%s357 + $0xa0] sm:$0xff] %v2416
        %2867 = vst [vmem:[%s357 + $0xa8] sm:$0xff] %v2419
        %2868 = vst [vmem:[%s357 + $0xb0] sm:$0xff] %v2424
        %2869 = vst [vmem:[%s357 + $0xb8] sm:$0xff] %v2427
        %2870 = vst [vmem:[%s357 + $0xc0] sm:$0xff] %v2432
        %2871 = vst [vmem:[%s357 + $0xc8] sm:$0xff] %v2435
        %2872 = vst [vmem:[%s357 + $0xd0] sm:$0xff] %v2440
        %2873 = vst [vmem:[%s357 + $0xd8] sm:$0xff] %v2443
        %2874 = vst [vmem:[%s357 + $0xe0] sm:$0xff] %v2448
        %2875 = vst [vmem:[%s357 + $0xe8] sm:$0xff] %v2451
        %2876 = vst [vmem:[%s357 + $0xf0] sm:$0xff] %v2456
        %2877 = vst [vmem:[%s357 + $0xf8] sm:$0xff] %v2459
        %2878 = vst [vmem:[%s357 + $0x100] sm:$0xff] %v2464
        %2879 = vst [vmem:[%s357 + $0x108] sm:$0xff] %v2467
        %2880 = vst [vmem:[%s357 + $0x110] sm:$0xff] %v2472
        %2881 = vst [vmem:[%s357 + $0x118] sm:$0xff] %v2475
        %2882 = vst [vmem:[%s357 + $0x120] sm:$0xff] %v2480
        %2883 = vst [vmem:[%s357 + $0x128] sm:$0xff] %v2483
        %2884 = vst [vmem:[%s357 + $0x130] sm:$0xff] %v2488
        %2885 = vst [vmem:[%s357 + $0x138] sm:$0xff] %v2491
        %2886 = vst [vmem:[%s357 + $0x140] sm:$0xff] %v2496
        %2887 = vst [vmem:[%s357 + $0x148] sm:$0xff] %v2499
        %2888 = vst [vmem:[%s357 + $0x150] sm:$0xff] %v2504
        %2889 = vst [vmem:[%s357 + $0x158] sm:$0xff] %v2507
        %2890 = vst [vmem:[%s357 + $0x160] sm:$0xff] %v2512
        %2891 = vst [vmem:[%s357 + $0x168] sm:$0xff] %v2515
        %2892 = vst [vmem:[%s357 + $0x170] sm:$0xff] %v2520
        %2893 = vst [vmem:[%s357 + $0x178] sm:$0xff] %v2523
        %2894 = vst [vmem:[%s357 + $0x180] sm:$0xff] %v2528
        %2895 = vst [vmem:[%s357 + $0x188] sm:$0xff] %v2531
        %2896 = vst [vmem:[%s357 + $0x190] sm:$0xff] %v2536
        %2897 = vst [vmem:[%s357 + $0x198] sm:$0xff] %v2539
        %2898 = vst [vmem:[%s357 + $0x1a0] sm:$0xff] %v2544
        %2899 = vst [vmem:[%s357 + $0x1a8] sm:$0xff] %v2547
        %2900 = vst [vmem:[%s357 + $0x1b0] sm:$0xff] %v2552
        %2901 = vst [vmem:[%s357 + $0x1b8] sm:$0xff] %v2555
        %2902 = vst [vmem:[%s357 + $0x1c0] sm:$0xff] %v2560
        %2903 = vst [vmem:[%s357 + $0x1c8] sm:$0xff] %v2563
        %2904 = vst [vmem:[%s357 + $0x1d0] sm:$0xff] %v2568
        %2905 = vst [vmem:[%s357 + $0x1d8] sm:$0xff] %v2571
        %2906 = vst [vmem:[%s357 + $0x1e0] sm:$0xff] %v2576
        %2907 = vst [vmem:[%s357 + $0x1e8] sm:$0xff] %v2579
        %2908 = vst [vmem:[%s357 + $0x1f0] sm:$0xff] %v2584
        %2909 = vst [vmem:[%s357 + $0x1f8] sm:$0xff] %v2587
        %2910 = vst [vmem:[%s357 + $0x200] sm:$0xff] %v2592
        %2911 = vst [vmem:[%s357 + $0x208] sm:$0xff] %v2595
        %2912 = vst [vmem:[%s357 + $0x210] sm:$0xff] %v2600
        %2913 = vst [vmem:[%s357 + $0x218] sm:$0xff] %v2603
        %2914 = vst [vmem:[%s357 + $0x220] sm:$0xff] %v2608
        %2915 = vst [vmem:[%s357 + $0x228] sm:$0xff] %v2611
        %2916 = vst [vmem:[%s357 + $0x230] sm:$0xff] %v2616
        %2917 = vst [vmem:[%s357 + $0x238] sm:$0xff] %v2619
        %2918 = vst [vmem:[%s357 + $0x240] sm:$0xff] %v2624
        %2919 = vst [vmem:[%s357 + $0x248] sm:$0xff] %v2627
        %2920 = vst [vmem:[%s357 + $0x250] sm:$0xff] %v2632
        %2921 = vst [vmem:[%s357 + $0x258] sm:$0xff] %v2635
        %2922 = vst [vmem:[%s357 + $0x260] sm:$0xff] %v2640
        %2923 = vst [vmem:[%s357 + $0x268] sm:$0xff] %v2643
        %2924 = vst [vmem:[%s357 + $0x270] sm:$0xff] %v2648
        %2925 = vst [vmem:[%s357 + $0x278] sm:$0xff] %v2651
        %2926 = vst [vmem:[%s357 + $0x280] sm:$0xff] %v2656
        %2927 = vst [vmem:[%s357 + $0x288] sm:$0xff] %v2659
        %2928 = vst [vmem:[%s357 + $0x290] sm:$0xff] %v2664
        %2929 = vst [vmem:[%s357 + $0x298] sm:$0xff] %v2667
        %2930 = vst [vmem:[%s357 + $0x2a0] sm:$0xff] %v2672
        %2931 = vst [vmem:[%s357 + $0x2a8] sm:$0xff] %v2675
        %2932 = vst [vmem:[%s357 + $0x2b0] sm:$0xff] %v2680
        %2933 = vst [vmem:[%s357 + $0x2b8] sm:$0xff] %v2683
        %2934 = vst [vmem:[%s357 + $0x2c0] sm:$0xff] %v2688
        %2935 = vst [vmem:[%s357 + $0x2c8] sm:$0xff] %v2691
        %2936 = vst [vmem:[%s357 + $0x2d0] sm:$0xff] %v2696
        %2937 = vst [vmem:[%s357 + $0x2d8] sm:$0xff] %v2699
        %2938 = vst [vmem:[%s357 + $0x2e0] sm:$0xff] %v2704
        %2939 = vst [vmem:[%s357 + $0x2e8] sm:$0xff] %v2707
        %2940 = vst [vmem:[%s357 + $0x2f0] sm:$0xff] %v2712
        %2941 = vst [vmem:[%s357 + $0x2f8] sm:$0xff] %v2715
        %2942 = vst [vmem:[%s357 + $0x300] sm:$0xff] %v2720
        %2943 = vst [vmem:[%s357 + $0x308] sm:$0xff] %v2723
        %2944 = vst [vmem:[%s357 + $0x310] sm:$0xff] %v2728
        %2945 = vst [vmem:[%s357 + $0x318] sm:$0xff] %v2731
        %2946 = vst [vmem:[%s357 + $0x320] sm:$0xff] %v2736
        %2947 = vst [vmem:[%s357 + $0x328] sm:$0xff] %v2739
        %2948 = vst [vmem:[%s357 + $0x330] sm:$0xff] %v2744
        %2949 = vst [vmem:[%s357 + $0x338] sm:$0xff] %v2747
        %2950 = vst [vmem:[%s357 + $0x340] sm:$0xff] %v2752
        %2951 = vst [vmem:[%s357 + $0x348] sm:$0xff] %v2755
        %2952 = vst [vmem:[%s357 + $0x350] sm:$0xff] %v2760
        %2953 = vst [vmem:[%s357 + $0x358] sm:$0xff] %v2763
        %2954 = vst [vmem:[%s357 + $0x360] sm:$0xff] %v2768
        %2955 = vst [vmem:[%s357 + $0x368] sm:$0xff] %v2771
        %2956 = vst [vmem:[%s357 + $0x370] sm:$0xff] %v2776
        %2957 = vst [vmem:[%s357 + $0x378] sm:$0xff] %v2779
        %2958 = vst [vmem:[%s357 + $0x380] sm:$0xff] %v2784
        %2959 = vst [vmem:[%s357 + $0x388] sm:$0xff] %v2787
        %2960 = vst [vmem:[%s357 + $0x390] sm:$0xff] %v2792
        %2961 = vst [vmem:[%s357 + $0x398] sm:$0xff] %v2795
        %2962 = vst [vmem:[%s357 + $0x3a0] sm:$0xff] %v2800
        %2963 = vst [vmem:[%s357 + $0x3a8] sm:$0xff] %v2803
        %2964 = vst [vmem:[%s357 + $0x3b0] sm:$0xff] %v2808
        %2965 = vst [vmem:[%s357 + $0x3b8] sm:$0xff] %v2811
        %2966 = vst [vmem:[%s357 + $0x3c0] sm:$0xff] %v2816
        %2967 = vst [vmem:[%s357 + $0x3c8] sm:$0xff] %v2819
        %2968 = vst [vmem:[%s357 + $0x3d0] sm:$0xff] %v2824
        %2969 = vst [vmem:[%s357 + $0x3d8] sm:$0xff] %v2827
        %2970 = vst [vmem:[%s357 + $0x3e0] sm:$0xff] %v2832
        %2971 = vst [vmem:[%s357 + $0x3e8] sm:$0xff] %v2835
        %2972 = vst [vmem:[%s357 + $0x3f0] sm:$0xff] %v2840
        %2973 = vst [vmem:[%s357 + $0x3f8] sm:$0xff] %v2843
        %2974 = vmax.xlane.f32.xlu0 %v2336
        %v2975 = vpop.xlane.xlu0 %2974
        %2976 = vmax.xlane.f32.xlu0 %v2339
        %v2977 = vpop.xlane.xlu0 %2976
        %2978 = vmax.xlane.f32.xlu0 %v2344
        %v2979 = vpop.xlane.xlu0 %2978
        %2980 = vmax.xlane.f32.xlu0 %v2347
        %v2981 = vpop.xlane.xlu0 %2980
        %2982 = vmax.xlane.f32.xlu0 %v2352
        %v2983 = vpop.xlane.xlu0 %2982
        %2984 = vmax.xlane.f32.xlu0 %v2355
        %v2985 = vpop.xlane.xlu0 %2984
        %2986 = vmax.xlane.f32.xlu0 %v2360
        %v2987 = vpop.xlane.xlu0 %2986
        %2988 = vmax.xlane.f32.xlu0 %v2363
        %v2989 = vpop.xlane.xlu0 %2988
        %2990 = vmax.xlane.f32.xlu0 %v2368
        %v2991 = vpop.xlane.xlu0 %2990
        %2992 = vmax.xlane.f32.xlu0 %v2371
        %v2993 = vpop.xlane.xlu0 %2992
        %2994 = vmax.xlane.f32.xlu0 %v2376
        %v2995 = vpop.xlane.xlu0 %2994
        %2996 = vmax.xlane.f32.xlu0 %v2379
        %v2997 = vpop.xlane.xlu0 %2996
        %2998 = vmax.xlane.f32.xlu0 %v2384
        %v2999 = vpop.xlane.xlu0 %2998
        %3000 = vmax.xlane.f32.xlu0 %v2387
        %v3001 = vpop.xlane.xlu0 %3000
        %3002 = vmax.xlane.f32.xlu0 %v2392
        %v3003 = vpop.xlane.xlu0 %3002
        %3004 = vmax.xlane.f32.xlu0 %v2395
        %v3005 = vpop.xlane.xlu0 %3004
        %3006 = vmax.xlane.f32.xlu0 %v2400
        %v3007 = vpop.xlane.xlu0 %3006
        %3008 = vmax.xlane.f32.xlu0 %v2403
        %v3009 = vpop.xlane.xlu0 %3008
        %3010 = vmax.xlane.f32.xlu0 %v2408
        %v3011 = vpop.xlane.xlu0 %3010
        %3012 = vmax.xlane.f32.xlu0 %v2411
        %v3013 = vpop.xlane.xlu0 %3012
        %3014 = vmax.xlane.f32.xlu0 %v2416
        %v3015 = vpop.xlane.xlu0 %3014
        %3016 = vmax.xlane.f32.xlu0 %v2419
        %v3017 = vpop.xlane.xlu0 %3016
        %3018 = vmax.xlane.f32.xlu0 %v2424
        %v3019 = vpop.xlane.xlu0 %3018
        %3020 = vmax.xlane.f32.xlu0 %v2427
        %v3021 = vpop.xlane.xlu0 %3020
        %3022 = vmax.xlane.f32.xlu0 %v2432
        %v3023 = vpop.xlane.xlu0 %3022
        %3024 = vmax.xlane.f32.xlu0 %v2435
        %v3025 = vpop.xlane.xlu0 %3024
        %3026 = vmax.xlane.f32.xlu0 %v2440
        %v3027 = vpop.xlane.xlu0 %3026
        %3028 = vmax.xlane.f32.xlu0 %v2443
        %v3029 = vpop.xlane.xlu0 %3028
        %3030 = vmax.xlane.f32.xlu0 %v2448
        %v3031 = vpop.xlane.xlu0 %3030
        %3032 = vmax.xlane.f32.xlu0 %v2451
        %v3033 = vpop.xlane.xlu0 %3032
        %3034 = vmax.xlane.f32.xlu0 %v2456
        %v3035 = vpop.xlane.xlu0 %3034
        %3036 = vmax.xlane.f32.xlu0 %v2459
        %v3037 = vpop.xlane.xlu0 %3036
        %3038 = vmax.xlane.f32.xlu0 %v2464
        %v3039 = vpop.xlane.xlu0 %3038
        %3040 = vmax.xlane.f32.xlu0 %v2467
        %v3041 = vpop.xlane.xlu0 %3040
        %3042 = vmax.xlane.f32.xlu0 %v2472
        %v3043 = vpop.xlane.xlu0 %3042
        %3044 = vmax.xlane.f32.xlu0 %v2475
        %v3045 = vpop.xlane.xlu0 %3044
        %3046 = vmax.xlane.f32.xlu0 %v2480
        %v3047 = vpop.xlane.xlu0 %3046
        %3048 = vmax.xlane.f32.xlu0 %v2483
        %v3049 = vpop.xlane.xlu0 %3048
        %3050 = vmax.xlane.f32.xlu0 %v2488
        %v3051 = vpop.xlane.xlu0 %3050
        %3052 = vmax.xlane.f32.xlu0 %v2491
        %v3053 = vpop.xlane.xlu0 %3052
        %3054 = vmax.xlane.f32.xlu0 %v2496
        %v3055 = vpop.xlane.xlu0 %3054
        %3056 = vmax.xlane.f32.xlu0 %v2499
        %v3057 = vpop.xlane.xlu0 %3056
        %3058 = vmax.xlane.f32.xlu0 %v2504
        %v3059 = vpop.xlane.xlu0 %3058
        %3060 = vmax.xlane.f32.xlu0 %v2507
        %v3061 = vpop.xlane.xlu0 %3060
        %3062 = vmax.xlane.f32.xlu0 %v2512
        %v3063 = vpop.xlane.xlu0 %3062
        %3064 = vmax.xlane.f32.xlu0 %v2515
        %v3065 = vpop.xlane.xlu0 %3064
        %3066 = vmax.xlane.f32.xlu0 %v2520
        %v3067 = vpop.xlane.xlu0 %3066
        %3068 = vmax.xlane.f32.xlu0 %v2523
        %v3069 = vpop.xlane.xlu0 %3068
        %3070 = vmax.xlane.f32.xlu0 %v2528
        %v3071 = vpop.xlane.xlu0 %3070
        %3072 = vmax.xlane.f32.xlu0 %v2531
        %v3073 = vpop.xlane.xlu0 %3072
        %3074 = vmax.xlane.f32.xlu0 %v2536
        %v3075 = vpop.xlane.xlu0 %3074
        %3076 = vmax.xlane.f32.xlu0 %v2539
        %v3077 = vpop.xlane.xlu0 %3076
        %3078 = vmax.xlane.f32.xlu0 %v2544
        %v3079 = vpop.xlane.xlu0 %3078
        %3080 = vmax.xlane.f32.xlu0 %v2547
        %v3081 = vpop.xlane.xlu0 %3080
        %3082 = vmax.xlane.f32.xlu0 %v2552
        %v3083 = vpop.xlane.xlu0 %3082
        %3084 = vmax.xlane.f32.xlu0 %v2555
        %v3085 = vpop.xlane.xlu0 %3084
        %3086 = vmax.xlane.f32.xlu0 %v2560
        %v3087 = vpop.xlane.xlu0 %3086
        %3088 = vmax.xlane.f32.xlu0 %v2563
        %v3089 = vpop.xlane.xlu0 %3088
        %3090 = vmax.xlane.f32.xlu0 %v2568
        %v3091 = vpop.xlane.xlu0 %3090
        %3092 = vmax.xlane.f32.xlu0 %v2571
        %v3093 = vpop.xlane.xlu0 %3092
        %3094 = vmax.xlane.f32.xlu0 %v2576
        %v3095 = vpop.xlane.xlu0 %3094
        %3096 = vmax.xlane.f32.xlu0 %v2579
        %v3097 = vpop.xlane.xlu0 %3096
        %3098 = vmax.xlane.f32.xlu0 %v2584
        %v3099 = vpop.xlane.xlu0 %3098
        %3100 = vmax.xlane.f32.xlu0 %v2587
        %v3101 = vpop.xlane.xlu0 %3100
        %3102 = vmax.xlane.f32.xlu0 %v2592
        %v3103 = vpop.xlane.xlu0 %3102
        %3104 = vmax.xlane.f32.xlu0 %v2595
        %v3105 = vpop.xlane.xlu0 %3104
        %3106 = vmax.xlane.f32.xlu0 %v2600
        %v3107 = vpop.xlane.xlu0 %3106
        %3108 = vmax.xlane.f32.xlu0 %v2603
        %v3109 = vpop.xlane.xlu0 %3108
        %3110 = vmax.xlane.f32.xlu0 %v2608
        %v3111 = vpop.xlane.xlu0 %3110
        %3112 = vmax.xlane.f32.xlu0 %v2611
        %v3113 = vpop.xlane.xlu0 %3112
        %3114 = vmax.xlane.f32.xlu0 %v2616
        %v3115 = vpop.xlane.xlu0 %3114
        %3116 = vmax.xlane.f32.xlu0 %v2619
        %v3117 = vpop.xlane.xlu0 %3116
        %3118 = vmax.xlane.f32.xlu0 %v2624
        %v3119 = vpop.xlane.xlu0 %3118
        %3120 = vmax.xlane.f32.xlu0 %v2627
        %v3121 = vpop.xlane.xlu0 %3120
        %3122 = vmax.xlane.f32.xlu0 %v2632
        %v3123 = vpop.xlane.xlu0 %3122
        %3124 = vmax.xlane.f32.xlu0 %v2635
        %v3125 = vpop.xlane.xlu0 %3124
        %3126 = vmax.xlane.f32.xlu0 %v2640
        %v3127 = vpop.xlane.xlu0 %3126
        %3128 = vmax.xlane.f32.xlu0 %v2643
        %v3129 = vpop.xlane.xlu0 %3128
        %3130 = vmax.xlane.f32.xlu0 %v2648
        %v3131 = vpop.xlane.xlu0 %3130
        %3132 = vmax.xlane.f32.xlu0 %v2651
        %v3133 = vpop.xlane.xlu0 %3132
        %3134 = vmax.xlane.f32.xlu0 %v2656
        %v3135 = vpop.xlane.xlu0 %3134
        %3136 = vmax.xlane.f32.xlu0 %v2659
        %v3137 = vpop.xlane.xlu0 %3136
        %3138 = vmax.xlane.f32.xlu0 %v2664
        %v3139 = vpop.xlane.xlu0 %3138
        %3140 = vmax.xlane.f32.xlu0 %v2667
        %v3141 = vpop.xlane.xlu0 %3140
        %3142 = vmax.xlane.f32.xlu0 %v2672
        %v3143 = vpop.xlane.xlu0 %3142
        %3144 = vmax.xlane.f32.xlu0 %v2675
        %v3145 = vpop.xlane.xlu0 %3144
        %3146 = vmax.xlane.f32.xlu0 %v2680
        %v3147 = vpop.xlane.xlu0 %3146
        %3148 = vmax.xlane.f32.xlu0 %v2683
        %v3149 = vpop.xlane.xlu0 %3148
        %3150 = vmax.xlane.f32.xlu0 %v2688
        %v3151 = vpop.xlane.xlu0 %3150
        %3152 = vmax.xlane.f32.xlu0 %v2691
        %v3153 = vpop.xlane.xlu0 %3152
        %3154 = vmax.xlane.f32.xlu0 %v2696
        %v3155 = vpop.xlane.xlu0 %3154
        %3156 = vmax.xlane.f32.xlu0 %v2699
        %v3157 = vpop.xlane.xlu0 %3156
        %3158 = vmax.xlane.f32.xlu0 %v2704
        %v3159 = vpop.xlane.xlu0 %3158
        %3160 = vmax.xlane.f32.xlu0 %v2707
        %v3161 = vpop.xlane.xlu0 %3160
        %3162 = vmax.xlane.f32.xlu0 %v2712
        %v3163 = vpop.xlane.xlu0 %3162
        %3164 = vmax.xlane.f32.xlu0 %v2715
        %v3165 = vpop.xlane.xlu0 %3164
        %3166 = vmax.xlane.f32.xlu0 %v2720
        %v3167 = vpop.xlane.xlu0 %3166
        %3168 = vmax.xlane.f32.xlu0 %v2723
        %v3169 = vpop.xlane.xlu0 %3168
        %3170 = vmax.xlane.f32.xlu0 %v2728
        %v3171 = vpop.xlane.xlu0 %3170
        %3172 = vmax.xlane.f32.xlu0 %v2731
        %v3173 = vpop.xlane.xlu0 %3172
        %3174 = vmax.xlane.f32.xlu0 %v2736
        %v3175 = vpop.xlane.xlu0 %3174
        %3176 = vmax.xlane.f32.xlu0 %v2739
        %v3177 = vpop.xlane.xlu0 %3176
        %3178 = vmax.xlane.f32.xlu0 %v2744
        %v3179 = vpop.xlane.xlu0 %3178
        %3180 = vmax.xlane.f32.xlu0 %v2747
        %v3181 = vpop.xlane.xlu0 %3180
        %3182 = vmax.xlane.f32.xlu0 %v2752
        %v3183 = vpop.xlane.xlu0 %3182
        %3184 = vmax.xlane.f32.xlu0 %v2755
        %v3185 = vpop.xlane.xlu0 %3184
        %3186 = vmax.xlane.f32.xlu0 %v2760
        %v3187 = vpop.xlane.xlu0 %3186
        %3188 = vmax.xlane.f32.xlu0 %v2763
        %v3189 = vpop.xlane.xlu0 %3188
        %3190 = vmax.xlane.f32.xlu0 %v2768
        %v3191 = vpop.xlane.xlu0 %3190
        %3192 = vmax.xlane.f32.xlu0 %v2771
        %v3193 = vpop.xlane.xlu0 %3192
        %3194 = vmax.xlane.f32.xlu0 %v2776
        %v3195 = vpop.xlane.xlu0 %3194
        %3196 = vmax.xlane.f32.xlu0 %v2779
        %v3197 = vpop.xlane.xlu0 %3196
        %3198 = vmax.xlane.f32.xlu0 %v2784
        %v3199 = vpop.xlane.xlu0 %3198
        %3200 = vmax.xlane.f32.xlu0 %v2787
        %v3201 = vpop.xlane.xlu0 %3200
        %3202 = vmax.xlane.f32.xlu0 %v2792
        %v3203 = vpop.xlane.xlu0 %3202
        %3204 = vmax.xlane.f32.xlu0 %v2795
        %v3205 = vpop.xlane.xlu0 %3204
        %3206 = vmax.xlane.f32.xlu0 %v2800
        %v3207 = vpop.xlane.xlu0 %3206
        %3208 = vmax.xlane.f32.xlu0 %v2803
        %v3209 = vpop.xlane.xlu0 %3208
        %3210 = vmax.xlane.f32.xlu0 %v2808
        %v3211 = vpop.xlane.xlu0 %3210
        %3212 = vmax.xlane.f32.xlu0 %v2811
        %v3213 = vpop.xlane.xlu0 %3212
        %3214 = vmax.xlane.f32.xlu0 %v2816
        %v3215 = vpop.xlane.xlu0 %3214
        %3216 = vmax.xlane.f32.xlu0 %v2819
        %v3217 = vpop.xlane.xlu0 %3216
        %3218 = vmax.xlane.f32.xlu0 %v2824
        %v3219 = vpop.xlane.xlu0 %3218
        %3220 = vmax.xlane.f32.xlu0 %v2827
        %v3221 = vpop.xlane.xlu0 %3220
        %3222 = vmax.xlane.f32.xlu0 %v2832
        %v3223 = vpop.xlane.xlu0 %3222
        %3224 = vmax.xlane.f32.xlu0 %v2835
        %v3225 = vpop.xlane.xlu0 %3224
        %3226 = vmax.xlane.f32.xlu0 %v2840
        %v3227 = vpop.xlane.xlu0 %3226
        %3228 = vmax.xlane.f32.xlu0 %v2843
        %v3229 = vpop.xlane.xlu0 %3228
        %p3230 = scmp.eq.s32.totalorder %s29, 0
        // Predicated region
        $region53: #{_forward_jit.6} parent=51 // pred_check
          %p3231 = pneg %p3230
        $region54: #{_forward_jit.6} parent=51 // pred_check_branch
          %3233 = sbr.rel (%p3231) target = $region56
        $region55: #{_forward_jit.6} parent=51 // pred_region
          %vm3234 = vcmask 7168
          %3235 = vst.msk [vmem:[%s379] sm:$0xff] %vm3234, %v2975
          %3236 = vst.msk [vmem:[%s379 + $0x8] sm:$0xff] %vm3234, %v2977
          %3237 = vst.msk [vmem:[%s379 + $0x10] sm:$0xff] %vm3234, %v2979
          %3238 = vst.msk [vmem:[%s379 + $0x18] sm:$0xff] %vm3234, %v2981
          %3239 = vst.msk [vmem:[%s379 + $0x20] sm:$0xff] %vm3234, %v2983
          %3240 = vst.msk [vmem:[%s379 + $0x28] sm:$0xff] %vm3234, %v2985
          %3241 = vst.msk [vmem:[%s379 + $0x30] sm:$0xff] %vm3234, %v2987
          %3242 = vst.msk [vmem:[%s379 + $0x38] sm:$0xff] %vm3234, %v2989
          %3243 = vst.msk [vmem:[%s379 + $0x40] sm:$0xff] %vm3234, %v2991
          %3244 = vst.msk [vmem:[%s379 + $0x48] sm:$0xff] %vm3234, %v2993
          %3245 = vst.msk [vmem:[%s379 + $0x50] sm:$0xff] %vm3234, %v2995
          %3246 = vst.msk [vmem:[%s379 + $0x58] sm:$0xff] %vm3234, %v2997
          %3247 = vst.msk [vmem:[%s379 + $0x60] sm:$0xff] %vm3234, %v2999
          %3248 = vst.msk [vmem:[%s379 + $0x68] sm:$0xff] %vm3234, %v3001
          %3249 = vst.msk [vmem:[%s379 + $0x70] sm:$0xff] %vm3234, %v3003
          %3250 = vst.msk [vmem:[%s379 + $0x78] sm:$0xff] %vm3234, %v3005
          %3251 = vst.msk [vmem:[%s379 + $0x80] sm:$0xff] %vm3234, %v3007
          %3252 = vst.msk [vmem:[%s379 + $0x88] sm:$0xff] %vm3234, %v3009
          %3253 = vst.msk [vmem:[%s379 + $0x90] sm:$0xff] %vm3234, %v3011
          %3254 = vst.msk [vmem:[%s379 + $0x98] sm:$0xff] %vm3234, %v3013
          %3255 = vst.msk [vmem:[%s379 + $0xa0] sm:$0xff] %vm3234, %v3015
          %3256 = vst.msk [vmem:[%s379 + $0xa8] sm:$0xff] %vm3234, %v3017
          %3257 = vst.msk [vmem:[%s379 + $0xb0] sm:$0xff] %vm3234, %v3019
          %3258 = vst.msk [vmem:[%s379 + $0xb8] sm:$0xff] %vm3234, %v3021
          %3259 = vst.msk [vmem:[%s379 + $0xc0] sm:$0xff] %vm3234, %v3023
          %3260 = vst.msk [vmem:[%s379 + $0xc8] sm:$0xff] %vm3234, %v3025
          %3261 = vst.msk [vmem:[%s379 + $0xd0] sm:$0xff] %vm3234, %v3027
          %3262 = vst.msk [vmem:[%s379 + $0xd8] sm:$0xff] %vm3234, %v3029
          %3263 = vst.msk [vmem:[%s379 + $0xe0] sm:$0xff] %vm3234, %v3031
          %3264 = vst.msk [vmem:[%s379 + $0xe8] sm:$0xff] %vm3234, %v3033
          %3265 = vst.msk [vmem:[%s379 + $0xf0] sm:$0xff] %vm3234, %v3035
          %3266 = vst.msk [vmem:[%s379 + $0xf8] sm:$0xff] %vm3234, %v3037
          %3267 = vst.msk [vmem:[%s379 + $0x100] sm:$0xff] %vm3234, %v3039
          %3268 = vst.msk [vmem:[%s379 + $0x108] sm:$0xff] %vm3234, %v3041
          %3269 = vst.msk [vmem:[%s379 + $0x110] sm:$0xff] %vm3234, %v3043
          %3270 = vst.msk [vmem:[%s379 + $0x118] sm:$0xff] %vm3234, %v3045
          %3271 = vst.msk [vmem:[%s379 + $0x120] sm:$0xff] %vm3234, %v3047
          %3272 = vst.msk [vmem:[%s379 + $0x128] sm:$0xff] %vm3234, %v3049
          %3273 = vst.msk [vmem:[%s379 + $0x130] sm:$0xff] %vm3234, %v3051
          %3274 = vst.msk [vmem:[%s379 + $0x138] sm:$0xff] %vm3234, %v3053
          %3275 = vst.msk [vmem:[%s379 + $0x140] sm:$0xff] %vm3234, %v3055
          %3276 = vst.msk [vmem:[%s379 + $0x148] sm:$0xff] %vm3234, %v3057
          %3277 = vst.msk [vmem:[%s379 + $0x150] sm:$0xff] %vm3234, %v3059
          %3278 = vst.msk [vmem:[%s379 + $0x158] sm:$0xff] %vm3234, %v3061
          %3279 = vst.msk [vmem:[%s379 + $0x160] sm:$0xff] %vm3234, %v3063
          %3280 = vst.msk [vmem:[%s379 + $0x168] sm:$0xff] %vm3234, %v3065
          %3281 = vst.msk [vmem:[%s379 + $0x170] sm:$0xff] %vm3234, %v3067
          %3282 = vst.msk [vmem:[%s379 + $0x178] sm:$0xff] %vm3234, %v3069
          %3283 = vst.msk [vmem:[%s379 + $0x180] sm:$0xff] %vm3234, %v3071
          %3284 = vst.msk [vmem:[%s379 + $0x188] sm:$0xff] %vm3234, %v3073
          %3285 = vst.msk [vmem:[%s379 + $0x190] sm:$0xff] %vm3234, %v3075
          %3286 = vst.msk [vmem:[%s379 + $0x198] sm:$0xff] %vm3234, %v3077
          %3287 = vst.msk [vmem:[%s379 + $0x1a0] sm:$0xff] %vm3234, %v3079
          %3288 = vst.msk [vmem:[%s379 + $0x1a8] sm:$0xff] %vm3234, %v3081
          %3289 = vst.msk [vmem:[%s379 + $0x1b0] sm:$0xff] %vm3234, %v3083
          %3290 = vst.msk [vmem:[%s379 + $0x1b8] sm:$0xff] %vm3234, %v3085
          %3291 = vst.msk [vmem:[%s379 + $0x1c0] sm:$0xff] %vm3234, %v3087
          %3292 = vst.msk [vmem:[%s379 + $0x1c8] sm:$0xff] %vm3234, %v3089
          %3293 = vst.msk [vmem:[%s379 + $0x1d0] sm:$0xff] %vm3234, %v3091
          %3294 = vst.msk [vmem:[%s379 + $0x1d8] sm:$0xff] %vm3234, %v3093
          %3295 = vst.msk [vmem:[%s379 + $0x1e0] sm:$0xff] %vm3234, %v3095
          %3296 = vst.msk [vmem:[%s379 + $0x1e8] sm:$0xff] %vm3234, %v3097
          %3297 = vst.msk [vmem:[%s379 + $0x1f0] sm:$0xff] %vm3234, %v3099
          %3298 = vst.msk [vmem:[%s379 + $0x1f8] sm:$0xff] %vm3234, %v3101
          %3299 = vst.msk [vmem:[%s379 + $0x200] sm:$0xff] %vm3234, %v3103
          %3300 = vst.msk [vmem:[%s379 + $0x208] sm:$0xff] %vm3234, %v3105
          %3301 = vst.msk [vmem:[%s379 + $0x210] sm:$0xff] %vm3234, %v3107
          %3302 = vst.msk [vmem:[%s379 + $0x218] sm:$0xff] %vm3234, %v3109
          %3303 = vst.msk [vmem:[%s379 + $0x220] sm:$0xff] %vm3234, %v3111
          %3304 = vst.msk [vmem:[%s379 + $0x228] sm:$0xff] %vm3234, %v3113
          %3305 = vst.msk [vmem:[%s379 + $0x230] sm:$0xff] %vm3234, %v3115
          %3306 = vst.msk [vmem:[%s379 + $0x238] sm:$0xff] %vm3234, %v3117
          %3307 = vst.msk [vmem:[%s379 + $0x240] sm:$0xff] %vm3234, %v3119
          %3308 = vst.msk [vmem:[%s379 + $0x248] sm:$0xff] %vm3234, %v3121
          %3309 = vst.msk [vmem:[%s379 + $0x250] sm:$0xff] %vm3234, %v3123
          %3310 = vst.msk [vmem:[%s379 + $0x258] sm:$0xff] %vm3234, %v3125
          %3311 = vst.msk [vmem:[%s379 + $0x260] sm:$0xff] %vm3234, %v3127
          %3312 = vst.msk [vmem:[%s379 + $0x268] sm:$0xff] %vm3234, %v3129
          %3313 = vst.msk [vmem:[%s379 + $0x270] sm:$0xff] %vm3234, %v3131
          %3314 = vst.msk [vmem:[%s379 + $0x278] sm:$0xff] %vm3234, %v3133
          %3315 = vst.msk [vmem:[%s379 + $0x280] sm:$0xff] %vm3234, %v3135
          %3316 = vst.msk [vmem:[%s379 + $0x288] sm:$0xff] %vm3234, %v3137
          %3317 = vst.msk [vmem:[%s379 + $0x290] sm:$0xff] %vm3234, %v3139
          %3318 = vst.msk [vmem:[%s379 + $0x298] sm:$0xff] %vm3234, %v3141
          %3319 = vst.msk [vmem:[%s379 + $0x2a0] sm:$0xff] %vm3234, %v3143
          %3320 = vst.msk [vmem:[%s379 + $0x2a8] sm:$0xff] %vm3234, %v3145
          %3321 = vst.msk [vmem:[%s379 + $0x2b0] sm:$0xff] %vm3234, %v3147
          %3322 = vst.msk [vmem:[%s379 + $0x2b8] sm:$0xff] %vm3234, %v3149
          %3323 = vst.msk [vmem:[%s379 + $0x2c0] sm:$0xff] %vm3234, %v3151
          %3324 = vst.msk [vmem:[%s379 + $0x2c8] sm:$0xff] %vm3234, %v3153
          %3325 = vst.msk [vmem:[%s379 + $0x2d0] sm:$0xff] %vm3234, %v3155
          %3326 = vst.msk [vmem:[%s379 + $0x2d8] sm:$0xff] %vm3234, %v3157
          %3327 = vst.msk [vmem:[%s379 + $0x2e0] sm:$0xff] %vm3234, %v3159
          %3328 = vst.msk [vmem:[%s379 + $0x2e8] sm:$0xff] %vm3234, %v3161
          %3329 = vst.msk [vmem:[%s379 + $0x2f0] sm:$0xff] %vm3234, %v3163
          %3330 = vst.msk [vmem:[%s379 + $0x2f8] sm:$0xff] %vm3234, %v3165
          %3331 = vst.msk [vmem:[%s379 + $0x300] sm:$0xff] %vm3234, %v3167
          %3332 = vst.msk [vmem:[%s379 + $0x308] sm:$0xff] %vm3234, %v3169
          %3333 = vst.msk [vmem:[%s379 + $0x310] sm:$0xff] %vm3234, %v3171
          %3334 = vst.msk [vmem:[%s379 + $0x318] sm:$0xff] %vm3234, %v3173
          %3335 = vst.msk [vmem:[%s379 + $0x320] sm:$0xff] %vm3234, %v3175
          %3336 = vst.msk [vmem:[%s379 + $0x328] sm:$0xff] %vm3234, %v3177
          %3337 = vst.msk [vmem:[%s379 + $0x330] sm:$0xff] %vm3234, %v3179
          %3338 = vst.msk [vmem:[%s379 + $0x338] sm:$0xff] %vm3234, %v3181
          %3339 = vst.msk [vmem:[%s379 + $0x340] sm:$0xff] %vm3234, %v3183
          %3340 = vst.msk [vmem:[%s379 + $0x348] sm:$0xff] %vm3234, %v3185
          %3341 = vst.msk [vmem:[%s379 + $0x350] sm:$0xff] %vm3234, %v3187
          %3342 = vst.msk [vmem:[%s379 + $0x358] sm:$0xff] %vm3234, %v3189
          %3343 = vst.msk [vmem:[%s379 + $0x360] sm:$0xff] %vm3234, %v3191
          %3344 = vst.msk [vmem:[%s379 + $0x368] sm:$0xff] %vm3234, %v3193
          %3345 = vst.msk [vmem:[%s379 + $0x370] sm:$0xff] %vm3234, %v3195
          %3346 = vst.msk [vmem:[%s379 + $0x378] sm:$0xff] %vm3234, %v3197
          %3347 = vst.msk [vmem:[%s379 + $0x380] sm:$0xff] %vm3234, %v3199
          %3348 = vst.msk [vmem:[%s379 + $0x388] sm:$0xff] %vm3234, %v3201
          %3349 = vst.msk [vmem:[%s379 + $0x390] sm:$0xff] %vm3234, %v3203
          %3350 = vst.msk [vmem:[%s379 + $0x398] sm:$0xff] %vm3234, %v3205
          %3351 = vst.msk [vmem:[%s379 + $0x3a0] sm:$0xff] %vm3234, %v3207
          %3352 = vst.msk [vmem:[%s379 + $0x3a8] sm:$0xff] %vm3234, %v3209
          %3353 = vst.msk [vmem:[%s379 + $0x3b0] sm:$0xff] %vm3234, %v3211
          %3354 = vst.msk [vmem:[%s379 + $0x3b8] sm:$0xff] %vm3234, %v3213
          %3355 = vst.msk [vmem:[%s379 + $0x3c0] sm:$0xff] %vm3234, %v3215
          %3356 = vst.msk [vmem:[%s379 + $0x3c8] sm:$0xff] %vm3234, %v3217
          %3357 = vst.msk [vmem:[%s379 + $0x3d0] sm:$0xff] %vm3234, %v3219
          %3358 = vst.msk [vmem:[%s379 + $0x3d8] sm:$0xff] %vm3234, %v3221
          %3359 = vst.msk [vmem:[%s379 + $0x3e0] sm:$0xff] %vm3234, %v3223
          %3360 = vst.msk [vmem:[%s379 + $0x3e8] sm:$0xff] %vm3234, %v3225
          %3361 = vst.msk [vmem:[%s379 + $0x3f0] sm:$0xff] %vm3234, %v3227
          %3362 = vst.msk [vmem:[%s379 + $0x3f8] sm:$0xff] %vm3234, %v3229
        $region56: #{_forward_jit.6} parent=51 // pred_fallthru
          _
        %p3363 = scmp.gt.s32.totalorder %s29, 0
        // Predicated region
        $region57: #{_forward_jit.6} parent=51 // pred_check
          %p3364 = pneg %p3363
        $region58: #{_forward_jit.6} parent=51 // pred_check_branch
          %3366 = sbr.rel (%p3364) target = $region60
        $region59: #{_forward_jit.6} parent=51 // pred_region
          %v3367 = vld [vmem:[%s379] sm:$0xff]
          %v3368 = vld [vmem:[%s379 + $0x8] sm:$0xff]
          %v3369 = vld [vmem:[%s379 + $0x10] sm:$0xff]
          %v3370 = vld [vmem:[%s379 + $0x18] sm:$0xff]
          %v3371 = vld [vmem:[%s379 + $0x20] sm:$0xff]
          %v3372 = vld [vmem:[%s379 + $0x28] sm:$0xff]
          %v3373 = vld [vmem:[%s379 + $0x30] sm:$0xff]
          %v3374 = vld [vmem:[%s379 + $0x38] sm:$0xff]
          %v3375 = vld [vmem:[%s379 + $0x40] sm:$0xff]
          %v3376 = vld [vmem:[%s379 + $0x48] sm:$0xff]
          %v3377 = vld [vmem:[%s379 + $0x50] sm:$0xff]
          %v3378 = vld [vmem:[%s379 + $0x58] sm:$0xff]
          %v3379 = vld [vmem:[%s379 + $0x60] sm:$0xff]
          %v3380 = vld [vmem:[%s379 + $0x68] sm:$0xff]
          %v3381 = vld [vmem:[%s379 + $0x70] sm:$0xff]
          %v3382 = vld [vmem:[%s379 + $0x78] sm:$0xff]
          %v3383 = vld [vmem:[%s379 + $0x80] sm:$0xff]
          %v3384 = vld [vmem:[%s379 + $0x88] sm:$0xff]
          %v3385 = vld [vmem:[%s379 + $0x90] sm:$0xff]
          %v3386 = vld [vmem:[%s379 + $0x98] sm:$0xff]
          %v3387 = vld [vmem:[%s379 + $0xa0] sm:$0xff]
          %v3388 = vld [vmem:[%s379 + $0xa8] sm:$0xff]
          %v3389 = vld [vmem:[%s379 + $0xb0] sm:$0xff]
          %v3390 = vld [vmem:[%s379 + $0xb8] sm:$0xff]
          %v3391 = vld [vmem:[%s379 + $0xc0] sm:$0xff]
          %v3392 = vld [vmem:[%s379 + $0xc8] sm:$0xff]
          %v3393 = vld [vmem:[%s379 + $0xd0] sm:$0xff]
          %v3394 = vld [vmem:[%s379 + $0xd8] sm:$0xff]
          %v3395 = vld [vmem:[%s379 + $0xe0] sm:$0xff]
          %v3396 = vld [vmem:[%s379 + $0xe8] sm:$0xff]
          %v3397 = vld [vmem:[%s379 + $0xf0] sm:$0xff]
          %v3398 = vld [vmem:[%s379 + $0xf8] sm:$0xff]
          %v3399 = vld [vmem:[%s379 + $0x100] sm:$0xff]
          %v3400 = vld [vmem:[%s379 + $0x108] sm:$0xff]
          %v3401 = vld [vmem:[%s379 + $0x110] sm:$0xff]
          %v3402 = vld [vmem:[%s379 + $0x118] sm:$0xff]
          %v3403 = vld [vmem:[%s379 + $0x120] sm:$0xff]
          %v3404 = vld [vmem:[%s379 + $0x128] sm:$0xff]
          %v3405 = vld [vmem:[%s379 + $0x130] sm:$0xff]
          %v3406 = vld [vmem:[%s379 + $0x138] sm:$0xff]
          %v3407 = vld [vmem:[%s379 + $0x140] sm:$0xff]
          %v3408 = vld [vmem:[%s379 + $0x148] sm:$0xff]
          %v3409 = vld [vmem:[%s379 + $0x150] sm:$0xff]
          %v3410 = vld [vmem:[%s379 + $0x158] sm:$0xff]
          %v3411 = vld [vmem:[%s379 + $0x160] sm:$0xff]
          %v3412 = vld [vmem:[%s379 + $0x168] sm:$0xff]
          %v3413 = vld [vmem:[%s379 + $0x170] sm:$0xff]
          %v3414 = vld [vmem:[%s379 + $0x178] sm:$0xff]
          %v3415 = vld [vmem:[%s379 + $0x180] sm:$0xff]
          %v3416 = vld [vmem:[%s379 + $0x188] sm:$0xff]
          %v3417 = vld [vmem:[%s379 + $0x190] sm:$0xff]
          %v3418 = vld [vmem:[%s379 + $0x198] sm:$0xff]
          %v3419 = vld [vmem:[%s379 + $0x1a0] sm:$0xff]
          %v3420 = vld [vmem:[%s379 + $0x1a8] sm:$0xff]
          %v3421 = vld [vmem:[%s379 + $0x1b0] sm:$0xff]
          %v3422 = vld [vmem:[%s379 + $0x1b8] sm:$0xff]
          %v3423 = vld [vmem:[%s379 + $0x1c0] sm:$0xff]
          %v3424 = vld [vmem:[%s379 + $0x1c8] sm:$0xff]
          %v3425 = vld [vmem:[%s379 + $0x1d0] sm:$0xff]
          %v3426 = vld [vmem:[%s379 + $0x1d8] sm:$0xff]
          %v3427 = vld [vmem:[%s379 + $0x1e0] sm:$0xff]
          %v3428 = vld [vmem:[%s379 + $0x1e8] sm:$0xff]
          %v3429 = vld [vmem:[%s379 + $0x1f0] sm:$0xff]
          %v3430 = vld [vmem:[%s379 + $0x1f8] sm:$0xff]
          %v3431 = vld [vmem:[%s379 + $0x200] sm:$0xff]
          %v3432 = vld [vmem:[%s379 + $0x208] sm:$0xff]
          %v3433 = vld [vmem:[%s379 + $0x210] sm:$0xff]
          %v3434 = vld [vmem:[%s379 + $0x218] sm:$0xff]
          %v3435 = vld [vmem:[%s379 + $0x220] sm:$0xff]
          %v3436 = vld [vmem:[%s379 + $0x228] sm:$0xff]
          %v3437 = vld [vmem:[%s379 + $0x230] sm:$0xff]
          %v3438 = vld [vmem:[%s379 + $0x238] sm:$0xff]
          %v3439 = vld [vmem:[%s379 + $0x240] sm:$0xff]
          %v3440 = vld [vmem:[%s379 + $0x248] sm:$0xff]
          %v3441 = vld [vmem:[%s379 + $0x250] sm:$0xff]
          %v3442 = vld [vmem:[%s379 + $0x258] sm:$0xff]
          %v3443 = vld [vmem:[%s379 + $0x260] sm:$0xff]
          %v3444 = vld [vmem:[%s379 + $0x268] sm:$0xff]
          %v3445 = vld [vmem:[%s379 + $0x270] sm:$0xff]
          %v3446 = vld [vmem:[%s379 + $0x278] sm:$0xff]
          %v3447 = vld [vmem:[%s379 + $0x280] sm:$0xff]
          %v3448 = vld [vmem:[%s379 + $0x288] sm:$0xff]
          %v3449 = vld [vmem:[%s379 + $0x290] sm:$0xff]
          %v3450 = vld [vmem:[%s379 + $0x298] sm:$0xff]
          %v3451 = vld [vmem:[%s379 + $0x2a0] sm:$0xff]
          %v3452 = vld [vmem:[%s379 + $0x2a8] sm:$0xff]
          %v3453 = vld [vmem:[%s379 + $0x2b0] sm:$0xff]
          %v3454 = vld [vmem:[%s379 + $0x2b8] sm:$0xff]
          %v3455 = vld [vmem:[%s379 + $0x2c0] sm:$0xff]
          %v3456 = vld [vmem:[%s379 + $0x2c8] sm:$0xff]
          %v3457 = vld [vmem:[%s379 + $0x2d0] sm:$0xff]
          %v3458 = vld [vmem:[%s379 + $0x2d8] sm:$0xff]
          %v3459 = vld [vmem:[%s379 + $0x2e0] sm:$0xff]
          %v3460 = vld [vmem:[%s379 + $0x2e8] sm:$0xff]
          %v3461 = vld [vmem:[%s379 + $0x2f0] sm:$0xff]
          %v3462 = vld [vmem:[%s379 + $0x2f8] sm:$0xff]
          %v3463 = vld [vmem:[%s379 + $0x300] sm:$0xff]
          %v3464 = vld [vmem:[%s379 + $0x308] sm:$0xff]
          %v3465 = vld [vmem:[%s379 + $0x310] sm:$0xff]
          %v3466 = vld [vmem:[%s379 + $0x318] sm:$0xff]
          %v3467 = vld [vmem:[%s379 + $0x320] sm:$0xff]
          %v3468 = vld [vmem:[%s379 + $0x328] sm:$0xff]
          %v3469 = vld [vmem:[%s379 + $0x330] sm:$0xff]
          %v3470 = vld [vmem:[%s379 + $0x338] sm:$0xff]
          %v3471 = vld [vmem:[%s379 + $0x340] sm:$0xff]
          %v3472 = vld [vmem:[%s379 + $0x348] sm:$0xff]
          %v3473 = vld [vmem:[%s379 + $0x350] sm:$0xff]
          %v3474 = vld [vmem:[%s379 + $0x358] sm:$0xff]
          %v3475 = vld [vmem:[%s379 + $0x360] sm:$0xff]
          %v3476 = vld [vmem:[%s379 + $0x368] sm:$0xff]
          %v3477 = vld [vmem:[%s379 + $0x370] sm:$0xff]
          %v3478 = vld [vmem:[%s379 + $0x378] sm:$0xff]
          %v3479 = vld [vmem:[%s379 + $0x380] sm:$0xff]
          %v3480 = vld [vmem:[%s379 + $0x388] sm:$0xff]
          %v3481 = vld [vmem:[%s379 + $0x390] sm:$0xff]
          %v3482 = vld [vmem:[%s379 + $0x398] sm:$0xff]
          %v3483 = vld [vmem:[%s379 + $0x3a0] sm:$0xff]
          %v3484 = vld [vmem:[%s379 + $0x3a8] sm:$0xff]
          %v3485 = vld [vmem:[%s379 + $0x3b0] sm:$0xff]
          %v3486 = vld [vmem:[%s379 + $0x3b8] sm:$0xff]
          %v3487 = vld [vmem:[%s379 + $0x3c0] sm:$0xff]
          %v3488 = vld [vmem:[%s379 + $0x3c8] sm:$0xff]
          %v3489 = vld [vmem:[%s379 + $0x3d0] sm:$0xff]
          %v3490 = vld [vmem:[%s379 + $0x3d8] sm:$0xff]
          %v3491 = vld [vmem:[%s379 + $0x3e0] sm:$0xff]
          %v3492 = vld [vmem:[%s379 + $0x3e8] sm:$0xff]
          %v3493 = vld [vmem:[%s379 + $0x3f0] sm:$0xff]
          %v3494 = vld [vmem:[%s379 + $0x3f8] sm:$0xff]
          %v3495 = vmax.f32 %v3367, %v2975
          %v3496 = vmax.f32 %v3368, %v2977
          %v3497 = vmax.f32 %v3369, %v2979
          %v3498 = vmax.f32 %v3370, %v2981
          %v3499 = vmax.f32 %v3371, %v2983
          %v3500 = vmax.f32 %v3372, %v2985
          %v3501 = vmax.f32 %v3373, %v2987
          %v3502 = vmax.f32 %v3374, %v2989
          %v3503 = vmax.f32 %v3375, %v2991
          %v3504 = vmax.f32 %v3376, %v2993
          %v3505 = vmax.f32 %v3377, %v2995
          %v3506 = vmax.f32 %v3378, %v2997
          %v3507 = vmax.f32 %v3379, %v2999
          %v3508 = vmax.f32 %v3380, %v3001
          %v3509 = vmax.f32 %v3381, %v3003
          %v3510 = vmax.f32 %v3382, %v3005
          %v3511 = vmax.f32 %v3383, %v3007
          %v3512 = vmax.f32 %v3384, %v3009
          %v3513 = vmax.f32 %v3385, %v3011
          %v3514 = vmax.f32 %v3386, %v3013
          %v3515 = vmax.f32 %v3387, %v3015
          %v3516 = vmax.f32 %v3388, %v3017
          %v3517 = vmax.f32 %v3389, %v3019
          %v3518 = vmax.f32 %v3390, %v3021
          %v3519 = vmax.f32 %v3391, %v3023
          %v3520 = vmax.f32 %v3392, %v3025
          %v3521 = vmax.f32 %v3393, %v3027
          %v3522 = vmax.f32 %v3394, %v3029
          %v3523 = vmax.f32 %v3395, %v3031
          %v3524 = vmax.f32 %v3396, %v3033
          %v3525 = vmax.f32 %v3397, %v3035
          %v3526 = vmax.f32 %v3398, %v3037
          %v3527 = vmax.f32 %v3399, %v3039
          %v3528 = vmax.f32 %v3400, %v3041
          %v3529 = vmax.f32 %v3401, %v3043
          %v3530 = vmax.f32 %v3402, %v3045
          %v3531 = vmax.f32 %v3403, %v3047
          %v3532 = vmax.f32 %v3404, %v3049
          %v3533 = vmax.f32 %v3405, %v3051
          %v3534 = vmax.f32 %v3406, %v3053
          %v3535 = vmax.f32 %v3407, %v3055
          %v3536 = vmax.f32 %v3408, %v3057
          %v3537 = vmax.f32 %v3409, %v3059
          %v3538 = vmax.f32 %v3410, %v3061
          %v3539 = vmax.f32 %v3411, %v3063
          %v3540 = vmax.f32 %v3412, %v3065
          %v3541 = vmax.f32 %v3413, %v3067
          %v3542 = vmax.f32 %v3414, %v3069
          %v3543 = vmax.f32 %v3415, %v3071
          %v3544 = vmax.f32 %v3416, %v3073
          %v3545 = vmax.f32 %v3417, %v3075
          %v3546 = vmax.f32 %v3418, %v3077
          %v3547 = vmax.f32 %v3419, %v3079
          %v3548 = vmax.f32 %v3420, %v3081
          %v3549 = vmax.f32 %v3421, %v3083
          %v3550 = vmax.f32 %v3422, %v3085
          %v3551 = vmax.f32 %v3423, %v3087
          %v3552 = vmax.f32 %v3424, %v3089
          %v3553 = vmax.f32 %v3425, %v3091
          %v3554 = vmax.f32 %v3426, %v3093
          %v3555 = vmax.f32 %v3427, %v3095
          %v3556 = vmax.f32 %v3428, %v3097
          %v3557 = vmax.f32 %v3429, %v3099
          %v3558 = vmax.f32 %v3430, %v3101
          %v3559 = vmax.f32 %v3431, %v3103
          %v3560 = vmax.f32 %v3432, %v3105
          %v3561 = vmax.f32 %v3433, %v3107
          %v3562 = vmax.f32 %v3434, %v3109
          %v3563 = vmax.f32 %v3435, %v3111
          %v3564 = vmax.f32 %v3436, %v3113
          %v3565 = vmax.f32 %v3437, %v3115
          %v3566 = vmax.f32 %v3438, %v3117
          %v3567 = vmax.f32 %v3439, %v3119
          %v3568 = vmax.f32 %v3440, %v3121
          %v3569 = vmax.f32 %v3441, %v3123
          %v3570 = vmax.f32 %v3442, %v3125
          %v3571 = vmax.f32 %v3443, %v3127
          %v3572 = vmax.f32 %v3444, %v3129
          %v3573 = vmax.f32 %v3445, %v3131
          %v3574 = vmax.f32 %v3446, %v3133
          %v3575 = vmax.f32 %v3447, %v3135
          %v3576 = vmax.f32 %v3448, %v3137
          %v3577 = vmax.f32 %v3449, %v3139
          %v3578 = vmax.f32 %v3450, %v3141
          %v3579 = vmax.f32 %v3451, %v3143
          %v3580 = vmax.f32 %v3452, %v3145
          %v3581 = vmax.f32 %v3453, %v3147
          %v3582 = vmax.f32 %v3454, %v3149
          %v3583 = vmax.f32 %v3455, %v3151
          %v3584 = vmax.f32 %v3456, %v3153
          %v3585 = vmax.f32 %v3457, %v3155
          %v3586 = vmax.f32 %v3458, %v3157
          %v3587 = vmax.f32 %v3459, %v3159
          %v3588 = vmax.f32 %v3460, %v3161
          %v3589 = vmax.f32 %v3461, %v3163
          %v3590 = vmax.f32 %v3462, %v3165
          %v3591 = vmax.f32 %v3463, %v3167
          %v3592 = vmax.f32 %v3464, %v3169
          %v3593 = vmax.f32 %v3465, %v3171
          %v3594 = vmax.f32 %v3466, %v3173
          %v3595 = vmax.f32 %v3467, %v3175
          %v3596 = vmax.f32 %v3468, %v3177
          %v3597 = vmax.f32 %v3469, %v3179
          %v3598 = vmax.f32 %v3470, %v3181
          %v3599 = vmax.f32 %v3471, %v3183
          %v3600 = vmax.f32 %v3472, %v3185
          %v3601 = vmax.f32 %v3473, %v3187
          %v3602 = vmax.f32 %v3474, %v3189
          %v3603 = vmax.f32 %v3475, %v3191
          %v3604 = vmax.f32 %v3476, %v3193
          %v3605 = vmax.f32 %v3477, %v3195
          %v3606 = vmax.f32 %v3478, %v3197
          %v3607 = vmax.f32 %v3479, %v3199
          %v3608 = vmax.f32 %v3480, %v3201
          %v3609 = vmax.f32 %v3481, %v3203
          %v3610 = vmax.f32 %v3482, %v3205
          %v3611 = vmax.f32 %v3483, %v3207
          %v3612 = vmax.f32 %v3484, %v3209
          %v3613 = vmax.f32 %v3485, %v3211
          %v3614 = vmax.f32 %v3486, %v3213
          %v3615 = vmax.f32 %v3487, %v3215
          %v3616 = vmax.f32 %v3488, %v3217
          %v3617 = vmax.f32 %v3489, %v3219
          %v3618 = vmax.f32 %v3490, %v3221
          %v3619 = vmax.f32 %v3491, %v3223
          %v3620 = vmax.f32 %v3492, %v3225
          %v3621 = vmax.f32 %v3493, %v3227
          %v3622 = vmax.f32 %v3494, %v3229
          %vm3623 = vcmask 7168
          %3624 = vst.msk [vmem:[%s379] sm:$0xff] %vm3623, %v3495
          %3625 = vst.msk [vmem:[%s379 + $0x8] sm:$0xff] %vm3623, %v3496
          %3626 = vst.msk [vmem:[%s379 + $0x10] sm:$0xff] %vm3623, %v3497
          %3627 = vst.msk [vmem:[%s379 + $0x18] sm:$0xff] %vm3623, %v3498
          %3628 = vst.msk [vmem:[%s379 + $0x20] sm:$0xff] %vm3623, %v3499
          %3629 = vst.msk [vmem:[%s379 + $0x28] sm:$0xff] %vm3623, %v3500
          %3630 = vst.msk [vmem:[%s379 + $0x30] sm:$0xff] %vm3623, %v3501
          %3631 = vst.msk [vmem:[%s379 + $0x38] sm:$0xff] %vm3623, %v3502
          %3632 = vst.msk [vmem:[%s379 + $0x40] sm:$0xff] %vm3623, %v3503
          %3633 = vst.msk [vmem:[%s379 + $0x48] sm:$0xff] %vm3623, %v3504
          %3634 = vst.msk [vmem:[%s379 + $0x50] sm:$0xff] %vm3623, %v3505
          %3635 = vst.msk [vmem:[%s379 + $0x58] sm:$0xff] %vm3623, %v3506
          %3636 = vst.msk [vmem:[%s379 + $0x60] sm:$0xff] %vm3623, %v3507
          %3637 = vst.msk [vmem:[%s379 + $0x68] sm:$0xff] %vm3623, %v3508
          %3638 = vst.msk [vmem:[%s379 + $0x70] sm:$0xff] %vm3623, %v3509
          %3639 = vst.msk [vmem:[%s379 + $0x78] sm:$0xff] %vm3623, %v3510
          %3640 = vst.msk [vmem:[%s379 + $0x80] sm:$0xff] %vm3623, %v3511
          %3641 = vst.msk [vmem:[%s379 + $0x88] sm:$0xff] %vm3623, %v3512
          %3642 = vst.msk [vmem:[%s379 + $0x90] sm:$0xff] %vm3623, %v3513
          %3643 = vst.msk [vmem:[%s379 + $0x98] sm:$0xff] %vm3623, %v3514
          %3644 = vst.msk [vmem:[%s379 + $0xa0] sm:$0xff] %vm3623, %v3515
          %3645 = vst.msk [vmem:[%s379 + $0xa8] sm:$0xff] %vm3623, %v3516
          %3646 = vst.msk [vmem:[%s379 + $0xb0] sm:$0xff] %vm3623, %v3517
          %3647 = vst.msk [vmem:[%s379 + $0xb8] sm:$0xff] %vm3623, %v3518
          %3648 = vst.msk [vmem:[%s379 + $0xc0] sm:$0xff] %vm3623, %v3519
          %3649 = vst.msk [vmem:[%s379 + $0xc8] sm:$0xff] %vm3623, %v3520
          %3650 = vst.msk [vmem:[%s379 + $0xd0] sm:$0xff] %vm3623, %v3521
          %3651 = vst.msk [vmem:[%s379 + $0xd8] sm:$0xff] %vm3623, %v3522
          %3652 = vst.msk [vmem:[%s379 + $0xe0] sm:$0xff] %vm3623, %v3523
          %3653 = vst.msk [vmem:[%s379 + $0xe8] sm:$0xff] %vm3623, %v3524
          %3654 = vst.msk [vmem:[%s379 + $0xf0] sm:$0xff] %vm3623, %v3525
          %3655 = vst.msk [vmem:[%s379 + $0xf8] sm:$0xff] %vm3623, %v3526
          %3656 = vst.msk [vmem:[%s379 + $0x100] sm:$0xff] %vm3623, %v3527
          %3657 = vst.msk [vmem:[%s379 + $0x108] sm:$0xff] %vm3623, %v3528
          %3658 = vst.msk [vmem:[%s379 + $0x110] sm:$0xff] %vm3623, %v3529
          %3659 = vst.msk [vmem:[%s379 + $0x118] sm:$0xff] %vm3623, %v3530
          %3660 = vst.msk [vmem:[%s379 + $0x120] sm:$0xff] %vm3623, %v3531
          %3661 = vst.msk [vmem:[%s379 + $0x128] sm:$0xff] %vm3623, %v3532
          %3662 = vst.msk [vmem:[%s379 + $0x130] sm:$0xff] %vm3623, %v3533
          %3663 = vst.msk [vmem:[%s379 + $0x138] sm:$0xff] %vm3623, %v3534
          %3664 = vst.msk [vmem:[%s379 + $0x140] sm:$0xff] %vm3623, %v3535
          %3665 = vst.msk [vmem:[%s379 + $0x148] sm:$0xff] %vm3623, %v3536
          %3666 = vst.msk [vmem:[%s379 + $0x150] sm:$0xff] %vm3623, %v3537
          %3667 = vst.msk [vmem:[%s379 + $0x158] sm:$0xff] %vm3623, %v3538
          %3668 = vst.msk [vmem:[%s379 + $0x160] sm:$0xff] %vm3623, %v3539
          %3669 = vst.msk [vmem:[%s379 + $0x168] sm:$0xff] %vm3623, %v3540
          %3670 = vst.msk [vmem:[%s379 + $0x170] sm:$0xff] %vm3623, %v3541
          %3671 = vst.msk [vmem:[%s379 + $0x178] sm:$0xff] %vm3623, %v3542
          %3672 = vst.msk [vmem:[%s379 + $0x180] sm:$0xff] %vm3623, %v3543
          %3673 = vst.msk [vmem:[%s379 + $0x188] sm:$0xff] %vm3623, %v3544
          %3674 = vst.msk [vmem:[%s379 + $0x190] sm:$0xff] %vm3623, %v3545
          %3675 = vst.msk [vmem:[%s379 + $0x198] sm:$0xff] %vm3623, %v3546
          %3676 = vst.msk [vmem:[%s379 + $0x1a0] sm:$0xff] %vm3623, %v3547
          %3677 = vst.msk [vmem:[%s379 + $0x1a8] sm:$0xff] %vm3623, %v3548
          %3678 = vst.msk [vmem:[%s379 + $0x1b0] sm:$0xff] %vm3623, %v3549
          %3679 = vst.msk [vmem:[%s379 + $0x1b8] sm:$0xff] %vm3623, %v3550
          %3680 = vst.msk [vmem:[%s379 + $0x1c0] sm:$0xff] %vm3623, %v3551
          %3681 = vst.msk [vmem:[%s379 + $0x1c8] sm:$0xff] %vm3623, %v3552
          %3682 = vst.msk [vmem:[%s379 + $0x1d0] sm:$0xff] %vm3623, %v3553
          %3683 = vst.msk [vmem:[%s379 + $0x1d8] sm:$0xff] %vm3623, %v3554
          %3684 = vst.msk [vmem:[%s379 + $0x1e0] sm:$0xff] %vm3623, %v3555
          %3685 = vst.msk [vmem:[%s379 + $0x1e8] sm:$0xff] %vm3623, %v3556
          %3686 = vst.msk [vmem:[%s379 + $0x1f0] sm:$0xff] %vm3623, %v3557
          %3687 = vst.msk [vmem:[%s379 + $0x1f8] sm:$0xff] %vm3623, %v3558
          %3688 = vst.msk [vmem:[%s379 + $0x200] sm:$0xff] %vm3623, %v3559
          %3689 = vst.msk [vmem:[%s379 + $0x208] sm:$0xff] %vm3623, %v3560
          %3690 = vst.msk [vmem:[%s379 + $0x210] sm:$0xff] %vm3623, %v3561
          %3691 = vst.msk [vmem:[%s379 + $0x218] sm:$0xff] %vm3623, %v3562
          %3692 = vst.msk [vmem:[%s379 + $0x220] sm:$0xff] %vm3623, %v3563
          %3693 = vst.msk [vmem:[%s379 + $0x228] sm:$0xff] %vm3623, %v3564
          %3694 = vst.msk [vmem:[%s379 + $0x230] sm:$0xff] %vm3623, %v3565
          %3695 = vst.msk [vmem:[%s379 + $0x238] sm:$0xff] %vm3623, %v3566
          %3696 = vst.msk [vmem:[%s379 + $0x240] sm:$0xff] %vm3623, %v3567
          %3697 = vst.msk [vmem:[%s379 + $0x248] sm:$0xff] %vm3623, %v3568
          %3698 = vst.msk [vmem:[%s379 + $0x250] sm:$0xff] %vm3623, %v3569
          %3699 = vst.msk [vmem:[%s379 + $0x258] sm:$0xff] %vm3623, %v3570
          %3700 = vst.msk [vmem:[%s379 + $0x260] sm:$0xff] %vm3623, %v3571
          %3701 = vst.msk [vmem:[%s379 + $0x268] sm:$0xff] %vm3623, %v3572
          %3702 = vst.msk [vmem:[%s379 + $0x270] sm:$0xff] %vm3623, %v3573
          %3703 = vst.msk [vmem:[%s379 + $0x278] sm:$0xff] %vm3623, %v3574
          %3704 = vst.msk [vmem:[%s379 + $0x280] sm:$0xff] %vm3623, %v3575
          %3705 = vst.msk [vmem:[%s379 + $0x288] sm:$0xff] %vm3623, %v3576
          %3706 = vst.msk [vmem:[%s379 + $0x290] sm:$0xff] %vm3623, %v3577
          %3707 = vst.msk [vmem:[%s379 + $0x298] sm:$0xff] %vm3623, %v3578
          %3708 = vst.msk [vmem:[%s379 + $0x2a0] sm:$0xff] %vm3623, %v3579
          %3709 = vst.msk [vmem:[%s379 + $0x2a8] sm:$0xff] %vm3623, %v3580
          %3710 = vst.msk [vmem:[%s379 + $0x2b0] sm:$0xff] %vm3623, %v3581
          %3711 = vst.msk [vmem:[%s379 + $0x2b8] sm:$0xff] %vm3623, %v3582
          %3712 = vst.msk [vmem:[%s379 + $0x2c0] sm:$0xff] %vm3623, %v3583
          %3713 = vst.msk [vmem:[%s379 + $0x2c8] sm:$0xff] %vm3623, %v3584
          %3714 = vst.msk [vmem:[%s379 + $0x2d0] sm:$0xff] %vm3623, %v3585
          %3715 = vst.msk [vmem:[%s379 + $0x2d8] sm:$0xff] %vm3623, %v3586
          %3716 = vst.msk [vmem:[%s379 + $0x2e0] sm:$0xff] %vm3623, %v3587
          %3717 = vst.msk [vmem:[%s379 + $0x2e8] sm:$0xff] %vm3623, %v3588
          %3718 = vst.msk [vmem:[%s379 + $0x2f0] sm:$0xff] %vm3623, %v3589
          %3719 = vst.msk [vmem:[%s379 + $0x2f8] sm:$0xff] %vm3623, %v3590
          %3720 = vst.msk [vmem:[%s379 + $0x300] sm:$0xff] %vm3623, %v3591
          %3721 = vst.msk [vmem:[%s379 + $0x308] sm:$0xff] %vm3623, %v3592
          %3722 = vst.msk [vmem:[%s379 + $0x310] sm:$0xff] %vm3623, %v3593
          %3723 = vst.msk [vmem:[%s379 + $0x318] sm:$0xff] %vm3623, %v3594
          %3724 = vst.msk [vmem:[%s379 + $0x320] sm:$0xff] %vm3623, %v3595
          %3725 = vst.msk [vmem:[%s379 + $0x328] sm:$0xff] %vm3623, %v3596
          %3726 = vst.msk [vmem:[%s379 + $0x330] sm:$0xff] %vm3623, %v3597
          %3727 = vst.msk [vmem:[%s379 + $0x338] sm:$0xff] %vm3623, %v3598
          %3728 = vst.msk [vmem:[%s379 + $0x340] sm:$0xff] %vm3623, %v3599
          %3729 = vst.msk [vmem:[%s379 + $0x348] sm:$0xff] %vm3623, %v3600
          %3730 = vst.msk [vmem:[%s379 + $0x350] sm:$0xff] %vm3623, %v3601
          %3731 = vst.msk [vmem:[%s379 + $0x358] sm:$0xff] %vm3623, %v3602
          %3732 = vst.msk [vmem:[%s379 + $0x360] sm:$0xff] %vm3623, %v3603
          %3733 = vst.msk [vmem:[%s379 + $0x368] sm:$0xff] %vm3623, %v3604
          %3734 = vst.msk [vmem:[%s379 + $0x370] sm:$0xff] %vm3623, %v3605
          %3735 = vst.msk [vmem:[%s379 + $0x378] sm:$0xff] %vm3623, %v3606
          %3736 = vst.msk [vmem:[%s379 + $0x380] sm:$0xff] %vm3623, %v3607
          %3737 = vst.msk [vmem:[%s379 + $0x388] sm:$0xff] %vm3623, %v3608
          %3738 = vst.msk [vmem:[%s379 + $0x390] sm:$0xff] %vm3623, %v3609
          %3739 = vst.msk [vmem:[%s379 + $0x398] sm:$0xff] %vm3623, %v3610
          %3740 = vst.msk [vmem:[%s379 + $0x3a0] sm:$0xff] %vm3623, %v3611
          %3741 = vst.msk [vmem:[%s379 + $0x3a8] sm:$0xff] %vm3623, %v3612
          %3742 = vst.msk [vmem:[%s379 + $0x3b0] sm:$0xff] %vm3623, %v3613
          %3743 = vst.msk [vmem:[%s379 + $0x3b8] sm:$0xff] %vm3623, %v3614
          %3744 = vst.msk [vmem:[%s379 + $0x3c0] sm:$0xff] %vm3623, %v3615
          %3745 = vst.msk [vmem:[%s379 + $0x3c8] sm:$0xff] %vm3623, %v3616
          %3746 = vst.msk [vmem:[%s379 + $0x3d0] sm:$0xff] %vm3623, %v3617
          %3747 = vst.msk [vmem:[%s379 + $0x3d8] sm:$0xff] %vm3623, %v3618
          %3748 = vst.msk [vmem:[%s379 + $0x3e0] sm:$0xff] %vm3623, %v3619
          %3749 = vst.msk [vmem:[%s379 + $0x3e8] sm:$0xff] %vm3623, %v3620
          %3750 = vst.msk [vmem:[%s379 + $0x3f0] sm:$0xff] %vm3623, %v3621
          %3751 = vst.msk [vmem:[%s379 + $0x3f8] sm:$0xff] %vm3623, %v3622
        $region60: #{_forward_jit.6} parent=51 // pred_fallthru
          _
        %s3752 = sand.u32 %s226, 1
        %s3753 = scalar_lea.sflag [#allocation3], %s3752
        %s3754 = sand.u32 %s226, 1
        %s3755 = smul.addr %s3754, 1024
        %s3756 = scalar_lea.vmem [#allocation2], %s3755
        %p3757 = scmp.lt.s32.totalorder %s28, 1
        %s3758 = scalar_select %p3757, %s28, 1
        %s3759 = smul.addr %s3758, 128
        %s3760 = smul.addr %s3759, 8
        %s3761 = scalar_lea.vmem %s9, %s3760
        // Predicated region
        $region61: #{_forward_jit.6} parent=51 // pred_check
          %p3762 = pneg %p236
        $region62: #{_forward_jit.6} parent=51 // pred_check_branch
          %3764 = sbr.rel (%p3762) target = $region64
        $region63: #{_forward_jit.6} parent=51 // pred_region
          %s3766 = ssub.s32 16384, 16384
          %3767 = vsyncadd %s3753, %s3766
          %s3768 = smul.addr %s28, 128
          %s3769 = sadd.s32 %s29, %s3768
          %s3770 = smul.addr %s3769, 128
          %s3771 = scalar_lea.hbm %s8, %s3770
          %s3772 = sshll.u32 %s3756, 4
          %s3773 = int_to_ptr.vmem [resolvable:$true] %s3772
          %3778 = dma.vmem_to_hbm [thread:$0]  %s3773, 16384, %s3771, %s3753, 128, 128, 8
        $region64: #{_forward_jit.6} parent=51 // pred_fallthru
          _
        // Predicated region
        $region65: #{_forward_jit.6} parent=51 // pred_check
          %p3779 = pneg %p262
        $region66: #{_forward_jit.6} parent=51 // pred_check_branch
          %3781 = sbr.rel (%p3779) target = $region68
        $region67: #{_forward_jit.6} parent=51 // pred_region
          _
        $region68: #{_forward_jit.6} parent=51 // pred_fallthru
          _
      $region52: #{_forward_jit.6} parent=5 // pred_fallthru
        _
      %p3782 = scmp.le.s32.totalorder 2, %s19
      // Predicated region
      $region69: #{_forward_jit.6} parent=5 // pred_check
        %p3783 = pneg %p3782
      $region70: #{_forward_jit.6} parent=5 // pred_check_branch
        %3785 = sbr.rel (%p3783) target = $region72
      $region71: #{_forward_jit.6} parent=5 // pred_region
        %s3786 = ssub.s32 %s19, 2
        // Predicated region
        $region73: #{_forward_jit.6} parent=71 // pred_check
          %p3787 = pneg %p242
        $region74: #{_forward_jit.6} parent=71 // pred_check_branch
          %3789 = sbr.rel (%p3787) target = $region76
        $region75: #{_forward_jit.6} parent=71 // pred_region
          %s3790 = sand.u32 %s227, 1
          %s3791 = scalar_lea.sflag [#allocation3], %s3790
          %s3792 = sand.u32 %s227, 1
          %s3793 = smul.addr %s3792, 1024
          %s3794 = scalar_lea.vmem [#allocation2], %s3793
          %3795 = dma.done %s3791, 16384
        $region76: #{_forward_jit.6} parent=71 // pred_fallthru
          _
        // Predicated region
        $region77: #{_forward_jit.6} parent=71 // pred_check
          %p3796 = pneg %p268
        $region78: #{_forward_jit.6} parent=71 // pred_check_branch
          %3798 = sbr.rel (%p3796) target = $region80
        $region79: #{_forward_jit.6} parent=71 // pred_region
          %p3799 = scmp.lt.s32.totalorder %s30, 1
          %s3800 = scalar_select %p3799, %s30, 1
          %s3801 = smul.addr %s3800, 128
          %s3802 = smul.addr %s3801, 8
          %s3803 = scalar_lea.vmem %s9, %s3802
        $region80: #{_forward_jit.6} parent=71 // pred_fallthru
          _
      $region72: #{_forward_jit.6} parent=5 // pred_fallthru
        _
    $region6: #{_forward_jit.6} parent=1 // loop_footer
      %s23 = sadd.s32 1, %s19
    $region7: #{_forward_jit.6} parent=1 // loop_footer_branch
      %18 = sbr.rel target = $region3
    $region8: #{_forward_jit.6} parent=1 // loop_exit
      _
    %3804 = vsyncpa [#allocation3], 1
    %s3805 = scalar_lea.sflag [#allocation3], 1
    %3806 = vsyncpa %s3805, 1

// kernel: _forward_jit.7
$region0: #{_forward_jit.7}
  #allocation0 [shape = 'u32[]', space=smem, size = 0x4, offset = 0x4, fixed_abs, tag = 'smem constant byte address 0x4 - core index']
  #allocation1 [shape = 'u32[144,128]{1,0:T(1,128)}', space=vmem, size = 0x12000, scoped, tag = 'internal scratch']
  %s0 = inlined_call_operand.vmem [shape: f32[2,1024], index: 0, kind: input, shape index: {}]
  %s1 = inlined_call_operand.vmem [shape: bf16[1024,512], index: 1, kind: input, shape index: {}]
  %s2 = inlined_call_operand.vmem [shape: f32[1,512], index: 2, kind: input, shape index: {}]
  %s3 = inlined_call_operand.vmem [shape: bf16[512,256], index: 3, kind: input, shape index: {}]
  %s4 = inlined_call_operand.vmem [shape: f32[1,256], index: 4, kind: input, shape index: {}]
  %s5 = inlined_call_operand.vmem [shape: bf16[256,2], index: 5, kind: input, shape index: {}]
  %s6 = inlined_call_operand.vmem [shape: f32[1,2], index: 6, kind: input, shape index: {}]
  %s7 = inlined_call_operand.hbm [shape: f32[2,2], index: 7, kind: output, shape index: {}]
  %s8 = sld [smem:[#allocation0]]
  $region38: #{_forward_jit.7} parent=0
    _
  %s10 = ssub.s32 1, %s8
  %s11 = scalar_select 0, %s10, %s8
  $region1: #{_forward_jit.7} parent=0
    #allocation2 [shape = 'u8[1024]{0}', space=vmem, size = 0x400, scoped, tag = 'output window, operand 0, single buffered']
    #allocation3 [shape = 's32[1]{0}', space=sflag, size = 0x4, scoped, tag = 'scoped memory for _forward_jit.7']
    %12 = vsyncpa [#allocation3], 0
    // Predicated region
    $region2: #{_forward_jit.7} parent=1 // pred_check
      _
    $region3: #{_forward_jit.7} parent=1 // pred_check_branch
      %14 = sbr.rel (0) target = $region5
    $region4: #{_forward_jit.7} parent=1 // pred_region
      _
    $region5: #{_forward_jit.7} parent=1 // pred_fallthru
      _
    // Predicated region
    $region6: #{_forward_jit.7} parent=1 // pred_check
      _
    $region7: #{_forward_jit.7} parent=1 // pred_check_branch
      %16 = sbr.rel (0) target = $region9
    $region8: #{_forward_jit.7} parent=1 // pred_region
      _
    $region9: #{_forward_jit.7} parent=1 // pred_fallthru
      _
    // Predicated region
    $region10: #{_forward_jit.7} parent=1 // pred_check
      _
    $region11: #{_forward_jit.7} parent=1 // pred_check_branch
      %18 = sbr.rel (0) target = $region13
    $region12: #{_forward_jit.7} parent=1 // pred_region
      _
    $region13: #{_forward_jit.7} parent=1 // pred_fallthru
      _
    // Predicated region
    $region14: #{_forward_jit.7} parent=1 // pred_check
      _
    $region15: #{_forward_jit.7} parent=1 // pred_check_branch
      %20 = sbr.rel (0) target = $region17
    $region16: #{_forward_jit.7} parent=1 // pred_region
      _
    $region17: #{_forward_jit.7} parent=1 // pred_fallthru
      _
    // Predicated region
    $region18: #{_forward_jit.7} parent=1 // pred_check
      _
    $region19: #{_forward_jit.7} parent=1 // pred_check_branch
      %22 = sbr.rel (0) target = $region21
    $region20: #{_forward_jit.7} parent=1 // pred_region
      _
    $region21: #{_forward_jit.7} parent=1 // pred_fallthru
      _
    // Predicated region
    $region22: #{_forward_jit.7} parent=1 // pred_check
      _
    $region23: #{_forward_jit.7} parent=1 // pred_check_branch
      %24 = sbr.rel (0) target = $region25
    $region24: #{_forward_jit.7} parent=1 // pred_region
      _
    $region25: #{_forward_jit.7} parent=1 // pred_fallthru
      _
    // Predicated region
    $region26: #{_forward_jit.7} parent=1 // pred_check
      _
    $region27: #{_forward_jit.7} parent=1 // pred_check_branch
      %26 = sbr.rel (0) target = $region29
    $region28: #{_forward_jit.7} parent=1 // pred_region
      _
    $region29: #{_forward_jit.7} parent=1 // pred_fallthru
      _
    %v28 = vld [vmem:[%s0] sm:$0xff]
    %v29 = vld [vmem:[%s0 + $0x8] sm:$0xff]
    %v32 = vcombine.high %v28, %v28
    %v34 = vunpack.c.l.s4 1983009808
    %v35 = vunpack.c.0.s8 %v34
    %v36 = vlaneseq
    %v37 = vshrl.u32 %v36, 7
    %v38 = vsub.s32 %v35, %v37
    %v39 = vrot.slane %v28, %v38
    %v41 = vunpack.c.l.s4 1983009808
    %v42 = vunpack.c.0.s8 %v41
    %v43 = vlaneseq
    %v44 = vshrl.u32 %v43, 7
    %v45 = vsub.s32 %v42, %v44
    %v46 = vrot.slane %v32, %v45
    %v47 = vcombine.high %v39, %v39
    %v48 = vcombine.high %v46, %v46
    %v49 = vcombine.high %v29, %v29
    %v51 = vunpack.c.l.s4 1983009808
    %v52 = vunpack.c.0.s8 %v51
    %v53 = vlaneseq
    %v54 = vshrl.u32 %v53, 7
    %v55 = vsub.s32 %v52, %v54
    %v56 = vrot.slane %v29, %v55
    %v58 = vunpack.c.l.s4 1983009808
    %v59 = vunpack.c.0.s8 %v58
    %v60 = vlaneseq
    %v61 = vshrl.u32 %v60, 7
    %v62 = vsub.s32 %v59, %v61
    %v63 = vrot.slane %v49, %v62
    %v64 = vcombine.high %v56, %v56
    %v65 = vcombine.high %v63, %v63
    %v74 = vpack.c.bf16 %v39, %v39
    %v75 = vpack.c.bf16 %v47, %v47
    %v76 = vpack.c.bf16 %v46, %v46
    %v77 = vpack.c.bf16 %v48, %v48
    %v78 = vpack.c.bf16 %v56, %v56
    %v79 = vpack.c.bf16 %v64, %v64
    %v80 = vpack.c.bf16 %v63, %v63
    %v81 = vpack.c.bf16 %v65, %v65
    %v82 = vld [vmem:[%s1] sm:$0xff]
    %v83 = vld [vmem:[%s1 + $0x8] sm:$0xff]
    %v84 = vld [vmem:[%s1 + $0x10] sm:$0xff]
    %v85 = vld [vmem:[%s1 + $0x18] sm:$0xff]
    %v86 = vld [vmem:[%s1 + $0x20] sm:$0xff]
    %v87 = vld [vmem:[%s1 + $0x28] sm:$0xff]
    %v88 = vld [vmem:[%s1 + $0x30] sm:$0xff]
    %v89 = vld [vmem:[%s1 + $0x38] sm:$0xff]
    %v90 = vld [vmem:[%s1 + $0x40] sm:$0xff]
    %v91 = vld [vmem:[%s1 + $0x48] sm:$0xff]
    %v92 = vld [vmem:[%s1 + $0x50] sm:$0xff]
    %v93 = vld [vmem:[%s1 + $0x58] sm:$0xff]
    %v94 = vld [vmem:[%s1 + $0x60] sm:$0xff]
    %v95 = vld [vmem:[%s1 + $0x68] sm:$0xff]
    %v96 = vld [vmem:[%s1 + $0x70] sm:$0xff]
    %v97 = vld [vmem:[%s1 + $0x78] sm:$0xff]
    %v98 = vld [vmem:[%s1 + $0x80] sm:$0xff]
    %v99 = vld [vmem:[%s1 + $0x88] sm:$0xff]
    %v100 = vld [vmem:[%s1 + $0x90] sm:$0xff]
    %v101 = vld [vmem:[%s1 + $0x98] sm:$0xff]
    %v102 = vld [vmem:[%s1 + $0xa0] sm:$0xff]
    %v103 = vld [vmem:[%s1 + $0xa8] sm:$0xff]
    %v104 = vld [vmem:[%s1 + $0xb0] sm:$0xff]
    %v105 = vld [vmem:[%s1 + $0xb8] sm:$0xff]
    %v106 = vld [vmem:[%s1 + $0xc0] sm:$0xff]
    %v107 = vld [vmem:[%s1 + $0xc8] sm:$0xff]
    %v108 = vld [vmem:[%s1 + $0xd0] sm:$0xff]
    %v109 = vld [vmem:[%s1 + $0xd8] sm:$0xff]
    %v110 = vld [vmem:[%s1 + $0xe0] sm:$0xff]
    %v111 = vld [vmem:[%s1 + $0xe8] sm:$0xff]
    %v112 = vld [vmem:[%s1 + $0xf0] sm:$0xff]
    %v113 = vld [vmem:[%s1 + $0xf8] sm:$0xff]
    %v114 = vld [vmem:[%s1 + $0x100] sm:$0xff]
    %v115 = vld [vmem:[%s1 + $0x108] sm:$0xff]
    %v116 = vld [vmem:[%s1 + $0x110] sm:$0xff]
    %v117 = vld [vmem:[%s1 + $0x118] sm:$0xff]
    %v118 = vld [vmem:[%s1 + $0x120] sm:$0xff]
    %v119 = vld [vmem:[%s1 + $0x128] sm:$0xff]
    %v120 = vld [vmem:[%s1 + $0x130] sm:$0xff]
    %v121 = vld [vmem:[%s1 + $0x138] sm:$0xff]
    %v122 = vld [vmem:[%s1 + $0x140] sm:$0xff]
    %v123 = vld [vmem:[%s1 + $0x148] sm:$0xff]
    %v124 = vld [vmem:[%s1 + $0x150] sm:$0xff]
    %v125 = vld [vmem:[%s1 + $0x158] sm:$0xff]
    %v126 = vld [vmem:[%s1 + $0x160] sm:$0xff]
    %v127 = vld [vmem:[%s1 + $0x168] sm:$0xff]
    %v128 = vld [vmem:[%s1 + $0x170] sm:$0xff]
    %v129 = vld [vmem:[%s1 + $0x178] sm:$0xff]
    %v130 = vld [vmem:[%s1 + $0x180] sm:$0xff]
    %v131 = vld [vmem:[%s1 + $0x188] sm:$0xff]
    %v132 = vld [vmem:[%s1 + $0x190] sm:$0xff]
    %v133 = vld [vmem:[%s1 + $0x198] sm:$0xff]
    %v134 = vld [vmem:[%s1 + $0x1a0] sm:$0xff]
    %v135 = vld [vmem:[%s1 + $0x1a8] sm:$0xff]
    %v136 = vld [vmem:[%s1 + $0x1b0] sm:$0xff]
    %v137 = vld [vmem:[%s1 + $0x1b8] sm:$0xff]
    %v138 = vld [vmem:[%s1 + $0x1c0] sm:$0xff]
    %v139 = vld [vmem:[%s1 + $0x1c8] sm:$0xff]
    %v140 = vld [vmem:[%s1 + $0x1d0] sm:$0xff]
    %v141 = vld [vmem:[%s1 + $0x1d8] sm:$0xff]
    %v142 = vld [vmem:[%s1 + $0x1e0] sm:$0xff]
    %v143 = vld [vmem:[%s1 + $0x1e8] sm:$0xff]
    %v144 = vld [vmem:[%s1 + $0x1f0] sm:$0xff]
    %v145 = vld [vmem:[%s1 + $0x1f8] sm:$0xff]
    %v146 = vld [vmem:[%s1 + $0x200] sm:$0xff]
    %v147 = vld [vmem:[%s1 + $0x208] sm:$0xff]
    %v148 = vld [vmem:[%s1 + $0x210] sm:$0xff]
    %v149 = vld [vmem:[%s1 + $0x218] sm:$0xff]
    %v150 = vld [vmem:[%s1 + $0x220] sm:$0xff]
    %v151 = vld [vmem:[%s1 + $0x228] sm:$0xff]
    %v152 = vld [vmem:[%s1 + $0x230] sm:$0xff]
    %v153 = vld [vmem:[%s1 + $0x238] sm:$0xff]
    %v154 = vld [vmem:[%s1 + $0x240] sm:$0xff]
    %v155 = vld [vmem:[%s1 + $0x248] sm:$0xff]
    %v156 = vld [vmem:[%s1 + $0x250] sm:$0xff]
    %v157 = vld [vmem:[%s1 + $0x258] sm:$0xff]
    %v158 = vld [vmem:[%s1 + $0x260] sm:$0xff]
    %v159 = vld [vmem:[%s1 + $0x268] sm:$0xff]
    %v160 = vld [vmem:[%s1 + $0x270] sm:$0xff]
    %v161 = vld [vmem:[%s1 + $0x278] sm:$0xff]
    %v162 = vld [vmem:[%s1 + $0x280] sm:$0xff]
    %v163 = vld [vmem:[%s1 + $0x288] sm:$0xff]
    %v164 = vld [vmem:[%s1 + $0x290] sm:$0xff]
    %v165 = vld [vmem:[%s1 + $0x298] sm:$0xff]
    %v166 = vld [vmem:[%s1 + $0x2a0] sm:$0xff]
    %v167 = vld [vmem:[%s1 + $0x2a8] sm:$0xff]
    %v168 = vld [vmem:[%s1 + $0x2b0] sm:$0xff]
    %v169 = vld [vmem:[%s1 + $0x2b8] sm:$0xff]
    %v170 = vld [vmem:[%s1 + $0x2c0] sm:$0xff]
    %v171 = vld [vmem:[%s1 + $0x2c8] sm:$0xff]
    %v172 = vld [vmem:[%s1 + $0x2d0] sm:$0xff]
    %v173 = vld [vmem:[%s1 + $0x2d8] sm:$0xff]
    %v174 = vld [vmem:[%s1 + $0x2e0] sm:$0xff]
    %v175 = vld [vmem:[%s1 + $0x2e8] sm:$0xff]
    %v176 = vld [vmem:[%s1 + $0x2f0] sm:$0xff]
    %v177 = vld [vmem:[%s1 + $0x2f8] sm:$0xff]
    %v178 = vld [vmem:[%s1 + $0x300] sm:$0xff]
    %v179 = vld [vmem:[%s1 + $0x308] sm:$0xff]
    %v180 = vld [vmem:[%s1 + $0x310] sm:$0xff]
    %v181 = vld [vmem:[%s1 + $0x318] sm:$0xff]
    %v182 = vld [vmem:[%s1 + $0x320] sm:$0xff]
    %v183 = vld [vmem:[%s1 + $0x328] sm:$0xff]
    %v184 = vld [vmem:[%s1 + $0x330] sm:$0xff]
    %v185 = vld [vmem:[%s1 + $0x338] sm:$0xff]
    %v186 = vld [vmem:[%s1 + $0x340] sm:$0xff]
    %v187 = vld [vmem:[%s1 + $0x348] sm:$0xff]
    %v188 = vld [vmem:[%s1 + $0x350] sm:$0xff]
    %v189 = vld [vmem:[%s1 + $0x358] sm:$0xff]
    %v190 = vld [vmem:[%s1 + $0x360] sm:$0xff]
    %v191 = vld [vmem:[%s1 + $0x368] sm:$0xff]
    %v192 = vld [vmem:[%s1 + $0x370] sm:$0xff]
    %v193 = vld [vmem:[%s1 + $0x378] sm:$0xff]
    %v194 = vld [vmem:[%s1 + $0x380] sm:$0xff]
    %v195 = vld [vmem:[%s1 + $0x388] sm:$0xff]
    %v196 = vld [vmem:[%s1 + $0x390] sm:$0xff]
    %v197 = vld [vmem:[%s1 + $0x398] sm:$0xff]
    %v198 = vld [vmem:[%s1 + $0x3a0] sm:$0xff]
    %v199 = vld [vmem:[%s1 + $0x3a8] sm:$0xff]
    %v200 = vld [vmem:[%s1 + $0x3b0] sm:$0xff]
    %v201 = vld [vmem:[%s1 + $0x3b8] sm:$0xff]
    %v202 = vld [vmem:[%s1 + $0x3c0] sm:$0xff]
    %v203 = vld [vmem:[%s1 + $0x3c8] sm:$0xff]
    %v204 = vld [vmem:[%s1 + $0x3d0] sm:$0xff]
    %v205 = vld [vmem:[%s1 + $0x3d8] sm:$0xff]
    %v206 = vld [vmem:[%s1 + $0x3e0] sm:$0xff]
    %v207 = vld [vmem:[%s1 + $0x3e8] sm:$0xff]
    %v208 = vld [vmem:[%s1 + $0x3f0] sm:$0xff]
    %v209 = vld [vmem:[%s1 + $0x3f8] sm:$0xff]
    %v210 = vld [vmem:[%s1 + $0x400] sm:$0xff]
    %v211 = vld [vmem:[%s1 + $0x408] sm:$0xff]
    %v212 = vld [vmem:[%s1 + $0x410] sm:$0xff]
    %v213 = vld [vmem:[%s1 + $0x418] sm:$0xff]
    %v214 = vld [vmem:[%s1 + $0x420] sm:$0xff]
    %v215 = vld [vmem:[%s1 + $0x428] sm:$0xff]
    %v216 = vld [vmem:[%s1 + $0x430] sm:$0xff]
    %v217 = vld [vmem:[%s1 + $0x438] sm:$0xff]
    %v218 = vld [vmem:[%s1 + $0x440] sm:$0xff]
    %v219 = vld [vmem:[%s1 + $0x448] sm:$0xff]
    %v220 = vld [vmem:[%s1 + $0x450] sm:$0xff]
    %v221 = vld [vmem:[%s1 + $0x458] sm:$0xff]
    %v222 = vld [vmem:[%s1 + $0x460] sm:$0xff]
    %v223 = vld [vmem:[%s1 + $0x468] sm:$0xff]
    %v224 = vld [vmem:[%s1 + $0x470] sm:$0xff]
    %v225 = vld [vmem:[%s1 + $0x478] sm:$0xff]
    %v226 = vld [vmem:[%s1 + $0x480] sm:$0xff]
    %v227 = vld [vmem:[%s1 + $0x488] sm:$0xff]
    %v228 = vld [vmem:[%s1 + $0x490] sm:$0xff]
    %v229 = vld [vmem:[%s1 + $0x498] sm:$0xff]
    %v230 = vld [vmem:[%s1 + $0x4a0] sm:$0xff]
    %v231 = vld [vmem:[%s1 + $0x4a8] sm:$0xff]
    %v232 = vld [vmem:[%s1 + $0x4b0] sm:$0xff]
    %v233 = vld [vmem:[%s1 + $0x4b8] sm:$0xff]
    %v234 = vld [vmem:[%s1 + $0x4c0] sm:$0xff]
    %v235 = vld [vmem:[%s1 + $0x4c8] sm:$0xff]
    %v236 = vld [vmem:[%s1 + $0x4d0] sm:$0xff]
    %v237 = vld [vmem:[%s1 + $0x4d8] sm:$0xff]
    %v238 = vld [vmem:[%s1 + $0x4e0] sm:$0xff]
    %v239 = vld [vmem:[%s1 + $0x4e8] sm:$0xff]
    %v240 = vld [vmem:[%s1 + $0x4f0] sm:$0xff]
    %v241 = vld [vmem:[%s1 + $0x4f8] sm:$0xff]
    %v242 = vld [vmem:[%s1 + $0x500] sm:$0xff]
    %v243 = vld [vmem:[%s1 + $0x508] sm:$0xff]
    %v244 = vld [vmem:[%s1 + $0x510] sm:$0xff]
    %v245 = vld [vmem:[%s1 + $0x518] sm:$0xff]
    %v246 = vld [vmem:[%s1 + $0x520] sm:$0xff]
    %v247 = vld [vmem:[%s1 + $0x528] sm:$0xff]
    %v248 = vld [vmem:[%s1 + $0x530] sm:$0xff]
    %v249 = vld [vmem:[%s1 + $0x538] sm:$0xff]
    %v250 = vld [vmem:[%s1 + $0x540] sm:$0xff]
    %v251 = vld [vmem:[%s1 + $0x548] sm:$0xff]
    %v252 = vld [vmem:[%s1 + $0x550] sm:$0xff]
    %v253 = vld [vmem:[%s1 + $0x558] sm:$0xff]
    %v254 = vld [vmem:[%s1 + $0x560] sm:$0xff]
    %v255 = vld [vmem:[%s1 + $0x568] sm:$0xff]
    %v256 = vld [vmem:[%s1 + $0x570] sm:$0xff]
    %v257 = vld [vmem:[%s1 + $0x578] sm:$0xff]
    %v258 = vld [vmem:[%s1 + $0x580] sm:$0xff]
    %v259 = vld [vmem:[%s1 + $0x588] sm:$0xff]
    %v260 = vld [vmem:[%s1 + $0x590] sm:$0xff]
    %v261 = vld [vmem:[%s1 + $0x598] sm:$0xff]
    %v262 = vld [vmem:[%s1 + $0x5a0] sm:$0xff]
    %v263 = vld [vmem:[%s1 + $0x5a8] sm:$0xff]
    %v264 = vld [vmem:[%s1 + $0x5b0] sm:$0xff]
    %v265 = vld [vmem:[%s1 + $0x5b8] sm:$0xff]
    %v266 = vld [vmem:[%s1 + $0x5c0] sm:$0xff]
    %v267 = vld [vmem:[%s1 + $0x5c8] sm:$0xff]
    %v268 = vld [vmem:[%s1 + $0x5d0] sm:$0xff]
    %v269 = vld [vmem:[%s1 + $0x5d8] sm:$0xff]
    %v270 = vld [vmem:[%s1 + $0x5e0] sm:$0xff]
    %v271 = vld [vmem:[%s1 + $0x5e8] sm:$0xff]
    %v272 = vld [vmem:[%s1 + $0x5f0] sm:$0xff]
    %v273 = vld [vmem:[%s1 + $0x5f8] sm:$0xff]
    %v274 = vld [vmem:[%s1 + $0x600] sm:$0xff]
    %v275 = vld [vmem:[%s1 + $0x608] sm:$0xff]
    %v276 = vld [vmem:[%s1 + $0x610] sm:$0xff]
    %v277 = vld [vmem:[%s1 + $0x618] sm:$0xff]
    %v278 = vld [vmem:[%s1 + $0x620] sm:$0xff]
    %v279 = vld [vmem:[%s1 + $0x628] sm:$0xff]
    %v280 = vld [vmem:[%s1 + $0x630] sm:$0xff]
    %v281 = vld [vmem:[%s1 + $0x638] sm:$0xff]
    %v282 = vld [vmem:[%s1 + $0x640] sm:$0xff]
    %v283 = vld [vmem:[%s1 + $0x648] sm:$0xff]
    %v284 = vld [vmem:[%s1 + $0x650] sm:$0xff]
    %v285 = vld [vmem:[%s1 + $0x658] sm:$0xff]
    %v286 = vld [vmem:[%s1 + $0x660] sm:$0xff]
    %v287 = vld [vmem:[%s1 + $0x668] sm:$0xff]
    %v288 = vld [vmem:[%s1 + $0x670] sm:$0xff]
    %v289 = vld [vmem:[%s1 + $0x678] sm:$0xff]
    %v290 = vld [vmem:[%s1 + $0x680] sm:$0xff]
    %v291 = vld [vmem:[%s1 + $0x688] sm:$0xff]
    %v292 = vld [vmem:[%s1 + $0x690] sm:$0xff]
    %v293 = vld [vmem:[%s1 + $0x698] sm:$0xff]
    %v294 = vld [vmem:[%s1 + $0x6a0] sm:$0xff]
    %v295 = vld [vmem:[%s1 + $0x6a8] sm:$0xff]
    %v296 = vld [vmem:[%s1 + $0x6b0] sm:$0xff]
    %v297 = vld [vmem:[%s1 + $0x6b8] sm:$0xff]
    %v298 = vld [vmem:[%s1 + $0x6c0] sm:$0xff]
    %v299 = vld [vmem:[%s1 + $0x6c8] sm:$0xff]
    %v300 = vld [vmem:[%s1 + $0x6d0] sm:$0xff]
    %v301 = vld [vmem:[%s1 + $0x6d8] sm:$0xff]
    %v302 = vld [vmem:[%s1 + $0x6e0] sm:$0xff]
    %v303 = vld [vmem:[%s1 + $0x6e8] sm:$0xff]
    %v304 = vld [vmem:[%s1 + $0x6f0] sm:$0xff]
    %v305 = vld [vmem:[%s1 + $0x6f8] sm:$0xff]
    %v306 = vld [vmem:[%s1 + $0x700] sm:$0xff]
    %v307 = vld [vmem:[%s1 + $0x708] sm:$0xff]
    %v308 = vld [vmem:[%s1 + $0x710] sm:$0xff]
    %v309 = vld [vmem:[%s1 + $0x718] sm:$0xff]
    %v310 = vld [vmem:[%s1 + $0x720] sm:$0xff]
    %v311 = vld [vmem:[%s1 + $0x728] sm:$0xff]
    %v312 = vld [vmem:[%s1 + $0x730] sm:$0xff]
    %v313 = vld [vmem:[%s1 + $0x738] sm:$0xff]
    %v314 = vld [vmem:[%s1 + $0x740] sm:$0xff]
    %v315 = vld [vmem:[%s1 + $0x748] sm:$0xff]
    %v316 = vld [vmem:[%s1 + $0x750] sm:$0xff]
    %v317 = vld [vmem:[%s1 + $0x758] sm:$0xff]
    %v318 = vld [vmem:[%s1 + $0x760] sm:$0xff]
    %v319 = vld [vmem:[%s1 + $0x768] sm:$0xff]
    %v320 = vld [vmem:[%s1 + $0x770] sm:$0xff]
    %v321 = vld [vmem:[%s1 + $0x778] sm:$0xff]
    %v322 = vld [vmem:[%s1 + $0x780] sm:$0xff]
    %v323 = vld [vmem:[%s1 + $0x788] sm:$0xff]
    %v324 = vld [vmem:[%s1 + $0x790] sm:$0xff]
    %v325 = vld [vmem:[%s1 + $0x798] sm:$0xff]
    %v326 = vld [vmem:[%s1 + $0x7a0] sm:$0xff]
    %v327 = vld [vmem:[%s1 + $0x7a8] sm:$0xff]
    %v328 = vld [vmem:[%s1 + $0x7b0] sm:$0xff]
    %v329 = vld [vmem:[%s1 + $0x7b8] sm:$0xff]
    %v330 = vld [vmem:[%s1 + $0x7c0] sm:$0xff]
    %v331 = vld [vmem:[%s1 + $0x7c8] sm:$0xff]
    %v332 = vld [vmem:[%s1 + $0x7d0] sm:$0xff]
    %v333 = vld [vmem:[%s1 + $0x7d8] sm:$0xff]
    %v334 = vld [vmem:[%s1 + $0x7e0] sm:$0xff]
    %v335 = vld [vmem:[%s1 + $0x7e8] sm:$0xff]
    %v336 = vld [vmem:[%s1 + $0x7f0] sm:$0xff]
    %v337 = vld [vmem:[%s1 + $0x7f8] sm:$0xff]
    %v338 = vld [vmem:[%s2] sm:$0xf]
    %v340 = vlaneseq
    %v341 = vshrl.u32 %v340, 7
    %v342 = vsub.s32 0, %v341
    %v343 = vrot.slane %v338, %v342
    %v344 = vlaneseq
    %v345 = vshrl.u32 %v344, 7
    %v346 = vsub.s32 1, %v345
    %v347 = vrot.slane %v338, %v346
    %v348 = vlaneseq
    %v349 = vshrl.u32 %v348, 7
    %v350 = vsub.s32 2, %v349
    %v351 = vrot.slane %v338, %v350
    %v352 = vlaneseq
    %v353 = vshrl.u32 %v352, 7
    %v354 = vsub.s32 3, %v353
    %v355 = vrot.slane %v338, %v354
    %v616 = vunpack.c.l.b16 %v82
    %v617 = vunpack.c.h.b16 %v82
    %v618 = vunpack.c.l.b16 %v83
    %v619 = vunpack.c.h.b16 %v83
    %v620 = vunpack.c.l.b16 %v84
    %v621 = vunpack.c.h.b16 %v84
    %v622 = vunpack.c.l.b16 %v85
    %v623 = vunpack.c.h.b16 %v85
    %v624 = vunpack.c.l.b16 %v86
    %v625 = vunpack.c.h.b16 %v86
    %v626 = vunpack.c.l.b16 %v87
    %v627 = vunpack.c.h.b16 %v87
    %v628 = vunpack.c.l.b16 %v88
    %v629 = vunpack.c.h.b16 %v88
    %v630 = vunpack.c.l.b16 %v89
    %v631 = vunpack.c.h.b16 %v89
    %v632 = vunpack.c.l.b16 %v90
    %v633 = vunpack.c.h.b16 %v90
    %v634 = vunpack.c.l.b16 %v91
    %v635 = vunpack.c.h.b16 %v91
    %v636 = vunpack.c.l.b16 %v92
    %v637 = vunpack.c.h.b16 %v92
    %v638 = vunpack.c.l.b16 %v93
    %v639 = vunpack.c.h.b16 %v93
    %v640 = vunpack.c.l.b16 %v94
    %v641 = vunpack.c.h.b16 %v94
    %v642 = vunpack.c.l.b16 %v95
    %v643 = vunpack.c.h.b16 %v95
    %v644 = vunpack.c.l.b16 %v96
    %v645 = vunpack.c.h.b16 %v96
    %v646 = vunpack.c.l.b16 %v97
    %v647 = vunpack.c.h.b16 %v97
    %v648 = vunpack.c.l.b16 %v98
    %v649 = vunpack.c.h.b16 %v98
    %v650 = vunpack.c.l.b16 %v99
    %v651 = vunpack.c.h.b16 %v99
    %v652 = vunpack.c.l.b16 %v100
    %v653 = vunpack.c.h.b16 %v100
    %v654 = vunpack.c.l.b16 %v101
    %v655 = vunpack.c.h.b16 %v101
    %v656 = vunpack.c.l.b16 %v102
    %v657 = vunpack.c.h.b16 %v102
    %v658 = vunpack.c.l.b16 %v103
    %v659 = vunpack.c.h.b16 %v103
    %v660 = vunpack.c.l.b16 %v104
    %v661 = vunpack.c.h.b16 %v104
    %v662 = vunpack.c.l.b16 %v105
    %v663 = vunpack.c.h.b16 %v105
    %v664 = vunpack.c.l.b16 %v106
    %v665 = vunpack.c.h.b16 %v106
    %v666 = vunpack.c.l.b16 %v107
    %v667 = vunpack.c.h.b16 %v107
    %v668 = vunpack.c.l.b16 %v108
    %v669 = vunpack.c.h.b16 %v108
    %v670 = vunpack.c.l.b16 %v109
    %v671 = vunpack.c.h.b16 %v109
    %v672 = vunpack.c.l.b16 %v110
    %v673 = vunpack.c.h.b16 %v110
    %v674 = vunpack.c.l.b16 %v111
    %v675 = vunpack.c.h.b16 %v111
    %v676 = vunpack.c.l.b16 %v112
    %v677 = vunpack.c.h.b16 %v112
    %v678 = vunpack.c.l.b16 %v113
    %v679 = vunpack.c.h.b16 %v113
    %v680 = vunpack.c.l.b16 %v114
    %v681 = vunpack.c.h.b16 %v114
    %v682 = vunpack.c.l.b16 %v115
    %v683 = vunpack.c.h.b16 %v115
    %v684 = vunpack.c.l.b16 %v116
    %v685 = vunpack.c.h.b16 %v116
    %v686 = vunpack.c.l.b16 %v117
    %v687 = vunpack.c.h.b16 %v117
    %v688 = vunpack.c.l.b16 %v118
    %v689 = vunpack.c.h.b16 %v118
    %v690 = vunpack.c.l.b16 %v119
    %v691 = vunpack.c.h.b16 %v119
    %v692 = vunpack.c.l.b16 %v120
    %v693 = vunpack.c.h.b16 %v120
    %v694 = vunpack.c.l.b16 %v121
    %v695 = vunpack.c.h.b16 %v121
    %v696 = vunpack.c.l.b16 %v122
    %v697 = vunpack.c.h.b16 %v122
    %v698 = vunpack.c.l.b16 %v123
    %v699 = vunpack.c.h.b16 %v123
    %v700 = vunpack.c.l.b16 %v124
    %v701 = vunpack.c.h.b16 %v124
    %v702 = vunpack.c.l.b16 %v125
    %v703 = vunpack.c.h.b16 %v125
    %v704 = vunpack.c.l.b16 %v126
    %v705 = vunpack.c.h.b16 %v126
    %v706 = vunpack.c.l.b16 %v127
    %v707 = vunpack.c.h.b16 %v127
    %v708 = vunpack.c.l.b16 %v128
    %v709 = vunpack.c.h.b16 %v128
    %v710 = vunpack.c.l.b16 %v129
    %v711 = vunpack.c.h.b16 %v129
    %v712 = vunpack.c.l.b16 %v130
    %v713 = vunpack.c.h.b16 %v130
    %v714 = vunpack.c.l.b16 %v131
    %v715 = vunpack.c.h.b16 %v131
    %v716 = vunpack.c.l.b16 %v132
    %v717 = vunpack.c.h.b16 %v132
    %v718 = vunpack.c.l.b16 %v133
    %v719 = vunpack.c.h.b16 %v133
    %v720 = vunpack.c.l.b16 %v134
    %v721 = vunpack.c.h.b16 %v134
    %v722 = vunpack.c.l.b16 %v135
    %v723 = vunpack.c.h.b16 %v135
    %v724 = vunpack.c.l.b16 %v136
    %v725 = vunpack.c.h.b16 %v136
    %v726 = vunpack.c.l.b16 %v137
    %v727 = vunpack.c.h.b16 %v137
    %v728 = vunpack.c.l.b16 %v138
    %v729 = vunpack.c.h.b16 %v138
    %v730 = vunpack.c.l.b16 %v139
    %v731 = vunpack.c.h.b16 %v139
    %v732 = vunpack.c.l.b16 %v140
    %v733 = vunpack.c.h.b16 %v140
    %v734 = vunpack.c.l.b16 %v141
    %v735 = vunpack.c.h.b16 %v141
    %v736 = vunpack.c.l.b16 %v142
    %v737 = vunpack.c.h.b16 %v142
    %v738 = vunpack.c.l.b16 %v143
    %v739 = vunpack.c.h.b16 %v143
    %v740 = vunpack.c.l.b16 %v144
    %v741 = vunpack.c.h.b16 %v144
    %v742 = vunpack.c.l.b16 %v145
    %v743 = vunpack.c.h.b16 %v145
    %v744 = vunpack.c.l.b16 %v146
    %v745 = vunpack.c.h.b16 %v146
    %v746 = vunpack.c.l.b16 %v147
    %v747 = vunpack.c.h.b16 %v147
    %v748 = vunpack.c.l.b16 %v148
    %v749 = vunpack.c.h.b16 %v148
    %v750 = vunpack.c.l.b16 %v149
    %v751 = vunpack.c.h.b16 %v149
    %v752 = vunpack.c.l.b16 %v150
    %v753 = vunpack.c.h.b16 %v150
    %v754 = vunpack.c.l.b16 %v151
    %v755 = vunpack.c.h.b16 %v151
    %v756 = vunpack.c.l.b16 %v152
    %v757 = vunpack.c.h.b16 %v152
    %v758 = vunpack.c.l.b16 %v153
    %v759 = vunpack.c.h.b16 %v153
    %v760 = vunpack.c.l.b16 %v154
    %v761 = vunpack.c.h.b16 %v154
    %v762 = vunpack.c.l.b16 %v155
    %v763 = vunpack.c.h.b16 %v155
    %v764 = vunpack.c.l.b16 %v156
    %v765 = vunpack.c.h.b16 %v156
    %v766 = vunpack.c.l.b16 %v157
    %v767 = vunpack.c.h.b16 %v157
    %v768 = vunpack.c.l.b16 %v158
    %v769 = vunpack.c.h.b16 %v158
    %v770 = vunpack.c.l.b16 %v159
    %v771 = vunpack.c.h.b16 %v159
    %v772 = vunpack.c.l.b16 %v160
    %v773 = vunpack.c.h.b16 %v160
    %v774 = vunpack.c.l.b16 %v161
    %v775 = vunpack.c.h.b16 %v161
    %v776 = vunpack.c.l.b16 %v162
    %v777 = vunpack.c.h.b16 %v162
    %v778 = vunpack.c.l.b16 %v163
    %v779 = vunpack.c.h.b16 %v163
    %v780 = vunpack.c.l.b16 %v164
    %v781 = vunpack.c.h.b16 %v164
    %v782 = vunpack.c.l.b16 %v165
    %v783 = vunpack.c.h.b16 %v165
    %v784 = vunpack.c.l.b16 %v166
    %v785 = vunpack.c.h.b16 %v166
    %v786 = vunpack.c.l.b16 %v167
    %v787 = vunpack.c.h.b16 %v167
    %v788 = vunpack.c.l.b16 %v168
    %v789 = vunpack.c.h.b16 %v168
    %v790 = vunpack.c.l.b16 %v169
    %v791 = vunpack.c.h.b16 %v169
    %v792 = vunpack.c.l.b16 %v170
    %v793 = vunpack.c.h.b16 %v170
    %v794 = vunpack.c.l.b16 %v171
    %v795 = vunpack.c.h.b16 %v171
    %v796 = vunpack.c.l.b16 %v172
    %v797 = vunpack.c.h.b16 %v172
    %v798 = vunpack.c.l.b16 %v173
    %v799 = vunpack.c.h.b16 %v173
    %v800 = vunpack.c.l.b16 %v174
    %v801 = vunpack.c.h.b16 %v174
    %v802 = vunpack.c.l.b16 %v175
    %v803 = vunpack.c.h.b16 %v175
    %v804 = vunpack.c.l.b16 %v176
    %v805 = vunpack.c.h.b16 %v176
    %v806 = vunpack.c.l.b16 %v177
    %v807 = vunpack.c.h.b16 %v177
    %v808 = vunpack.c.l.b16 %v178
    %v809 = vunpack.c.h.b16 %v178
    %v810 = vunpack.c.l.b16 %v179
    %v811 = vunpack.c.h.b16 %v179
    %v812 = vunpack.c.l.b16 %v180
    %v813 = vunpack.c.h.b16 %v180
    %v814 = vunpack.c.l.b16 %v181
    %v815 = vunpack.c.h.b16 %v181
    %v816 = vunpack.c.l.b16 %v182
    %v817 = vunpack.c.h.b16 %v182
    %v818 = vunpack.c.l.b16 %v183
    %v819 = vunpack.c.h.b16 %v183
    %v820 = vunpack.c.l.b16 %v184
    %v821 = vunpack.c.h.b16 %v184
    %v822 = vunpack.c.l.b16 %v185
    %v823 = vunpack.c.h.b16 %v185
    %v824 = vunpack.c.l.b16 %v186
    %v825 = vunpack.c.h.b16 %v186
    %v826 = vunpack.c.l.b16 %v187
    %v827 = vunpack.c.h.b16 %v187
    %v828 = vunpack.c.l.b16 %v188
    %v829 = vunpack.c.h.b16 %v188
    %v830 = vunpack.c.l.b16 %v189
    %v831 = vunpack.c.h.b16 %v189
    %v832 = vunpack.c.l.b16 %v190
    %v833 = vunpack.c.h.b16 %v190
    %v834 = vunpack.c.l.b16 %v191
    %v835 = vunpack.c.h.b16 %v191
    %v836 = vunpack.c.l.b16 %v192
    %v837 = vunpack.c.h.b16 %v192
    %v838 = vunpack.c.l.b16 %v193
    %v839 = vunpack.c.h.b16 %v193
    %v840 = vunpack.c.l.b16 %v194
    %v841 = vunpack.c.h.b16 %v194
    %v842 = vunpack.c.l.b16 %v195
    %v843 = vunpack.c.h.b16 %v195
    %v844 = vunpack.c.l.b16 %v196
    %v845 = vunpack.c.h.b16 %v196
    %v846 = vunpack.c.l.b16 %v197
    %v847 = vunpack.c.h.b16 %v197
    %v848 = vunpack.c.l.b16 %v198
    %v849 = vunpack.c.h.b16 %v198
    %v850 = vunpack.c.l.b16 %v199
    %v851 = vunpack.c.h.b16 %v199
    %v852 = vunpack.c.l.b16 %v200
    %v853 = vunpack.c.h.b16 %v200
    %v854 = vunpack.c.l.b16 %v201
    %v855 = vunpack.c.h.b16 %v201
    %v856 = vunpack.c.l.b16 %v202
    %v857 = vunpack.c.h.b16 %v202
    %v858 = vunpack.c.l.b16 %v203
    %v859 = vunpack.c.h.b16 %v203
    %v860 = vunpack.c.l.b16 %v204
    %v861 = vunpack.c.h.b16 %v204
    %v862 = vunpack.c.l.b16 %v205
    %v863 = vunpack.c.h.b16 %v205
    %v864 = vunpack.c.l.b16 %v206
    %v865 = vunpack.c.h.b16 %v206
    %v866 = vunpack.c.l.b16 %v207
    %v867 = vunpack.c.h.b16 %v207
    %v868 = vunpack.c.l.b16 %v208
    %v869 = vunpack.c.h.b16 %v208
    %v870 = vunpack.c.l.b16 %v209
    %v871 = vunpack.c.h.b16 %v209
    %v872 = vunpack.c.l.b16 %v210
    %v873 = vunpack.c.h.b16 %v210
    %v874 = vunpack.c.l.b16 %v211
    %v875 = vunpack.c.h.b16 %v211
    %v876 = vunpack.c.l.b16 %v212
    %v877 = vunpack.c.h.b16 %v212
    %v878 = vunpack.c.l.b16 %v213
    %v879 = vunpack.c.h.b16 %v213
    %v880 = vunpack.c.l.b16 %v214
    %v881 = vunpack.c.h.b16 %v214
    %v882 = vunpack.c.l.b16 %v215
    %v883 = vunpack.c.h.b16 %v215
    %v884 = vunpack.c.l.b16 %v216
    %v885 = vunpack.c.h.b16 %v216
    %v886 = vunpack.c.l.b16 %v217
    %v887 = vunpack.c.h.b16 %v217
    %v888 = vunpack.c.l.b16 %v218
    %v889 = vunpack.c.h.b16 %v218
    %v890 = vunpack.c.l.b16 %v219
    %v891 = vunpack.c.h.b16 %v219
    %v892 = vunpack.c.l.b16 %v220
    %v893 = vunpack.c.h.b16 %v220
    %v894 = vunpack.c.l.b16 %v221
    %v895 = vunpack.c.h.b16 %v221
    %v896 = vunpack.c.l.b16 %v222
    %v897 = vunpack.c.h.b16 %v222
    %v898 = vunpack.c.l.b16 %v223
    %v899 = vunpack.c.h.b16 %v223
    %v900 = vunpack.c.l.b16 %v224
    %v901 = vunpack.c.h.b16 %v224
    %v902 = vunpack.c.l.b16 %v225
    %v903 = vunpack.c.h.b16 %v225
    %v904 = vunpack.c.l.b16 %v226
    %v905 = vunpack.c.h.b16 %v226
    %v906 = vunpack.c.l.b16 %v227
    %v907 = vunpack.c.h.b16 %v227
    %v908 = vunpack.c.l.b16 %v228
    %v909 = vunpack.c.h.b16 %v228
    %v910 = vunpack.c.l.b16 %v229
    %v911 = vunpack.c.h.b16 %v229
    %v912 = vunpack.c.l.b16 %v230
    %v913 = vunpack.c.h.b16 %v230
    %v914 = vunpack.c.l.b16 %v231
    %v915 = vunpack.c.h.b16 %v231
    %v916 = vunpack.c.l.b16 %v232
    %v917 = vunpack.c.h.b16 %v232
    %v918 = vunpack.c.l.b16 %v233
    %v919 = vunpack.c.h.b16 %v233
    %v920 = vunpack.c.l.b16 %v234
    %v921 = vunpack.c.h.b16 %v234
    %v922 = vunpack.c.l.b16 %v235
    %v923 = vunpack.c.h.b16 %v235
    %v924 = vunpack.c.l.b16 %v236
    %v925 = vunpack.c.h.b16 %v236
    %v926 = vunpack.c.l.b16 %v237
    %v927 = vunpack.c.h.b16 %v237
    %v928 = vunpack.c.l.b16 %v238
    %v929 = vunpack.c.h.b16 %v238
    %v930 = vunpack.c.l.b16 %v239
    %v931 = vunpack.c.h.b16 %v239
    %v932 = vunpack.c.l.b16 %v240
    %v933 = vunpack.c.h.b16 %v240
    %v934 = vunpack.c.l.b16 %v241
    %v935 = vunpack.c.h.b16 %v241
    %v936 = vunpack.c.l.b16 %v242
    %v937 = vunpack.c.h.b16 %v242
    %v938 = vunpack.c.l.b16 %v243
    %v939 = vunpack.c.h.b16 %v243
    %v940 = vunpack.c.l.b16 %v244
    %v941 = vunpack.c.h.b16 %v244
    %v942 = vunpack.c.l.b16 %v245
    %v943 = vunpack.c.h.b16 %v245
    %v944 = vunpack.c.l.b16 %v246
    %v945 = vunpack.c.h.b16 %v246
    %v946 = vunpack.c.l.b16 %v247
    %v947 = vunpack.c.h.b16 %v247
    %v948 = vunpack.c.l.b16 %v248
    %v949 = vunpack.c.h.b16 %v248
    %v950 = vunpack.c.l.b16 %v249
    %v951 = vunpack.c.h.b16 %v249
    %v952 = vunpack.c.l.b16 %v250
    %v953 = vunpack.c.h.b16 %v250
    %v954 = vunpack.c.l.b16 %v251
    %v955 = vunpack.c.h.b16 %v251
    %v956 = vunpack.c.l.b16 %v252
    %v957 = vunpack.c.h.b16 %v252
    %v958 = vunpack.c.l.b16 %v253
    %v959 = vunpack.c.h.b16 %v253
    %v960 = vunpack.c.l.b16 %v254
    %v961 = vunpack.c.h.b16 %v254
    %v962 = vunpack.c.l.b16 %v255
    %v963 = vunpack.c.h.b16 %v255
    %v964 = vunpack.c.l.b16 %v256
    %v965 = vunpack.c.h.b16 %v256
    %v966 = vunpack.c.l.b16 %v257
    %v967 = vunpack.c.h.b16 %v257
    %v968 = vunpack.c.l.b16 %v258
    %v969 = vunpack.c.h.b16 %v258
    %v970 = vunpack.c.l.b16 %v259
    %v971 = vunpack.c.h.b16 %v259
    %v972 = vunpack.c.l.b16 %v260
    %v973 = vunpack.c.h.b16 %v260
    %v974 = vunpack.c.l.b16 %v261
    %v975 = vunpack.c.h.b16 %v261
    %v976 = vunpack.c.l.b16 %v262
    %v977 = vunpack.c.h.b16 %v262
    %v978 = vunpack.c.l.b16 %v263
    %v979 = vunpack.c.h.b16 %v263
    %v980 = vunpack.c.l.b16 %v264
    %v981 = vunpack.c.h.b16 %v264
    %v982 = vunpack.c.l.b16 %v265
    %v983 = vunpack.c.h.b16 %v265
    %v984 = vunpack.c.l.b16 %v266
    %v985 = vunpack.c.h.b16 %v266
    %v986 = vunpack.c.l.b16 %v267
    %v987 = vunpack.c.h.b16 %v267
    %v988 = vunpack.c.l.b16 %v268
    %v989 = vunpack.c.h.b16 %v268
    %v990 = vunpack.c.l.b16 %v269
    %v991 = vunpack.c.h.b16 %v269
    %v992 = vunpack.c.l.b16 %v270
    %v993 = vunpack.c.h.b16 %v270
    %v994 = vunpack.c.l.b16 %v271
    %v995 = vunpack.c.h.b16 %v271
    %v996 = vunpack.c.l.b16 %v272
    %v997 = vunpack.c.h.b16 %v272
    %v998 = vunpack.c.l.b16 %v273
    %v999 = vunpack.c.h.b16 %v273
    %v1000 = vunpack.c.l.b16 %v274
    %v1001 = vunpack.c.h.b16 %v274
    %v1002 = vunpack.c.l.b16 %v275
    %v1003 = vunpack.c.h.b16 %v275
    %v1004 = vunpack.c.l.b16 %v276
    %v1005 = vunpack.c.h.b16 %v276
    %v1006 = vunpack.c.l.b16 %v277
    %v1007 = vunpack.c.h.b16 %v277
    %v1008 = vunpack.c.l.b16 %v278
    %v1009 = vunpack.c.h.b16 %v278
    %v1010 = vunpack.c.l.b16 %v279
    %v1011 = vunpack.c.h.b16 %v279
    %v1012 = vunpack.c.l.b16 %v280
    %v1013 = vunpack.c.h.b16 %v280
    %v1014 = vunpack.c.l.b16 %v281
    %v1015 = vunpack.c.h.b16 %v281
    %v1016 = vunpack.c.l.b16 %v282
    %v1017 = vunpack.c.h.b16 %v282
    %v1018 = vunpack.c.l.b16 %v283
    %v1019 = vunpack.c.h.b16 %v283
    %v1020 = vunpack.c.l.b16 %v284
    %v1021 = vunpack.c.h.b16 %v284
    %v1022 = vunpack.c.l.b16 %v285
    %v1023 = vunpack.c.h.b16 %v285
    %v1024 = vunpack.c.l.b16 %v286
    %v1025 = vunpack.c.h.b16 %v286
    %v1026 = vunpack.c.l.b16 %v287
    %v1027 = vunpack.c.h.b16 %v287
    %v1028 = vunpack.c.l.b16 %v288
    %v1029 = vunpack.c.h.b16 %v288
    %v1030 = vunpack.c.l.b16 %v289
    %v1031 = vunpack.c.h.b16 %v289
    %v1032 = vunpack.c.l.b16 %v290
    %v1033 = vunpack.c.h.b16 %v290
    %v1034 = vunpack.c.l.b16 %v291
    %v1035 = vunpack.c.h.b16 %v291
    %v1036 = vunpack.c.l.b16 %v292
    %v1037 = vunpack.c.h.b16 %v292
    %v1038 = vunpack.c.l.b16 %v293
    %v1039 = vunpack.c.h.b16 %v293
    %v1040 = vunpack.c.l.b16 %v294
    %v1041 = vunpack.c.h.b16 %v294
    %v1042 = vunpack.c.l.b16 %v295
    %v1043 = vunpack.c.h.b16 %v295
    %v1044 = vunpack.c.l.b16 %v296
    %v1045 = vunpack.c.h.b16 %v296
    %v1046 = vunpack.c.l.b16 %v297
    %v1047 = vunpack.c.h.b16 %v297
    %v1048 = vunpack.c.l.b16 %v298
    %v1049 = vunpack.c.h.b16 %v298
    %v1050 = vunpack.c.l.b16 %v299
    %v1051 = vunpack.c.h.b16 %v299
    %v1052 = vunpack.c.l.b16 %v300
    %v1053 = vunpack.c.h.b16 %v300
    %v1054 = vunpack.c.l.b16 %v301
    %v1055 = vunpack.c.h.b16 %v301
    %v1056 = vunpack.c.l.b16 %v302
    %v1057 = vunpack.c.h.b16 %v302
    %v1058 = vunpack.c.l.b16 %v303
    %v1059 = vunpack.c.h.b16 %v303
    %v1060 = vunpack.c.l.b16 %v304
    %v1061 = vunpack.c.h.b16 %v304
    %v1062 = vunpack.c.l.b16 %v305
    %v1063 = vunpack.c.h.b16 %v305
    %v1064 = vunpack.c.l.b16 %v306
    %v1065 = vunpack.c.h.b16 %v306
    %v1066 = vunpack.c.l.b16 %v307
    %v1067 = vunpack.c.h.b16 %v307
    %v1068 = vunpack.c.l.b16 %v308
    %v1069 = vunpack.c.h.b16 %v308
    %v1070 = vunpack.c.l.b16 %v309
    %v1071 = vunpack.c.h.b16 %v309
    %v1072 = vunpack.c.l.b16 %v310
    %v1073 = vunpack.c.h.b16 %v310
    %v1074 = vunpack.c.l.b16 %v311
    %v1075 = vunpack.c.h.b16 %v311
    %v1076 = vunpack.c.l.b16 %v312
    %v1077 = vunpack.c.h.b16 %v312
    %v1078 = vunpack.c.l.b16 %v313
    %v1079 = vunpack.c.h.b16 %v313
    %v1080 = vunpack.c.l.b16 %v314
    %v1081 = vunpack.c.h.b16 %v314
    %v1082 = vunpack.c.l.b16 %v315
    %v1083 = vunpack.c.h.b16 %v315
    %v1084 = vunpack.c.l.b16 %v316
    %v1085 = vunpack.c.h.b16 %v316
    %v1086 = vunpack.c.l.b16 %v317
    %v1087 = vunpack.c.h.b16 %v317
    %v1088 = vunpack.c.l.b16 %v318
    %v1089 = vunpack.c.h.b16 %v318
    %v1090 = vunpack.c.l.b16 %v319
    %v1091 = vunpack.c.h.b16 %v319
    %v1092 = vunpack.c.l.b16 %v320
    %v1093 = vunpack.c.h.b16 %v320
    %v1094 = vunpack.c.l.b16 %v321
    %v1095 = vunpack.c.h.b16 %v321
    %v1096 = vunpack.c.l.b16 %v322
    %v1097 = vunpack.c.h.b16 %v322
    %v1098 = vunpack.c.l.b16 %v323
    %v1099 = vunpack.c.h.b16 %v323
    %v1100 = vunpack.c.l.b16 %v324
    %v1101 = vunpack.c.h.b16 %v324
    %v1102 = vunpack.c.l.b16 %v325
    %v1103 = vunpack.c.h.b16 %v325
    %v1104 = vunpack.c.l.b16 %v326
    %v1105 = vunpack.c.h.b16 %v326
    %v1106 = vunpack.c.l.b16 %v327
    %v1107 = vunpack.c.h.b16 %v327
    %v1108 = vunpack.c.l.b16 %v328
    %v1109 = vunpack.c.h.b16 %v328
    %v1110 = vunpack.c.l.b16 %v329
    %v1111 = vunpack.c.h.b16 %v329
    %v1112 = vunpack.c.l.b16 %v330
    %v1113 = vunpack.c.h.b16 %v330
    %v1114 = vunpack.c.l.b16 %v331
    %v1115 = vunpack.c.h.b16 %v331
    %v1116 = vunpack.c.l.b16 %v332
    %v1117 = vunpack.c.h.b16 %v332
    %v1118 = vunpack.c.l.b16 %v333
    %v1119 = vunpack.c.h.b16 %v333
    %v1120 = vunpack.c.l.b16 %v334
    %v1121 = vunpack.c.h.b16 %v334
    %v1122 = vunpack.c.l.b16 %v335
    %v1123 = vunpack.c.h.b16 %v335
    %v1124 = vunpack.c.l.b16 %v336
    %v1125 = vunpack.c.h.b16 %v336
    %v1126 = vunpack.c.l.b16 %v337
    %v1127 = vunpack.c.h.b16 %v337
    %v1128 = vpack.c.b16 %v620, %v616
    %v1129 = vpack.c.b16 %v621, %v617
    %v1130 = vpack.c.b16 %v622, %v618
    %v1131 = vpack.c.b16 %v623, %v619
    %v1132 = vpack.c.b16 %v628, %v624
    %v1133 = vpack.c.b16 %v629, %v625
    %v1134 = vpack.c.b16 %v630, %v626
    %v1135 = vpack.c.b16 %v631, %v627
    %v1136 = vpack.c.b16 %v636, %v632
    %v1137 = vpack.c.b16 %v637, %v633
    %v1138 = vpack.c.b16 %v638, %v634
    %v1139 = vpack.c.b16 %v639, %v635
    %v1140 = vpack.c.b16 %v644, %v640
    %v1141 = vpack.c.b16 %v645, %v641
    %v1142 = vpack.c.b16 %v646, %v642
    %v1143 = vpack.c.b16 %v647, %v643
    %v1144 = vpack.c.b16 %v652, %v648
    %v1145 = vpack.c.b16 %v653, %v649
    %v1146 = vpack.c.b16 %v654, %v650
    %v1147 = vpack.c.b16 %v655, %v651
    %v1148 = vpack.c.b16 %v660, %v656
    %v1149 = vpack.c.b16 %v661, %v657
    %v1150 = vpack.c.b16 %v662, %v658
    %v1151 = vpack.c.b16 %v663, %v659
    %v1152 = vpack.c.b16 %v668, %v664
    %v1153 = vpack.c.b16 %v669, %v665
    %v1154 = vpack.c.b16 %v670, %v666
    %v1155 = vpack.c.b16 %v671, %v667
    %v1156 = vpack.c.b16 %v676, %v672
    %v1157 = vpack.c.b16 %v677, %v673
    %v1158 = vpack.c.b16 %v678, %v674
    %v1159 = vpack.c.b16 %v679, %v675
    %v1160 = vpack.c.b16 %v684, %v680
    %v1161 = vpack.c.b16 %v685, %v681
    %v1162 = vpack.c.b16 %v686, %v682
    %v1163 = vpack.c.b16 %v687, %v683
    %v1164 = vpack.c.b16 %v692, %v688
    %v1165 = vpack.c.b16 %v693, %v689
    %v1166 = vpack.c.b16 %v694, %v690
    %v1167 = vpack.c.b16 %v695, %v691
    %v1168 = vpack.c.b16 %v700, %v696
    %v1169 = vpack.c.b16 %v701, %v697
    %v1170 = vpack.c.b16 %v702, %v698
    %v1171 = vpack.c.b16 %v703, %v699
    %v1172 = vpack.c.b16 %v708, %v704
    %v1173 = vpack.c.b16 %v709, %v705
    %v1174 = vpack.c.b16 %v710, %v706
    %v1175 = vpack.c.b16 %v711, %v707
    %v1176 = vpack.c.b16 %v716, %v712
    %v1177 = vpack.c.b16 %v717, %v713
    %v1178 = vpack.c.b16 %v718, %v714
    %v1179 = vpack.c.b16 %v719, %v715
    %v1180 = vpack.c.b16 %v724, %v720
    %v1181 = vpack.c.b16 %v725, %v721
    %v1182 = vpack.c.b16 %v726, %v722
    %v1183 = vpack.c.b16 %v727, %v723
    %v1184 = vpack.c.b16 %v732, %v728
    %v1185 = vpack.c.b16 %v733, %v729
    %v1186 = vpack.c.b16 %v734, %v730
    %v1187 = vpack.c.b16 %v735, %v731
    %v1188 = vpack.c.b16 %v740, %v736
    %v1189 = vpack.c.b16 %v741, %v737
    %v1190 = vpack.c.b16 %v742, %v738
    %v1191 = vpack.c.b16 %v743, %v739
    %v1192 = vpack.c.b16 %v748, %v744
    %v1193 = vpack.c.b16 %v749, %v745
    %v1194 = vpack.c.b16 %v750, %v746
    %v1195 = vpack.c.b16 %v751, %v747
    %v1196 = vpack.c.b16 %v756, %v752
    %v1197 = vpack.c.b16 %v757, %v753
    %v1198 = vpack.c.b16 %v758, %v754
    %v1199 = vpack.c.b16 %v759, %v755
    %v1200 = vpack.c.b16 %v764, %v760
    %v1201 = vpack.c.b16 %v765, %v761
    %v1202 = vpack.c.b16 %v766, %v762
    %v1203 = vpack.c.b16 %v767, %v763
    %v1204 = vpack.c.b16 %v772, %v768
    %v1205 = vpack.c.b16 %v773, %v769
    %v1206 = vpack.c.b16 %v774, %v770
    %v1207 = vpack.c.b16 %v775, %v771
    %v1208 = vpack.c.b16 %v780, %v776
    %v1209 = vpack.c.b16 %v781, %v777
    %v1210 = vpack.c.b16 %v782, %v778
    %v1211 = vpack.c.b16 %v783, %v779
    %v1212 = vpack.c.b16 %v788, %v784
    %v1213 = vpack.c.b16 %v789, %v785
    %v1214 = vpack.c.b16 %v790, %v786
    %v1215 = vpack.c.b16 %v791, %v787
    %v1216 = vpack.c.b16 %v796, %v792
    %v1217 = vpack.c.b16 %v797, %v793
    %v1218 = vpack.c.b16 %v798, %v794
    %v1219 = vpack.c.b16 %v799, %v795
    %v1220 = vpack.c.b16 %v804, %v800
    %v1221 = vpack.c.b16 %v805, %v801
    %v1222 = vpack.c.b16 %v806, %v802
    %v1223 = vpack.c.b16 %v807, %v803
    %v1224 = vpack.c.b16 %v812, %v808
    %v1225 = vpack.c.b16 %v813, %v809
    %v1226 = vpack.c.b16 %v814, %v810
    %v1227 = vpack.c.b16 %v815, %v811
    %v1228 = vpack.c.b16 %v820, %v816
    %v1229 = vpack.c.b16 %v821, %v817
    %v1230 = vpack.c.b16 %v822, %v818
    %v1231 = vpack.c.b16 %v823, %v819
    %v1232 = vpack.c.b16 %v828, %v824
    %v1233 = vpack.c.b16 %v829, %v825
    %v1234 = vpack.c.b16 %v830, %v826
    %v1235 = vpack.c.b16 %v831, %v827
    %v1236 = vpack.c.b16 %v836, %v832
    %v1237 = vpack.c.b16 %v837, %v833
    %v1238 = vpack.c.b16 %v838, %v834
    %v1239 = vpack.c.b16 %v839, %v835
    %v1240 = vpack.c.b16 %v844, %v840
    %v1241 = vpack.c.b16 %v845, %v841
    %v1242 = vpack.c.b16 %v846, %v842
    %v1243 = vpack.c.b16 %v847, %v843
    %v1244 = vpack.c.b16 %v852, %v848
    %v1245 = vpack.c.b16 %v853, %v849
    %v1246 = vpack.c.b16 %v854, %v850
    %v1247 = vpack.c.b16 %v855, %v851
    %v1248 = vpack.c.b16 %v860, %v856
    %v1249 = vpack.c.b16 %v861, %v857
    %v1250 = vpack.c.b16 %v862, %v858
    %v1251 = vpack.c.b16 %v863, %v859
    %v1252 = vpack.c.b16 %v868, %v864
    %v1253 = vpack.c.b16 %v869, %v865
    %v1254 = vpack.c.b16 %v870, %v866
    %v1255 = vpack.c.b16 %v871, %v867
    %v1256 = vpack.c.b16 %v876, %v872
    %v1257 = vpack.c.b16 %v877, %v873
    %v1258 = vpack.c.b16 %v878, %v874
    %v1259 = vpack.c.b16 %v879, %v875
    %v1260 = vpack.c.b16 %v884, %v880
    %v1261 = vpack.c.b16 %v885, %v881
    %v1262 = vpack.c.b16 %v886, %v882
    %v1263 = vpack.c.b16 %v887, %v883
    %v1264 = vpack.c.b16 %v892, %v888
    %v1265 = vpack.c.b16 %v893, %v889
    %v1266 = vpack.c.b16 %v894, %v890
    %v1267 = vpack.c.b16 %v895, %v891
    %v1268 = vpack.c.b16 %v900, %v896
    %v1269 = vpack.c.b16 %v901, %v897
    %v1270 = vpack.c.b16 %v902, %v898
    %v1271 = vpack.c.b16 %v903, %v899
    %v1272 = vpack.c.b16 %v908, %v904
    %v1273 = vpack.c.b16 %v909, %v905
    %v1274 = vpack.c.b16 %v910, %v906
    %v1275 = vpack.c.b16 %v911, %v907
    %v1276 = vpack.c.b16 %v916, %v912
    %v1277 = vpack.c.b16 %v917, %v913
    %v1278 = vpack.c.b16 %v918, %v914
    %v1279 = vpack.c.b16 %v919, %v915
    %v1280 = vpack.c.b16 %v924, %v920
    %v1281 = vpack.c.b16 %v925, %v921
    %v1282 = vpack.c.b16 %v926, %v922
    %v1283 = vpack.c.b16 %v927, %v923
    %v1284 = vpack.c.b16 %v932, %v928
    %v1285 = vpack.c.b16 %v933, %v929
    %v1286 = vpack.c.b16 %v934, %v930
    %v1287 = vpack.c.b16 %v935, %v931
    %v1288 = vpack.c.b16 %v940, %v936
    %v1289 = vpack.c.b16 %v941, %v937
    %v1290 = vpack.c.b16 %v942, %v938
    %v1291 = vpack.c.b16 %v943, %v939
    %v1292 = vpack.c.b16 %v948, %v944
    %v1293 = vpack.c.b16 %v949, %v945
    %v1294 = vpack.c.b16 %v950, %v946
    %v1295 = vpack.c.b16 %v951, %v947
    %v1296 = vpack.c.b16 %v956, %v952
    %v1297 = vpack.c.b16 %v957, %v953
    %v1298 = vpack.c.b16 %v958, %v954
    %v1299 = vpack.c.b16 %v959, %v955
    %v1300 = vpack.c.b16 %v964, %v960
    %v1301 = vpack.c.b16 %v965, %v961
    %v1302 = vpack.c.b16 %v966, %v962
    %v1303 = vpack.c.b16 %v967, %v963
    %v1304 = vpack.c.b16 %v972, %v968
    %v1305 = vpack.c.b16 %v973, %v969
    %v1306 = vpack.c.b16 %v974, %v970
    %v1307 = vpack.c.b16 %v975, %v971
    %v1308 = vpack.c.b16 %v980, %v976
    %v1309 = vpack.c.b16 %v981, %v977
    %v1310 = vpack.c.b16 %v982, %v978
    %v1311 = vpack.c.b16 %v983, %v979
    %v1312 = vpack.c.b16 %v988, %v984
    %v1313 = vpack.c.b16 %v989, %v985
    %v1314 = vpack.c.b16 %v990, %v986
    %v1315 = vpack.c.b16 %v991, %v987
    %v1316 = vpack.c.b16 %v996, %v992
    %v1317 = vpack.c.b16 %v997, %v993
    %v1318 = vpack.c.b16 %v998, %v994
    %v1319 = vpack.c.b16 %v999, %v995
    %v1320 = vpack.c.b16 %v1004, %v1000
    %v1321 = vpack.c.b16 %v1005, %v1001
    %v1322 = vpack.c.b16 %v1006, %v1002
    %v1323 = vpack.c.b16 %v1007, %v1003
    %v1324 = vpack.c.b16 %v1012, %v1008
    %v1325 = vpack.c.b16 %v1013, %v1009
    %v1326 = vpack.c.b16 %v1014, %v1010
    %v1327 = vpack.c.b16 %v1015, %v1011
    %v1328 = vpack.c.b16 %v1020, %v1016
    %v1329 = vpack.c.b16 %v1021, %v1017
    %v1330 = vpack.c.b16 %v1022, %v1018
    %v1331 = vpack.c.b16 %v1023, %v1019
    %v1332 = vpack.c.b16 %v1028, %v1024
    %v1333 = vpack.c.b16 %v1029, %v1025
    %v1334 = vpack.c.b16 %v1030, %v1026
    %v1335 = vpack.c.b16 %v1031, %v1027
    %v1336 = vpack.c.b16 %v1036, %v1032
    %v1337 = vpack.c.b16 %v1037, %v1033
    %v1338 = vpack.c.b16 %v1038, %v1034
    %v1339 = vpack.c.b16 %v1039, %v1035
    %v1340 = vpack.c.b16 %v1044, %v1040
    %v1341 = vpack.c.b16 %v1045, %v1041
    %v1342 = vpack.c.b16 %v1046, %v1042
    %v1343 = vpack.c.b16 %v1047, %v1043
    %v1344 = vpack.c.b16 %v1052, %v1048
    %v1345 = vpack.c.b16 %v1053, %v1049
    %v1346 = vpack.c.b16 %v1054, %v1050
    %v1347 = vpack.c.b16 %v1055, %v1051
    %v1348 = vpack.c.b16 %v1060, %v1056
    %v1349 = vpack.c.b16 %v1061, %v1057
    %v1350 = vpack.c.b16 %v1062, %v1058
    %v1351 = vpack.c.b16 %v1063, %v1059
    %v1352 = vpack.c.b16 %v1068, %v1064
    %v1353 = vpack.c.b16 %v1069, %v1065
    %v1354 = vpack.c.b16 %v1070, %v1066
    %v1355 = vpack.c.b16 %v1071, %v1067
    %v1356 = vpack.c.b16 %v1076, %v1072
    %v1357 = vpack.c.b16 %v1077, %v1073
    %v1358 = vpack.c.b16 %v1078, %v1074
    %v1359 = vpack.c.b16 %v1079, %v1075
    %v1360 = vpack.c.b16 %v1084, %v1080
    %v1361 = vpack.c.b16 %v1085, %v1081
    %v1362 = vpack.c.b16 %v1086, %v1082
    %v1363 = vpack.c.b16 %v1087, %v1083
    %v1364 = vpack.c.b16 %v1092, %v1088
    %v1365 = vpack.c.b16 %v1093, %v1089
    %v1366 = vpack.c.b16 %v1094, %v1090
    %v1367 = vpack.c.b16 %v1095, %v1091
    %v1368 = vpack.c.b16 %v1100, %v1096
    %v1369 = vpack.c.b16 %v1101, %v1097
    %v1370 = vpack.c.b16 %v1102, %v1098
    %v1371 = vpack.c.b16 %v1103, %v1099
    %v1372 = vpack.c.b16 %v1108, %v1104
    %v1373 = vpack.c.b16 %v1109, %v1105
    %v1374 = vpack.c.b16 %v1110, %v1106
    %v1375 = vpack.c.b16 %v1111, %v1107
    %v1376 = vpack.c.b16 %v1116, %v1112
    %v1377 = vpack.c.b16 %v1117, %v1113
    %v1378 = vpack.c.b16 %v1118, %v1114
    %v1379 = vpack.c.b16 %v1119, %v1115
    %v1380 = vpack.c.b16 %v1124, %v1120
    %v1381 = vpack.c.b16 %v1125, %v1121
    %v1382 = vpack.c.b16 %v1126, %v1122
    %v1383 = vpack.c.b16 %v1127, %v1123
    %1640 = vmatprep.subr.bf16.mxu0 %v1129
    %1641 = vmatpush1.bf16.msra.mxu0 %v1128
    %1642 = vmatprep.subr.bf16.mxu0 %v1133
    %1643 = vmatpush1.bf16.msra.mxu0 %v1132
    %1644 = vmatprep.subr.bf16.mxu0 %v1137
    %1645 = vmatpush1.bf16.msra.mxu0 %v1136
    %1646 = vmatprep.subr.bf16.mxu0 %v1141
    %1647 = vmatpush1.bf16.msra.mxu0 %v1140
    %1648 = vmatprep.subr.bf16.mxu0 %v1145
    %1649 = vmatpush1.bf16.msra.mxu0 %v1144
    %1650 = vmatprep.subr.bf16.mxu0 %v1149
    %1651 = vmatpush1.bf16.msra.mxu0 %v1148
    %1652 = vmatprep.subr.bf16.mxu0 %v1153
    %1653 = vmatpush1.bf16.msra.mxu0 %v1152
    %1654 = vmatprep.subr.bf16.mxu0 %v1157
    %1655 = vmatpush1.bf16.msra.mxu0 %v1156
    %1656 = vmatprep.subr.bf16.mxu0 %v1161
    %1657 = vmatpush1.bf16.msra.mxu0 %v1160
    %1658 = vmatprep.subr.bf16.mxu0 %v1165
    %1659 = vmatpush1.bf16.msra.mxu0 %v1164
    %1660 = vmatprep.subr.bf16.mxu0 %v1169
    %1661 = vmatpush1.bf16.msra.mxu0 %v1168
    %1662 = vmatprep.subr.bf16.mxu0 %v1173
    %1663 = vmatpush1.bf16.msra.mxu0 %v1172
    %1664 = vmatprep.subr.bf16.mxu0 %v1177
    %1665 = vmatpush1.bf16.msra.mxu0 %v1176
    %1666 = vmatprep.subr.bf16.mxu0 %v1181
    %1667 = vmatpush1.bf16.msra.mxu0 %v1180
    %1668 = vmatprep.subr.bf16.mxu0 %v1185
    %1669 = vmatpush1.bf16.msra.mxu0 %v1184
    %1670 = vmatprep.subr.bf16.mxu0 %v1189
    %1671 = vmatpush1.bf16.msra.mxu0 %v1188
    %1672 = vmatprep.mubr.bf16.mxu0 %v75
    %1673 = vmatmul.mubr.bf16.gmra.mrb[0].mxu0 %v74
    %v1674 = vpop.f32.mrb[0].mxu0
    %v1675 = vadd.f32 %v343, %v1674
    %v1676 = vpop.f32.mrb[0].mxu0
    %v1677 = vadd.f32 %v347, %v1676
    %v1678 = vpop.f32.mrb[0].mxu0
    %v1679 = vpop.f32.mrb[0].mxu0
    %1680 = vdwg.mxu0
    %1681 = vmatprep.subr.bf16.mxu0 %v1193
    %1682 = vmatpush1.bf16.msra.mxu0 %v1192
    %1683 = vmatprep.subr.bf16.mxu0 %v1197
    %1684 = vmatpush1.bf16.msra.mxu0 %v1196
    %1685 = vmatprep.subr.bf16.mxu0 %v1201
    %1686 = vmatpush1.bf16.msra.mxu0 %v1200
    %1687 = vmatprep.subr.bf16.mxu0 %v1205
    %1688 = vmatpush1.bf16.msra.mxu0 %v1204
    %1689 = vmatprep.subr.bf16.mxu0 %v1209
    %1690 = vmatpush1.bf16.msra.mxu0 %v1208
    %1691 = vmatprep.subr.bf16.mxu0 %v1213
    %1692 = vmatpush1.bf16.msra.mxu0 %v1212
    %1693 = vmatprep.subr.bf16.mxu0 %v1217
    %1694 = vmatpush1.bf16.msra.mxu0 %v1216
    %1695 = vmatprep.subr.bf16.mxu0 %v1221
    %1696 = vmatpush1.bf16.msra.mxu0 %v1220
    %1697 = vmatprep.subr.bf16.mxu0 %v1225
    %1698 = vmatpush1.bf16.msra.mxu0 %v1224
    %1699 = vmatprep.subr.bf16.mxu0 %v1229
    %1700 = vmatpush1.bf16.msra.mxu0 %v1228
    %1701 = vmatprep.subr.bf16.mxu0 %v1233
    %1702 = vmatpush1.bf16.msra.mxu0 %v1232
    %1703 = vmatprep.subr.bf16.mxu0 %v1237
    %1704 = vmatpush1.bf16.msra.mxu0 %v1236
    %1705 = vmatprep.subr.bf16.mxu0 %v1241
    %1706 = vmatpush1.bf16.msra.mxu0 %v1240
    %1707 = vmatprep.subr.bf16.mxu0 %v1245
    %1708 = vmatpush1.bf16.msra.mxu0 %v1244
    %1709 = vmatprep.subr.bf16.mxu0 %v1249
    %1710 = vmatpush1.bf16.msra.mxu0 %v1248
    %1711 = vmatprep.subr.bf16.mxu0 %v1253
    %1712 = vmatpush1.bf16.msra.mxu0 %v1252
    %1713 = vmatprep.mubr.bf16.mxu0 %v77
    %1714 = vmatmul.mubr.bf16.gmra.mrb[0].mxu0 %v76
    %v1715 = vpop.f32.mrb[0].mxu0
    %v1716 = vadd.f32 %v1675, %v1715
    %v1717 = vpop.f32.mrb[0].mxu0
    %v1718 = vadd.f32 %v1677, %v1717
    %v1719 = vpop.f32.mrb[0].mxu0
    %v1720 = vpop.f32.mrb[0].mxu0
    %1721 = vdwg.mxu0
    %1722 = vmatprep.subr.bf16.mxu0 %v1257
    %1723 = vmatpush1.bf16.msra.mxu0 %v1256
    %1724 = vmatprep.subr.bf16.mxu0 %v1261
    %1725 = vmatpush1.bf16.msra.mxu0 %v1260
    %1726 = vmatprep.subr.bf16.mxu0 %v1265
    %1727 = vmatpush1.bf16.msra.mxu0 %v1264
    %1728 = vmatprep.subr.bf16.mxu0 %v1269
    %1729 = vmatpush1.bf16.msra.mxu0 %v1268
    %1730 = vmatprep.subr.bf16.mxu0 %v1273
    %1731 = vmatpush1.bf16.msra.mxu0 %v1272
    %1732 = vmatprep.subr.bf16.mxu0 %v1277
    %1733 = vmatpush1.bf16.msra.mxu0 %v1276
    %1734 = vmatprep.subr.bf16.mxu0 %v1281
    %1735 = vmatpush1.bf16.msra.mxu0 %v1280
    %1736 = vmatprep.subr.bf16.mxu0 %v1285
    %1737 = vmatpush1.bf16.msra.mxu0 %v1284
    %1738 = vmatprep.subr.bf16.mxu0 %v1289
    %1739 = vmatpush1.bf16.msra.mxu0 %v1288
    %1740 = vmatprep.subr.bf16.mxu0 %v1293
    %1741 = vmatpush1.bf16.msra.mxu0 %v1292
    %1742 = vmatprep.subr.bf16.mxu0 %v1297
    %1743 = vmatpush1.bf16.msra.mxu0 %v1296
    %1744 = vmatprep.subr.bf16.mxu0 %v1301
    %1745 = vmatpush1.bf16.msra.mxu0 %v1300
    %1746 = vmatprep.subr.bf16.mxu0 %v1305
    %1747 = vmatpush1.bf16.msra.mxu0 %v1304
    %1748 = vmatprep.subr.bf16.mxu0 %v1309
    %1749 = vmatpush1.bf16.msra.mxu0 %v1308
    %1750 = vmatprep.subr.bf16.mxu0 %v1313
    %1751 = vmatpush1.bf16.msra.mxu0 %v1312
    %1752 = vmatprep.subr.bf16.mxu0 %v1317
    %1753 = vmatpush1.bf16.msra.mxu0 %v1316
    %1754 = vmatprep.mubr.bf16.mxu0 %v79
    %1755 = vmatmul.mubr.bf16.gmra.mrb[0].mxu0 %v78
    %v1756 = vpop.f32.mrb[0].mxu0
    %v1757 = vadd.f32 %v1716, %v1756
    %v1758 = vpop.f32.mrb[0].mxu0
    %v1759 = vadd.f32 %v1718, %v1758
    %v1760 = vpop.f32.mrb[0].mxu0
    %v1761 = vpop.f32.mrb[0].mxu0
    %1762 = vdwg.mxu0
    %1763 = vmatprep.subr.bf16.mxu0 %v1321
    %1764 = vmatpush1.bf16.msra.mxu0 %v1320
    %1765 = vmatprep.subr.bf16.mxu0 %v1325
    %1766 = vmatpush1.bf16.msra.mxu0 %v1324
    %1767 = vmatprep.subr.bf16.mxu0 %v1329
    %1768 = vmatpush1.bf16.msra.mxu0 %v1328
    %1769 = vmatprep.subr.bf16.mxu0 %v1333
    %1770 = vmatpush1.bf16.msra.mxu0 %v1332
    %1771 = vmatprep.subr.bf16.mxu0 %v1337
    %1772 = vmatpush1.bf16.msra.mxu0 %v1336
    %1773 = vmatprep.subr.bf16.mxu0 %v1341
    %1774 = vmatpush1.bf16.msra.mxu0 %v1340
    %1775 = vmatprep.subr.bf16.mxu0 %v1345
    %1776 = vmatpush1.bf16.msra.mxu0 %v1344
    %1777 = vmatprep.subr.bf16.mxu0 %v1349
    %1778 = vmatpush1.bf16.msra.mxu0 %v1348
    %1779 = vmatprep.subr.bf16.mxu0 %v1353
    %1780 = vmatpush1.bf16.msra.mxu0 %v1352
    %1781 = vmatprep.subr.bf16.mxu0 %v1357
    %1782 = vmatpush1.bf16.msra.mxu0 %v1356
    %1783 = vmatprep.subr.bf16.mxu0 %v1361
    %1784 = vmatpush1.bf16.msra.mxu0 %v1360
    %1785 = vmatprep.subr.bf16.mxu0 %v1365
    %1786 = vmatpush1.bf16.msra.mxu0 %v1364
    %1787 = vmatprep.subr.bf16.mxu0 %v1369
    %1788 = vmatpush1.bf16.msra.mxu0 %v1368
    %1789 = vmatprep.subr.bf16.mxu0 %v1373
    %1790 = vmatpush1.bf16.msra.mxu0 %v1372
    %1791 = vmatprep.subr.bf16.mxu0 %v1377
    %1792 = vmatpush1.bf16.msra.mxu0 %v1376
    %1793 = vmatprep.subr.bf16.mxu0 %v1381
    %1794 = vmatpush1.bf16.msra.mxu0 %v1380
    %1795 = vmatprep.mubr.bf16.mxu0 %v81
    %1796 = vmatmul.mubr.bf16.gmra.mrb[0].mxu0 %v80
    %v1797 = vpop.f32.mrb[0].mxu0
    %v1798 = vadd.f32 %v1757, %v1797
    %v1799 = vpop.f32.mrb[0].mxu0
    %v1800 = vadd.f32 %v1759, %v1799
    %v1801 = vpop.f32.mrb[0].mxu0
    %v1802 = vpop.f32.mrb[0].mxu0
    %1803 = vdwg.mxu0
    %1804 = vmatprep.subr.bf16.mxu0 %v1131
    %1805 = vmatpush1.bf16.msra.mxu0 %v1130
    %1806 = vmatprep.subr.bf16.mxu0 %v1135
    %1807 = vmatpush1.bf16.msra.mxu0 %v1134
    %1808 = vmatprep.subr.bf16.mxu0 %v1139
    %1809 = vmatpush1.bf16.msra.mxu0 %v1138
    %1810 = vmatprep.subr.bf16.mxu0 %v1143
    %1811 = vmatpush1.bf16.msra.mxu0 %v1142
    %1812 = vmatprep.subr.bf16.mxu0 %v1147
    %1813 = vmatpush1.bf16.msra.mxu0 %v1146
    %1814 = vmatprep.subr.bf16.mxu0 %v1151
    %1815 = vmatpush1.bf16.msra.mxu0 %v1150
    %1816 = vmatprep.subr.bf16.mxu0 %v1155
    %1817 = vmatpush1.bf16.msra.mxu0 %v1154
    %1818 = vmatprep.subr.bf16.mxu0 %v1159
    %1819 = vmatpush1.bf16.msra.mxu0 %v1158
    %1820 = vmatprep.subr.bf16.mxu0 %v1163
    %1821 = vmatpush1.bf16.msra.mxu0 %v1162
    %1822 = vmatprep.subr.bf16.mxu0 %v1167
    %1823 = vmatpush1.bf16.msra.mxu0 %v1166
    %1824 = vmatprep.subr.bf16.mxu0 %v1171
    %1825 = vmatpush1.bf16.msra.mxu0 %v1170
    %1826 = vmatprep.subr.bf16.mxu0 %v1175
    %1827 = vmatpush1.bf16.msra.mxu0 %v1174
    %1828 = vmatprep.subr.bf16.mxu0 %v1179
    %1829 = vmatpush1.bf16.msra.mxu0 %v1178
    %1830 = vmatprep.subr.bf16.mxu0 %v1183
    %1831 = vmatpush1.bf16.msra.mxu0 %v1182
    %1832 = vmatprep.subr.bf16.mxu0 %v1187
    %1833 = vmatpush1.bf16.msra.mxu0 %v1186
    %1834 = vmatprep.subr.bf16.mxu0 %v1191
    %1835 = vmatpush1.bf16.msra.mxu0 %v1190
    %1836 = vmatprep.mubr.bf16.mxu0 %v75
    %1837 = vmatmul.mubr.bf16.gmra.mrb[0].mxu0 %v74
    %v1838 = vpop.f32.mrb[0].mxu0
    %v1839 = vadd.f32 %v351, %v1838
    %v1840 = vpop.f32.mrb[0].mxu0
    %v1841 = vadd.f32 %v355, %v1840
    %v1842 = vpop.f32.mrb[0].mxu0
    %v1843 = vpop.f32.mrb[0].mxu0
    %1844 = vdwg.mxu0
    %1845 = vmatprep.subr.bf16.mxu0 %v1195
    %1846 = vmatpush1.bf16.msra.mxu0 %v1194
    %1847 = vmatprep.subr.bf16.mxu0 %v1199
    %1848 = vmatpush1.bf16.msra.mxu0 %v1198
    %1849 = vmatprep.subr.bf16.mxu0 %v1203
    %1850 = vmatpush1.bf16.msra.mxu0 %v1202
    %1851 = vmatprep.subr.bf16.mxu0 %v1207
    %1852 = vmatpush1.bf16.msra.mxu0 %v1206
    %1853 = vmatprep.subr.bf16.mxu0 %v1211
    %1854 = vmatpush1.bf16.msra.mxu0 %v1210
    %1855 = vmatprep.subr.bf16.mxu0 %v1215
    %1856 = vmatpush1.bf16.msra.mxu0 %v1214
    %1857 = vmatprep.subr.bf16.mxu0 %v1219
    %1858 = vmatpush1.bf16.msra.mxu0 %v1218
    %1859 = vmatprep.subr.bf16.mxu0 %v1223
    %1860 = vmatpush1.bf16.msra.mxu0 %v1222
    %1861 = vmatprep.subr.bf16.mxu0 %v1227
    %1862 = vmatpush1.bf16.msra.mxu0 %v1226
    %1863 = vmatprep.subr.bf16.mxu0 %v1231
    %1864 = vmatpush1.bf16.msra.mxu0 %v1230
    %1865 = vmatprep.subr.bf16.mxu0 %v1235
    %1866 = vmatpush1.bf16.msra.mxu0 %v1234
    %1867 = vmatprep.subr.bf16.mxu0 %v1239
    %1868 = vmatpush1.bf16.msra.mxu0 %v1238
    %1869 = vmatprep.subr.bf16.mxu0 %v1243
    %1870 = vmatpush1.bf16.msra.mxu0 %v1242
    %1871 = vmatprep.subr.bf16.mxu0 %v1247
    %1872 = vmatpush1.bf16.msra.mxu0 %v1246
    %1873 = vmatprep.subr.bf16.mxu0 %v1251
    %1874 = vmatpush1.bf16.msra.mxu0 %v1250
    %1875 = vmatprep.subr.bf16.mxu0 %v1255
    %1876 = vmatpush1.bf16.msra.mxu0 %v1254
    %1877 = vmatprep.mubr.bf16.mxu0 %v77
    %1878 = vmatmul.mubr.bf16.gmra.mrb[0].mxu0 %v76
    %v1879 = vpop.f32.mrb[0].mxu0
    %v1880 = vadd.f32 %v1839, %v1879
    %v1881 = vpop.f32.mrb[0].mxu0
    %v1882 = vadd.f32 %v1841, %v1881
    %v1883 = vpop.f32.mrb[0].mxu0
    %v1884 = vpop.f32.mrb[0].mxu0
    %1885 = vdwg.mxu0
    %1886 = vmatprep.subr.bf16.mxu0 %v1259
    %1887 = vmatpush1.bf16.msra.mxu0 %v1258
    %1888 = vmatprep.subr.bf16.mxu0 %v1263
    %1889 = vmatpush1.bf16.msra.mxu0 %v1262
    %1890 = vmatprep.subr.bf16.mxu0 %v1267
    %1891 = vmatpush1.bf16.msra.mxu0 %v1266
    %1892 = vmatprep.subr.bf16.mxu0 %v1271
    %1893 = vmatpush1.bf16.msra.mxu0 %v1270
    %1894 = vmatprep.subr.bf16.mxu0 %v1275
    %1895 = vmatpush1.bf16.msra.mxu0 %v1274
    %1896 = vmatprep.subr.bf16.mxu0 %v1279
    %1897 = vmatpush1.bf16.msra.mxu0 %v1278
    %1898 = vmatprep.subr.bf16.mxu0 %v1283
    %1899 = vmatpush1.bf16.msra.mxu0 %v1282
    %1900 = vmatprep.subr.bf16.mxu0 %v1287
    %1901 = vmatpush1.bf16.msra.mxu0 %v1286
    %1902 = vmatprep.subr.bf16.mxu0 %v1291
    %1903 = vmatpush1.bf16.msra.mxu0 %v1290
    %1904 = vmatprep.subr.bf16.mxu0 %v1295
    %1905 = vmatpush1.bf16.msra.mxu0 %v1294
    %1906 = vmatprep.subr.bf16.mxu0 %v1299
    %1907 = vmatpush1.bf16.msra.mxu0 %v1298
    %1908 = vmatprep.subr.bf16.mxu0 %v1303
    %1909 = vmatpush1.bf16.msra.mxu0 %v1302
    %1910 = vmatprep.subr.bf16.mxu0 %v1307
    %1911 = vmatpush1.bf16.msra.mxu0 %v1306
    %1912 = vmatprep.subr.bf16.mxu0 %v1311
    %1913 = vmatpush1.bf16.msra.mxu0 %v1310
    %1914 = vmatprep.subr.bf16.mxu0 %v1315
    %1915 = vmatpush1.bf16.msra.mxu0 %v1314
    %1916 = vmatprep.subr.bf16.mxu0 %v1319
    %1917 = vmatpush1.bf16.msra.mxu0 %v1318
    %1918 = vmatprep.mubr.bf16.mxu0 %v79
    %1919 = vmatmul.mubr.bf16.gmra.mrb[0].mxu0 %v78
    %v1920 = vpop.f32.mrb[0].mxu0
    %v1921 = vadd.f32 %v1880, %v1920
    %v1922 = vpop.f32.mrb[0].mxu0
    %v1923 = vadd.f32 %v1882, %v1922
    %v1924 = vpop.f32.mrb[0].mxu0
    %v1925 = vpop.f32.mrb[0].mxu0
    %1926 = vdwg.mxu0
    %1927 = vmatprep.subr.bf16.mxu0 %v1323
    %1928 = vmatpush1.bf16.msra.mxu0 %v1322
    %1929 = vmatprep.subr.bf16.mxu0 %v1327
    %1930 = vmatpush1.bf16.msra.mxu0 %v1326
    %1931 = vmatprep.subr.bf16.mxu0 %v1331
    %1932 = vmatpush1.bf16.msra.mxu0 %v1330
    %1933 = vmatprep.subr.bf16.mxu0 %v1335
    %1934 = vmatpush1.bf16.msra.mxu0 %v1334
    %1935 = vmatprep.subr.bf16.mxu0 %v1339
    %1936 = vmatpush1.bf16.msra.mxu0 %v1338
    %1937 = vmatprep.subr.bf16.mxu0 %v1343
    %1938 = vmatpush1.bf16.msra.mxu0 %v1342
    %1939 = vmatprep.subr.bf16.mxu0 %v1347
    %1940 = vmatpush1.bf16.msra.mxu0 %v1346
    %1941 = vmatprep.subr.bf16.mxu0 %v1351
    %1942 = vmatpush1.bf16.msra.mxu0 %v1350
    %1943 = vmatprep.subr.bf16.mxu0 %v1355
    %1944 = vmatpush1.bf16.msra.mxu0 %v1354
    %1945 = vmatprep.subr.bf16.mxu0 %v1359
    %1946 = vmatpush1.bf16.msra.mxu0 %v1358
    %1947 = vmatprep.subr.bf16.mxu0 %v1363
    %1948 = vmatpush1.bf16.msra.mxu0 %v1362
    %1949 = vmatprep.subr.bf16.mxu0 %v1367
    %1950 = vmatpush1.bf16.msra.mxu0 %v1366
    %1951 = vmatprep.subr.bf16.mxu0 %v1371
    %1952 = vmatpush1.bf16.msra.mxu0 %v1370
    %1953 = vmatprep.subr.bf16.mxu0 %v1375
    %1954 = vmatpush1.bf16.msra.mxu0 %v1374
    %1955 = vmatprep.subr.bf16.mxu0 %v1379
    %1956 = vmatpush1.bf16.msra.mxu0 %v1378
    %1957 = vmatprep.subr.bf16.mxu0 %v1383
    %1958 = vmatpush1.bf16.msra.mxu0 %v1382
    %1959 = vmatprep.mubr.bf16.mxu0 %v81
    %1960 = vmatmul.mubr.bf16.gmra.mrb[0].mxu0 %v80
    %v1961 = vpop.f32.mrb[0].mxu0
    %v1962 = vadd.f32 %v1921, %v1961
    %v1963 = vpop.f32.mrb[0].mxu0
    %v1964 = vadd.f32 %v1923, %v1963
    %v1965 = vpop.f32.mrb[0].mxu0
    %v1966 = vpop.f32.mrb[0].mxu0
    %1967 = vdwg.mxu0
    %v1968 = vmax.f32 %v1798, 0.0
    %v1969 = vmax.f32 %v1800, 0.0
    %v1970 = vmax.f32 %v1962, 0.0
    %v1971 = vmax.f32 %v1964, 0.0
    %v1972 = vpack.c.bf16 %v1968, %v1968
    %v1973 = vpack.c.bf16 %v1969, %v1969
    %v1974 = vpack.c.bf16 %v1970, %v1970
    %v1975 = vpack.c.bf16 %v1971, %v1971
    %v1976 = vld [vmem:[%s3] sm:$0xff]
    %v1977 = vld [vmem:[%s3 + $0x8] sm:$0xff]
    %v1978 = vld [vmem:[%s3 + $0x10] sm:$0xff]
    %v1979 = vld [vmem:[%s3 + $0x18] sm:$0xff]
    %v1980 = vld [vmem:[%s3 + $0x20] sm:$0xff]
    %v1981 = vld [vmem:[%s3 + $0x28] sm:$0xff]
    %v1982 = vld [vmem:[%s3 + $0x30] sm:$0xff]
    %v1983 = vld [vmem:[%s3 + $0x38] sm:$0xff]
    %v1984 = vld [vmem:[%s3 + $0x40] sm:$0xff]
    %v1985 = vld [vmem:[%s3 + $0x48] sm:$0xff]
    %v1986 = vld [vmem:[%s3 + $0x50] sm:$0xff]
    %v1987 = vld [vmem:[%s3 + $0x58] sm:$0xff]
    %v1988 = vld [vmem:[%s3 + $0x60] sm:$0xff]
    %v1989 = vld [vmem:[%s3 + $0x68] sm:$0xff]
    %v1990 = vld [vmem:[%s3 + $0x70] sm:$0xff]
    %v1991 = vld [vmem:[%s3 + $0x78] sm:$0xff]
    %v1992 = vld [vmem:[%s3 + $0x80] sm:$0xff]
    %v1993 = vld [vmem:[%s3 + $0x88] sm:$0xff]
    %v1994 = vld [vmem:[%s3 + $0x90] sm:$0xff]
    %v1995 = vld [vmem:[%s3 + $0x98] sm:$0xff]
    %v1996 = vld [vmem:[%s3 + $0xa0] sm:$0xff]
    %v1997 = vld [vmem:[%s3 + $0xa8] sm:$0xff]
    %v1998 = vld [vmem:[%s3 + $0xb0] sm:$0xff]
    %v1999 = vld [vmem:[%s3 + $0xb8] sm:$0xff]
    %v2000 = vld [vmem:[%s3 + $0xc0] sm:$0xff]
    %v2001 = vld [vmem:[%s3 + $0xc8] sm:$0xff]
    %v2002 = vld [vmem:[%s3 + $0xd0] sm:$0xff]
    %v2003 = vld [vmem:[%s3 + $0xd8] sm:$0xff]
    %v2004 = vld [vmem:[%s3 + $0xe0] sm:$0xff]
    %v2005 = vld [vmem:[%s3 + $0xe8] sm:$0xff]
    %v2006 = vld [vmem:[%s3 + $0xf0] sm:$0xff]
    %v2007 = vld [vmem:[%s3 + $0xf8] sm:$0xff]
    %v2008 = vld [vmem:[%s3 + $0x100] sm:$0xff]
    %v2009 = vld [vmem:[%s3 + $0x108] sm:$0xff]
    %v2010 = vld [vmem:[%s3 + $0x110] sm:$0xff]
    %v2011 = vld [vmem:[%s3 + $0x118] sm:$0xff]
    %v2012 = vld [vmem:[%s3 + $0x120] sm:$0xff]
    %v2013 = vld [vmem:[%s3 + $0x128] sm:$0xff]
    %v2014 = vld [vmem:[%s3 + $0x130] sm:$0xff]
    %v2015 = vld [vmem:[%s3 + $0x138] sm:$0xff]
    %v2016 = vld [vmem:[%s3 + $0x140] sm:$0xff]
    %v2017 = vld [vmem:[%s3 + $0x148] sm:$0xff]
    %v2018 = vld [vmem:[%s3 + $0x150] sm:$0xff]
    %v2019 = vld [vmem:[%s3 + $0x158] sm:$0xff]
    %v2020 = vld [vmem:[%s3 + $0x160] sm:$0xff]
    %v2021 = vld [vmem:[%s3 + $0x168] sm:$0xff]
    %v2022 = vld [vmem:[%s3 + $0x170] sm:$0xff]
    %v2023 = vld [vmem:[%s3 + $0x178] sm:$0xff]
    %v2024 = vld [vmem:[%s3 + $0x180] sm:$0xff]
    %v2025 = vld [vmem:[%s3 + $0x188] sm:$0xff]
    %v2026 = vld [vmem:[%s3 + $0x190] sm:$0xff]
    %v2027 = vld [vmem:[%s3 + $0x198] sm:$0xff]
    %v2028 = vld [vmem:[%s3 + $0x1a0] sm:$0xff]
    %v2029 = vld [vmem:[%s3 + $0x1a8] sm:$0xff]
    %v2030 = vld [vmem:[%s3 + $0x1b0] sm:$0xff]
    %v2031 = vld [vmem:[%s3 + $0x1b8] sm:$0xff]
    %v2032 = vld [vmem:[%s3 + $0x1c0] sm:$0xff]
    %v2033 = vld [vmem:[%s3 + $0x1c8] sm:$0xff]
    %v2034 = vld [vmem:[%s3 + $0x1d0] sm:$0xff]
    %v2035 = vld [vmem:[%s3 + $0x1d8] sm:$0xff]
    %v2036 = vld [vmem:[%s3 + $0x1e0] sm:$0xff]
    %v2037 = vld [vmem:[%s3 + $0x1e8] sm:$0xff]
    %v2038 = vld [vmem:[%s3 + $0x1f0] sm:$0xff]
    %v2039 = vld [vmem:[%s3 + $0x1f8] sm:$0xff]
    %v2040 = vld [vmem:[%s4] sm:$0x3]
    %v2042 = vlaneseq
    %v2043 = vshrl.u32 %v2042, 7
    %v2044 = vsub.s32 0, %v2043
    %v2045 = vrot.slane %v2040, %v2044
    %v2046 = vlaneseq
    %v2047 = vshrl.u32 %v2046, 7
    %v2048 = vsub.s32 1, %v2047
    %v2049 = vrot.slane %v2040, %v2048
    %v2116 = vunpack.c.l.b16 %v1976
    %v2117 = vunpack.c.h.b16 %v1976
    %v2118 = vunpack.c.l.b16 %v1977
    %v2119 = vunpack.c.h.b16 %v1977
    %v2120 = vunpack.c.l.b16 %v1978
    %v2121 = vunpack.c.h.b16 %v1978
    %v2122 = vunpack.c.l.b16 %v1979
    %v2123 = vunpack.c.h.b16 %v1979
    %v2124 = vunpack.c.l.b16 %v1980
    %v2125 = vunpack.c.h.b16 %v1980
    %v2126 = vunpack.c.l.b16 %v1981
    %v2127 = vunpack.c.h.b16 %v1981
    %v2128 = vunpack.c.l.b16 %v1982
    %v2129 = vunpack.c.h.b16 %v1982
    %v2130 = vunpack.c.l.b16 %v1983
    %v2131 = vunpack.c.h.b16 %v1983
    %v2132 = vunpack.c.l.b16 %v1984
    %v2133 = vunpack.c.h.b16 %v1984
    %v2134 = vunpack.c.l.b16 %v1985
    %v2135 = vunpack.c.h.b16 %v1985
    %v2136 = vunpack.c.l.b16 %v1986
    %v2137 = vunpack.c.h.b16 %v1986
    %v2138 = vunpack.c.l.b16 %v1987
    %v2139 = vunpack.c.h.b16 %v1987
    %v2140 = vunpack.c.l.b16 %v1988
    %v2141 = vunpack.c.h.b16 %v1988
    %v2142 = vunpack.c.l.b16 %v1989
    %v2143 = vunpack.c.h.b16 %v1989
    %v2144 = vunpack.c.l.b16 %v1990
    %v2145 = vunpack.c.h.b16 %v1990
    %v2146 = vunpack.c.l.b16 %v1991
    %v2147 = vunpack.c.h.b16 %v1991
    %v2148 = vunpack.c.l.b16 %v1992
    %v2149 = vunpack.c.h.b16 %v1992
    %v2150 = vunpack.c.l.b16 %v1993
    %v2151 = vunpack.c.h.b16 %v1993
    %v2152 = vunpack.c.l.b16 %v1994
    %v2153 = vunpack.c.h.b16 %v1994
    %v2154 = vunpack.c.l.b16 %v1995
    %v2155 = vunpack.c.h.b16 %v1995
    %v2156 = vunpack.c.l.b16 %v1996
    %v2157 = vunpack.c.h.b16 %v1996
    %v2158 = vunpack.c.l.b16 %v1997
    %v2159 = vunpack.c.h.b16 %v1997
    %v2160 = vunpack.c.l.b16 %v1998
    %v2161 = vunpack.c.h.b16 %v1998
    %v2162 = vunpack.c.l.b16 %v1999
    %v2163 = vunpack.c.h.b16 %v1999
    %v2164 = vunpack.c.l.b16 %v2000
    %v2165 = vunpack.c.h.b16 %v2000
    %v2166 = vunpack.c.l.b16 %v2001
    %v2167 = vunpack.c.h.b16 %v2001
    %v2168 = vunpack.c.l.b16 %v2002
    %v2169 = vunpack.c.h.b16 %v2002
    %v2170 = vunpack.c.l.b16 %v2003
    %v2171 = vunpack.c.h.b16 %v2003
    %v2172 = vunpack.c.l.b16 %v2004
    %v2173 = vunpack.c.h.b16 %v2004
    %v2174 = vunpack.c.l.b16 %v2005
    %v2175 = vunpack.c.h.b16 %v2005
    %v2176 = vunpack.c.l.b16 %v2006
    %v2177 = vunpack.c.h.b16 %v2006
    %v2178 = vunpack.c.l.b16 %v2007
    %v2179 = vunpack.c.h.b16 %v2007
    %v2180 = vunpack.c.l.b16 %v2008
    %v2181 = vunpack.c.h.b16 %v2008
    %v2182 = vunpack.c.l.b16 %v2009
    %v2183 = vunpack.c.h.b16 %v2009
    %v2184 = vunpack.c.l.b16 %v2010
    %v2185 = vunpack.c.h.b16 %v2010
    %v2186 = vunpack.c.l.b16 %v2011
    %v2187 = vunpack.c.h.b16 %v2011
    %v2188 = vunpack.c.l.b16 %v2012
    %v2189 = vunpack.c.h.b16 %v2012
    %v2190 = vunpack.c.l.b16 %v2013
    %v2191 = vunpack.c.h.b16 %v2013
    %v2192 = vunpack.c.l.b16 %v2014
    %v2193 = vunpack.c.h.b16 %v2014
    %v2194 = vunpack.c.l.b16 %v2015
    %v2195 = vunpack.c.h.b16 %v2015
    %v2196 = vunpack.c.l.b16 %v2016
    %v2197 = vunpack.c.h.b16 %v2016
    %v2198 = vunpack.c.l.b16 %v2017
    %v2199 = vunpack.c.h.b16 %v2017
    %v2200 = vunpack.c.l.b16 %v2018
    %v2201 = vunpack.c.h.b16 %v2018
    %v2202 = vunpack.c.l.b16 %v2019
    %v2203 = vunpack.c.h.b16 %v2019
    %v2204 = vunpack.c.l.b16 %v2020
    %v2205 = vunpack.c.h.b16 %v2020
    %v2206 = vunpack.c.l.b16 %v2021
    %v2207 = vunpack.c.h.b16 %v2021
    %v2208 = vunpack.c.l.b16 %v2022
    %v2209 = vunpack.c.h.b16 %v2022
    %v2210 = vunpack.c.l.b16 %v2023
    %v2211 = vunpack.c.h.b16 %v2023
    %v2212 = vunpack.c.l.b16 %v2024
    %v2213 = vunpack.c.h.b16 %v2024
    %v2214 = vunpack.c.l.b16 %v2025
    %v2215 = vunpack.c.h.b16 %v2025
    %v2216 = vunpack.c.l.b16 %v2026
    %v2217 = vunpack.c.h.b16 %v2026
    %v2218 = vunpack.c.l.b16 %v2027
    %v2219 = vunpack.c.h.b16 %v2027
    %v2220 = vunpack.c.l.b16 %v2028
    %v2221 = vunpack.c.h.b16 %v2028
    %v2222 = vunpack.c.l.b16 %v2029
    %v2223 = vunpack.c.h.b16 %v2029
    %v2224 = vunpack.c.l.b16 %v2030
    %v2225 = vunpack.c.h.b16 %v2030
    %v2226 = vunpack.c.l.b16 %v2031
    %v2227 = vunpack.c.h.b16 %v2031
    %v2228 = vunpack.c.l.b16 %v2032
    %v2229 = vunpack.c.h.b16 %v2032
    %v2230 = vunpack.c.l.b16 %v2033
    %v2231 = vunpack.c.h.b16 %v2033
    %v2232 = vunpack.c.l.b16 %v2034
    %v2233 = vunpack.c.h.b16 %v2034
    %v2234 = vunpack.c.l.b16 %v2035
    %v2235 = vunpack.c.h.b16 %v2035
    %v2236 = vunpack.c.l.b16 %v2036
    %v2237 = vunpack.c.h.b16 %v2036
    %v2238 = vunpack.c.l.b16 %v2037
    %v2239 = vunpack.c.h.b16 %v2037
    %v2240 = vunpack.c.l.b16 %v2038
    %v2241 = vunpack.c.h.b16 %v2038
    %v2242 = vunpack.c.l.b16 %v2039
    %v2243 = vunpack.c.h.b16 %v2039
    %v2244 = vpack.c.b16 %v2118, %v2116
    %v2245 = vpack.c.b16 %v2119, %v2117
    %v2246 = vpack.c.b16 %v2122, %v2120
    %v2247 = vpack.c.b16 %v2123, %v2121
    %v2248 = vpack.c.b16 %v2126, %v2124
    %v2249 = vpack.c.b16 %v2127, %v2125
    %v2250 = vpack.c.b16 %v2130, %v2128
    %v2251 = vpack.c.b16 %v2131, %v2129
    %v2252 = vpack.c.b16 %v2134, %v2132
    %v2253 = vpack.c.b16 %v2135, %v2133
    %v2254 = vpack.c.b16 %v2138, %v2136
    %v2255 = vpack.c.b16 %v2139, %v2137
    %v2256 = vpack.c.b16 %v2142, %v2140
    %v2257 = vpack.c.b16 %v2143, %v2141
    %v2258 = vpack.c.b16 %v2146, %v2144
    %v2259 = vpack.c.b16 %v2147, %v2145
    %v2260 = vpack.c.b16 %v2150, %v2148
    %v2261 = vpack.c.b16 %v2151, %v2149
    %v2262 = vpack.c.b16 %v2154, %v2152
    %v2263 = vpack.c.b16 %v2155, %v2153
    %v2264 = vpack.c.b16 %v2158, %v2156
    %v2265 = vpack.c.b16 %v2159, %v2157
    %v2266 = vpack.c.b16 %v2162, %v2160
    %v2267 = vpack.c.b16 %v2163, %v2161
    %v2268 = vpack.c.b16 %v2166, %v2164
    %v2269 = vpack.c.b16 %v2167, %v2165
    %v2270 = vpack.c.b16 %v2170, %v2168
    %v2271 = vpack.c.b16 %v2171, %v2169
    %v2272 = vpack.c.b16 %v2174, %v2172
    %v2273 = vpack.c.b16 %v2175, %v2173
    %v2274 = vpack.c.b16 %v2178, %v2176
    %v2275 = vpack.c.b16 %v2179, %v2177
    %v2276 = vpack.c.b16 %v2182, %v2180
    %v2277 = vpack.c.b16 %v2183, %v2181
    %v2278 = vpack.c.b16 %v2186, %v2184
    %v2279 = vpack.c.b16 %v2187, %v2185
    %v2280 = vpack.c.b16 %v2190, %v2188
    %v2281 = vpack.c.b16 %v2191, %v2189
    %v2282 = vpack.c.b16 %v2194, %v2192
    %v2283 = vpack.c.b16 %v2195, %v2193
    %v2284 = vpack.c.b16 %v2198, %v2196
    %v2285 = vpack.c.b16 %v2199, %v2197
    %v2286 = vpack.c.b16 %v2202, %v2200
    %v2287 = vpack.c.b16 %v2203, %v2201
    %v2288 = vpack.c.b16 %v2206, %v2204
    %v2289 = vpack.c.b16 %v2207, %v2205
    %v2290 = vpack.c.b16 %v2210, %v2208
    %v2291 = vpack.c.b16 %v2211, %v2209
    %v2292 = vpack.c.b16 %v2214, %v2212
    %v2293 = vpack.c.b16 %v2215, %v2213
    %v2294 = vpack.c.b16 %v2218, %v2216
    %v2295 = vpack.c.b16 %v2219, %v2217
    %v2296 = vpack.c.b16 %v2222, %v2220
    %v2297 = vpack.c.b16 %v2223, %v2221
    %v2298 = vpack.c.b16 %v2226, %v2224
    %v2299 = vpack.c.b16 %v2227, %v2225
    %v2300 = vpack.c.b16 %v2230, %v2228
    %v2301 = vpack.c.b16 %v2231, %v2229
    %v2302 = vpack.c.b16 %v2234, %v2232
    %v2303 = vpack.c.b16 %v2235, %v2233
    %v2304 = vpack.c.b16 %v2238, %v2236
    %v2305 = vpack.c.b16 %v2239, %v2237
    %v2306 = vpack.c.b16 %v2242, %v2240
    %v2307 = vpack.c.b16 %v2243, %v2241
    %2372 = vmatprep.subr.bf16.mxu0 %v2245
    %2373 = vmatpush1.bf16.msra.mxu0 %v2244
    %2374 = vmatprep.subr.bf16.mxu0 %v2247
    %2375 = vmatpush1.bf16.msra.mxu0 %v2246
    %2376 = vmatprep.subr.bf16.mxu0 %v2249
    %2377 = vmatpush1.bf16.msra.mxu0 %v2248
    %2378 = vmatprep.subr.bf16.mxu0 %v2251
    %2379 = vmatpush1.bf16.msra.mxu0 %v2250
    %2380 = vmatprep.subr.bf16.mxu0 %v2253
    %2381 = vmatpush1.bf16.msra.mxu0 %v2252
    %2382 = vmatprep.subr.bf16.mxu0 %v2255
    %2383 = vmatpush1.bf16.msra.mxu0 %v2254
    %2384 = vmatprep.subr.bf16.mxu0 %v2257
    %2385 = vmatpush1.bf16.msra.mxu0 %v2256
    %2386 = vmatprep.subr.bf16.mxu0 %v2259
    %2387 = vmatpush1.bf16.msra.mxu0 %v2258
    %2388 = vmatprep.subr.bf16.mxu0 %v2261
    %2389 = vmatpush1.bf16.msra.mxu0 %v2260
    %2390 = vmatprep.subr.bf16.mxu0 %v2263
    %2391 = vmatpush1.bf16.msra.mxu0 %v2262
    %2392 = vmatprep.subr.bf16.mxu0 %v2265
    %2393 = vmatpush1.bf16.msra.mxu0 %v2264
    %2394 = vmatprep.subr.bf16.mxu0 %v2267
    %2395 = vmatpush1.bf16.msra.mxu0 %v2266
    %2396 = vmatprep.subr.bf16.mxu0 %v2269
    %2397 = vmatpush1.bf16.msra.mxu0 %v2268
    %2398 = vmatprep.subr.bf16.mxu0 %v2271
    %2399 = vmatpush1.bf16.msra.mxu0 %v2270
    %2400 = vmatprep.subr.bf16.mxu0 %v2273
    %2401 = vmatpush1.bf16.msra.mxu0 %v2272
    %2402 = vmatprep.subr.bf16.mxu0 %v2275
    %2403 = vmatpush1.bf16.msra.mxu0 %v2274
    %2404 = vmatprep.mubr.bf16.mxu0 %v1973
    %2405 = vmatmul.mubr.bf16.gmra.mrb[0].mxu0 %v1972
    %v2406 = vpop.f32.mrb[0].mxu0
    %v2407 = vadd.f32 %v2045, %v2406
    %v2408 = vpop.f32.mrb[0].mxu0
    %v2409 = vadd.f32 %v2049, %v2408
    %v2410 = vpop.f32.mrb[0].mxu0
    %v2411 = vpop.f32.mrb[0].mxu0
    %2412 = vdwg.mxu0
    %2413 = vmatprep.subr.bf16.mxu0 %v2277
    %2414 = vmatpush1.bf16.msra.mxu0 %v2276
    %2415 = vmatprep.subr.bf16.mxu0 %v2279
    %2416 = vmatpush1.bf16.msra.mxu0 %v2278
    %2417 = vmatprep.subr.bf16.mxu0 %v2281
    %2418 = vmatpush1.bf16.msra.mxu0 %v2280
    %2419 = vmatprep.subr.bf16.mxu0 %v2283
    %2420 = vmatpush1.bf16.msra.mxu0 %v2282
    %2421 = vmatprep.subr.bf16.mxu0 %v2285
    %2422 = vmatpush1.bf16.msra.mxu0 %v2284
    %2423 = vmatprep.subr.bf16.mxu0 %v2287
    %2424 = vmatpush1.bf16.msra.mxu0 %v2286
    %2425 = vmatprep.subr.bf16.mxu0 %v2289
    %2426 = vmatpush1.bf16.msra.mxu0 %v2288
    %2427 = vmatprep.subr.bf16.mxu0 %v2291
    %2428 = vmatpush1.bf16.msra.mxu0 %v2290
    %2429 = vmatprep.subr.bf16.mxu0 %v2293
    %2430 = vmatpush1.bf16.msra.mxu0 %v2292
    %2431 = vmatprep.subr.bf16.mxu0 %v2295
    %2432 = vmatpush1.bf16.msra.mxu0 %v2294
    %2433 = vmatprep.subr.bf16.mxu0 %v2297
    %2434 = vmatpush1.bf16.msra.mxu0 %v2296
    %2435 = vmatprep.subr.bf16.mxu0 %v2299
    %2436 = vmatpush1.bf16.msra.mxu0 %v2298
    %2437 = vmatprep.subr.bf16.mxu0 %v2301
    %2438 = vmatpush1.bf16.msra.mxu0 %v2300
    %2439 = vmatprep.subr.bf16.mxu0 %v2303
    %2440 = vmatpush1.bf16.msra.mxu0 %v2302
    %2441 = vmatprep.subr.bf16.mxu0 %v2305
    %2442 = vmatpush1.bf16.msra.mxu0 %v2304
    %2443 = vmatprep.subr.bf16.mxu0 %v2307
    %2444 = vmatpush1.bf16.msra.mxu0 %v2306
    %2445 = vmatprep.mubr.bf16.mxu0 %v1975
    %2446 = vmatmul.mubr.bf16.gmra.mrb[0].mxu0 %v1974
    %v2447 = vpop.f32.mrb[0].mxu0
    %v2448 = vadd.f32 %v2407, %v2447
    %v2449 = vpop.f32.mrb[0].mxu0
    %v2450 = vadd.f32 %v2409, %v2449
    %v2451 = vpop.f32.mrb[0].mxu0
    %v2452 = vpop.f32.mrb[0].mxu0
    %2453 = vdwg.mxu0
    %v2454 = vmax.f32 %v2448, 0.0
    %v2455 = vmax.f32 %v2450, 0.0
    %v2456 = vpack.c.bf16 %v2454, %v2454
    %v2457 = vpack.c.bf16 %v2455, %v2455
    %v2458 = vld [vmem:[%s5] sm:$0xf]
    %v2459 = vld [vmem:[%s5 + $0x4] sm:$0xf]
    %v2460 = vld [vmem:[%s5 + $0x8] sm:$0xf]
    %v2461 = vld [vmem:[%s5 + $0xc] sm:$0xf]
    %v2462 = vld [vmem:[%s5 + $0x10] sm:$0xf]
    %v2463 = vld [vmem:[%s5 + $0x14] sm:$0xf]
    %v2464 = vld [vmem:[%s5 + $0x18] sm:$0xf]
    %v2465 = vld [vmem:[%s5 + $0x1c] sm:$0xf]
    %v2466 = vld [vmem:[%s5 + $0x20] sm:$0xf]
    %v2467 = vld [vmem:[%s5 + $0x24] sm:$0xf]
    %v2468 = vld [vmem:[%s5 + $0x28] sm:$0xf]
    %v2469 = vld [vmem:[%s5 + $0x2c] sm:$0xf]
    %v2470 = vld [vmem:[%s5 + $0x30] sm:$0xf]
    %v2471 = vld [vmem:[%s5 + $0x34] sm:$0xf]
    %v2472 = vld [vmem:[%s5 + $0x38] sm:$0xf]
    %v2473 = vld [vmem:[%s5 + $0x3c] sm:$0xf]
    %v2474 = vld [vmem:[%s5 + $0x40] sm:$0xf]
    %v2475 = vld [vmem:[%s5 + $0x44] sm:$0xf]
    %v2476 = vld [vmem:[%s5 + $0x48] sm:$0xf]
    %v2477 = vld [vmem:[%s5 + $0x4c] sm:$0xf]
    %v2478 = vld [vmem:[%s5 + $0x50] sm:$0xf]
    %v2479 = vld [vmem:[%s5 + $0x54] sm:$0xf]
    %v2480 = vld [vmem:[%s5 + $0x58] sm:$0xf]
    %v2481 = vld [vmem:[%s5 + $0x5c] sm:$0xf]
    %v2482 = vld [vmem:[%s5 + $0x60] sm:$0xf]
    %v2483 = vld [vmem:[%s5 + $0x64] sm:$0xf]
    %v2484 = vld [vmem:[%s5 + $0x68] sm:$0xf]
    %v2485 = vld [vmem:[%s5 + $0x6c] sm:$0xf]
    %v2486 = vld [vmem:[%s5 + $0x70] sm:$0xf]
    %v2487 = vld [vmem:[%s5 + $0x74] sm:$0xf]
    %v2488 = vld [vmem:[%s5 + $0x78] sm:$0xf]
    %v2489 = vld [vmem:[%s5 + $0x7c] sm:$0xf]
    %v2490 = vld [vmem:[%s6] sm:$0x1]
    %v2492 = vlaneseq
    %v2493 = vshrl.u32 %v2492, 7
    %v2494 = vsub.s32 0, %v2493
    %v2495 = vrot.slane %v2490, %v2494
    %v2529 = vunpack.c.l.b16 %v2458
    %v2530 = vunpack.c.l.b16 %v2459
    %v2531 = vunpack.c.l.b16 %v2460
    %v2532 = vunpack.c.l.b16 %v2461
    %v2533 = vunpack.c.l.b16 %v2462
    %v2534 = vunpack.c.l.b16 %v2463
    %v2535 = vunpack.c.l.b16 %v2464
    %v2536 = vunpack.c.l.b16 %v2465
    %v2537 = vunpack.c.l.b16 %v2466
    %v2538 = vunpack.c.l.b16 %v2467
    %v2539 = vunpack.c.l.b16 %v2468
    %v2540 = vunpack.c.l.b16 %v2469
    %v2541 = vunpack.c.l.b16 %v2470
    %v2542 = vunpack.c.l.b16 %v2471
    %v2543 = vunpack.c.l.b16 %v2472
    %v2544 = vunpack.c.l.b16 %v2473
    %v2545 = vunpack.c.l.b16 %v2474
    %v2546 = vunpack.c.l.b16 %v2475
    %v2547 = vunpack.c.l.b16 %v2476
    %v2548 = vunpack.c.l.b16 %v2477
    %v2549 = vunpack.c.l.b16 %v2478
    %v2550 = vunpack.c.l.b16 %v2479
    %v2551 = vunpack.c.l.b16 %v2480
    %v2552 = vunpack.c.l.b16 %v2481
    %v2553 = vunpack.c.l.b16 %v2482
    %v2554 = vunpack.c.l.b16 %v2483
    %v2555 = vunpack.c.l.b16 %v2484
    %v2556 = vunpack.c.l.b16 %v2485
    %v2557 = vunpack.c.l.b16 %v2486
    %v2558 = vunpack.c.l.b16 %v2487
    %v2559 = vunpack.c.l.b16 %v2488
    %v2560 = vunpack.c.l.b16 %v2489
    %v2561 = vpack.c.b16 %v2530, %v2529
    %v2562 = vpack.c.b16 %v2532, %v2531
    %v2563 = vpack.c.b16 %v2534, %v2533
    %v2564 = vpack.c.b16 %v2536, %v2535
    %v2565 = vpack.c.b16 %v2538, %v2537
    %v2566 = vpack.c.b16 %v2540, %v2539
    %v2567 = vpack.c.b16 %v2542, %v2541
    %v2568 = vpack.c.b16 %v2544, %v2543
    %v2569 = vpack.c.b16 %v2546, %v2545
    %v2570 = vpack.c.b16 %v2548, %v2547
    %v2571 = vpack.c.b16 %v2550, %v2549
    %v2572 = vpack.c.b16 %v2552, %v2551
    %v2573 = vpack.c.b16 %v2554, %v2553
    %v2574 = vpack.c.b16 %v2556, %v2555
    %v2575 = vpack.c.b16 %v2558, %v2557
    %v2576 = vpack.c.b16 %v2560, %v2559
    %2593 = vmatprep.subr.bf16.mxu0 0
    %2594 = vmatpush1.bf16.msra.mxu0 %v2561
    %2595 = vmatprep.subr.bf16.mxu0 0
    %2596 = vmatpush1.bf16.msra.mxu0 %v2562
    %2597 = vmatprep.subr.bf16.mxu0 0
    %2598 = vmatpush1.bf16.msra.mxu0 %v2563
    %2599 = vmatprep.subr.bf16.mxu0 0
    %2600 = vmatpush1.bf16.msra.mxu0 %v2564
    %2601 = vmatprep.subr.bf16.mxu0 0
    %2602 = vmatpush1.bf16.msra.mxu0 %v2565
    %2603 = vmatprep.subr.bf16.mxu0 0
    %2604 = vmatpush1.bf16.msra.mxu0 %v2566
    %2605 = vmatprep.subr.bf16.mxu0 0
    %2606 = vmatpush1.bf16.msra.mxu0 %v2567
    %2607 = vmatprep.subr.bf16.mxu0 0
    %2608 = vmatpush1.bf16.msra.mxu0 %v2568
    %2609 = vmatprep.subr.bf16.mxu0 0
    %2610 = vmatpush1.bf16.msra.mxu0 %v2569
    %2611 = vmatprep.subr.bf16.mxu0 0
    %2612 = vmatpush1.bf16.msra.mxu0 %v2570
    %2613 = vmatprep.subr.bf16.mxu0 0
    %2614 = vmatpush1.bf16.msra.mxu0 %v2571
    %2615 = vmatprep.subr.bf16.mxu0 0
    %2616 = vmatpush1.bf16.msra.mxu0 %v2572
    %2617 = vmatprep.subr.bf16.mxu0 0
    %2618 = vmatpush1.bf16.msra.mxu0 %v2573
    %2619 = vmatprep.subr.bf16.mxu0 0
    %2620 = vmatpush1.bf16.msra.mxu0 %v2574
    %2621 = vmatprep.subr.bf16.mxu0 0
    %2622 = vmatpush1.bf16.msra.mxu0 %v2575
    %2623 = vmatprep.subr.bf16.mxu0 0
    %2624 = vmatpush1.bf16.msra.mxu0 %v2576
    %2625 = vmatprep.mubr.bf16.mxu0 %v2457
    %2626 = vmatmul.mubr.bf16.gmra.mrb[0].mxu0 %v2456
    %v2627 = vpop.f32.mrb[0].mxu0
    %v2628 = vadd.f32 %v2495, %v2627
    %v2629 = vpop.f32.mrb[0].mxu0
    %v2630 = vpop.f32.mrb[0].mxu0
    %v2631 = vpop.f32.mrb[0].mxu0
    %2632 = vdwg.mxu0
    %vm2633 = vcmask 9216
    %v2634 = vsel %vm2633, %v2628, -inf
    %2635 = vmax.xlane.f32.xlu0 %v2634
    %v2636 = vpop.xlane.xlu0 %2635
    %v2637 = vsub.f32 %v2628, %v2636
    %v2638 = vmul.f32 %v2637, 1.442695
    %v2639 = vpow.pop %v2638
    %v2640 = vsel %vm2633, %v2639, 0.0
    %2641 = vadd.xlane.f32.xlu0 %v2640
    %v2642 = vpop.xlane.xlu0 %2641
    %v2643 = vlog2.pop %v2642
    %v2644 = vmul.f32 %v2643, 0.6931472
    %v2645 = vsub.f32 %v2637, %v2644
    %2646 = vst.msk [vmem:[#allocation2] sm:$0x3] %vm2633, %v2645
    // Predicated region
    $region30: #{_forward_jit.7} parent=1 // pred_check
      _
    $region31: #{_forward_jit.7} parent=1 // pred_check_branch
      %2648 = sbr.rel (0) target = $region33
    $region32: #{_forward_jit.7} parent=1 // pred_region
      %s2650 = ssub.s32 32, 32
      %2651 = vsyncadd [#allocation3], %s2650
      %s2653 = sshll.u32 [#allocation2], 4
      %s2654 = int_to_ptr.vmem [resolvable:$true] %s2653
      %2656 = dma.vmem_to_hbm [thread:$0]  %s2654, 32, %s7, [#allocation3]
    $region33: #{_forward_jit.7} parent=1 // pred_fallthru
      _
    // Predicated region
    $region34: #{_forward_jit.7} parent=1 // pred_check
      _
    $region35: #{_forward_jit.7} parent=1 // pred_check_branch
      %2658 = sbr.rel (0) target = $region37
    $region36: #{_forward_jit.7} parent=1 // pred_region
      %2659 = dma.done [#allocation3], 32
    $region37: #{_forward_jit.7} parent=1 // pred_fallthru
      _
    %2660 = vsyncpa [#allocation3], 1

</llo_original>
